<compile_context>
chip_gen: v7x
topology: tpu7x:2x2x1
jax: 0.10.0
libtpu: 0.0.40
codegen_flags: <defaults>
</compile_context>

<pallas_src>
import functools

import jax
import jax.numpy as jnp
from jax.experimental import pallas as pl
from jax.experimental.pallas import tpu as pltpu

C_FPN = 256            # channels per FPN level
HIDDEN = 4 * C_FPN     # 1024, width of the embedding Linear
BN_EPS = 1e-5
C_TILE = 128           # channel block (256 -> 2 blocks; parallel axis for megacore)
MAX_S_TILE = 2048      # upper bound on spatial chunk (multiple of 128 lanes)
S_TILE_BUDGET = 4 * 1024 * 1024   # ~4 MiB per in-flight input tile (x2 double buffer)
VMEM_LIMIT = 32 * 1024 * 1024


# ----------------------------------------------------------------------------
# Kernel 1: global average pool (AdaptiveAvgPool2d((1,1))) over (B, C, S=H*W)
# ----------------------------------------------------------------------------
def _pool_kernel(f_ref, out_ref, *, inv_s, s_tile, s_total, need_mask):
    s = pl.program_id(1)

    @pl.when(s == 0)
    def _():
        out_ref[...] = jnp.zeros_like(out_ref)

    vals = f_ref[...].astype(jnp.float32)
    if need_mask:
        # Ragged final chunk: zero out lanes past the true spatial extent.
        lane = jax.lax.broadcasted_iota(jnp.int32, vals.shape, dimension=2)
        vals = jnp.where(s * s_tile + lane < s_total, vals, 0.0)

    # Partial sum of this spatial chunk (lane-axis reduce -> (B, C_TILE)).
    out_ref[...] += jnp.sum(vals, axis=-1)

    @pl.when(s == pl.num_programs(1) - 1)
    def _():
        out_ref[...] *= inv_s


def _pick_s_tile(B, S):
    """Spatial chunk: lane-aligned, sized to the VMEM budget; mask iff ragged."""
    # Largest 128-multiple chunk that keeps B*C_TILE*s_tile*4B under budget.
    t = S_TILE_BUDGET // (B * C_TILE * 4)
    t = max(128, min(MAX_S_TILE, (t // 128) * 128))
    if S <= t:
        return S, False                      # one block == full spatial dim (always legal)
    return t, (S % t != 0)                   # chunked; mask only if ragged


def _global_avg_pool(f):
    """f: (B, 256, S) float -> (B, 256) f32 mean over the spatial axis."""
    B, C, S = f.shape
    s_tile, need_mask = _pick_s_tile(B, S)
    grid = (C // C_TILE, pl.cdiv(S, s_tile))
    kernel = functools.partial(
        _pool_kernel, inv_s=1.0 / S, s_tile=s_tile, s_total=S, need_mask=need_mask)
    return pl.pallas_call(
        kernel,
        out_shape=jax.ShapeDtypeStruct((B, C), jnp.float32),
        grid=grid,
        in_specs=[pl.BlockSpec((B, C_TILE, s_tile), lambda c, s: (0, c, s))],
        out_specs=pl.BlockSpec((B, C_TILE), lambda c, s: (0, c)),
        compiler_params=pltpu.CompilerParams(
            dimension_semantics=("parallel", "arbitrary"),
            vmem_limit_bytes=VMEM_LIMIT),
    )(f)


# ----------------------------------------------------------------------------
# Kernel 2: Linear(1024, 1024) + ReLU + BatchNorm1d (training-mode statistics)
# ----------------------------------------------------------------------------
def _head_kernel(x_ref, w_ref, bgb_ref, out_ref):
    # bf16 operands on the MXU, f32 accumulation; weight ref fed straight in.
    h = jnp.dot(x_ref[...].astype(jnp.bfloat16), w_ref[...],
                preferred_element_type=jnp.float32)
    h = jnp.maximum(h + bgb_ref[0:1, :], 0.0)                 # + bias, ReLU

    # BatchNorm1d (training mode): biased batch statistics over the batch axis.
    mu = jnp.mean(h, axis=0, keepdims=True)
    d = h - mu
    var = jnp.mean(d * d, axis=0, keepdims=True)
    out_ref[...] = (d * jax.lax.rsqrt(var + BN_EPS)
                    * bgb_ref[1:2, :] + bgb_ref[2:3, :]).astype(out_ref.dtype)


def _embed_head(x, w_bf16, bgb):
    B = x.shape[0]
    vmem = functools.partial(pl.BlockSpec, memory_space=pltpu.MemorySpace.VMEM)
    return pl.pallas_call(
        _head_kernel,
        out_shape=jax.ShapeDtypeStruct((B, HIDDEN), jnp.float32),
        in_specs=[vmem(), vmem(), vmem()],
        out_specs=vmem(),
        compiler_params=pltpu.CompilerParams(vmem_limit_bytes=VMEM_LIMIT),
    )(x, w_bf16, bgb)


# ----------------------------------------------------------------------------
# Full embedder forward (post-backbone)
# ----------------------------------------------------------------------------
def faster_rcnn_embedder(fpn_feats, w_bf16, bgb):
    """fpn_feats: list of 4 NCHW arrays (B, 256, Hi, Wi). Returns (B, 1024) f32."""
    pooled = []
    for f in fpn_feats:
        b_, c_, h_, wd_ = f.shape
        pooled.append(_global_avg_pool(f.reshape(b_, c_, h_ * wd_)))  # free reshape
    x = jnp.concatenate(pooled, axis=1)        # (B, 1024) f32 — tiny (8 KiB at B=2)
    return _embed_head(x, w_bf16, bgb)


# ----------------------------------------------------------------------------
# Deterministic stand-ins (backbone + params)
# ----------------------------------------------------------------------------
def stub_backbone(x):
    """Deterministic stand-in for the ResNet50-FPN-v2 backbone.

    Produces FPN levels '0'..'3' with the correct shapes:
    (B,256,H/4,W/4), (B,256,H/8,W/8), (B,256,H/16,W/16), (B,256,H/32,W/32).
    """
    B, C, H, W = x.shape
    feats = []
    for i, s in enumerate((4, 8, 16, 32)):
        h, w = H // s, W // s
        pooled = x.reshape(B, C, h, s, w, s).mean(axis=(3, 5))           # (B, 3, h, w)
        proj = jax.random.normal(jax.random.PRNGKey(100 + i), (C, C_FPN),
                                 dtype=jnp.float32) * 0.1                # fixed projection
        feats.append(jnp.einsum('bchw,cd->bdhw', pooled, proj))          # (B, 256, h, w)
    return feats


def make_params():
    """Deterministic parameter init matching the module's __init__."""
    key = jax.random.PRNGKey(0)
    k_w, _ = jax.random.split(key)
    # kaiming_normal_ on Linear(1024, 1024): std = sqrt(2 / fan_in)
    w_out_in = jax.random.normal(k_w, (HIDDEN, HIDDEN), jnp.float32) * jnp.sqrt(2.0 / HIDDEN)
    w_bf16 = w_out_in.T.astype(jnp.bfloat16)          # stored (in, out), bf16 for the MXU
    b = jnp.zeros((HIDDEN,), jnp.float32)             # constant_(bias, 0)
    gamma = jnp.ones((HIDDEN,), jnp.float32)          # BatchNorm1d default weight
    beta = jnp.zeros((HIDDEN,), jnp.float32)          # BatchNorm1d default bias
    bgb = jnp.stack([b, gamma, beta], axis=0)         # packed (3, 1024): one DMA
    return w_bf16, bgb


if __name__ == "__main__":
    key = jax.random.PRNGKey(0)
    # Small image batch (NCHW, like the PyTorch module's input).
    x = jax.random.normal(key, (2, 3, 64, 64), dtype=jnp.float32)

    fpn_feats = stub_backbone(x)            # 4 levels: (2,256,16,16) ... (2,256,2,2)
    w_bf16, bgb = make_params()

    fwd = jax.jit(faster_rcnn_embedder)
    out = jax.block_until_ready(fwd(fpn_feats, w_bf16, bgb))

    assert out.shape == (2, HIDDEN) and out.dtype == jnp.float32
    assert bool(jnp.all(jnp.isfinite(out)))
    print("KERNEL_OK")
</pallas_src>

<mosaic_0001>
module attributes {stable_mosaic.version = 11 : i64} {
  func.func @_pool_kernel(%arg0: i32, %arg1: i32, %arg2: memref<2x128x256xf32, #tpu.memory_space<vmem>>, %arg3: memref<2x128xf32, #tpu.memory_space<vmem>>) attributes {dimension_semantics = [#tpu.dimension_semantics<parallel>, #tpu.dimension_semantics<arbitrary>], iteration_bounds = array<i64: 2, 1>, scalar_prefetch = 0 : i64, scratch_operands = 0 : i64, tpu.core_type = #tpu.core_type<tc>, window_params = [{transform_indices = @transform_0, window_bounds = array<i64: 2, 128, 256>}, {transform_indices = @transform_1, window_bounds = array<i64: 2, 128>}]} {
    %c0_i32 = arith.constant 0 : i32
    %0 = arith.cmpi eq, %arg1, %c0_i32 : i32
    %1 = arith.extui %0 : i1 to i32
    %c0_i32_0 = arith.constant 0 : i32
    %2 = arith.cmpi ne, %1, %c0_i32_0 : i32
    scf.if %2 {
      %cst_9 = arith.constant 0.000000e+00 : f32
      %11 = vector.broadcast %cst_9 : f32 to vector<2x128xf32>
      %c0_10 = arith.constant 0 : index
      %c0_11 = arith.constant 0 : index
      %12 = vector.load %arg3[%c0_10, %c0_11] : memref<2x128xf32, #tpu.memory_space<vmem>>, vector<2x128xf32>
      tpu.vector_store %arg3[%c0_10, %c0_11], %11 {strides = array<i32>} : memref<2x128xf32, #tpu.memory_space<vmem>>, vector<2x128xf32>,
    } else {
    }
    %c0 = arith.constant 0 : index
    %c0_1 = arith.constant 0 : index
    %c0_2 = arith.constant 0 : index
    %3 = vector.load %arg2[%c0, %c0_1, %c0_2] : memref<2x128x256xf32, #tpu.memory_space<vmem>>, vector<2x128x256xf32>
    %c0_3 = arith.constant 0 : index
    %c0_4 = arith.constant 0 : index
    %4 = vector.load %arg3[%c0_3, %c0_4] : memref<2x128xf32, #tpu.memory_space<vmem>>, vector<2x128xf32>
    %cst = arith.constant dense<0.000000e+00> : vector<2x128xf32>
    %5 = vector.multi_reduction <add>, %3, %cst [2] : vector<2x128x256xf32> to vector<2x128xf32>
    %6 = arith.addf %4, %5 : vector<2x128xf32>
    %c0_5 = arith.constant 0 : index
    %c0_6 = arith.constant 0 : index
    %7 = vector.load %arg3[%c0_5, %c0_6] : memref<2x128xf32, #tpu.memory_space<vmem>>, vector<2x128xf32>
    tpu.vector_store %arg3[%c0_5, %c0_6], %6 {strides = array<i32>} : memref<2x128xf32, #tpu.memory_space<vmem>>, vector<2x128xf32>,
    %c0_i32_7 = arith.constant 0 : i32
    %8 = arith.cmpi eq, %arg1, %c0_i32_7 : i32
    %9 = arith.extui %8 : i1 to i32
    %c0_i32_8 = arith.constant 0 : i32
    %10 = arith.cmpi ne, %9, %c0_i32_8 : i32
    scf.if %10 {
      %c0_9 = arith.constant 0 : index
      %c0_10 = arith.constant 0 : index
      %11 = vector.load %arg3[%c0_9, %c0_10] : memref<2x128xf32, #tpu.memory_space<vmem>>, vector<2x128xf32>
      %cst_11 = arith.constant 3.906250e-03 : f32
      %12 = vector.broadcast %cst_11 : f32 to vector<2x128xf32>
      %13 = arith.mulf %11, %12 : vector<2x128xf32>
      %c0_12 = arith.constant 0 : index
      %c0_13 = arith.constant 0 : index
      %14 = vector.load %arg3[%c0_12, %c0_13] : memref<2x128xf32, #tpu.memory_space<vmem>>, vector<2x128xf32>
      tpu.vector_store %arg3[%c0_12, %c0_13], %13 {strides = array<i32>} : memref<2x128xf32, #tpu.memory_space<vmem>>, vector<2x128xf32>,
    } else {
    }
    return
  }
  func.func @transform_0(%arg0: i32, %arg1: i32) -> (i32, i32, i32) {
    %c0_i32 = arith.constant 0 : i32
    %c0_i32_0 = arith.constant 0 : i32
    return %c0_i32, %arg0, %arg1 : i32, i32, i32
  }
  func.func @transform_1(%arg0: i32, %arg1: i32) -> (i32, i32) {
    %c0_i32 = arith.constant 0 : i32
    %c0_i32_0 = arith.constant 0 : i32
    return %c0_i32, %arg0 : i32, i32
  }
}

module attributes {stable_mosaic.version = 11 : i64} {
  func.func @_pool_kernel(%arg0: i32, %arg1: i32, %arg2: memref<2x128x4xf32, #tpu.memory_space<vmem>>, %arg3: memref<2x128xf32, #tpu.memory_space<vmem>>) attributes {dimension_semantics = [#tpu.dimension_semantics<parallel>, #tpu.dimension_semantics<arbitrary>], iteration_bounds = array<i64: 2, 1>, scalar_prefetch = 0 : i64, scratch_operands = 0 : i64, tpu.core_type = #tpu.core_type<tc>, window_params = [{transform_indices = @transform_0, window_bounds = array<i64: 2, 128, 4>}, {transform_indices = @transform_1, window_bounds = array<i64: 2, 128>}]} {
    %c0_i32 = arith.constant 0 : i32
    %0 = arith.cmpi eq, %arg1, %c0_i32 : i32
    %1 = arith.extui %0 : i1 to i32
    %c0_i32_0 = arith.constant 0 : i32
    %2 = arith.cmpi ne, %1, %c0_i32_0 : i32
    scf.if %2 {
      %cst_9 = arith.constant 0.000000e+00 : f32
      %11 = vector.broadcast %cst_9 : f32 to vector<2x128xf32>
      %c0_10 = arith.constant 0 : index
      %c0_11 = arith.constant 0 : index
      %12 = vector.load %arg3[%c0_10, %c0_11] : memref<2x128xf32, #tpu.memory_space<vmem>>, vector<2x128xf32>
      tpu.vector_store %arg3[%c0_10, %c0_11], %11 {strides = array<i32>} : memref<2x128xf32, #tpu.memory_space<vmem>>, vector<2x128xf32>,
    } else {
    }
    %c0 = arith.constant 0 : index
    %c0_1 = arith.constant 0 : index
    %c0_2 = arith.constant 0 : index
    %3 = vector.load %arg2[%c0, %c0_1, %c0_2] : memref<2x128x4xf32, #tpu.memory_space<vmem>>, vector<2x128x4xf32>
    %c0_3 = arith.constant 0 : index
    %c0_4 = arith.constant 0 : index
    %4 = vector.load %arg3[%c0_3, %c0_4] : memref<2x128xf32, #tpu.memory_space<vmem>>, vector<2x128xf32>
    %cst = arith.constant dense<0.000000e+00> : vector<2x128xf32>
    %5 = vector.multi_reduction <add>, %3, %cst [2] : vector<2x128x4xf32> to vector<2x128xf32>
    %6 = arith.addf %4, %5 : vector<2x128xf32>
    %c0_5 = arith.constant 0 : index
    %c0_6 = arith.constant 0 : index
    %7 = vector.load %arg3[%c0_5, %c0_6] : memref<2x128xf32, #tpu.memory_space<vmem>>, vector<2x128xf32>
    tpu.vector_store %arg3[%c0_5, %c0_6], %6 {strides = array<i32>} : memref<2x128xf32, #tpu.memory_space<vmem>>, vector<2x128xf32>,
    %c0_i32_7 = arith.constant 0 : i32
    %8 = arith.cmpi eq, %arg1, %c0_i32_7 : i32
    %9 = arith.extui %8 : i1 to i32
    %c0_i32_8 = arith.constant 0 : i32
    %10 = arith.cmpi ne, %9, %c0_i32_8 : i32
    scf.if %10 {
      %c0_9 = arith.constant 0 : index
      %c0_10 = arith.constant 0 : index
      %11 = vector.load %arg3[%c0_9, %c0_10] : memref<2x128xf32, #tpu.memory_space<vmem>>, vector<2x128xf32>
      %cst_11 = arith.constant 2.500000e-01 : f32
      %12 = vector.broadcast %cst_11 : f32 to vector<2x128xf32>
      %13 = arith.mulf %11, %12 : vector<2x128xf32>
      %c0_12 = arith.constant 0 : index
      %c0_13 = arith.constant 0 : index
      %14 = vector.load %arg3[%c0_12, %c0_13] : memref<2x128xf32, #tpu.memory_space<vmem>>, vector<2x128xf32>
      tpu.vector_store %arg3[%c0_12, %c0_13], %13 {strides = array<i32>} : memref<2x128xf32, #tpu.memory_space<vmem>>, vector<2x128xf32>,
    } else {
    }
    return
  }
  func.func @transform_0(%arg0: i32, %arg1: i32) -> (i32, i32, i32) {
    %c0_i32 = arith.constant 0 : i32
    %c0_i32_0 = arith.constant 0 : i32
    return %c0_i32, %arg0, %arg1 : i32, i32, i32
  }
  func.func @transform_1(%arg0: i32, %arg1: i32) -> (i32, i32) {
    %c0_i32 = arith.constant 0 : i32
    %c0_i32_0 = arith.constant 0 : i32
    return %c0_i32, %arg0 : i32, i32
  }
}

module attributes {stable_mosaic.version = 11 : i64} {
  func.func @_pool_kernel(%arg0: i32, %arg1: i32, %arg2: memref<2x128x16xf32, #tpu.memory_space<vmem>>, %arg3: memref<2x128xf32, #tpu.memory_space<vmem>>) attributes {dimension_semantics = [#tpu.dimension_semantics<parallel>, #tpu.dimension_semantics<arbitrary>], iteration_bounds = array<i64: 2, 1>, scalar_prefetch = 0 : i64, scratch_operands = 0 : i64, tpu.core_type = #tpu.core_type<tc>, window_params = [{transform_indices = @transform_0, window_bounds = array<i64: 2, 128, 16>}, {transform_indices = @transform_1, window_bounds = array<i64: 2, 128>}]} {
    %c0_i32 = arith.constant 0 : i32
    %0 = arith.cmpi eq, %arg1, %c0_i32 : i32
    %1 = arith.extui %0 : i1 to i32
    %c0_i32_0 = arith.constant 0 : i32
    %2 = arith.cmpi ne, %1, %c0_i32_0 : i32
    scf.if %2 {
      %cst_9 = arith.constant 0.000000e+00 : f32
      %11 = vector.broadcast %cst_9 : f32 to vector<2x128xf32>
      %c0_10 = arith.constant 0 : index
      %c0_11 = arith.constant 0 : index
      %12 = vector.load %arg3[%c0_10, %c0_11] : memref<2x128xf32, #tpu.memory_space<vmem>>, vector<2x128xf32>
      tpu.vector_store %arg3[%c0_10, %c0_11], %11 {strides = array<i32>} : memref<2x128xf32, #tpu.memory_space<vmem>>, vector<2x128xf32>,
    } else {
    }
    %c0 = arith.constant 0 : index
    %c0_1 = arith.constant 0 : index
    %c0_2 = arith.constant 0 : index
    %3 = vector.load %arg2[%c0, %c0_1, %c0_2] : memref<2x128x16xf32, #tpu.memory_space<vmem>>, vector<2x128x16xf32>
    %c0_3 = arith.constant 0 : index
    %c0_4 = arith.constant 0 : index
    %4 = vector.load %arg3[%c0_3, %c0_4] : memref<2x128xf32, #tpu.memory_space<vmem>>, vector<2x128xf32>
    %cst = arith.constant dense<0.000000e+00> : vector<2x128xf32>
    %5 = vector.multi_reduction <add>, %3, %cst [2] : vector<2x128x16xf32> to vector<2x128xf32>
    %6 = arith.addf %4, %5 : vector<2x128xf32>
    %c0_5 = arith.constant 0 : index
    %c0_6 = arith.constant 0 : index
    %7 = vector.load %arg3[%c0_5, %c0_6] : memref<2x128xf32, #tpu.memory_space<vmem>>, vector<2x128xf32>
    tpu.vector_store %arg3[%c0_5, %c0_6], %6 {strides = array<i32>} : memref<2x128xf32, #tpu.memory_space<vmem>>, vector<2x128xf32>,
    %c0_i32_7 = arith.constant 0 : i32
    %8 = arith.cmpi eq, %arg1, %c0_i32_7 : i32
    %9 = arith.extui %8 : i1 to i32
    %c0_i32_8 = arith.constant 0 : i32
    %10 = arith.cmpi ne, %9, %c0_i32_8 : i32
    scf.if %10 {
      %c0_9 = arith.constant 0 : index
      %c0_10 = arith.constant 0 : index
      %11 = vector.load %arg3[%c0_9, %c0_10] : memref<2x128xf32, #tpu.memory_space<vmem>>, vector<2x128xf32>
      %cst_11 = arith.constant 6.250000e-02 : f32
      %12 = vector.broadcast %cst_11 : f32 to vector<2x128xf32>
      %13 = arith.mulf %11, %12 : vector<2x128xf32>
      %c0_12 = arith.constant 0 : index
      %c0_13 = arith.constant 0 : index
      %14 = vector.load %arg3[%c0_12, %c0_13] : memref<2x128xf32, #tpu.memory_space<vmem>>, vector<2x128xf32>
      tpu.vector_store %arg3[%c0_12, %c0_13], %13 {strides = array<i32>} : memref<2x128xf32, #tpu.memory_space<vmem>>, vector<2x128xf32>,
    } else {
    }
    return
  }
  func.func @transform_0(%arg0: i32, %arg1: i32) -> (i32, i32, i32) {
    %c0_i32 = arith.constant 0 : i32
    %c0_i32_0 = arith.constant 0 : i32
    return %c0_i32, %arg0, %arg1 : i32, i32, i32
  }
  func.func @transform_1(%arg0: i32, %arg1: i32) -> (i32, i32) {
    %c0_i32 = arith.constant 0 : i32
    %c0_i32_0 = arith.constant 0 : i32
    return %c0_i32, %arg0 : i32, i32
  }
}

module attributes {stable_mosaic.version = 11 : i64} {
  func.func @_pool_kernel(%arg0: i32, %arg1: i32, %arg2: memref<2x128x64xf32, #tpu.memory_space<vmem>>, %arg3: memref<2x128xf32, #tpu.memory_space<vmem>>) attributes {dimension_semantics = [#tpu.dimension_semantics<parallel>, #tpu.dimension_semantics<arbitrary>], iteration_bounds = array<i64: 2, 1>, scalar_prefetch = 0 : i64, scratch_operands = 0 : i64, tpu.core_type = #tpu.core_type<tc>, window_params = [{transform_indices = @transform_0, window_bounds = array<i64: 2, 128, 64>}, {transform_indices = @transform_1, window_bounds = array<i64: 2, 128>}]} {
    %c0_i32 = arith.constant 0 : i32
    %0 = arith.cmpi eq, %arg1, %c0_i32 : i32
    %1 = arith.extui %0 : i1 to i32
    %c0_i32_0 = arith.constant 0 : i32
    %2 = arith.cmpi ne, %1, %c0_i32_0 : i32
    scf.if %2 {
      %cst_9 = arith.constant 0.000000e+00 : f32
      %11 = vector.broadcast %cst_9 : f32 to vector<2x128xf32>
      %c0_10 = arith.constant 0 : index
      %c0_11 = arith.constant 0 : index
      %12 = vector.load %arg3[%c0_10, %c0_11] : memref<2x128xf32, #tpu.memory_space<vmem>>, vector<2x128xf32>
      tpu.vector_store %arg3[%c0_10, %c0_11], %11 {strides = array<i32>} : memref<2x128xf32, #tpu.memory_space<vmem>>, vector<2x128xf32>,
    } else {
    }
    %c0 = arith.constant 0 : index
    %c0_1 = arith.constant 0 : index
    %c0_2 = arith.constant 0 : index
    %3 = vector.load %arg2[%c0, %c0_1, %c0_2] : memref<2x128x64xf32, #tpu.memory_space<vmem>>, vector<2x128x64xf32>
    %c0_3 = arith.constant 0 : index
    %c0_4 = arith.constant 0 : index
    %4 = vector.load %arg3[%c0_3, %c0_4] : memref<2x128xf32, #tpu.memory_space<vmem>>, vector<2x128xf32>
    %cst = arith.constant dense<0.000000e+00> : vector<2x128xf32>
    %5 = vector.multi_reduction <add>, %3, %cst [2] : vector<2x128x64xf32> to vector<2x128xf32>
    %6 = arith.addf %4, %5 : vector<2x128xf32>
    %c0_5 = arith.constant 0 : index
    %c0_6 = arith.constant 0 : index
    %7 = vector.load %arg3[%c0_5, %c0_6] : memref<2x128xf32, #tpu.memory_space<vmem>>, vector<2x128xf32>
    tpu.vector_store %arg3[%c0_5, %c0_6], %6 {strides = array<i32>} : memref<2x128xf32, #tpu.memory_space<vmem>>, vector<2x128xf32>,
    %c0_i32_7 = arith.constant 0 : i32
    %8 = arith.cmpi eq, %arg1, %c0_i32_7 : i32
    %9 = arith.extui %8 : i1 to i32
    %c0_i32_8 = arith.constant 0 : i32
    %10 = arith.cmpi ne, %9, %c0_i32_8 : i32
    scf.if %10 {
      %c0_9 = arith.constant 0 : index
      %c0_10 = arith.constant 0 : index
      %11 = vector.load %arg3[%c0_9, %c0_10] : memref<2x128xf32, #tpu.memory_space<vmem>>, vector<2x128xf32>
      %cst_11 = arith.constant 1.562500e-02 : f32
      %12 = vector.broadcast %cst_11 : f32 to vector<2x128xf32>
      %13 = arith.mulf %11, %12 : vector<2x128xf32>
      %c0_12 = arith.constant 0 : index
      %c0_13 = arith.constant 0 : index
      %14 = vector.load %arg3[%c0_12, %c0_13] : memref<2x128xf32, #tpu.memory_space<vmem>>, vector<2x128xf32>
      tpu.vector_store %arg3[%c0_12, %c0_13], %13 {strides = array<i32>} : memref<2x128xf32, #tpu.memory_space<vmem>>, vector<2x128xf32>,
    } else {
    }
    return
  }
  func.func @transform_0(%arg0: i32, %arg1: i32) -> (i32, i32, i32) {
    %c0_i32 = arith.constant 0 : i32
    %c0_i32_0 = arith.constant 0 : i32
    return %c0_i32, %arg0, %arg1 : i32, i32, i32
  }
  func.func @transform_1(%arg0: i32, %arg1: i32) -> (i32, i32) {
    %c0_i32 = arith.constant 0 : i32
    %c0_i32_0 = arith.constant 0 : i32
    return %c0_i32, %arg0 : i32, i32
  }
}

module attributes {stable_mosaic.version = 11 : i64} {
  func.func @_head_kernel(%arg0: memref<2x1024xf32, #tpu.memory_space<vmem>>, %arg1: memref<1024x1024xbf16, #tpu.memory_space<vmem>>, %arg2: memref<3x1024xf32, #tpu.memory_space<vmem>>, %arg3: memref<2x1024xf32, #tpu.memory_space<vmem>>) attributes {dimension_semantics = [], scalar_prefetch = 0 : i64, scratch_operands = 0 : i64, tpu.core_type = #tpu.core_type<tc>} {
    %c0 = arith.constant 0 : index
    %c0_0 = arith.constant 0 : index
    %0 = vector.load %arg0[%c0, %c0_0] : memref<2x1024xf32, #tpu.memory_space<vmem>>, vector<2x1024xf32>
    %1 = arith.truncf %0 : vector<2x1024xf32> to vector<2x1024xbf16>
    %c0_1 = arith.constant 0 : index
    %c0_2 = arith.constant 0 : index
    %2 = vector.load %arg1[%c0_1, %c0_2] : memref<1024x1024xbf16, #tpu.memory_space<vmem>>, vector<1024x1024xbf16>
    %cst = arith.constant dense<0.000000e+00> : vector<2x1024xf32>
    %3 = tpu.matmul %1, %2, %cst {dimension_numbers = #tpu.dot_dimension_numbers<[1], [0], [0], [1], [0, 0, 1, 1], [], []>} : vector<2x1024xbf16>, vector<1024x1024xbf16>, vector<2x1024xf32> -> vector<2x1024xf32>
    %c0_3 = arith.constant 0 : index
    %c0_4 = arith.constant 0 : index
    %4 = vector.load %arg2[%c0_3, %c0_4] : memref<3x1024xf32, #tpu.memory_space<vmem>>, vector<1x1024xf32>
    %5 = vector.broadcast %4 : vector<1x1024xf32> to vector<2x1024xf32>
    %6 = arith.addf %3, %5 : vector<2x1024xf32>
    %cst_5 = arith.constant 0.000000e+00 : f32
    %7 = vector.broadcast %cst_5 : f32 to vector<2x1024xf32>
    %8 = arith.maximumf %6, %7 : vector<2x1024xf32>
    %cst_6 = arith.constant dense<0.000000e+00> : vector<1024xf32>
    %9 = vector.multi_reduction <add>, %8, %cst_6 [0] : vector<2x1024xf32> to vector<1024xf32>
    %10 = vector.shape_cast %9 : vector<1024xf32> to vector<1x1024xf32>
    %cst_7 = arith.constant 2.000000e+00 : f32
    %11 = vector.broadcast %cst_7 : f32 to vector<1x1024xf32>
    %12 = arith.divf %10, %11 : vector<1x1024xf32>
    %13 = vector.broadcast %12 : vector<1x1024xf32> to vector<2x1024xf32>
    %14 = arith.subf %8, %13 : vector<2x1024xf32>
    %15 = arith.mulf %14, %14 : vector<2x1024xf32>
    %cst_8 = arith.constant dense<0.000000e+00> : vector<1024xf32>
    %16 = vector.multi_reduction <add>, %15, %cst_8 [0] : vector<2x1024xf32> to vector<1024xf32>
    %17 = vector.shape_cast %16 : vector<1024xf32> to vector<1x1024xf32>
    %cst_9 = arith.constant 2.000000e+00 : f32
    %18 = vector.broadcast %cst_9 : f32 to vector<1x1024xf32>
    %19 = arith.divf %17, %18 : vector<1x1024xf32>
    %cst_10 = arith.constant 9.99999974E-6 : f32
    %20 = vector.broadcast %cst_10 : f32 to vector<1x1024xf32>
    %21 = arith.addf %19, %20 : vector<1x1024xf32>
    %22 = math.rsqrt %21 : vector<1x1024xf32>
    %23 = vector.broadcast %22 : vector<1x1024xf32> to vector<2x1024xf32>
    %24 = arith.mulf %14, %23 : vector<2x1024xf32>
    %c1 = arith.constant 1 : index
    %c0_11 = arith.constant 0 : index
    %25 = vector.load %arg2[%c1, %c0_11] : memref<3x1024xf32, #tpu.memory_space<vmem>>, vector<1x1024xf32>
    %26 = vector.broadcast %25 : vector<1x1024xf32> to vector<2x1024xf32>
    %27 = arith.mulf %24, %26 : vector<2x1024xf32>
    %c2 = arith.constant 2 : index
    %c0_12 = arith.constant 0 : index
    %28 = vector.load %arg2[%c2, %c0_12] : memref<3x1024xf32, #tpu.memory_space<vmem>>, vector<1x1024xf32>
    %29 = vector.broadcast %28 : vector<1x1024xf32> to vector<2x1024xf32>
    %30 = arith.addf %27, %29 : vector<2x1024xf32>
    %c0_13 = arith.constant 0 : index
    %c0_14 = arith.constant 0 : index
    %31 = vector.load %arg3[%c0_13, %c0_14] : memref<2x1024xf32, #tpu.memory_space<vmem>>, vector<2x1024xf32>
    tpu.vector_store %arg3[%c0_13, %c0_14], %30 {strides = array<i32>} : memref<2x1024xf32, #tpu.memory_space<vmem>>, vector<2x1024xf32>,
    return
  }
}

</mosaic_0001>

<llo_original>
// kernel: faster_rcnn_embedder.8
$region0: #{faster_rcnn_embedder.8}
  #allocation0 [shape = 'u32[]', space=smem, size = 0x4, offset = 0x4, fixed_abs, tag = 'smem constant byte address 0x4 - core index']
  #allocation1 [shape = 'u32[144,128]{1,0:T(1,128)}', space=vmem, size = 0x12000, scoped, tag = 'internal scratch']
  %s0 = inlined_call_operand.vmem [shape: f32[2,256,4], index: 0, kind: input, shape index: {}]
  %s1 = inlined_call_operand.vmem [shape: f32[2,256], index: 1, kind: output, shape index: {}]
  %s2 = sld [smem:[#allocation0]]
  $region83: #{faster_rcnn_embedder.8} parent=0
    _
  %s4 = ssub.s32 1, %s2
  %s5 = scalar_select 0, %s4, %s2
  $region1: #{faster_rcnn_embedder.8} parent=0
    #allocation2 [shape = 'u8[262144]{0}', space=vmem, size = 0x40000, scoped, tag = 'input window, operand 0']
    loop: start=0, step=1, limit=4
    $region2: #{faster_rcnn_embedder.8} parent=1 // loop_pre_header
      _
    $region3: #{faster_rcnn_embedder.8} parent=1 // loop_header
      %s7 = sphi 0, %s11
      %p8 = scmp.ge.s32.totalorder %s7, 4
      %s14 = sphi 0, %s26
      %s15 = sphi 0, %s22
      %s16 = sphi 0, %s14
      %s17 = sphi 0, %s15
      %s18 = sphi 0, %s16
      %s19 = sphi 0, %s17
      %s31 = sphi 0, %s33
      %s34 = sphi 0, %s31
      %s35 = sphi 0, %s34
      %s51 = sphi 0, %s35
      %s57 = sphi 0, %s59
      %s60 = sphi 0, %s57
      %s61 = sphi 0, %s60
      %s77 = sphi 0, %s61
    $region4: #{faster_rcnn_embedder.8} parent=1 // loop_header_branch
      %10 = sbr.rel (%p8) target = $region8
    $region5: #{faster_rcnn_embedder.8} parent=1 // loop_body
      %s12 = ssub.s32 %s7, 1
      %s13 = ssub.s32 %s7, 2
      %s20 = sadd.s32 1, %s15
      %p21 = scmp.ge.s32.totalorder %s20, 1
      %s22 = scalar_select %p21, 0, %s20
      %s23 = sadd.s32 1, %s14
      %s24 = scalar_select %p21, %s23, %s14
      %p25 = scmp.ge.s32.totalorder %s24, 2
      %s26 = scalar_select %p25, 0, %s24
      %s27 = ssub.s32 %s14, %s26
      %s28 = ssub.s32 %s15, %s22
      %s29 = sor.u32 %s27, %s28
      %p30 = scmp.eq.s32.totalorder %s29, 0
      %s32 = sadd.s32 %s31, 1
      %s33 = scalar_select %p30, %s31, %s32
      %p36 = pneg %p30
      %p37 = scmp.eq.s32.totalorder %s7, 1
      %p38 = por %p36, %p37
      %p39 = scmp.ne.s32.totalorder %s31, %s34
      %p40 = scmp.eq.s32.totalorder %s7, 0
      %p41 = por %p39, %p40
      %p42 = scmp.ne.s32.totalorder %s31, %s34
      %p43 = scmp.eq.s32.totalorder %s12, 1
      %p44 = por %p42, %p43
      %p45 = scmp.ne.s32.totalorder %s34, %s35
      %p46 = scmp.eq.s32.totalorder %s12, 0
      %p47 = por %p45, %p46
      %p48 = scmp.ne.s32.totalorder %s34, %s35
      %p49 = scmp.eq.s32.totalorder %s13, 1
      %p50 = por %p48, %p49
      %p52 = scmp.ne.s32.totalorder %s35, %s51
      %p53 = scmp.eq.s32.totalorder %s13, 0
      %p54 = por %p52, %p53
      %s55 = ssub.s32 %s14, %s26
      %p56 = scmp.eq.s32.totalorder %s55, 0
      %s58 = sadd.s32 %s57, 1
      %s59 = scalar_select %p56, %s57, %s58
      %p62 = pneg %p56
      %p63 = scmp.eq.s32.totalorder %s7, 1
      %p64 = por %p62, %p63
      %p65 = scmp.ne.s32.totalorder %s57, %s60
      %p66 = scmp.eq.s32.totalorder %s7, 0
      %p67 = por %p65, %p66
      %p68 = scmp.ne.s32.totalorder %s57, %s60
      %p69 = scmp.eq.s32.totalorder %s12, 1
      %p70 = por %p68, %p69
      %p71 = scmp.ne.s32.totalorder %s60, %s61
      %p72 = scmp.eq.s32.totalorder %s12, 0
      %p73 = por %p71, %p72
      %p74 = scmp.ne.s32.totalorder %s60, %s61
      %p75 = scmp.eq.s32.totalorder %s13, 1
      %p76 = por %p74, %p75
      %p78 = scmp.ne.s32.totalorder %s61, %s77
      %p79 = scmp.eq.s32.totalorder %s13, 0
      %p80 = por %p78, %p79
      %p81 = scmp.le.s32.totalorder 1, %s7
      %p82 = scmp.lt.s32.totalorder %s7, 3
      %p83 = pnand %p81, %p82
      %p84 = pneg %p83
      // Predicated region
      $region9: #{faster_rcnn_embedder.8} parent=5 // pred_check
        _
      $region10: #{faster_rcnn_embedder.8} parent=5 // pred_check_branch
        %86 = sbr.rel (%p83) target = $region12
      $region11: #{faster_rcnn_embedder.8} parent=5 // pred_region
        %s87 = ssub.s32 %s7, 1
      $region12: #{faster_rcnn_embedder.8} parent=5 // pred_fallthru
        _
      %p88 = scmp.lt.s32.totalorder %s7, 2
      // Predicated region
      $region13: #{faster_rcnn_embedder.8} parent=5 // pred_check
        %p89 = pneg %p88
      $region14: #{faster_rcnn_embedder.8} parent=5 // pred_check_branch
        %91 = sbr.rel (%p89) target = $region16
      $region15: #{faster_rcnn_embedder.8} parent=5 // pred_region
        // Predicated region
        $region17: #{faster_rcnn_embedder.8} parent=15 // pred_check
          %p92 = pneg %p41
        $region18: #{faster_rcnn_embedder.8} parent=15 // pred_check_branch
          %94 = sbr.rel (%p92) target = $region20
        $region19: #{faster_rcnn_embedder.8} parent=15 // pred_region
          %s95 = sand.u32 %s31, 1
          %s96 = sand.u32 %s31, 1
          %s97 = smul.addr %s96, 256
          %s98 = scalar_lea.vmem [#allocation2], %s97
          %s99 = smul.u32 16, %s14
          %s100 = sadd.s32 %s15, %s99
          %s101 = smul.addr %s100, 8
          %s102 = scalar_lea.vmem %s0, %s101
          // Predicated region
          $region21: #{faster_rcnn_embedder.8} parent=19 // pred_check
            _
          $region22: #{faster_rcnn_embedder.8} parent=19 // pred_check_branch
            %104 = sbr.rel (0) target = $region24
          $region23: #{faster_rcnn_embedder.8} parent=19 // pred_region
            // Predicated region
            $region25: #{faster_rcnn_embedder.8} parent=23 // pred_check
              _
            $region26: #{faster_rcnn_embedder.8} parent=23 // pred_check_branch
              %106 = sbr.rel (0) target = $region28
            $region27: #{faster_rcnn_embedder.8} parent=23 // pred_region
              // Predicated region
              $region40: #{faster_rcnn_embedder.8} parent=27 // pred_check
                _
              $region41: #{faster_rcnn_embedder.8} parent=27 // pred_check_branch
                %183 = sbr.rel (0) target = $region43
              $region42: #{faster_rcnn_embedder.8} parent=27 // pred_region
                loop: start=0, step=1, limit=1
                $region44: #{faster_rcnn_embedder.8} parent=42 // loop_pre_header
                  _
                $region45: #{faster_rcnn_embedder.8} parent=42 // loop_header
                  %s185 = sphi 0, %s189
                  %p186 = scmp.ge.s32.totalorder %s185, 1
                  %s190 = sphi %s102, %s102
                  %s191 = sphi %s98, %s98
                $region46: #{faster_rcnn_embedder.8} parent=42 // loop_header_branch
                  %188 = sbr.rel (%p186) target = $region50
                $region47: #{faster_rcnn_embedder.8} parent=42 // loop_body
                  %v192 = vld [vmem:[%s190] sm:$0xff]
                  %193 = vst [vmem:[%s191] sm:$0xff] %v192
                  %v194 = vld [vmem:[%s190 + $0x8] sm:$0xff]
                  %195 = vst [vmem:[%s191 + $0x8] sm:$0xff] %v194
                  %v196 = vld [vmem:[%s190 + $0x10] sm:$0xff]
                  %197 = vst [vmem:[%s191 + $0x10] sm:$0xff] %v196
                  %v198 = vld [vmem:[%s190 + $0x18] sm:$0xff]
                  %199 = vst [vmem:[%s191 + $0x18] sm:$0xff] %v198
                  %v200 = vld [vmem:[%s190 + $0x20] sm:$0xff]
                  %201 = vst [vmem:[%s191 + $0x20] sm:$0xff] %v200
                  %v202 = vld [vmem:[%s190 + $0x28] sm:$0xff]
                  %203 = vst [vmem:[%s191 + $0x28] sm:$0xff] %v202
                  %v204 = vld [vmem:[%s190 + $0x30] sm:$0xff]
                  %205 = vst [vmem:[%s191 + $0x30] sm:$0xff] %v204
                  %v206 = vld [vmem:[%s190 + $0x38] sm:$0xff]
                  %207 = vst [vmem:[%s191 + $0x38] sm:$0xff] %v206
                  %v208 = vld [vmem:[%s190 + $0x40] sm:$0xff]
                  %209 = vst [vmem:[%s191 + $0x40] sm:$0xff] %v208
                  %v210 = vld [vmem:[%s190 + $0x48] sm:$0xff]
                  %211 = vst [vmem:[%s191 + $0x48] sm:$0xff] %v210
                  %v212 = vld [vmem:[%s190 + $0x50] sm:$0xff]
                  %213 = vst [vmem:[%s191 + $0x50] sm:$0xff] %v212
                  %v214 = vld [vmem:[%s190 + $0x58] sm:$0xff]
                  %215 = vst [vmem:[%s191 + $0x58] sm:$0xff] %v214
                  %v216 = vld [vmem:[%s190 + $0x60] sm:$0xff]
                  %217 = vst [vmem:[%s191 + $0x60] sm:$0xff] %v216
                  %v218 = vld [vmem:[%s190 + $0x68] sm:$0xff]
                  %219 = vst [vmem:[%s191 + $0x68] sm:$0xff] %v218
                  %v220 = vld [vmem:[%s190 + $0x70] sm:$0xff]
                  %221 = vst [vmem:[%s191 + $0x70] sm:$0xff] %v220
                  %v222 = vld [vmem:[%s190 + $0x78] sm:$0xff]
                  %223 = vst [vmem:[%s191 + $0x78] sm:$0xff] %v222
                  %v224 = vld [vmem:[%s190 + $0x100] sm:$0xff]
                  %225 = vst [vmem:[%s191 + $0x80] sm:$0xff] %v224
                  %v226 = vld [vmem:[%s190 + $0x108] sm:$0xff]
                  %227 = vst [vmem:[%s191 + $0x88] sm:$0xff] %v226
                  %v228 = vld [vmem:[%s190 + $0x110] sm:$0xff]
                  %229 = vst [vmem:[%s191 + $0x90] sm:$0xff] %v228
                  %v230 = vld [vmem:[%s190 + $0x118] sm:$0xff]
                  %231 = vst [vmem:[%s191 + $0x98] sm:$0xff] %v230
                  %v232 = vld [vmem:[%s190 + $0x120] sm:$0xff]
                  %233 = vst [vmem:[%s191 + $0xa0] sm:$0xff] %v232
                  %v234 = vld [vmem:[%s190 + $0x128] sm:$0xff]
                  %235 = vst [vmem:[%s191 + $0xa8] sm:$0xff] %v234
                  %v236 = vld [vmem:[%s190 + $0x130] sm:$0xff]
                  %237 = vst [vmem:[%s191 + $0xb0] sm:$0xff] %v236
                  %v238 = vld [vmem:[%s190 + $0x138] sm:$0xff]
                  %239 = vst [vmem:[%s191 + $0xb8] sm:$0xff] %v238
                  %v240 = vld [vmem:[%s190 + $0x140] sm:$0xff]
                  %241 = vst [vmem:[%s191 + $0xc0] sm:$0xff] %v240
                  %v242 = vld [vmem:[%s190 + $0x148] sm:$0xff]
                  %243 = vst [vmem:[%s191 + $0xc8] sm:$0xff] %v242
                  %v244 = vld [vmem:[%s190 + $0x150] sm:$0xff]
                  %245 = vst [vmem:[%s191 + $0xd0] sm:$0xff] %v244
                  %v246 = vld [vmem:[%s190 + $0x158] sm:$0xff]
                  %247 = vst [vmem:[%s191 + $0xd8] sm:$0xff] %v246
                  %v248 = vld [vmem:[%s190 + $0x160] sm:$0xff]
                  %249 = vst [vmem:[%s191 + $0xe0] sm:$0xff] %v248
                  %v250 = vld [vmem:[%s190 + $0x168] sm:$0xff]
                  %251 = vst [vmem:[%s191 + $0xe8] sm:$0xff] %v250
                  %v252 = vld [vmem:[%s190 + $0x170] sm:$0xff]
                  %253 = vst [vmem:[%s191 + $0xf0] sm:$0xff] %v252
                  %v254 = vld [vmem:[%s190 + $0x178] sm:$0xff]
                  %255 = vst [vmem:[%s191 + $0xf8] sm:$0xff] %v254
                $region48: #{faster_rcnn_embedder.8} parent=42 // loop_footer
                  %s189 = sadd.s32 1, %s185
                $region49: #{faster_rcnn_embedder.8} parent=42 // loop_footer_branch
                  %184 = sbr.rel target = $region45
                $region50: #{faster_rcnn_embedder.8} parent=42 // loop_exit
                  _
              $region43: #{faster_rcnn_embedder.8} parent=27 // pred_fallthru
                _
              // Predicated region
              $region51: #{faster_rcnn_embedder.8} parent=27 // pred_check
                _
              $region52: #{faster_rcnn_embedder.8} parent=27 // pred_check_branch
                %257 = sbr.rel target = $region54
              $region53: #{faster_rcnn_embedder.8} parent=27 // pred_region
                _
              $region54: #{faster_rcnn_embedder.8} parent=27 // pred_fallthru
                _
            $region28: #{faster_rcnn_embedder.8} parent=23 // pred_fallthru
              _
            // Predicated region
            $region29: #{faster_rcnn_embedder.8} parent=23 // pred_check
              _
            $region30: #{faster_rcnn_embedder.8} parent=23 // pred_check_branch
              %108 = sbr.rel target = $region32
            $region31: #{faster_rcnn_embedder.8} parent=23 // pred_region
              loop: start=0, step=1, limit=1
              $region33: #{faster_rcnn_embedder.8} parent=31 // loop_pre_header
                _
              $region34: #{faster_rcnn_embedder.8} parent=31 // loop_header
                %s111 = sphi 0, %s115
                %p112 = scmp.ge.s32.totalorder %s111, 1
                %s116 = sphi %s102, %s102
                %s117 = sphi %s98, %s98
              $region35: #{faster_rcnn_embedder.8} parent=31 // loop_header_branch
                %114 = sbr.rel (%p112) target = $region39
              $region36: #{faster_rcnn_embedder.8} parent=31 // loop_body
                %v118 = vld [vmem:[%s116] sm:$0xff]
                %119 = vst [vmem:[%s117] sm:$0xff] %v118
                %v120 = vld [vmem:[%s116 + $0x8] sm:$0xff]
                %121 = vst [vmem:[%s117 + $0x8] sm:$0xff] %v120
                %v122 = vld [vmem:[%s116 + $0x10] sm:$0xff]
                %123 = vst [vmem:[%s117 + $0x10] sm:$0xff] %v122
                %v124 = vld [vmem:[%s116 + $0x18] sm:$0xff]
                %125 = vst [vmem:[%s117 + $0x18] sm:$0xff] %v124
                %v126 = vld [vmem:[%s116 + $0x20] sm:$0xff]
                %127 = vst [vmem:[%s117 + $0x20] sm:$0xff] %v126
                %v128 = vld [vmem:[%s116 + $0x28] sm:$0xff]
                %129 = vst [vmem:[%s117 + $0x28] sm:$0xff] %v128
                %v130 = vld [vmem:[%s116 + $0x30] sm:$0xff]
                %131 = vst [vmem:[%s117 + $0x30] sm:$0xff] %v130
                %v132 = vld [vmem:[%s116 + $0x38] sm:$0xff]
                %133 = vst [vmem:[%s117 + $0x38] sm:$0xff] %v132
                %v134 = vld [vmem:[%s116 + $0x40] sm:$0xff]
                %135 = vst [vmem:[%s117 + $0x40] sm:$0xff] %v134
                %v136 = vld [vmem:[%s116 + $0x48] sm:$0xff]
                %137 = vst [vmem:[%s117 + $0x48] sm:$0xff] %v136
                %v138 = vld [vmem:[%s116 + $0x50] sm:$0xff]
                %139 = vst [vmem:[%s117 + $0x50] sm:$0xff] %v138
                %v140 = vld [vmem:[%s116 + $0x58] sm:$0xff]
                %141 = vst [vmem:[%s117 + $0x58] sm:$0xff] %v140
                %v142 = vld [vmem:[%s116 + $0x60] sm:$0xff]
                %143 = vst [vmem:[%s117 + $0x60] sm:$0xff] %v142
                %v144 = vld [vmem:[%s116 + $0x68] sm:$0xff]
                %145 = vst [vmem:[%s117 + $0x68] sm:$0xff] %v144
                %v146 = vld [vmem:[%s116 + $0x70] sm:$0xff]
                %147 = vst [vmem:[%s117 + $0x70] sm:$0xff] %v146
                %v148 = vld [vmem:[%s116 + $0x78] sm:$0xff]
                %149 = vst [vmem:[%s117 + $0x78] sm:$0xff] %v148
                %v150 = vld [vmem:[%s116 + $0x100] sm:$0xff]
                %151 = vst [vmem:[%s117 + $0x80] sm:$0xff] %v150
                %v152 = vld [vmem:[%s116 + $0x108] sm:$0xff]
                %153 = vst [vmem:[%s117 + $0x88] sm:$0xff] %v152
                %v154 = vld [vmem:[%s116 + $0x110] sm:$0xff]
                %155 = vst [vmem:[%s117 + $0x90] sm:$0xff] %v154
                %v156 = vld [vmem:[%s116 + $0x118] sm:$0xff]
                %157 = vst [vmem:[%s117 + $0x98] sm:$0xff] %v156
                %v158 = vld [vmem:[%s116 + $0x120] sm:$0xff]
                %159 = vst [vmem:[%s117 + $0xa0] sm:$0xff] %v158
                %v160 = vld [vmem:[%s116 + $0x128] sm:$0xff]
                %161 = vst [vmem:[%s117 + $0xa8] sm:$0xff] %v160
                %v162 = vld [vmem:[%s116 + $0x130] sm:$0xff]
                %163 = vst [vmem:[%s117 + $0xb0] sm:$0xff] %v162
                %v164 = vld [vmem:[%s116 + $0x138] sm:$0xff]
                %165 = vst [vmem:[%s117 + $0xb8] sm:$0xff] %v164
                %v166 = vld [vmem:[%s116 + $0x140] sm:$0xff]
                %167 = vst [vmem:[%s117 + $0xc0] sm:$0xff] %v166
                %v168 = vld [vmem:[%s116 + $0x148] sm:$0xff]
                %169 = vst [vmem:[%s117 + $0xc8] sm:$0xff] %v168
                %v170 = vld [vmem:[%s116 + $0x150] sm:$0xff]
                %171 = vst [vmem:[%s117 + $0xd0] sm:$0xff] %v170
                %v172 = vld [vmem:[%s116 + $0x158] sm:$0xff]
                %173 = vst [vmem:[%s117 + $0xd8] sm:$0xff] %v172
                %v174 = vld [vmem:[%s116 + $0x160] sm:$0xff]
                %175 = vst [vmem:[%s117 + $0xe0] sm:$0xff] %v174
                %v176 = vld [vmem:[%s116 + $0x168] sm:$0xff]
                %177 = vst [vmem:[%s117 + $0xe8] sm:$0xff] %v176
                %v178 = vld [vmem:[%s116 + $0x170] sm:$0xff]
                %179 = vst [vmem:[%s117 + $0xf0] sm:$0xff] %v178
                %v180 = vld [vmem:[%s116 + $0x178] sm:$0xff]
                %181 = vst [vmem:[%s117 + $0xf8] sm:$0xff] %v180
              $region37: #{faster_rcnn_embedder.8} parent=31 // loop_footer
                %s115 = sadd.s32 1, %s111
              $region38: #{faster_rcnn_embedder.8} parent=31 // loop_footer_branch
                %110 = sbr.rel target = $region34
              $region39: #{faster_rcnn_embedder.8} parent=31 // loop_exit
                _
            $region32: #{faster_rcnn_embedder.8} parent=23 // pred_fallthru
              _
          $region24: #{faster_rcnn_embedder.8} parent=19 // pred_fallthru
            _
          %258 = vnop
        $region20: #{faster_rcnn_embedder.8} parent=15 // pred_fallthru
          _
      $region16: #{faster_rcnn_embedder.8} parent=5 // pred_fallthru
        _
      %p259 = scmp.le.s32.totalorder 1, %s7
      %p260 = scmp.lt.s32.totalorder %s7, 3
      %p261 = pnand %p259, %p260
      %p262 = pneg %p261
      // Predicated region
      $region55: #{faster_rcnn_embedder.8} parent=5 // pred_check
        _
      $region56: #{faster_rcnn_embedder.8} parent=5 // pred_check_branch
        %264 = sbr.rel (%p261) target = $region58
      $region57: #{faster_rcnn_embedder.8} parent=5 // pred_region
        %s265 = ssub.s32 %s7, 1
        %s266 = sand.u32 %s34, 1
        %s267 = sand.u32 %s34, 1
        %s268 = smul.addr %s267, 256
        %s269 = scalar_lea.vmem [#allocation2], %s268
        // Predicated region
        $region59: #{faster_rcnn_embedder.8} parent=57 // pred_check
          %p270 = pneg %p47
        $region60: #{faster_rcnn_embedder.8} parent=57 // pred_check_branch
          %272 = sbr.rel (%p270) target = $region62
        $region61: #{faster_rcnn_embedder.8} parent=57 // pred_region
          _
        $region62: #{faster_rcnn_embedder.8} parent=57 // pred_fallthru
          _
        %s273 = sand.u32 %s34, 1
        %s274 = sand.u32 %s34, 1
        %s275 = smul.addr %s274, 256
        %s276 = scalar_lea.vmem [#allocation2], %s275
        %p277 = pneg %p47
        %p278 = pneg %p44
        %p279 = pneg %p73
        %p280 = pneg %p70
        %p281 = scmp.lt.s32.totalorder %s16, 1
        %s282 = scalar_select %p281, %s16, 1
        %s283 = smul.addr %s282, 2
        %s284 = scalar_lea.vmem %s1, %s283
        %s285 = smul.u32 16, %s16
        %p286 = scmp.lt.s32.totalorder %s16, 1
        %s287 = scalar_select %p286, %s16, 1
        %s288 = smul.addr %s287, 2
        %s289 = scalar_lea.vmem %s1, %s288
        %p290 = scmp.eq.s32.totalorder %s17, 0
        // Predicated region
        $region63: #{faster_rcnn_embedder.8} parent=57 // pred_check
          %p291 = pneg %p290
        $region64: #{faster_rcnn_embedder.8} parent=57 // pred_check_branch
          %293 = sbr.rel (%p291) target = $region66
        $region65: #{faster_rcnn_embedder.8} parent=57 // pred_region
          %294 = vst [vmem:[%s289] sm:$0x3] 0.0
        $region66: #{faster_rcnn_embedder.8} parent=57 // pred_fallthru
          _
        %v295 = vld [vmem:[%s269] sm:$0xff]
        %v296 = vld [vmem:[%s269 + $0x8] sm:$0xff]
        %v297 = vld [vmem:[%s269 + $0x10] sm:$0xff]
        %v298 = vld [vmem:[%s269 + $0x18] sm:$0xff]
        %v299 = vld [vmem:[%s269 + $0x20] sm:$0xff]
        %v300 = vld [vmem:[%s269 + $0x28] sm:$0xff]
        %v301 = vld [vmem:[%s269 + $0x30] sm:$0xff]
        %v302 = vld [vmem:[%s269 + $0x38] sm:$0xff]
        %v303 = vld [vmem:[%s269 + $0x40] sm:$0xff]
        %v304 = vld [vmem:[%s269 + $0x48] sm:$0xff]
        %v305 = vld [vmem:[%s269 + $0x50] sm:$0xff]
        %v306 = vld [vmem:[%s269 + $0x58] sm:$0xff]
        %v307 = vld [vmem:[%s269 + $0x60] sm:$0xff]
        %v308 = vld [vmem:[%s269 + $0x68] sm:$0xff]
        %v309 = vld [vmem:[%s269 + $0x70] sm:$0xff]
        %v310 = vld [vmem:[%s269 + $0x78] sm:$0xff]
        %v311 = vld [vmem:[%s269 + $0x80] sm:$0xff]
        %v312 = vld [vmem:[%s269 + $0x88] sm:$0xff]
        %v313 = vld [vmem:[%s269 + $0x90] sm:$0xff]
        %v314 = vld [vmem:[%s269 + $0x98] sm:$0xff]
        %v315 = vld [vmem:[%s269 + $0xa0] sm:$0xff]
        %v316 = vld [vmem:[%s269 + $0xa8] sm:$0xff]
        %v317 = vld [vmem:[%s269 + $0xb0] sm:$0xff]
        %v318 = vld [vmem:[%s269 + $0xb8] sm:$0xff]
        %v319 = vld [vmem:[%s269 + $0xc0] sm:$0xff]
        %v320 = vld [vmem:[%s269 + $0xc8] sm:$0xff]
        %v321 = vld [vmem:[%s269 + $0xd0] sm:$0xff]
        %v322 = vld [vmem:[%s269 + $0xd8] sm:$0xff]
        %v323 = vld [vmem:[%s269 + $0xe0] sm:$0xff]
        %v324 = vld [vmem:[%s269 + $0xe8] sm:$0xff]
        %v325 = vld [vmem:[%s269 + $0xf0] sm:$0xff]
        %v326 = vld [vmem:[%s269 + $0xf8] sm:$0xff]
        %v327 = vld [vmem:[%s289] sm:$0x3]
        %vm328 = vcmask 31744
        %v329 = vsel %vm328, %v295, 0.0
        %330 = vadd.xlane.f32.xlu0 %v329
        %v331 = vpop.xlane.xlu0 %330
        %v332 = vsel %vm328, %v296, 0.0
        %333 = vadd.xlane.f32.xlu0 %v332
        %v334 = vpop.xlane.xlu0 %333
        %v335 = vsel %vm328, %v297, 0.0
        %336 = vadd.xlane.f32.xlu0 %v335
        %v337 = vpop.xlane.xlu0 %336
        %v338 = vsel %vm328, %v298, 0.0
        %339 = vadd.xlane.f32.xlu0 %v338
        %v340 = vpop.xlane.xlu0 %339
        %v341 = vsel %vm328, %v299, 0.0
        %342 = vadd.xlane.f32.xlu0 %v341
        %v343 = vpop.xlane.xlu0 %342
        %v344 = vsel %vm328, %v300, 0.0
        %345 = vadd.xlane.f32.xlu0 %v344
        %v346 = vpop.xlane.xlu0 %345
        %v347 = vsel %vm328, %v301, 0.0
        %348 = vadd.xlane.f32.xlu0 %v347
        %v349 = vpop.xlane.xlu0 %348
        %v350 = vsel %vm328, %v302, 0.0
        %351 = vadd.xlane.f32.xlu0 %v350
        %v352 = vpop.xlane.xlu0 %351
        %v353 = vsel %vm328, %v303, 0.0
        %354 = vadd.xlane.f32.xlu0 %v353
        %v355 = vpop.xlane.xlu0 %354
        %v356 = vsel %vm328, %v304, 0.0
        %357 = vadd.xlane.f32.xlu0 %v356
        %v358 = vpop.xlane.xlu0 %357
        %v359 = vsel %vm328, %v305, 0.0
        %360 = vadd.xlane.f32.xlu0 %v359
        %v361 = vpop.xlane.xlu0 %360
        %v362 = vsel %vm328, %v306, 0.0
        %363 = vadd.xlane.f32.xlu0 %v362
        %v364 = vpop.xlane.xlu0 %363
        %v365 = vsel %vm328, %v307, 0.0
        %366 = vadd.xlane.f32.xlu0 %v365
        %v367 = vpop.xlane.xlu0 %366
        %v368 = vsel %vm328, %v308, 0.0
        %369 = vadd.xlane.f32.xlu0 %v368
        %v370 = vpop.xlane.xlu0 %369
        %v371 = vsel %vm328, %v309, 0.0
        %372 = vadd.xlane.f32.xlu0 %v371
        %v373 = vpop.xlane.xlu0 %372
        %v374 = vsel %vm328, %v310, 0.0
        %375 = vadd.xlane.f32.xlu0 %v374
        %v376 = vpop.xlane.xlu0 %375
        %v377 = vsel %vm328, %v311, 0.0
        %378 = vadd.xlane.f32.xlu0 %v377
        %v379 = vpop.xlane.xlu0 %378
        %v380 = vsel %vm328, %v312, 0.0
        %381 = vadd.xlane.f32.xlu0 %v380
        %v382 = vpop.xlane.xlu0 %381
        %v383 = vsel %vm328, %v313, 0.0
        %384 = vadd.xlane.f32.xlu0 %v383
        %v385 = vpop.xlane.xlu0 %384
        %v386 = vsel %vm328, %v314, 0.0
        %387 = vadd.xlane.f32.xlu0 %v386
        %v388 = vpop.xlane.xlu0 %387
        %v389 = vsel %vm328, %v315, 0.0
        %390 = vadd.xlane.f32.xlu0 %v389
        %v391 = vpop.xlane.xlu0 %390
        %v392 = vsel %vm328, %v316, 0.0
        %393 = vadd.xlane.f32.xlu0 %v392
        %v394 = vpop.xlane.xlu0 %393
        %v395 = vsel %vm328, %v317, 0.0
        %396 = vadd.xlane.f32.xlu0 %v395
        %v397 = vpop.xlane.xlu0 %396
        %v398 = vsel %vm328, %v318, 0.0
        %399 = vadd.xlane.f32.xlu0 %v398
        %v400 = vpop.xlane.xlu0 %399
        %v401 = vsel %vm328, %v319, 0.0
        %402 = vadd.xlane.f32.xlu0 %v401
        %v403 = vpop.xlane.xlu0 %402
        %v404 = vsel %vm328, %v320, 0.0
        %405 = vadd.xlane.f32.xlu0 %v404
        %v406 = vpop.xlane.xlu0 %405
        %v407 = vsel %vm328, %v321, 0.0
        %408 = vadd.xlane.f32.xlu0 %v407
        %v409 = vpop.xlane.xlu0 %408
        %v410 = vsel %vm328, %v322, 0.0
        %411 = vadd.xlane.f32.xlu0 %v410
        %v412 = vpop.xlane.xlu0 %411
        %v413 = vsel %vm328, %v323, 0.0
        %414 = vadd.xlane.f32.xlu0 %v413
        %v415 = vpop.xlane.xlu0 %414
        %v416 = vsel %vm328, %v324, 0.0
        %417 = vadd.xlane.f32.xlu0 %v416
        %v418 = vpop.xlane.xlu0 %417
        %v419 = vsel %vm328, %v325, 0.0
        %420 = vadd.xlane.f32.xlu0 %v419
        %v421 = vpop.xlane.xlu0 %420
        %v422 = vsel %vm328, %v326, 0.0
        %423 = vadd.xlane.f32.xlu0 %v422
        %v424 = vpop.xlane.xlu0 %423
        %v457 = vlaneseq
        %v458 = vand.u32 %v457, 127
        %v459 = vlaneseq
        %v460 = vshrl.u32 %v459, 7
        %v461 = vsub.s32 %v458, %v460
        %v462 = vrot.slane %v331, %v461
        %v463 = vadd.s32 %v458, 4294967288
        %v464 = vlaneseq
        %v465 = vshrl.u32 %v464, 7
        %v466 = vsub.s32 %v463, %v465
        %v467 = vrot.slane %v334, %v466
        %vm468 = vcmask 130112
        %v469 = vsel %vm468, %v467, %v462
        %v470 = vadd.s32 %v458, 4294967280
        %v471 = vlaneseq
        %v472 = vshrl.u32 %v471, 7
        %v473 = vsub.s32 %v470, %v472
        %v474 = vrot.slane %v337, %v473
        %vm475 = vcmask 195712
        %v476 = vsel %vm475, %v474, %v469
        %v477 = vadd.s32 %v458, 4294967272
        %v478 = vlaneseq
        %v479 = vshrl.u32 %v478, 7
        %v480 = vsub.s32 %v477, %v479
        %v481 = vrot.slane %v340, %v480
        %vm482 = vcmask 261312
        %v483 = vsel %vm482, %v481, %v476
        %v484 = vadd.s32 %v458, 4294967264
        %v485 = vlaneseq
        %v486 = vshrl.u32 %v485, 7
        %v487 = vsub.s32 %v484, %v486
        %v488 = vrot.slane %v343, %v487
        %vm489 = vcmask 326912
        %v490 = vsel %vm489, %v488, %v483
        %v491 = vadd.s32 %v458, 4294967256
        %v492 = vlaneseq
        %v493 = vshrl.u32 %v492, 7
        %v494 = vsub.s32 %v491, %v493
        %v495 = vrot.slane %v346, %v494
        %vm496 = vcmask 392512
        %v497 = vsel %vm496, %v495, %v490
        %v498 = vadd.s32 %v458, 4294967248
        %v499 = vlaneseq
        %v500 = vshrl.u32 %v499, 7
        %v501 = vsub.s32 %v498, %v500
        %v502 = vrot.slane %v349, %v501
        %vm503 = vcmask 458112
        %v504 = vsel %vm503, %v502, %v497
        %v505 = vadd.s32 %v458, 4294967240
        %v506 = vlaneseq
        %v507 = vshrl.u32 %v506, 7
        %v508 = vsub.s32 %v505, %v507
        %v509 = vrot.slane %v352, %v508
        %vm510 = vcmask 523712
        %v511 = vsel %vm510, %v509, %v504
        %v512 = vadd.s32 %v458, 4294967232
        %v513 = vlaneseq
        %v514 = vshrl.u32 %v513, 7
        %v515 = vsub.s32 %v512, %v514
        %v516 = vrot.slane %v355, %v515
        %vm517 = vcmask 589312
        %v518 = vsel %vm517, %v516, %v511
        %v519 = vadd.s32 %v458, 4294967224
        %v520 = vlaneseq
        %v521 = vshrl.u32 %v520, 7
        %v522 = vsub.s32 %v519, %v521
        %v523 = vrot.slane %v358, %v522
        %vm524 = vcmask 654912
        %v525 = vsel %vm524, %v523, %v518
        %v526 = vadd.s32 %v458, 4294967216
        %v527 = vlaneseq
        %v528 = vshrl.u32 %v527, 7
        %v529 = vsub.s32 %v526, %v528
        %v530 = vrot.slane %v361, %v529
        %vm531 = vcmask 720512
        %v532 = vsel %vm531, %v530, %v525
        %v533 = vadd.s32 %v458, 4294967208
        %v534 = vlaneseq
        %v535 = vshrl.u32 %v534, 7
        %v536 = vsub.s32 %v533, %v535
        %v537 = vrot.slane %v364, %v536
        %vm538 = vcmask 786112
        %v539 = vsel %vm538, %v537, %v532
        %v540 = vadd.s32 %v458, 4294967200
        %v541 = vlaneseq
        %v542 = vshrl.u32 %v541, 7
        %v543 = vsub.s32 %v540, %v542
        %v544 = vrot.slane %v367, %v543
        %vm545 = vcmask 851712
        %v546 = vsel %vm545, %v544, %v539
        %v547 = vadd.s32 %v458, 4294967192
        %v548 = vlaneseq
        %v549 = vshrl.u32 %v548, 7
        %v550 = vsub.s32 %v547, %v549
        %v551 = vrot.slane %v370, %v550
        %vm552 = vcmask 917312
        %v553 = vsel %vm552, %v551, %v546
        %v554 = vadd.s32 %v458, 4294967184
        %v555 = vlaneseq
        %v556 = vshrl.u32 %v555, 7
        %v557 = vsub.s32 %v554, %v556
        %v558 = vrot.slane %v373, %v557
        %vm559 = vcmask 982912
        %v560 = vsel %vm559, %v558, %v553
        %v561 = vadd.s32 %v458, 4294967176
        %v562 = vlaneseq
        %v563 = vshrl.u32 %v562, 7
        %v564 = vsub.s32 %v561, %v563
        %v565 = vrot.slane %v376, %v564
        %vm566 = vcmask 1048512
        %v567 = vsel %vm566, %v565, %v560
        %v568 = vlaneseq
        %v569 = vshrl.u32 %v568, 7
        %v570 = vsub.s32 %v458, %v569
        %v571 = vrot.slane %v379, %v570
        %v572 = vlaneseq
        %v573 = vshrl.u32 %v572, 7
        %v574 = vsub.s32 %v463, %v573
        %v575 = vrot.slane %v382, %v574
        %v576 = vsel %vm468, %v575, %v571
        %v577 = vlaneseq
        %v578 = vshrl.u32 %v577, 7
        %v579 = vsub.s32 %v470, %v578
        %v580 = vrot.slane %v385, %v579
        %v581 = vsel %vm475, %v580, %v576
        %v582 = vlaneseq
        %v583 = vshrl.u32 %v582, 7
        %v584 = vsub.s32 %v477, %v583
        %v585 = vrot.slane %v388, %v584
        %v586 = vsel %vm482, %v585, %v581
        %v587 = vlaneseq
        %v588 = vshrl.u32 %v587, 7
        %v589 = vsub.s32 %v484, %v588
        %v590 = vrot.slane %v391, %v589
        %v591 = vsel %vm489, %v590, %v586
        %v592 = vlaneseq
        %v593 = vshrl.u32 %v592, 7
        %v594 = vsub.s32 %v491, %v593
        %v595 = vrot.slane %v394, %v594
        %v596 = vsel %vm496, %v595, %v591
        %v597 = vlaneseq
        %v598 = vshrl.u32 %v597, 7
        %v599 = vsub.s32 %v498, %v598
        %v600 = vrot.slane %v397, %v599
        %v601 = vsel %vm503, %v600, %v596
        %v602 = vlaneseq
        %v603 = vshrl.u32 %v602, 7
        %v604 = vsub.s32 %v505, %v603
        %v605 = vrot.slane %v400, %v604
        %v606 = vsel %vm510, %v605, %v601
        %v607 = vlaneseq
        %v608 = vshrl.u32 %v607, 7
        %v609 = vsub.s32 %v512, %v608
        %v610 = vrot.slane %v403, %v609
        %v611 = vsel %vm517, %v610, %v606
        %v612 = vlaneseq
        %v613 = vshrl.u32 %v612, 7
        %v614 = vsub.s32 %v519, %v613
        %v615 = vrot.slane %v406, %v614
        %v616 = vsel %vm524, %v615, %v611
        %v617 = vlaneseq
        %v618 = vshrl.u32 %v617, 7
        %v619 = vsub.s32 %v526, %v618
        %v620 = vrot.slane %v409, %v619
        %v621 = vsel %vm531, %v620, %v616
        %v622 = vlaneseq
        %v623 = vshrl.u32 %v622, 7
        %v624 = vsub.s32 %v533, %v623
        %v625 = vrot.slane %v412, %v624
        %v626 = vsel %vm538, %v625, %v621
        %v627 = vlaneseq
        %v628 = vshrl.u32 %v627, 7
        %v629 = vsub.s32 %v540, %v628
        %v630 = vrot.slane %v415, %v629
        %v631 = vsel %vm545, %v630, %v626
        %v632 = vlaneseq
        %v633 = vshrl.u32 %v632, 7
        %v634 = vsub.s32 %v547, %v633
        %v635 = vrot.slane %v418, %v634
        %v636 = vsel %vm552, %v635, %v631
        %v637 = vlaneseq
        %v638 = vshrl.u32 %v637, 7
        %v639 = vsub.s32 %v554, %v638
        %v640 = vrot.slane %v421, %v639
        %v641 = vsel %vm559, %v640, %v636
        %v642 = vlaneseq
        %v643 = vshrl.u32 %v642, 7
        %v644 = vsub.s32 %v561, %v643
        %v645 = vrot.slane %v424, %v644
        %v646 = vsel %vm566, %v645, %v641
        %vm647 = vcmask 1041409
        %v648 = vsel %vm647, %v646, %v567
        %v650 = vadd.f32 %v327, %v648
        %651 = vst [vmem:[%s289] sm:$0x3] %v650
        // Predicated region
        $region67: #{faster_rcnn_embedder.8} parent=57 // pred_check
          %p652 = pneg %p290
        $region68: #{faster_rcnn_embedder.8} parent=57 // pred_check_branch
          %654 = sbr.rel (%p652) target = $region70
        $region69: #{faster_rcnn_embedder.8} parent=57 // pred_region
          %v655 = vld [vmem:[%s289] sm:$0x3]
          %v656 = vmul.f32 %v655, 0.25
          %657 = vst [vmem:[%s289] sm:$0x3] %v656
        $region70: #{faster_rcnn_embedder.8} parent=57 // pred_fallthru
          _
        %p658 = scmp.lt.s32.totalorder %s16, 1
        %s659 = scalar_select %p658, %s16, 1
        %s660 = smul.addr %s659, 2
        %s661 = scalar_lea.vmem %s1, %s660
        // Predicated region
        $region71: #{faster_rcnn_embedder.8} parent=57 // pred_check
          %p662 = pneg %p70
        $region72: #{faster_rcnn_embedder.8} parent=57 // pred_check_branch
          %664 = sbr.rel (%p662) target = $region74
        $region73: #{faster_rcnn_embedder.8} parent=57 // pred_region
          _
        $region74: #{faster_rcnn_embedder.8} parent=57 // pred_fallthru
          _
      $region58: #{faster_rcnn_embedder.8} parent=5 // pred_fallthru
        _
      %p665 = scmp.le.s32.totalorder 2, %s7
      // Predicated region
      $region75: #{faster_rcnn_embedder.8} parent=5 // pred_check
        %p666 = pneg %p665
      $region76: #{faster_rcnn_embedder.8} parent=5 // pred_check_branch
        %668 = sbr.rel (%p666) target = $region78
      $region77: #{faster_rcnn_embedder.8} parent=5 // pred_region
        %s669 = ssub.s32 %s7, 2
        // Predicated region
        $region79: #{faster_rcnn_embedder.8} parent=77 // pred_check
          %p670 = pneg %p76
        $region80: #{faster_rcnn_embedder.8} parent=77 // pred_check_branch
          %672 = sbr.rel (%p670) target = $region82
        $region81: #{faster_rcnn_embedder.8} parent=77 // pred_region
          %p673 = scmp.lt.s32.totalorder %s18, 1
          %s674 = scalar_select %p673, %s18, 1
          %s675 = smul.addr %s674, 2
          %s676 = scalar_lea.vmem %s1, %s675
        $region82: #{faster_rcnn_embedder.8} parent=77 // pred_fallthru
          _
      $region78: #{faster_rcnn_embedder.8} parent=5 // pred_fallthru
        _
    $region6: #{faster_rcnn_embedder.8} parent=1 // loop_footer
      %s11 = sadd.s32 1, %s7
    $region7: #{faster_rcnn_embedder.8} parent=1 // loop_footer_branch
      %6 = sbr.rel target = $region3
    $region8: #{faster_rcnn_embedder.8} parent=1 // loop_exit
      _

// kernel: faster_rcnn_embedder.5
$region0: #{faster_rcnn_embedder.5}
  #allocation0 [shape = 'u32[]', space=smem, size = 0x4, offset = 0x4, fixed_abs, tag = 'smem constant byte address 0x4 - core index']
  #allocation1 [shape = 'u32[144,128]{1,0:T(1,128)}', space=vmem, size = 0x12000, scoped, tag = 'internal scratch']
  %s0 = inlined_call_operand.vmem [shape: f32[2,256,256], index: 0, kind: input, shape index: {}]
  %s1 = inlined_call_operand.vmem [shape: f32[2,256], index: 1, kind: output, shape index: {}]
  %s2 = sld [smem:[#allocation0]]
  $region68: #{faster_rcnn_embedder.5} parent=0
    _
  %s4 = ssub.s32 1, %s2
  %s5 = scalar_select 0, %s4, %s2
  $region1: #{faster_rcnn_embedder.5} parent=0
    #allocation2 [shape = 'u8[524288]{0}', space=vmem, size = 0x80000, scoped, tag = 'input window, operand 0']
    loop: start=0, step=1, limit=4
    $region2: #{faster_rcnn_embedder.5} parent=1 // loop_pre_header
      _
    $region3: #{faster_rcnn_embedder.5} parent=1 // loop_header
      %s7 = sphi 0, %s11
      %p8 = scmp.ge.s32.totalorder %s7, 4
      %s14 = sphi 0, %s26
      %s15 = sphi 0, %s22
      %s16 = sphi 0, %s14
      %s17 = sphi 0, %s15
      %s18 = sphi 0, %s16
      %s19 = sphi 0, %s17
      %s31 = sphi 0, %s33
      %s34 = sphi 0, %s31
      %s35 = sphi 0, %s34
      %s51 = sphi 0, %s35
      %s57 = sphi 0, %s59
      %s60 = sphi 0, %s57
      %s61 = sphi 0, %s60
      %s77 = sphi 0, %s61
    $region4: #{faster_rcnn_embedder.5} parent=1 // loop_header_branch
      %10 = sbr.rel (%p8) target = $region8
    $region5: #{faster_rcnn_embedder.5} parent=1 // loop_body
      %s12 = ssub.s32 %s7, 1
      %s13 = ssub.s32 %s7, 2
      %s20 = sadd.s32 1, %s15
      %p21 = scmp.ge.s32.totalorder %s20, 1
      %s22 = scalar_select %p21, 0, %s20
      %s23 = sadd.s32 1, %s14
      %s24 = scalar_select %p21, %s23, %s14
      %p25 = scmp.ge.s32.totalorder %s24, 2
      %s26 = scalar_select %p25, 0, %s24
      %s27 = ssub.s32 %s14, %s26
      %s28 = ssub.s32 %s15, %s22
      %s29 = sor.u32 %s27, %s28
      %p30 = scmp.eq.s32.totalorder %s29, 0
      %s32 = sadd.s32 %s31, 1
      %s33 = scalar_select %p30, %s31, %s32
      %p36 = pneg %p30
      %p37 = scmp.eq.s32.totalorder %s7, 1
      %p38 = por %p36, %p37
      %p39 = scmp.ne.s32.totalorder %s31, %s34
      %p40 = scmp.eq.s32.totalorder %s7, 0
      %p41 = por %p39, %p40
      %p42 = scmp.ne.s32.totalorder %s31, %s34
      %p43 = scmp.eq.s32.totalorder %s12, 1
      %p44 = por %p42, %p43
      %p45 = scmp.ne.s32.totalorder %s34, %s35
      %p46 = scmp.eq.s32.totalorder %s12, 0
      %p47 = por %p45, %p46
      %p48 = scmp.ne.s32.totalorder %s34, %s35
      %p49 = scmp.eq.s32.totalorder %s13, 1
      %p50 = por %p48, %p49
      %p52 = scmp.ne.s32.totalorder %s35, %s51
      %p53 = scmp.eq.s32.totalorder %s13, 0
      %p54 = por %p52, %p53
      %s55 = ssub.s32 %s14, %s26
      %p56 = scmp.eq.s32.totalorder %s55, 0
      %s58 = sadd.s32 %s57, 1
      %s59 = scalar_select %p56, %s57, %s58
      %p62 = pneg %p56
      %p63 = scmp.eq.s32.totalorder %s7, 1
      %p64 = por %p62, %p63
      %p65 = scmp.ne.s32.totalorder %s57, %s60
      %p66 = scmp.eq.s32.totalorder %s7, 0
      %p67 = por %p65, %p66
      %p68 = scmp.ne.s32.totalorder %s57, %s60
      %p69 = scmp.eq.s32.totalorder %s12, 1
      %p70 = por %p68, %p69
      %p71 = scmp.ne.s32.totalorder %s60, %s61
      %p72 = scmp.eq.s32.totalorder %s12, 0
      %p73 = por %p71, %p72
      %p74 = scmp.ne.s32.totalorder %s60, %s61
      %p75 = scmp.eq.s32.totalorder %s13, 1
      %p76 = por %p74, %p75
      %p78 = scmp.ne.s32.totalorder %s61, %s77
      %p79 = scmp.eq.s32.totalorder %s13, 0
      %p80 = por %p78, %p79
      %p81 = scmp.le.s32.totalorder 1, %s7
      %p82 = scmp.lt.s32.totalorder %s7, 3
      %p83 = pnand %p81, %p82
      %p84 = pneg %p83
      // Predicated region
      $region9: #{faster_rcnn_embedder.5} parent=5 // pred_check
        _
      $region10: #{faster_rcnn_embedder.5} parent=5 // pred_check_branch
        %86 = sbr.rel (%p83) target = $region12
      $region11: #{faster_rcnn_embedder.5} parent=5 // pred_region
        %s87 = ssub.s32 %s7, 1
      $region12: #{faster_rcnn_embedder.5} parent=5 // pred_fallthru
        _
      %p88 = scmp.lt.s32.totalorder %s7, 2
      // Predicated region
      $region13: #{faster_rcnn_embedder.5} parent=5 // pred_check
        %p89 = pneg %p88
      $region14: #{faster_rcnn_embedder.5} parent=5 // pred_check_branch
        %91 = sbr.rel (%p89) target = $region16
      $region15: #{faster_rcnn_embedder.5} parent=5 // pred_region
        // Predicated region
        $region17: #{faster_rcnn_embedder.5} parent=15 // pred_check
          %p92 = pneg %p41
        $region18: #{faster_rcnn_embedder.5} parent=15 // pred_check_branch
          %94 = sbr.rel (%p92) target = $region20
        $region19: #{faster_rcnn_embedder.5} parent=15 // pred_region
          %s95 = sand.u32 %s31, 1
          %s96 = sand.u32 %s31, 1
          %s97 = smul.addr %s96, 512
          %s98 = scalar_lea.vmem [#allocation2], %s97
          %s99 = smul.u32 16, %s14
          %s100 = smul.u32 2, %s15
          %s101 = smul.addr %s99, 2
          %s102 = sadd.s32 %s100, %s101
          %s103 = smul.addr %s102, 8
          %s104 = scalar_lea.vmem %s0, %s103
          // Predicated region
          $region21: #{faster_rcnn_embedder.5} parent=19 // pred_check
            _
          $region22: #{faster_rcnn_embedder.5} parent=19 // pred_check_branch
            %106 = sbr.rel (0) target = $region24
          $region23: #{faster_rcnn_embedder.5} parent=19 // pred_region
            // Predicated region
            $region25: #{faster_rcnn_embedder.5} parent=23 // pred_check
              _
            $region26: #{faster_rcnn_embedder.5} parent=23 // pred_check_branch
              %108 = sbr.rel (0) target = $region28
            $region27: #{faster_rcnn_embedder.5} parent=23 // pred_region
              loop: start=0, step=1, limit=1
              $region29: #{faster_rcnn_embedder.5} parent=27 // loop_pre_header
                _
              $region30: #{faster_rcnn_embedder.5} parent=27 // loop_header
                %s110 = sphi 0, %s114
                %p111 = scmp.ge.s32.totalorder %s110, 1
                %s115 = sphi %s104, %s104
                %s116 = sphi %s98, %s98
              $region31: #{faster_rcnn_embedder.5} parent=27 // loop_header_branch
                %113 = sbr.rel (%p111) target = $region35
              $region32: #{faster_rcnn_embedder.5} parent=27 // loop_body
                %v117 = vld [vmem:[%s115] sm:$0xff]
                %118 = vst [vmem:[%s116] sm:$0xff] %v117
                %v119 = vld [vmem:[%s115 + $0x8] sm:$0xff]
                %120 = vst [vmem:[%s116 + $0x8] sm:$0xff] %v119
                %v121 = vld [vmem:[%s115 + $0x10] sm:$0xff]
                %122 = vst [vmem:[%s116 + $0x10] sm:$0xff] %v121
                %v123 = vld [vmem:[%s115 + $0x18] sm:$0xff]
                %124 = vst [vmem:[%s116 + $0x18] sm:$0xff] %v123
                %v125 = vld [vmem:[%s115 + $0x20] sm:$0xff]
                %126 = vst [vmem:[%s116 + $0x20] sm:$0xff] %v125
                %v127 = vld [vmem:[%s115 + $0x28] sm:$0xff]
                %128 = vst [vmem:[%s116 + $0x28] sm:$0xff] %v127
                %v129 = vld [vmem:[%s115 + $0x30] sm:$0xff]
                %130 = vst [vmem:[%s116 + $0x30] sm:$0xff] %v129
                %v131 = vld [vmem:[%s115 + $0x38] sm:$0xff]
                %132 = vst [vmem:[%s116 + $0x38] sm:$0xff] %v131
                %v133 = vld [vmem:[%s115 + $0x40] sm:$0xff]
                %134 = vst [vmem:[%s116 + $0x40] sm:$0xff] %v133
                %v135 = vld [vmem:[%s115 + $0x48] sm:$0xff]
                %136 = vst [vmem:[%s116 + $0x48] sm:$0xff] %v135
                %v137 = vld [vmem:[%s115 + $0x50] sm:$0xff]
                %138 = vst [vmem:[%s116 + $0x50] sm:$0xff] %v137
                %v139 = vld [vmem:[%s115 + $0x58] sm:$0xff]
                %140 = vst [vmem:[%s116 + $0x58] sm:$0xff] %v139
                %v141 = vld [vmem:[%s115 + $0x60] sm:$0xff]
                %142 = vst [vmem:[%s116 + $0x60] sm:$0xff] %v141
                %v143 = vld [vmem:[%s115 + $0x68] sm:$0xff]
                %144 = vst [vmem:[%s116 + $0x68] sm:$0xff] %v143
                %v145 = vld [vmem:[%s115 + $0x70] sm:$0xff]
                %146 = vst [vmem:[%s116 + $0x70] sm:$0xff] %v145
                %v147 = vld [vmem:[%s115 + $0x78] sm:$0xff]
                %148 = vst [vmem:[%s116 + $0x78] sm:$0xff] %v147
                %v149 = vld [vmem:[%s115 + $0x80] sm:$0xff]
                %150 = vst [vmem:[%s116 + $0x80] sm:$0xff] %v149
                %v151 = vld [vmem:[%s115 + $0x88] sm:$0xff]
                %152 = vst [vmem:[%s116 + $0x88] sm:$0xff] %v151
                %v153 = vld [vmem:[%s115 + $0x90] sm:$0xff]
                %154 = vst [vmem:[%s116 + $0x90] sm:$0xff] %v153
                %v155 = vld [vmem:[%s115 + $0x98] sm:$0xff]
                %156 = vst [vmem:[%s116 + $0x98] sm:$0xff] %v155
                %v157 = vld [vmem:[%s115 + $0xa0] sm:$0xff]
                %158 = vst [vmem:[%s116 + $0xa0] sm:$0xff] %v157
                %v159 = vld [vmem:[%s115 + $0xa8] sm:$0xff]
                %160 = vst [vmem:[%s116 + $0xa8] sm:$0xff] %v159
                %v161 = vld [vmem:[%s115 + $0xb0] sm:$0xff]
                %162 = vst [vmem:[%s116 + $0xb0] sm:$0xff] %v161
                %v163 = vld [vmem:[%s115 + $0xb8] sm:$0xff]
                %164 = vst [vmem:[%s116 + $0xb8] sm:$0xff] %v163
                %v165 = vld [vmem:[%s115 + $0xc0] sm:$0xff]
                %166 = vst [vmem:[%s116 + $0xc0] sm:$0xff] %v165
                %v167 = vld [vmem:[%s115 + $0xc8] sm:$0xff]
                %168 = vst [vmem:[%s116 + $0xc8] sm:$0xff] %v167
                %v169 = vld [vmem:[%s115 + $0xd0] sm:$0xff]
                %170 = vst [vmem:[%s116 + $0xd0] sm:$0xff] %v169
                %v171 = vld [vmem:[%s115 + $0xd8] sm:$0xff]
                %172 = vst [vmem:[%s116 + $0xd8] sm:$0xff] %v171
                %v173 = vld [vmem:[%s115 + $0xe0] sm:$0xff]
                %174 = vst [vmem:[%s116 + $0xe0] sm:$0xff] %v173
                %v175 = vld [vmem:[%s115 + $0xe8] sm:$0xff]
                %176 = vst [vmem:[%s116 + $0xe8] sm:$0xff] %v175
                %v177 = vld [vmem:[%s115 + $0xf0] sm:$0xff]
                %178 = vst [vmem:[%s116 + $0xf0] sm:$0xff] %v177
                %v179 = vld [vmem:[%s115 + $0xf8] sm:$0xff]
                %180 = vst [vmem:[%s116 + $0xf8] sm:$0xff] %v179
                %v181 = vld [vmem:[%s115 + $0x200] sm:$0xff]
                %182 = vst [vmem:[%s116 + $0x100] sm:$0xff] %v181
                %v183 = vld [vmem:[%s115 + $0x208] sm:$0xff]
                %184 = vst [vmem:[%s116 + $0x108] sm:$0xff] %v183
                %v185 = vld [vmem:[%s115 + $0x210] sm:$0xff]
                %186 = vst [vmem:[%s116 + $0x110] sm:$0xff] %v185
                %v187 = vld [vmem:[%s115 + $0x218] sm:$0xff]
                %188 = vst [vmem:[%s116 + $0x118] sm:$0xff] %v187
                %v189 = vld [vmem:[%s115 + $0x220] sm:$0xff]
                %190 = vst [vmem:[%s116 + $0x120] sm:$0xff] %v189
                %v191 = vld [vmem:[%s115 + $0x228] sm:$0xff]
                %192 = vst [vmem:[%s116 + $0x128] sm:$0xff] %v191
                %v193 = vld [vmem:[%s115 + $0x230] sm:$0xff]
                %194 = vst [vmem:[%s116 + $0x130] sm:$0xff] %v193
                %v195 = vld [vmem:[%s115 + $0x238] sm:$0xff]
                %196 = vst [vmem:[%s116 + $0x138] sm:$0xff] %v195
                %v197 = vld [vmem:[%s115 + $0x240] sm:$0xff]
                %198 = vst [vmem:[%s116 + $0x140] sm:$0xff] %v197
                %v199 = vld [vmem:[%s115 + $0x248] sm:$0xff]
                %200 = vst [vmem:[%s116 + $0x148] sm:$0xff] %v199
                %v201 = vld [vmem:[%s115 + $0x250] sm:$0xff]
                %202 = vst [vmem:[%s116 + $0x150] sm:$0xff] %v201
                %v203 = vld [vmem:[%s115 + $0x258] sm:$0xff]
                %204 = vst [vmem:[%s116 + $0x158] sm:$0xff] %v203
                %v205 = vld [vmem:[%s115 + $0x260] sm:$0xff]
                %206 = vst [vmem:[%s116 + $0x160] sm:$0xff] %v205
                %v207 = vld [vmem:[%s115 + $0x268] sm:$0xff]
                %208 = vst [vmem:[%s116 + $0x168] sm:$0xff] %v207
                %v209 = vld [vmem:[%s115 + $0x270] sm:$0xff]
                %210 = vst [vmem:[%s116 + $0x170] sm:$0xff] %v209
                %v211 = vld [vmem:[%s115 + $0x278] sm:$0xff]
                %212 = vst [vmem:[%s116 + $0x178] sm:$0xff] %v211
                %v213 = vld [vmem:[%s115 + $0x280] sm:$0xff]
                %214 = vst [vmem:[%s116 + $0x180] sm:$0xff] %v213
                %v215 = vld [vmem:[%s115 + $0x288] sm:$0xff]
                %216 = vst [vmem:[%s116 + $0x188] sm:$0xff] %v215
                %v217 = vld [vmem:[%s115 + $0x290] sm:$0xff]
                %218 = vst [vmem:[%s116 + $0x190] sm:$0xff] %v217
                %v219 = vld [vmem:[%s115 + $0x298] sm:$0xff]
                %220 = vst [vmem:[%s116 + $0x198] sm:$0xff] %v219
                %v221 = vld [vmem:[%s115 + $0x2a0] sm:$0xff]
                %222 = vst [vmem:[%s116 + $0x1a0] sm:$0xff] %v221
                %v223 = vld [vmem:[%s115 + $0x2a8] sm:$0xff]
                %224 = vst [vmem:[%s116 + $0x1a8] sm:$0xff] %v223
                %v225 = vld [vmem:[%s115 + $0x2b0] sm:$0xff]
                %226 = vst [vmem:[%s116 + $0x1b0] sm:$0xff] %v225
                %v227 = vld [vmem:[%s115 + $0x2b8] sm:$0xff]
                %228 = vst [vmem:[%s116 + $0x1b8] sm:$0xff] %v227
                %v229 = vld [vmem:[%s115 + $0x2c0] sm:$0xff]
                %230 = vst [vmem:[%s116 + $0x1c0] sm:$0xff] %v229
                %v231 = vld [vmem:[%s115 + $0x2c8] sm:$0xff]
                %232 = vst [vmem:[%s116 + $0x1c8] sm:$0xff] %v231
                %v233 = vld [vmem:[%s115 + $0x2d0] sm:$0xff]
                %234 = vst [vmem:[%s116 + $0x1d0] sm:$0xff] %v233
                %v235 = vld [vmem:[%s115 + $0x2d8] sm:$0xff]
                %236 = vst [vmem:[%s116 + $0x1d8] sm:$0xff] %v235
                %v237 = vld [vmem:[%s115 + $0x2e0] sm:$0xff]
                %238 = vst [vmem:[%s116 + $0x1e0] sm:$0xff] %v237
                %v239 = vld [vmem:[%s115 + $0x2e8] sm:$0xff]
                %240 = vst [vmem:[%s116 + $0x1e8] sm:$0xff] %v239
                %v241 = vld [vmem:[%s115 + $0x2f0] sm:$0xff]
                %242 = vst [vmem:[%s116 + $0x1f0] sm:$0xff] %v241
                %v243 = vld [vmem:[%s115 + $0x2f8] sm:$0xff]
                %244 = vst [vmem:[%s116 + $0x1f8] sm:$0xff] %v243
              $region33: #{faster_rcnn_embedder.5} parent=27 // loop_footer
                %s114 = sadd.s32 1, %s110
              $region34: #{faster_rcnn_embedder.5} parent=27 // loop_footer_branch
                %109 = sbr.rel target = $region30
              $region35: #{faster_rcnn_embedder.5} parent=27 // loop_exit
                _
            $region28: #{faster_rcnn_embedder.5} parent=23 // pred_fallthru
              _
            // Predicated region
            $region36: #{faster_rcnn_embedder.5} parent=23 // pred_check
              _
            $region37: #{faster_rcnn_embedder.5} parent=23 // pred_check_branch
              %246 = sbr.rel target = $region39
            $region38: #{faster_rcnn_embedder.5} parent=23 // pred_region
              _
            $region39: #{faster_rcnn_embedder.5} parent=23 // pred_fallthru
              _
          $region24: #{faster_rcnn_embedder.5} parent=19 // pred_fallthru
            _
          %247 = vnop
        $region20: #{faster_rcnn_embedder.5} parent=15 // pred_fallthru
          _
      $region16: #{faster_rcnn_embedder.5} parent=5 // pred_fallthru
        _
      %p248 = scmp.le.s32.totalorder 1, %s7
      %p249 = scmp.lt.s32.totalorder %s7, 3
      %p250 = pnand %p248, %p249
      %p251 = pneg %p250
      // Predicated region
      $region40: #{faster_rcnn_embedder.5} parent=5 // pred_check
        _
      $region41: #{faster_rcnn_embedder.5} parent=5 // pred_check_branch
        %253 = sbr.rel (%p250) target = $region43
      $region42: #{faster_rcnn_embedder.5} parent=5 // pred_region
        %s254 = ssub.s32 %s7, 1
        %s255 = sand.u32 %s34, 1
        %s256 = sand.u32 %s34, 1
        %s257 = smul.addr %s256, 512
        %s258 = scalar_lea.vmem [#allocation2], %s257
        // Predicated region
        $region44: #{faster_rcnn_embedder.5} parent=42 // pred_check
          %p259 = pneg %p47
        $region45: #{faster_rcnn_embedder.5} parent=42 // pred_check_branch
          %261 = sbr.rel (%p259) target = $region47
        $region46: #{faster_rcnn_embedder.5} parent=42 // pred_region
          _
        $region47: #{faster_rcnn_embedder.5} parent=42 // pred_fallthru
          _
        %s262 = sand.u32 %s34, 1
        %s263 = sand.u32 %s34, 1
        %s264 = smul.addr %s263, 512
        %s265 = scalar_lea.vmem [#allocation2], %s264
        %p266 = pneg %p47
        %p267 = pneg %p44
        %p268 = pneg %p73
        %p269 = pneg %p70
        %p270 = scmp.lt.s32.totalorder %s16, 1
        %s271 = scalar_select %p270, %s16, 1
        %s272 = smul.addr %s271, 2
        %s273 = scalar_lea.vmem %s1, %s272
        %s274 = smul.u32 16, %s16
        %s275 = smul.u32 2, %s17
        %p276 = scmp.lt.s32.totalorder %s16, 1
        %s277 = scalar_select %p276, %s16, 1
        %s278 = smul.addr %s277, 2
        %s279 = scalar_lea.vmem %s1, %s278
        %p280 = scmp.eq.s32.totalorder %s17, 0
        // Predicated region
        $region48: #{faster_rcnn_embedder.5} parent=42 // pred_check
          %p281 = pneg %p280
        $region49: #{faster_rcnn_embedder.5} parent=42 // pred_check_branch
          %283 = sbr.rel (%p281) target = $region51
        $region50: #{faster_rcnn_embedder.5} parent=42 // pred_region
          %284 = vst [vmem:[%s279] sm:$0x3] 0.0
        $region51: #{faster_rcnn_embedder.5} parent=42 // pred_fallthru
          _
        %v285 = vld [vmem:[%s258] sm:$0xff]
        %v286 = vld [vmem:[%s258 + $0x8] sm:$0xff]
        %v287 = vld [vmem:[%s258 + $0x10] sm:$0xff]
        %v288 = vld [vmem:[%s258 + $0x18] sm:$0xff]
        %v289 = vld [vmem:[%s258 + $0x20] sm:$0xff]
        %v290 = vld [vmem:[%s258 + $0x28] sm:$0xff]
        %v291 = vld [vmem:[%s258 + $0x30] sm:$0xff]
        %v292 = vld [vmem:[%s258 + $0x38] sm:$0xff]
        %v293 = vld [vmem:[%s258 + $0x40] sm:$0xff]
        %v294 = vld [vmem:[%s258 + $0x48] sm:$0xff]
        %v295 = vld [vmem:[%s258 + $0x50] sm:$0xff]
        %v296 = vld [vmem:[%s258 + $0x58] sm:$0xff]
        %v297 = vld [vmem:[%s258 + $0x60] sm:$0xff]
        %v298 = vld [vmem:[%s258 + $0x68] sm:$0xff]
        %v299 = vld [vmem:[%s258 + $0x70] sm:$0xff]
        %v300 = vld [vmem:[%s258 + $0x78] sm:$0xff]
        %v301 = vld [vmem:[%s258 + $0x80] sm:$0xff]
        %v302 = vld [vmem:[%s258 + $0x88] sm:$0xff]
        %v303 = vld [vmem:[%s258 + $0x90] sm:$0xff]
        %v304 = vld [vmem:[%s258 + $0x98] sm:$0xff]
        %v305 = vld [vmem:[%s258 + $0xa0] sm:$0xff]
        %v306 = vld [vmem:[%s258 + $0xa8] sm:$0xff]
        %v307 = vld [vmem:[%s258 + $0xb0] sm:$0xff]
        %v308 = vld [vmem:[%s258 + $0xb8] sm:$0xff]
        %v309 = vld [vmem:[%s258 + $0xc0] sm:$0xff]
        %v310 = vld [vmem:[%s258 + $0xc8] sm:$0xff]
        %v311 = vld [vmem:[%s258 + $0xd0] sm:$0xff]
        %v312 = vld [vmem:[%s258 + $0xd8] sm:$0xff]
        %v313 = vld [vmem:[%s258 + $0xe0] sm:$0xff]
        %v314 = vld [vmem:[%s258 + $0xe8] sm:$0xff]
        %v315 = vld [vmem:[%s258 + $0xf0] sm:$0xff]
        %v316 = vld [vmem:[%s258 + $0xf8] sm:$0xff]
        %v317 = vld [vmem:[%s258 + $0x100] sm:$0xff]
        %v318 = vld [vmem:[%s258 + $0x108] sm:$0xff]
        %v319 = vld [vmem:[%s258 + $0x110] sm:$0xff]
        %v320 = vld [vmem:[%s258 + $0x118] sm:$0xff]
        %v321 = vld [vmem:[%s258 + $0x120] sm:$0xff]
        %v322 = vld [vmem:[%s258 + $0x128] sm:$0xff]
        %v323 = vld [vmem:[%s258 + $0x130] sm:$0xff]
        %v324 = vld [vmem:[%s258 + $0x138] sm:$0xff]
        %v325 = vld [vmem:[%s258 + $0x140] sm:$0xff]
        %v326 = vld [vmem:[%s258 + $0x148] sm:$0xff]
        %v327 = vld [vmem:[%s258 + $0x150] sm:$0xff]
        %v328 = vld [vmem:[%s258 + $0x158] sm:$0xff]
        %v329 = vld [vmem:[%s258 + $0x160] sm:$0xff]
        %v330 = vld [vmem:[%s258 + $0x168] sm:$0xff]
        %v331 = vld [vmem:[%s258 + $0x170] sm:$0xff]
        %v332 = vld [vmem:[%s258 + $0x178] sm:$0xff]
        %v333 = vld [vmem:[%s258 + $0x180] sm:$0xff]
        %v334 = vld [vmem:[%s258 + $0x188] sm:$0xff]
        %v335 = vld [vmem:[%s258 + $0x190] sm:$0xff]
        %v336 = vld [vmem:[%s258 + $0x198] sm:$0xff]
        %v337 = vld [vmem:[%s258 + $0x1a0] sm:$0xff]
        %v338 = vld [vmem:[%s258 + $0x1a8] sm:$0xff]
        %v339 = vld [vmem:[%s258 + $0x1b0] sm:$0xff]
        %v340 = vld [vmem:[%s258 + $0x1b8] sm:$0xff]
        %v341 = vld [vmem:[%s258 + $0x1c0] sm:$0xff]
        %v342 = vld [vmem:[%s258 + $0x1c8] sm:$0xff]
        %v343 = vld [vmem:[%s258 + $0x1d0] sm:$0xff]
        %v344 = vld [vmem:[%s258 + $0x1d8] sm:$0xff]
        %v345 = vld [vmem:[%s258 + $0x1e0] sm:$0xff]
        %v346 = vld [vmem:[%s258 + $0x1e8] sm:$0xff]
        %v347 = vld [vmem:[%s258 + $0x1f0] sm:$0xff]
        %v348 = vld [vmem:[%s258 + $0x1f8] sm:$0xff]
        %v349 = vld [vmem:[%s279] sm:$0x3]
        %v350 = vadd.f32 %v285, %v286
        %351 = vadd.xlane.f32.xlu0 %v350
        %v352 = vpop.xlane.xlu0 %351
        %v353 = vadd.f32 %v287, %v288
        %354 = vadd.xlane.f32.xlu0 %v353
        %v355 = vpop.xlane.xlu0 %354
        %v356 = vadd.f32 %v289, %v290
        %357 = vadd.xlane.f32.xlu0 %v356
        %v358 = vpop.xlane.xlu0 %357
        %v359 = vadd.f32 %v291, %v292
        %360 = vadd.xlane.f32.xlu0 %v359
        %v361 = vpop.xlane.xlu0 %360
        %v362 = vadd.f32 %v293, %v294
        %363 = vadd.xlane.f32.xlu0 %v362
        %v364 = vpop.xlane.xlu0 %363
        %v365 = vadd.f32 %v295, %v296
        %366 = vadd.xlane.f32.xlu0 %v365
        %v367 = vpop.xlane.xlu0 %366
        %v368 = vadd.f32 %v297, %v298
        %369 = vadd.xlane.f32.xlu0 %v368
        %v370 = vpop.xlane.xlu0 %369
        %v371 = vadd.f32 %v299, %v300
        %372 = vadd.xlane.f32.xlu0 %v371
        %v373 = vpop.xlane.xlu0 %372
        %v374 = vadd.f32 %v301, %v302
        %375 = vadd.xlane.f32.xlu0 %v374
        %v376 = vpop.xlane.xlu0 %375
        %v377 = vadd.f32 %v303, %v304
        %378 = vadd.xlane.f32.xlu0 %v377
        %v379 = vpop.xlane.xlu0 %378
        %v380 = vadd.f32 %v305, %v306
        %381 = vadd.xlane.f32.xlu0 %v380
        %v382 = vpop.xlane.xlu0 %381
        %v383 = vadd.f32 %v307, %v308
        %384 = vadd.xlane.f32.xlu0 %v383
        %v385 = vpop.xlane.xlu0 %384
        %v386 = vadd.f32 %v309, %v310
        %387 = vadd.xlane.f32.xlu0 %v386
        %v388 = vpop.xlane.xlu0 %387
        %v389 = vadd.f32 %v311, %v312
        %390 = vadd.xlane.f32.xlu0 %v389
        %v391 = vpop.xlane.xlu0 %390
        %v392 = vadd.f32 %v313, %v314
        %393 = vadd.xlane.f32.xlu0 %v392
        %v394 = vpop.xlane.xlu0 %393
        %v395 = vadd.f32 %v315, %v316
        %396 = vadd.xlane.f32.xlu0 %v395
        %v397 = vpop.xlane.xlu0 %396
        %v398 = vadd.f32 %v317, %v318
        %399 = vadd.xlane.f32.xlu0 %v398
        %v400 = vpop.xlane.xlu0 %399
        %v401 = vadd.f32 %v319, %v320
        %402 = vadd.xlane.f32.xlu0 %v401
        %v403 = vpop.xlane.xlu0 %402
        %v404 = vadd.f32 %v321, %v322
        %405 = vadd.xlane.f32.xlu0 %v404
        %v406 = vpop.xlane.xlu0 %405
        %v407 = vadd.f32 %v323, %v324
        %408 = vadd.xlane.f32.xlu0 %v407
        %v409 = vpop.xlane.xlu0 %408
        %v410 = vadd.f32 %v325, %v326
        %411 = vadd.xlane.f32.xlu0 %v410
        %v412 = vpop.xlane.xlu0 %411
        %v413 = vadd.f32 %v327, %v328
        %414 = vadd.xlane.f32.xlu0 %v413
        %v415 = vpop.xlane.xlu0 %414
        %v416 = vadd.f32 %v329, %v330
        %417 = vadd.xlane.f32.xlu0 %v416
        %v418 = vpop.xlane.xlu0 %417
        %v419 = vadd.f32 %v331, %v332
        %420 = vadd.xlane.f32.xlu0 %v419
        %v421 = vpop.xlane.xlu0 %420
        %v422 = vadd.f32 %v333, %v334
        %423 = vadd.xlane.f32.xlu0 %v422
        %v424 = vpop.xlane.xlu0 %423
        %v425 = vadd.f32 %v335, %v336
        %426 = vadd.xlane.f32.xlu0 %v425
        %v427 = vpop.xlane.xlu0 %426
        %v428 = vadd.f32 %v337, %v338
        %429 = vadd.xlane.f32.xlu0 %v428
        %v430 = vpop.xlane.xlu0 %429
        %v431 = vadd.f32 %v339, %v340
        %432 = vadd.xlane.f32.xlu0 %v431
        %v433 = vpop.xlane.xlu0 %432
        %v434 = vadd.f32 %v341, %v342
        %435 = vadd.xlane.f32.xlu0 %v434
        %v436 = vpop.xlane.xlu0 %435
        %v437 = vadd.f32 %v343, %v344
        %438 = vadd.xlane.f32.xlu0 %v437
        %v439 = vpop.xlane.xlu0 %438
        %v440 = vadd.f32 %v345, %v346
        %441 = vadd.xlane.f32.xlu0 %v440
        %v442 = vpop.xlane.xlu0 %441
        %v443 = vadd.f32 %v347, %v348
        %444 = vadd.xlane.f32.xlu0 %v443
        %v445 = vpop.xlane.xlu0 %444
        %v478 = vlaneseq
        %v479 = vand.u32 %v478, 127
        %v480 = vlaneseq
        %v481 = vshrl.u32 %v480, 7
        %v482 = vsub.s32 %v479, %v481
        %v483 = vrot.slane %v352, %v482
        %v484 = vadd.s32 %v479, 4294967288
        %v485 = vlaneseq
        %v486 = vshrl.u32 %v485, 7
        %v487 = vsub.s32 %v484, %v486
        %v488 = vrot.slane %v355, %v487
        %vm489 = vcmask 130112
        %v490 = vsel %vm489, %v488, %v483
        %v491 = vadd.s32 %v479, 4294967280
        %v492 = vlaneseq
        %v493 = vshrl.u32 %v492, 7
        %v494 = vsub.s32 %v491, %v493
        %v495 = vrot.slane %v358, %v494
        %vm496 = vcmask 195712
        %v497 = vsel %vm496, %v495, %v490
        %v498 = vadd.s32 %v479, 4294967272
        %v499 = vlaneseq
        %v500 = vshrl.u32 %v499, 7
        %v501 = vsub.s32 %v498, %v500
        %v502 = vrot.slane %v361, %v501
        %vm503 = vcmask 261312
        %v504 = vsel %vm503, %v502, %v497
        %v505 = vadd.s32 %v479, 4294967264
        %v506 = vlaneseq
        %v507 = vshrl.u32 %v506, 7
        %v508 = vsub.s32 %v505, %v507
        %v509 = vrot.slane %v364, %v508
        %vm510 = vcmask 326912
        %v511 = vsel %vm510, %v509, %v504
        %v512 = vadd.s32 %v479, 4294967256
        %v513 = vlaneseq
        %v514 = vshrl.u32 %v513, 7
        %v515 = vsub.s32 %v512, %v514
        %v516 = vrot.slane %v367, %v515
        %vm517 = vcmask 392512
        %v518 = vsel %vm517, %v516, %v511
        %v519 = vadd.s32 %v479, 4294967248
        %v520 = vlaneseq
        %v521 = vshrl.u32 %v520, 7
        %v522 = vsub.s32 %v519, %v521
        %v523 = vrot.slane %v370, %v522
        %vm524 = vcmask 458112
        %v525 = vsel %vm524, %v523, %v518
        %v526 = vadd.s32 %v479, 4294967240
        %v527 = vlaneseq
        %v528 = vshrl.u32 %v527, 7
        %v529 = vsub.s32 %v526, %v528
        %v530 = vrot.slane %v373, %v529
        %vm531 = vcmask 523712
        %v532 = vsel %vm531, %v530, %v525
        %v533 = vadd.s32 %v479, 4294967232
        %v534 = vlaneseq
        %v535 = vshrl.u32 %v534, 7
        %v536 = vsub.s32 %v533, %v535
        %v537 = vrot.slane %v376, %v536
        %vm538 = vcmask 589312
        %v539 = vsel %vm538, %v537, %v532
        %v540 = vadd.s32 %v479, 4294967224
        %v541 = vlaneseq
        %v542 = vshrl.u32 %v541, 7
        %v543 = vsub.s32 %v540, %v542
        %v544 = vrot.slane %v379, %v543
        %vm545 = vcmask 654912
        %v546 = vsel %vm545, %v544, %v539
        %v547 = vadd.s32 %v479, 4294967216
        %v548 = vlaneseq
        %v549 = vshrl.u32 %v548, 7
        %v550 = vsub.s32 %v547, %v549
        %v551 = vrot.slane %v382, %v550
        %vm552 = vcmask 720512
        %v553 = vsel %vm552, %v551, %v546
        %v554 = vadd.s32 %v479, 4294967208
        %v555 = vlaneseq
        %v556 = vshrl.u32 %v555, 7
        %v557 = vsub.s32 %v554, %v556
        %v558 = vrot.slane %v385, %v557
        %vm559 = vcmask 786112
        %v560 = vsel %vm559, %v558, %v553
        %v561 = vadd.s32 %v479, 4294967200
        %v562 = vlaneseq
        %v563 = vshrl.u32 %v562, 7
        %v564 = vsub.s32 %v561, %v563
        %v565 = vrot.slane %v388, %v564
        %vm566 = vcmask 851712
        %v567 = vsel %vm566, %v565, %v560
        %v568 = vadd.s32 %v479, 4294967192
        %v569 = vlaneseq
        %v570 = vshrl.u32 %v569, 7
        %v571 = vsub.s32 %v568, %v570
        %v572 = vrot.slane %v391, %v571
        %vm573 = vcmask 917312
        %v574 = vsel %vm573, %v572, %v567
        %v575 = vadd.s32 %v479, 4294967184
        %v576 = vlaneseq
        %v577 = vshrl.u32 %v576, 7
        %v578 = vsub.s32 %v575, %v577
        %v579 = vrot.slane %v394, %v578
        %vm580 = vcmask 982912
        %v581 = vsel %vm580, %v579, %v574
        %v582 = vadd.s32 %v479, 4294967176
        %v583 = vlaneseq
        %v584 = vshrl.u32 %v583, 7
        %v585 = vsub.s32 %v582, %v584
        %v586 = vrot.slane %v397, %v585
        %vm587 = vcmask 1048512
        %v588 = vsel %vm587, %v586, %v581
        %v589 = vlaneseq
        %v590 = vshrl.u32 %v589, 7
        %v591 = vsub.s32 %v479, %v590
        %v592 = vrot.slane %v400, %v591
        %v593 = vlaneseq
        %v594 = vshrl.u32 %v593, 7
        %v595 = vsub.s32 %v484, %v594
        %v596 = vrot.slane %v403, %v595
        %v597 = vsel %vm489, %v596, %v592
        %v598 = vlaneseq
        %v599 = vshrl.u32 %v598, 7
        %v600 = vsub.s32 %v491, %v599
        %v601 = vrot.slane %v406, %v600
        %v602 = vsel %vm496, %v601, %v597
        %v603 = vlaneseq
        %v604 = vshrl.u32 %v603, 7
        %v605 = vsub.s32 %v498, %v604
        %v606 = vrot.slane %v409, %v605
        %v607 = vsel %vm503, %v606, %v602
        %v608 = vlaneseq
        %v609 = vshrl.u32 %v608, 7
        %v610 = vsub.s32 %v505, %v609
        %v611 = vrot.slane %v412, %v610
        %v612 = vsel %vm510, %v611, %v607
        %v613 = vlaneseq
        %v614 = vshrl.u32 %v613, 7
        %v615 = vsub.s32 %v512, %v614
        %v616 = vrot.slane %v415, %v615
        %v617 = vsel %vm517, %v616, %v612
        %v618 = vlaneseq
        %v619 = vshrl.u32 %v618, 7
        %v620 = vsub.s32 %v519, %v619
        %v621 = vrot.slane %v418, %v620
        %v622 = vsel %vm524, %v621, %v617
        %v623 = vlaneseq
        %v624 = vshrl.u32 %v623, 7
        %v625 = vsub.s32 %v526, %v624
        %v626 = vrot.slane %v421, %v625
        %v627 = vsel %vm531, %v626, %v622
        %v628 = vlaneseq
        %v629 = vshrl.u32 %v628, 7
        %v630 = vsub.s32 %v533, %v629
        %v631 = vrot.slane %v424, %v630
        %v632 = vsel %vm538, %v631, %v627
        %v633 = vlaneseq
        %v634 = vshrl.u32 %v633, 7
        %v635 = vsub.s32 %v540, %v634
        %v636 = vrot.slane %v427, %v635
        %v637 = vsel %vm545, %v636, %v632
        %v638 = vlaneseq
        %v639 = vshrl.u32 %v638, 7
        %v640 = vsub.s32 %v547, %v639
        %v641 = vrot.slane %v430, %v640
        %v642 = vsel %vm552, %v641, %v637
        %v643 = vlaneseq
        %v644 = vshrl.u32 %v643, 7
        %v645 = vsub.s32 %v554, %v644
        %v646 = vrot.slane %v433, %v645
        %v647 = vsel %vm559, %v646, %v642
        %v648 = vlaneseq
        %v649 = vshrl.u32 %v648, 7
        %v650 = vsub.s32 %v561, %v649
        %v651 = vrot.slane %v436, %v650
        %v652 = vsel %vm566, %v651, %v647
        %v653 = vlaneseq
        %v654 = vshrl.u32 %v653, 7
        %v655 = vsub.s32 %v568, %v654
        %v656 = vrot.slane %v439, %v655
        %v657 = vsel %vm573, %v656, %v652
        %v658 = vlaneseq
        %v659 = vshrl.u32 %v658, 7
        %v660 = vsub.s32 %v575, %v659
        %v661 = vrot.slane %v442, %v660
        %v662 = vsel %vm580, %v661, %v657
        %v663 = vlaneseq
        %v664 = vshrl.u32 %v663, 7
        %v665 = vsub.s32 %v582, %v664
        %v666 = vrot.slane %v445, %v665
        %v667 = vsel %vm587, %v666, %v662
        %vm668 = vcmask 1041409
        %v669 = vsel %vm668, %v667, %v588
        %v671 = vadd.f32 %v349, %v669
        %672 = vst [vmem:[%s279] sm:$0x3] %v671
        // Predicated region
        $region52: #{faster_rcnn_embedder.5} parent=42 // pred_check
          %p673 = pneg %p280
        $region53: #{faster_rcnn_embedder.5} parent=42 // pred_check_branch
          %675 = sbr.rel (%p673) target = $region55
        $region54: #{faster_rcnn_embedder.5} parent=42 // pred_region
          %v676 = vld [vmem:[%s279] sm:$0x3]
          %v677 = vmul.f32 %v676, 0.00390625
          %678 = vst [vmem:[%s279] sm:$0x3] %v677
        $region55: #{faster_rcnn_embedder.5} parent=42 // pred_fallthru
          _
        %p679 = scmp.lt.s32.totalorder %s16, 1
        %s680 = scalar_select %p679, %s16, 1
        %s681 = smul.addr %s680, 2
        %s682 = scalar_lea.vmem %s1, %s681
        // Predicated region
        $region56: #{faster_rcnn_embedder.5} parent=42 // pred_check
          %p683 = pneg %p70
        $region57: #{faster_rcnn_embedder.5} parent=42 // pred_check_branch
          %685 = sbr.rel (%p683) target = $region59
        $region58: #{faster_rcnn_embedder.5} parent=42 // pred_region
          _
        $region59: #{faster_rcnn_embedder.5} parent=42 // pred_fallthru
          _
      $region43: #{faster_rcnn_embedder.5} parent=5 // pred_fallthru
        _
      %p686 = scmp.le.s32.totalorder 2, %s7
      // Predicated region
      $region60: #{faster_rcnn_embedder.5} parent=5 // pred_check
        %p687 = pneg %p686
      $region61: #{faster_rcnn_embedder.5} parent=5 // pred_check_branch
        %689 = sbr.rel (%p687) target = $region63
      $region62: #{faster_rcnn_embedder.5} parent=5 // pred_region
        %s690 = ssub.s32 %s7, 2
        // Predicated region
        $region64: #{faster_rcnn_embedder.5} parent=62 // pred_check
          %p691 = pneg %p76
        $region65: #{faster_rcnn_embedder.5} parent=62 // pred_check_branch
          %693 = sbr.rel (%p691) target = $region67
        $region66: #{faster_rcnn_embedder.5} parent=62 // pred_region
          %p694 = scmp.lt.s32.totalorder %s18, 1
          %s695 = scalar_select %p694, %s18, 1
          %s696 = smul.addr %s695, 2
          %s697 = scalar_lea.vmem %s1, %s696
        $region67: #{faster_rcnn_embedder.5} parent=62 // pred_fallthru
          _
      $region63: #{faster_rcnn_embedder.5} parent=5 // pred_fallthru
        _
    $region6: #{faster_rcnn_embedder.5} parent=1 // loop_footer
      %s11 = sadd.s32 1, %s7
    $region7: #{faster_rcnn_embedder.5} parent=1 // loop_footer_branch
      %6 = sbr.rel target = $region3
    $region8: #{faster_rcnn_embedder.5} parent=1 // loop_exit
      _

// kernel: faster_rcnn_embedder.7
$region0: #{faster_rcnn_embedder.7}
  #allocation0 [shape = 'u32[]', space=smem, size = 0x4, offset = 0x4, fixed_abs, tag = 'smem constant byte address 0x4 - core index']
  #allocation1 [shape = 'u32[144,128]{1,0:T(1,128)}', space=vmem, size = 0x12000, scoped, tag = 'internal scratch']
  %s0 = inlined_call_operand.vmem [shape: f32[2,256,16], index: 0, kind: input, shape index: {}]
  %s1 = inlined_call_operand.vmem [shape: f32[2,256], index: 1, kind: output, shape index: {}]
  %s2 = sld [smem:[#allocation0]]
  $region83: #{faster_rcnn_embedder.7} parent=0
    _
  %s4 = ssub.s32 1, %s2
  %s5 = scalar_select 0, %s4, %s2
  $region1: #{faster_rcnn_embedder.7} parent=0
    #allocation2 [shape = 'u8[262144]{0}', space=vmem, size = 0x40000, scoped, tag = 'input window, operand 0']
    loop: start=0, step=1, limit=4
    $region2: #{faster_rcnn_embedder.7} parent=1 // loop_pre_header
      _
    $region3: #{faster_rcnn_embedder.7} parent=1 // loop_header
      %s7 = sphi 0, %s11
      %p8 = scmp.ge.s32.totalorder %s7, 4
      %s14 = sphi 0, %s26
      %s15 = sphi 0, %s22
      %s16 = sphi 0, %s14
      %s17 = sphi 0, %s15
      %s18 = sphi 0, %s16
      %s19 = sphi 0, %s17
      %s31 = sphi 0, %s33
      %s34 = sphi 0, %s31
      %s35 = sphi 0, %s34
      %s51 = sphi 0, %s35
      %s57 = sphi 0, %s59
      %s60 = sphi 0, %s57
      %s61 = sphi 0, %s60
      %s77 = sphi 0, %s61
    $region4: #{faster_rcnn_embedder.7} parent=1 // loop_header_branch
      %10 = sbr.rel (%p8) target = $region8
    $region5: #{faster_rcnn_embedder.7} parent=1 // loop_body
      %s12 = ssub.s32 %s7, 1
      %s13 = ssub.s32 %s7, 2
      %s20 = sadd.s32 1, %s15
      %p21 = scmp.ge.s32.totalorder %s20, 1
      %s22 = scalar_select %p21, 0, %s20
      %s23 = sadd.s32 1, %s14
      %s24 = scalar_select %p21, %s23, %s14
      %p25 = scmp.ge.s32.totalorder %s24, 2
      %s26 = scalar_select %p25, 0, %s24
      %s27 = ssub.s32 %s14, %s26
      %s28 = ssub.s32 %s15, %s22
      %s29 = sor.u32 %s27, %s28
      %p30 = scmp.eq.s32.totalorder %s29, 0
      %s32 = sadd.s32 %s31, 1
      %s33 = scalar_select %p30, %s31, %s32
      %p36 = pneg %p30
      %p37 = scmp.eq.s32.totalorder %s7, 1
      %p38 = por %p36, %p37
      %p39 = scmp.ne.s32.totalorder %s31, %s34
      %p40 = scmp.eq.s32.totalorder %s7, 0
      %p41 = por %p39, %p40
      %p42 = scmp.ne.s32.totalorder %s31, %s34
      %p43 = scmp.eq.s32.totalorder %s12, 1
      %p44 = por %p42, %p43
      %p45 = scmp.ne.s32.totalorder %s34, %s35
      %p46 = scmp.eq.s32.totalorder %s12, 0
      %p47 = por %p45, %p46
      %p48 = scmp.ne.s32.totalorder %s34, %s35
      %p49 = scmp.eq.s32.totalorder %s13, 1
      %p50 = por %p48, %p49
      %p52 = scmp.ne.s32.totalorder %s35, %s51
      %p53 = scmp.eq.s32.totalorder %s13, 0
      %p54 = por %p52, %p53
      %s55 = ssub.s32 %s14, %s26
      %p56 = scmp.eq.s32.totalorder %s55, 0
      %s58 = sadd.s32 %s57, 1
      %s59 = scalar_select %p56, %s57, %s58
      %p62 = pneg %p56
      %p63 = scmp.eq.s32.totalorder %s7, 1
      %p64 = por %p62, %p63
      %p65 = scmp.ne.s32.totalorder %s57, %s60
      %p66 = scmp.eq.s32.totalorder %s7, 0
      %p67 = por %p65, %p66
      %p68 = scmp.ne.s32.totalorder %s57, %s60
      %p69 = scmp.eq.s32.totalorder %s12, 1
      %p70 = por %p68, %p69
      %p71 = scmp.ne.s32.totalorder %s60, %s61
      %p72 = scmp.eq.s32.totalorder %s12, 0
      %p73 = por %p71, %p72
      %p74 = scmp.ne.s32.totalorder %s60, %s61
      %p75 = scmp.eq.s32.totalorder %s13, 1
      %p76 = por %p74, %p75
      %p78 = scmp.ne.s32.totalorder %s61, %s77
      %p79 = scmp.eq.s32.totalorder %s13, 0
      %p80 = por %p78, %p79
      %p81 = scmp.le.s32.totalorder 1, %s7
      %p82 = scmp.lt.s32.totalorder %s7, 3
      %p83 = pnand %p81, %p82
      %p84 = pneg %p83
      // Predicated region
      $region9: #{faster_rcnn_embedder.7} parent=5 // pred_check
        _
      $region10: #{faster_rcnn_embedder.7} parent=5 // pred_check_branch
        %86 = sbr.rel (%p83) target = $region12
      $region11: #{faster_rcnn_embedder.7} parent=5 // pred_region
        %s87 = ssub.s32 %s7, 1
      $region12: #{faster_rcnn_embedder.7} parent=5 // pred_fallthru
        _
      %p88 = scmp.lt.s32.totalorder %s7, 2
      // Predicated region
      $region13: #{faster_rcnn_embedder.7} parent=5 // pred_check
        %p89 = pneg %p88
      $region14: #{faster_rcnn_embedder.7} parent=5 // pred_check_branch
        %91 = sbr.rel (%p89) target = $region16
      $region15: #{faster_rcnn_embedder.7} parent=5 // pred_region
        // Predicated region
        $region17: #{faster_rcnn_embedder.7} parent=15 // pred_check
          %p92 = pneg %p41
        $region18: #{faster_rcnn_embedder.7} parent=15 // pred_check_branch
          %94 = sbr.rel (%p92) target = $region20
        $region19: #{faster_rcnn_embedder.7} parent=15 // pred_region
          %s95 = sand.u32 %s31, 1
          %s96 = sand.u32 %s31, 1
          %s97 = smul.addr %s96, 256
          %s98 = scalar_lea.vmem [#allocation2], %s97
          %s99 = smul.u32 16, %s14
          %s100 = sadd.s32 %s15, %s99
          %s101 = smul.addr %s100, 8
          %s102 = scalar_lea.vmem %s0, %s101
          // Predicated region
          $region21: #{faster_rcnn_embedder.7} parent=19 // pred_check
            _
          $region22: #{faster_rcnn_embedder.7} parent=19 // pred_check_branch
            %104 = sbr.rel (0) target = $region24
          $region23: #{faster_rcnn_embedder.7} parent=19 // pred_region
            // Predicated region
            $region25: #{faster_rcnn_embedder.7} parent=23 // pred_check
              _
            $region26: #{faster_rcnn_embedder.7} parent=23 // pred_check_branch
              %106 = sbr.rel (0) target = $region28
            $region27: #{faster_rcnn_embedder.7} parent=23 // pred_region
              // Predicated region
              $region40: #{faster_rcnn_embedder.7} parent=27 // pred_check
                _
              $region41: #{faster_rcnn_embedder.7} parent=27 // pred_check_branch
                %183 = sbr.rel (0) target = $region43
              $region42: #{faster_rcnn_embedder.7} parent=27 // pred_region
                loop: start=0, step=1, limit=1
                $region44: #{faster_rcnn_embedder.7} parent=42 // loop_pre_header
                  _
                $region45: #{faster_rcnn_embedder.7} parent=42 // loop_header
                  %s185 = sphi 0, %s189
                  %p186 = scmp.ge.s32.totalorder %s185, 1
                  %s190 = sphi %s102, %s102
                  %s191 = sphi %s98, %s98
                $region46: #{faster_rcnn_embedder.7} parent=42 // loop_header_branch
                  %188 = sbr.rel (%p186) target = $region50
                $region47: #{faster_rcnn_embedder.7} parent=42 // loop_body
                  %v192 = vld [vmem:[%s190] sm:$0xff]
                  %193 = vst [vmem:[%s191] sm:$0xff] %v192
                  %v194 = vld [vmem:[%s190 + $0x8] sm:$0xff]
                  %195 = vst [vmem:[%s191 + $0x8] sm:$0xff] %v194
                  %v196 = vld [vmem:[%s190 + $0x10] sm:$0xff]
                  %197 = vst [vmem:[%s191 + $0x10] sm:$0xff] %v196
                  %v198 = vld [vmem:[%s190 + $0x18] sm:$0xff]
                  %199 = vst [vmem:[%s191 + $0x18] sm:$0xff] %v198
                  %v200 = vld [vmem:[%s190 + $0x20] sm:$0xff]
                  %201 = vst [vmem:[%s191 + $0x20] sm:$0xff] %v200
                  %v202 = vld [vmem:[%s190 + $0x28] sm:$0xff]
                  %203 = vst [vmem:[%s191 + $0x28] sm:$0xff] %v202
                  %v204 = vld [vmem:[%s190 + $0x30] sm:$0xff]
                  %205 = vst [vmem:[%s191 + $0x30] sm:$0xff] %v204
                  %v206 = vld [vmem:[%s190 + $0x38] sm:$0xff]
                  %207 = vst [vmem:[%s191 + $0x38] sm:$0xff] %v206
                  %v208 = vld [vmem:[%s190 + $0x40] sm:$0xff]
                  %209 = vst [vmem:[%s191 + $0x40] sm:$0xff] %v208
                  %v210 = vld [vmem:[%s190 + $0x48] sm:$0xff]
                  %211 = vst [vmem:[%s191 + $0x48] sm:$0xff] %v210
                  %v212 = vld [vmem:[%s190 + $0x50] sm:$0xff]
                  %213 = vst [vmem:[%s191 + $0x50] sm:$0xff] %v212
                  %v214 = vld [vmem:[%s190 + $0x58] sm:$0xff]
                  %215 = vst [vmem:[%s191 + $0x58] sm:$0xff] %v214
                  %v216 = vld [vmem:[%s190 + $0x60] sm:$0xff]
                  %217 = vst [vmem:[%s191 + $0x60] sm:$0xff] %v216
                  %v218 = vld [vmem:[%s190 + $0x68] sm:$0xff]
                  %219 = vst [vmem:[%s191 + $0x68] sm:$0xff] %v218
                  %v220 = vld [vmem:[%s190 + $0x70] sm:$0xff]
                  %221 = vst [vmem:[%s191 + $0x70] sm:$0xff] %v220
                  %v222 = vld [vmem:[%s190 + $0x78] sm:$0xff]
                  %223 = vst [vmem:[%s191 + $0x78] sm:$0xff] %v222
                  %v224 = vld [vmem:[%s190 + $0x100] sm:$0xff]
                  %225 = vst [vmem:[%s191 + $0x80] sm:$0xff] %v224
                  %v226 = vld [vmem:[%s190 + $0x108] sm:$0xff]
                  %227 = vst [vmem:[%s191 + $0x88] sm:$0xff] %v226
                  %v228 = vld [vmem:[%s190 + $0x110] sm:$0xff]
                  %229 = vst [vmem:[%s191 + $0x90] sm:$0xff] %v228
                  %v230 = vld [vmem:[%s190 + $0x118] sm:$0xff]
                  %231 = vst [vmem:[%s191 + $0x98] sm:$0xff] %v230
                  %v232 = vld [vmem:[%s190 + $0x120] sm:$0xff]
                  %233 = vst [vmem:[%s191 + $0xa0] sm:$0xff] %v232
                  %v234 = vld [vmem:[%s190 + $0x128] sm:$0xff]
                  %235 = vst [vmem:[%s191 + $0xa8] sm:$0xff] %v234
                  %v236 = vld [vmem:[%s190 + $0x130] sm:$0xff]
                  %237 = vst [vmem:[%s191 + $0xb0] sm:$0xff] %v236
                  %v238 = vld [vmem:[%s190 + $0x138] sm:$0xff]
                  %239 = vst [vmem:[%s191 + $0xb8] sm:$0xff] %v238
                  %v240 = vld [vmem:[%s190 + $0x140] sm:$0xff]
                  %241 = vst [vmem:[%s191 + $0xc0] sm:$0xff] %v240
                  %v242 = vld [vmem:[%s190 + $0x148] sm:$0xff]
                  %243 = vst [vmem:[%s191 + $0xc8] sm:$0xff] %v242
                  %v244 = vld [vmem:[%s190 + $0x150] sm:$0xff]
                  %245 = vst [vmem:[%s191 + $0xd0] sm:$0xff] %v244
                  %v246 = vld [vmem:[%s190 + $0x158] sm:$0xff]
                  %247 = vst [vmem:[%s191 + $0xd8] sm:$0xff] %v246
                  %v248 = vld [vmem:[%s190 + $0x160] sm:$0xff]
                  %249 = vst [vmem:[%s191 + $0xe0] sm:$0xff] %v248
                  %v250 = vld [vmem:[%s190 + $0x168] sm:$0xff]
                  %251 = vst [vmem:[%s191 + $0xe8] sm:$0xff] %v250
                  %v252 = vld [vmem:[%s190 + $0x170] sm:$0xff]
                  %253 = vst [vmem:[%s191 + $0xf0] sm:$0xff] %v252
                  %v254 = vld [vmem:[%s190 + $0x178] sm:$0xff]
                  %255 = vst [vmem:[%s191 + $0xf8] sm:$0xff] %v254
                $region48: #{faster_rcnn_embedder.7} parent=42 // loop_footer
                  %s189 = sadd.s32 1, %s185
                $region49: #{faster_rcnn_embedder.7} parent=42 // loop_footer_branch
                  %184 = sbr.rel target = $region45
                $region50: #{faster_rcnn_embedder.7} parent=42 // loop_exit
                  _
              $region43: #{faster_rcnn_embedder.7} parent=27 // pred_fallthru
                _
              // Predicated region
              $region51: #{faster_rcnn_embedder.7} parent=27 // pred_check
                _
              $region52: #{faster_rcnn_embedder.7} parent=27 // pred_check_branch
                %257 = sbr.rel target = $region54
              $region53: #{faster_rcnn_embedder.7} parent=27 // pred_region
                _
              $region54: #{faster_rcnn_embedder.7} parent=27 // pred_fallthru
                _
            $region28: #{faster_rcnn_embedder.7} parent=23 // pred_fallthru
              _
            // Predicated region
            $region29: #{faster_rcnn_embedder.7} parent=23 // pred_check
              _
            $region30: #{faster_rcnn_embedder.7} parent=23 // pred_check_branch
              %108 = sbr.rel target = $region32
            $region31: #{faster_rcnn_embedder.7} parent=23 // pred_region
              loop: start=0, step=1, limit=1
              $region33: #{faster_rcnn_embedder.7} parent=31 // loop_pre_header
                _
              $region34: #{faster_rcnn_embedder.7} parent=31 // loop_header
                %s111 = sphi 0, %s115
                %p112 = scmp.ge.s32.totalorder %s111, 1
                %s116 = sphi %s102, %s102
                %s117 = sphi %s98, %s98
              $region35: #{faster_rcnn_embedder.7} parent=31 // loop_header_branch
                %114 = sbr.rel (%p112) target = $region39
              $region36: #{faster_rcnn_embedder.7} parent=31 // loop_body
                %v118 = vld [vmem:[%s116] sm:$0xff]
                %119 = vst [vmem:[%s117] sm:$0xff] %v118
                %v120 = vld [vmem:[%s116 + $0x8] sm:$0xff]
                %121 = vst [vmem:[%s117 + $0x8] sm:$0xff] %v120
                %v122 = vld [vmem:[%s116 + $0x10] sm:$0xff]
                %123 = vst [vmem:[%s117 + $0x10] sm:$0xff] %v122
                %v124 = vld [vmem:[%s116 + $0x18] sm:$0xff]
                %125 = vst [vmem:[%s117 + $0x18] sm:$0xff] %v124
                %v126 = vld [vmem:[%s116 + $0x20] sm:$0xff]
                %127 = vst [vmem:[%s117 + $0x20] sm:$0xff] %v126
                %v128 = vld [vmem:[%s116 + $0x28] sm:$0xff]
                %129 = vst [vmem:[%s117 + $0x28] sm:$0xff] %v128
                %v130 = vld [vmem:[%s116 + $0x30] sm:$0xff]
                %131 = vst [vmem:[%s117 + $0x30] sm:$0xff] %v130
                %v132 = vld [vmem:[%s116 + $0x38] sm:$0xff]
                %133 = vst [vmem:[%s117 + $0x38] sm:$0xff] %v132
                %v134 = vld [vmem:[%s116 + $0x40] sm:$0xff]
                %135 = vst [vmem:[%s117 + $0x40] sm:$0xff] %v134
                %v136 = vld [vmem:[%s116 + $0x48] sm:$0xff]
                %137 = vst [vmem:[%s117 + $0x48] sm:$0xff] %v136
                %v138 = vld [vmem:[%s116 + $0x50] sm:$0xff]
                %139 = vst [vmem:[%s117 + $0x50] sm:$0xff] %v138
                %v140 = vld [vmem:[%s116 + $0x58] sm:$0xff]
                %141 = vst [vmem:[%s117 + $0x58] sm:$0xff] %v140
                %v142 = vld [vmem:[%s116 + $0x60] sm:$0xff]
                %143 = vst [vmem:[%s117 + $0x60] sm:$0xff] %v142
                %v144 = vld [vmem:[%s116 + $0x68] sm:$0xff]
                %145 = vst [vmem:[%s117 + $0x68] sm:$0xff] %v144
                %v146 = vld [vmem:[%s116 + $0x70] sm:$0xff]
                %147 = vst [vmem:[%s117 + $0x70] sm:$0xff] %v146
                %v148 = vld [vmem:[%s116 + $0x78] sm:$0xff]
                %149 = vst [vmem:[%s117 + $0x78] sm:$0xff] %v148
                %v150 = vld [vmem:[%s116 + $0x100] sm:$0xff]
                %151 = vst [vmem:[%s117 + $0x80] sm:$0xff] %v150
                %v152 = vld [vmem:[%s116 + $0x108] sm:$0xff]
                %153 = vst [vmem:[%s117 + $0x88] sm:$0xff] %v152
                %v154 = vld [vmem:[%s116 + $0x110] sm:$0xff]
                %155 = vst [vmem:[%s117 + $0x90] sm:$0xff] %v154
                %v156 = vld [vmem:[%s116 + $0x118] sm:$0xff]
                %157 = vst [vmem:[%s117 + $0x98] sm:$0xff] %v156
                %v158 = vld [vmem:[%s116 + $0x120] sm:$0xff]
                %159 = vst [vmem:[%s117 + $0xa0] sm:$0xff] %v158
                %v160 = vld [vmem:[%s116 + $0x128] sm:$0xff]
                %161 = vst [vmem:[%s117 + $0xa8] sm:$0xff] %v160
                %v162 = vld [vmem:[%s116 + $0x130] sm:$0xff]
                %163 = vst [vmem:[%s117 + $0xb0] sm:$0xff] %v162
                %v164 = vld [vmem:[%s116 + $0x138] sm:$0xff]
                %165 = vst [vmem:[%s117 + $0xb8] sm:$0xff] %v164
                %v166 = vld [vmem:[%s116 + $0x140] sm:$0xff]
                %167 = vst [vmem:[%s117 + $0xc0] sm:$0xff] %v166
                %v168 = vld [vmem:[%s116 + $0x148] sm:$0xff]
                %169 = vst [vmem:[%s117 + $0xc8] sm:$0xff] %v168
                %v170 = vld [vmem:[%s116 + $0x150] sm:$0xff]
                %171 = vst [vmem:[%s117 + $0xd0] sm:$0xff] %v170
                %v172 = vld [vmem:[%s116 + $0x158] sm:$0xff]
                %173 = vst [vmem:[%s117 + $0xd8] sm:$0xff] %v172
                %v174 = vld [vmem:[%s116 + $0x160] sm:$0xff]
                %175 = vst [vmem:[%s117 + $0xe0] sm:$0xff] %v174
                %v176 = vld [vmem:[%s116 + $0x168] sm:$0xff]
                %177 = vst [vmem:[%s117 + $0xe8] sm:$0xff] %v176
                %v178 = vld [vmem:[%s116 + $0x170] sm:$0xff]
                %179 = vst [vmem:[%s117 + $0xf0] sm:$0xff] %v178
                %v180 = vld [vmem:[%s116 + $0x178] sm:$0xff]
                %181 = vst [vmem:[%s117 + $0xf8] sm:$0xff] %v180
              $region37: #{faster_rcnn_embedder.7} parent=31 // loop_footer
                %s115 = sadd.s32 1, %s111
              $region38: #{faster_rcnn_embedder.7} parent=31 // loop_footer_branch
                %110 = sbr.rel target = $region34
              $region39: #{faster_rcnn_embedder.7} parent=31 // loop_exit
                _
            $region32: #{faster_rcnn_embedder.7} parent=23 // pred_fallthru
              _
          $region24: #{faster_rcnn_embedder.7} parent=19 // pred_fallthru
            _
          %258 = vnop
        $region20: #{faster_rcnn_embedder.7} parent=15 // pred_fallthru
          _
      $region16: #{faster_rcnn_embedder.7} parent=5 // pred_fallthru
        _
      %p259 = scmp.le.s32.totalorder 1, %s7
      %p260 = scmp.lt.s32.totalorder %s7, 3
      %p261 = pnand %p259, %p260
      %p262 = pneg %p261
      // Predicated region
      $region55: #{faster_rcnn_embedder.7} parent=5 // pred_check
        _
      $region56: #{faster_rcnn_embedder.7} parent=5 // pred_check_branch
        %264 = sbr.rel (%p261) target = $region58
      $region57: #{faster_rcnn_embedder.7} parent=5 // pred_region
        %s265 = ssub.s32 %s7, 1
        %s266 = sand.u32 %s34, 1
        %s267 = sand.u32 %s34, 1
        %s268 = smul.addr %s267, 256
        %s269 = scalar_lea.vmem [#allocation2], %s268
        // Predicated region
        $region59: #{faster_rcnn_embedder.7} parent=57 // pred_check
          %p270 = pneg %p47
        $region60: #{faster_rcnn_embedder.7} parent=57 // pred_check_branch
          %272 = sbr.rel (%p270) target = $region62
        $region61: #{faster_rcnn_embedder.7} parent=57 // pred_region
          _
        $region62: #{faster_rcnn_embedder.7} parent=57 // pred_fallthru
          _
        %s273 = sand.u32 %s34, 1
        %s274 = sand.u32 %s34, 1
        %s275 = smul.addr %s274, 256
        %s276 = scalar_lea.vmem [#allocation2], %s275
        %p277 = pneg %p47
        %p278 = pneg %p44
        %p279 = pneg %p73
        %p280 = pneg %p70
        %p281 = scmp.lt.s32.totalorder %s16, 1
        %s282 = scalar_select %p281, %s16, 1
        %s283 = smul.addr %s282, 2
        %s284 = scalar_lea.vmem %s1, %s283
        %s285 = smul.u32 16, %s16
        %p286 = scmp.lt.s32.totalorder %s16, 1
        %s287 = scalar_select %p286, %s16, 1
        %s288 = smul.addr %s287, 2
        %s289 = scalar_lea.vmem %s1, %s288
        %p290 = scmp.eq.s32.totalorder %s17, 0
        // Predicated region
        $region63: #{faster_rcnn_embedder.7} parent=57 // pred_check
          %p291 = pneg %p290
        $region64: #{faster_rcnn_embedder.7} parent=57 // pred_check_branch
          %293 = sbr.rel (%p291) target = $region66
        $region65: #{faster_rcnn_embedder.7} parent=57 // pred_region
          %294 = vst [vmem:[%s289] sm:$0x3] 0.0
        $region66: #{faster_rcnn_embedder.7} parent=57 // pred_fallthru
          _
        %v295 = vld [vmem:[%s269] sm:$0xff]
        %v296 = vld [vmem:[%s269 + $0x8] sm:$0xff]
        %v297 = vld [vmem:[%s269 + $0x10] sm:$0xff]
        %v298 = vld [vmem:[%s269 + $0x18] sm:$0xff]
        %v299 = vld [vmem:[%s269 + $0x20] sm:$0xff]
        %v300 = vld [vmem:[%s269 + $0x28] sm:$0xff]
        %v301 = vld [vmem:[%s269 + $0x30] sm:$0xff]
        %v302 = vld [vmem:[%s269 + $0x38] sm:$0xff]
        %v303 = vld [vmem:[%s269 + $0x40] sm:$0xff]
        %v304 = vld [vmem:[%s269 + $0x48] sm:$0xff]
        %v305 = vld [vmem:[%s269 + $0x50] sm:$0xff]
        %v306 = vld [vmem:[%s269 + $0x58] sm:$0xff]
        %v307 = vld [vmem:[%s269 + $0x60] sm:$0xff]
        %v308 = vld [vmem:[%s269 + $0x68] sm:$0xff]
        %v309 = vld [vmem:[%s269 + $0x70] sm:$0xff]
        %v310 = vld [vmem:[%s269 + $0x78] sm:$0xff]
        %v311 = vld [vmem:[%s269 + $0x80] sm:$0xff]
        %v312 = vld [vmem:[%s269 + $0x88] sm:$0xff]
        %v313 = vld [vmem:[%s269 + $0x90] sm:$0xff]
        %v314 = vld [vmem:[%s269 + $0x98] sm:$0xff]
        %v315 = vld [vmem:[%s269 + $0xa0] sm:$0xff]
        %v316 = vld [vmem:[%s269 + $0xa8] sm:$0xff]
        %v317 = vld [vmem:[%s269 + $0xb0] sm:$0xff]
        %v318 = vld [vmem:[%s269 + $0xb8] sm:$0xff]
        %v319 = vld [vmem:[%s269 + $0xc0] sm:$0xff]
        %v320 = vld [vmem:[%s269 + $0xc8] sm:$0xff]
        %v321 = vld [vmem:[%s269 + $0xd0] sm:$0xff]
        %v322 = vld [vmem:[%s269 + $0xd8] sm:$0xff]
        %v323 = vld [vmem:[%s269 + $0xe0] sm:$0xff]
        %v324 = vld [vmem:[%s269 + $0xe8] sm:$0xff]
        %v325 = vld [vmem:[%s269 + $0xf0] sm:$0xff]
        %v326 = vld [vmem:[%s269 + $0xf8] sm:$0xff]
        %v327 = vld [vmem:[%s289] sm:$0x3]
        %vm328 = vcmask 130048
        %v329 = vsel %vm328, %v295, 0.0
        %330 = vadd.xlane.f32.xlu0 %v329
        %v331 = vpop.xlane.xlu0 %330
        %v332 = vsel %vm328, %v296, 0.0
        %333 = vadd.xlane.f32.xlu0 %v332
        %v334 = vpop.xlane.xlu0 %333
        %v335 = vsel %vm328, %v297, 0.0
        %336 = vadd.xlane.f32.xlu0 %v335
        %v337 = vpop.xlane.xlu0 %336
        %v338 = vsel %vm328, %v298, 0.0
        %339 = vadd.xlane.f32.xlu0 %v338
        %v340 = vpop.xlane.xlu0 %339
        %v341 = vsel %vm328, %v299, 0.0
        %342 = vadd.xlane.f32.xlu0 %v341
        %v343 = vpop.xlane.xlu0 %342
        %v344 = vsel %vm328, %v300, 0.0
        %345 = vadd.xlane.f32.xlu0 %v344
        %v346 = vpop.xlane.xlu0 %345
        %v347 = vsel %vm328, %v301, 0.0
        %348 = vadd.xlane.f32.xlu0 %v347
        %v349 = vpop.xlane.xlu0 %348
        %v350 = vsel %vm328, %v302, 0.0
        %351 = vadd.xlane.f32.xlu0 %v350
        %v352 = vpop.xlane.xlu0 %351
        %v353 = vsel %vm328, %v303, 0.0
        %354 = vadd.xlane.f32.xlu0 %v353
        %v355 = vpop.xlane.xlu0 %354
        %v356 = vsel %vm328, %v304, 0.0
        %357 = vadd.xlane.f32.xlu0 %v356
        %v358 = vpop.xlane.xlu0 %357
        %v359 = vsel %vm328, %v305, 0.0
        %360 = vadd.xlane.f32.xlu0 %v359
        %v361 = vpop.xlane.xlu0 %360
        %v362 = vsel %vm328, %v306, 0.0
        %363 = vadd.xlane.f32.xlu0 %v362
        %v364 = vpop.xlane.xlu0 %363
        %v365 = vsel %vm328, %v307, 0.0
        %366 = vadd.xlane.f32.xlu0 %v365
        %v367 = vpop.xlane.xlu0 %366
        %v368 = vsel %vm328, %v308, 0.0
        %369 = vadd.xlane.f32.xlu0 %v368
        %v370 = vpop.xlane.xlu0 %369
        %v371 = vsel %vm328, %v309, 0.0
        %372 = vadd.xlane.f32.xlu0 %v371
        %v373 = vpop.xlane.xlu0 %372
        %v374 = vsel %vm328, %v310, 0.0
        %375 = vadd.xlane.f32.xlu0 %v374
        %v376 = vpop.xlane.xlu0 %375
        %v377 = vsel %vm328, %v311, 0.0
        %378 = vadd.xlane.f32.xlu0 %v377
        %v379 = vpop.xlane.xlu0 %378
        %v380 = vsel %vm328, %v312, 0.0
        %381 = vadd.xlane.f32.xlu0 %v380
        %v382 = vpop.xlane.xlu0 %381
        %v383 = vsel %vm328, %v313, 0.0
        %384 = vadd.xlane.f32.xlu0 %v383
        %v385 = vpop.xlane.xlu0 %384
        %v386 = vsel %vm328, %v314, 0.0
        %387 = vadd.xlane.f32.xlu0 %v386
        %v388 = vpop.xlane.xlu0 %387
        %v389 = vsel %vm328, %v315, 0.0
        %390 = vadd.xlane.f32.xlu0 %v389
        %v391 = vpop.xlane.xlu0 %390
        %v392 = vsel %vm328, %v316, 0.0
        %393 = vadd.xlane.f32.xlu0 %v392
        %v394 = vpop.xlane.xlu0 %393
        %v395 = vsel %vm328, %v317, 0.0
        %396 = vadd.xlane.f32.xlu0 %v395
        %v397 = vpop.xlane.xlu0 %396
        %v398 = vsel %vm328, %v318, 0.0
        %399 = vadd.xlane.f32.xlu0 %v398
        %v400 = vpop.xlane.xlu0 %399
        %v401 = vsel %vm328, %v319, 0.0
        %402 = vadd.xlane.f32.xlu0 %v401
        %v403 = vpop.xlane.xlu0 %402
        %v404 = vsel %vm328, %v320, 0.0
        %405 = vadd.xlane.f32.xlu0 %v404
        %v406 = vpop.xlane.xlu0 %405
        %v407 = vsel %vm328, %v321, 0.0
        %408 = vadd.xlane.f32.xlu0 %v407
        %v409 = vpop.xlane.xlu0 %408
        %v410 = vsel %vm328, %v322, 0.0
        %411 = vadd.xlane.f32.xlu0 %v410
        %v412 = vpop.xlane.xlu0 %411
        %v413 = vsel %vm328, %v323, 0.0
        %414 = vadd.xlane.f32.xlu0 %v413
        %v415 = vpop.xlane.xlu0 %414
        %v416 = vsel %vm328, %v324, 0.0
        %417 = vadd.xlane.f32.xlu0 %v416
        %v418 = vpop.xlane.xlu0 %417
        %v419 = vsel %vm328, %v325, 0.0
        %420 = vadd.xlane.f32.xlu0 %v419
        %v421 = vpop.xlane.xlu0 %420
        %v422 = vsel %vm328, %v326, 0.0
        %423 = vadd.xlane.f32.xlu0 %v422
        %v424 = vpop.xlane.xlu0 %423
        %v457 = vlaneseq
        %v458 = vand.u32 %v457, 127
        %v459 = vlaneseq
        %v460 = vshrl.u32 %v459, 7
        %v461 = vsub.s32 %v458, %v460
        %v462 = vrot.slane %v331, %v461
        %v463 = vadd.s32 %v458, 4294967288
        %v464 = vlaneseq
        %v465 = vshrl.u32 %v464, 7
        %v466 = vsub.s32 %v463, %v465
        %v467 = vrot.slane %v334, %v466
        %vm468 = vcmask 130112
        %v469 = vsel %vm468, %v467, %v462
        %v470 = vadd.s32 %v458, 4294967280
        %v471 = vlaneseq
        %v472 = vshrl.u32 %v471, 7
        %v473 = vsub.s32 %v470, %v472
        %v474 = vrot.slane %v337, %v473
        %vm475 = vcmask 195712
        %v476 = vsel %vm475, %v474, %v469
        %v477 = vadd.s32 %v458, 4294967272
        %v478 = vlaneseq
        %v479 = vshrl.u32 %v478, 7
        %v480 = vsub.s32 %v477, %v479
        %v481 = vrot.slane %v340, %v480
        %vm482 = vcmask 261312
        %v483 = vsel %vm482, %v481, %v476
        %v484 = vadd.s32 %v458, 4294967264
        %v485 = vlaneseq
        %v486 = vshrl.u32 %v485, 7
        %v487 = vsub.s32 %v484, %v486
        %v488 = vrot.slane %v343, %v487
        %vm489 = vcmask 326912
        %v490 = vsel %vm489, %v488, %v483
        %v491 = vadd.s32 %v458, 4294967256
        %v492 = vlaneseq
        %v493 = vshrl.u32 %v492, 7
        %v494 = vsub.s32 %v491, %v493
        %v495 = vrot.slane %v346, %v494
        %vm496 = vcmask 392512
        %v497 = vsel %vm496, %v495, %v490
        %v498 = vadd.s32 %v458, 4294967248
        %v499 = vlaneseq
        %v500 = vshrl.u32 %v499, 7
        %v501 = vsub.s32 %v498, %v500
        %v502 = vrot.slane %v349, %v501
        %vm503 = vcmask 458112
        %v504 = vsel %vm503, %v502, %v497
        %v505 = vadd.s32 %v458, 4294967240
        %v506 = vlaneseq
        %v507 = vshrl.u32 %v506, 7
        %v508 = vsub.s32 %v505, %v507
        %v509 = vrot.slane %v352, %v508
        %vm510 = vcmask 523712
        %v511 = vsel %vm510, %v509, %v504
        %v512 = vadd.s32 %v458, 4294967232
        %v513 = vlaneseq
        %v514 = vshrl.u32 %v513, 7
        %v515 = vsub.s32 %v512, %v514
        %v516 = vrot.slane %v355, %v515
        %vm517 = vcmask 589312
        %v518 = vsel %vm517, %v516, %v511
        %v519 = vadd.s32 %v458, 4294967224
        %v520 = vlaneseq
        %v521 = vshrl.u32 %v520, 7
        %v522 = vsub.s32 %v519, %v521
        %v523 = vrot.slane %v358, %v522
        %vm524 = vcmask 654912
        %v525 = vsel %vm524, %v523, %v518
        %v526 = vadd.s32 %v458, 4294967216
        %v527 = vlaneseq
        %v528 = vshrl.u32 %v527, 7
        %v529 = vsub.s32 %v526, %v528
        %v530 = vrot.slane %v361, %v529
        %vm531 = vcmask 720512
        %v532 = vsel %vm531, %v530, %v525
        %v533 = vadd.s32 %v458, 4294967208
        %v534 = vlaneseq
        %v535 = vshrl.u32 %v534, 7
        %v536 = vsub.s32 %v533, %v535
        %v537 = vrot.slane %v364, %v536
        %vm538 = vcmask 786112
        %v539 = vsel %vm538, %v537, %v532
        %v540 = vadd.s32 %v458, 4294967200
        %v541 = vlaneseq
        %v542 = vshrl.u32 %v541, 7
        %v543 = vsub.s32 %v540, %v542
        %v544 = vrot.slane %v367, %v543
        %vm545 = vcmask 851712
        %v546 = vsel %vm545, %v544, %v539
        %v547 = vadd.s32 %v458, 4294967192
        %v548 = vlaneseq
        %v549 = vshrl.u32 %v548, 7
        %v550 = vsub.s32 %v547, %v549
        %v551 = vrot.slane %v370, %v550
        %vm552 = vcmask 917312
        %v553 = vsel %vm552, %v551, %v546
        %v554 = vadd.s32 %v458, 4294967184
        %v555 = vlaneseq
        %v556 = vshrl.u32 %v555, 7
        %v557 = vsub.s32 %v554, %v556
        %v558 = vrot.slane %v373, %v557
        %vm559 = vcmask 982912
        %v560 = vsel %vm559, %v558, %v553
        %v561 = vadd.s32 %v458, 4294967176
        %v562 = vlaneseq
        %v563 = vshrl.u32 %v562, 7
        %v564 = vsub.s32 %v561, %v563
        %v565 = vrot.slane %v376, %v564
        %vm566 = vcmask 1048512
        %v567 = vsel %vm566, %v565, %v560
        %v568 = vlaneseq
        %v569 = vshrl.u32 %v568, 7
        %v570 = vsub.s32 %v458, %v569
        %v571 = vrot.slane %v379, %v570
        %v572 = vlaneseq
        %v573 = vshrl.u32 %v572, 7
        %v574 = vsub.s32 %v463, %v573
        %v575 = vrot.slane %v382, %v574
        %v576 = vsel %vm468, %v575, %v571
        %v577 = vlaneseq
        %v578 = vshrl.u32 %v577, 7
        %v579 = vsub.s32 %v470, %v578
        %v580 = vrot.slane %v385, %v579
        %v581 = vsel %vm475, %v580, %v576
        %v582 = vlaneseq
        %v583 = vshrl.u32 %v582, 7
        %v584 = vsub.s32 %v477, %v583
        %v585 = vrot.slane %v388, %v584
        %v586 = vsel %vm482, %v585, %v581
        %v587 = vlaneseq
        %v588 = vshrl.u32 %v587, 7
        %v589 = vsub.s32 %v484, %v588
        %v590 = vrot.slane %v391, %v589
        %v591 = vsel %vm489, %v590, %v586
        %v592 = vlaneseq
        %v593 = vshrl.u32 %v592, 7
        %v594 = vsub.s32 %v491, %v593
        %v595 = vrot.slane %v394, %v594
        %v596 = vsel %vm496, %v595, %v591
        %v597 = vlaneseq
        %v598 = vshrl.u32 %v597, 7
        %v599 = vsub.s32 %v498, %v598
        %v600 = vrot.slane %v397, %v599
        %v601 = vsel %vm503, %v600, %v596
        %v602 = vlaneseq
        %v603 = vshrl.u32 %v602, 7
        %v604 = vsub.s32 %v505, %v603
        %v605 = vrot.slane %v400, %v604
        %v606 = vsel %vm510, %v605, %v601
        %v607 = vlaneseq
        %v608 = vshrl.u32 %v607, 7
        %v609 = vsub.s32 %v512, %v608
        %v610 = vrot.slane %v403, %v609
        %v611 = vsel %vm517, %v610, %v606
        %v612 = vlaneseq
        %v613 = vshrl.u32 %v612, 7
        %v614 = vsub.s32 %v519, %v613
        %v615 = vrot.slane %v406, %v614
        %v616 = vsel %vm524, %v615, %v611
        %v617 = vlaneseq
        %v618 = vshrl.u32 %v617, 7
        %v619 = vsub.s32 %v526, %v618
        %v620 = vrot.slane %v409, %v619
        %v621 = vsel %vm531, %v620, %v616
        %v622 = vlaneseq
        %v623 = vshrl.u32 %v622, 7
        %v624 = vsub.s32 %v533, %v623
        %v625 = vrot.slane %v412, %v624
        %v626 = vsel %vm538, %v625, %v621
        %v627 = vlaneseq
        %v628 = vshrl.u32 %v627, 7
        %v629 = vsub.s32 %v540, %v628
        %v630 = vrot.slane %v415, %v629
        %v631 = vsel %vm545, %v630, %v626
        %v632 = vlaneseq
        %v633 = vshrl.u32 %v632, 7
        %v634 = vsub.s32 %v547, %v633
        %v635 = vrot.slane %v418, %v634
        %v636 = vsel %vm552, %v635, %v631
        %v637 = vlaneseq
        %v638 = vshrl.u32 %v637, 7
        %v639 = vsub.s32 %v554, %v638
        %v640 = vrot.slane %v421, %v639
        %v641 = vsel %vm559, %v640, %v636
        %v642 = vlaneseq
        %v643 = vshrl.u32 %v642, 7
        %v644 = vsub.s32 %v561, %v643
        %v645 = vrot.slane %v424, %v644
        %v646 = vsel %vm566, %v645, %v641
        %vm647 = vcmask 1041409
        %v648 = vsel %vm647, %v646, %v567
        %v650 = vadd.f32 %v327, %v648
        %651 = vst [vmem:[%s289] sm:$0x3] %v650
        // Predicated region
        $region67: #{faster_rcnn_embedder.7} parent=57 // pred_check
          %p652 = pneg %p290
        $region68: #{faster_rcnn_embedder.7} parent=57 // pred_check_branch
          %654 = sbr.rel (%p652) target = $region70
        $region69: #{faster_rcnn_embedder.7} parent=57 // pred_region
          %v655 = vld [vmem:[%s289] sm:$0x3]
          %v656 = vmul.f32 %v655, 0.0625
          %657 = vst [vmem:[%s289] sm:$0x3] %v656
        $region70: #{faster_rcnn_embedder.7} parent=57 // pred_fallthru
          _
        %p658 = scmp.lt.s32.totalorder %s16, 1
        %s659 = scalar_select %p658, %s16, 1
        %s660 = smul.addr %s659, 2
        %s661 = scalar_lea.vmem %s1, %s660
        // Predicated region
        $region71: #{faster_rcnn_embedder.7} parent=57 // pred_check
          %p662 = pneg %p70
        $region72: #{faster_rcnn_embedder.7} parent=57 // pred_check_branch
          %664 = sbr.rel (%p662) target = $region74
        $region73: #{faster_rcnn_embedder.7} parent=57 // pred_region
          _
        $region74: #{faster_rcnn_embedder.7} parent=57 // pred_fallthru
          _
      $region58: #{faster_rcnn_embedder.7} parent=5 // pred_fallthru
        _
      %p665 = scmp.le.s32.totalorder 2, %s7
      // Predicated region
      $region75: #{faster_rcnn_embedder.7} parent=5 // pred_check
        %p666 = pneg %p665
      $region76: #{faster_rcnn_embedder.7} parent=5 // pred_check_branch
        %668 = sbr.rel (%p666) target = $region78
      $region77: #{faster_rcnn_embedder.7} parent=5 // pred_region
        %s669 = ssub.s32 %s7, 2
        // Predicated region
        $region79: #{faster_rcnn_embedder.7} parent=77 // pred_check
          %p670 = pneg %p76
        $region80: #{faster_rcnn_embedder.7} parent=77 // pred_check_branch
          %672 = sbr.rel (%p670) target = $region82
        $region81: #{faster_rcnn_embedder.7} parent=77 // pred_region
          %p673 = scmp.lt.s32.totalorder %s18, 1
          %s674 = scalar_select %p673, %s18, 1
          %s675 = smul.addr %s674, 2
          %s676 = scalar_lea.vmem %s1, %s675
        $region82: #{faster_rcnn_embedder.7} parent=77 // pred_fallthru
          _
      $region78: #{faster_rcnn_embedder.7} parent=5 // pred_fallthru
        _
    $region6: #{faster_rcnn_embedder.7} parent=1 // loop_footer
      %s11 = sadd.s32 1, %s7
    $region7: #{faster_rcnn_embedder.7} parent=1 // loop_footer_branch
      %6 = sbr.rel target = $region3
    $region8: #{faster_rcnn_embedder.7} parent=1 // loop_exit
      _

// kernel: faster_rcnn_embedder.6
$region0: #{faster_rcnn_embedder.6}
  #allocation0 [shape = 'u32[]', space=smem, size = 0x4, offset = 0x4, fixed_abs, tag = 'smem constant byte address 0x4 - core index']
  #allocation1 [shape = 'u32[144,128]{1,0:T(1,128)}', space=vmem, size = 0x12000, scoped, tag = 'internal scratch']
  %s0 = inlined_call_operand.vmem [shape: f32[2,256,64], index: 0, kind: input, shape index: {}]
  %s1 = inlined_call_operand.vmem [shape: f32[2,256], index: 1, kind: output, shape index: {}]
  %s2 = sld [smem:[#allocation0]]
  $region83: #{faster_rcnn_embedder.6} parent=0
    _
  %s4 = ssub.s32 1, %s2
  %s5 = scalar_select 0, %s4, %s2
  $region1: #{faster_rcnn_embedder.6} parent=0
    #allocation2 [shape = 'u8[262144]{0}', space=vmem, size = 0x40000, scoped, tag = 'input window, operand 0']
    loop: start=0, step=1, limit=4
    $region2: #{faster_rcnn_embedder.6} parent=1 // loop_pre_header
      _
    $region3: #{faster_rcnn_embedder.6} parent=1 // loop_header
      %s7 = sphi 0, %s11
      %p8 = scmp.ge.s32.totalorder %s7, 4
      %s14 = sphi 0, %s26
      %s15 = sphi 0, %s22
      %s16 = sphi 0, %s14
      %s17 = sphi 0, %s15
      %s18 = sphi 0, %s16
      %s19 = sphi 0, %s17
      %s31 = sphi 0, %s33
      %s34 = sphi 0, %s31
      %s35 = sphi 0, %s34
      %s51 = sphi 0, %s35
      %s57 = sphi 0, %s59
      %s60 = sphi 0, %s57
      %s61 = sphi 0, %s60
      %s77 = sphi 0, %s61
    $region4: #{faster_rcnn_embedder.6} parent=1 // loop_header_branch
      %10 = sbr.rel (%p8) target = $region8
    $region5: #{faster_rcnn_embedder.6} parent=1 // loop_body
      %s12 = ssub.s32 %s7, 1
      %s13 = ssub.s32 %s7, 2
      %s20 = sadd.s32 1, %s15
      %p21 = scmp.ge.s32.totalorder %s20, 1
      %s22 = scalar_select %p21, 0, %s20
      %s23 = sadd.s32 1, %s14
      %s24 = scalar_select %p21, %s23, %s14
      %p25 = scmp.ge.s32.totalorder %s24, 2
      %s26 = scalar_select %p25, 0, %s24
      %s27 = ssub.s32 %s14, %s26
      %s28 = ssub.s32 %s15, %s22
      %s29 = sor.u32 %s27, %s28
      %p30 = scmp.eq.s32.totalorder %s29, 0
      %s32 = sadd.s32 %s31, 1
      %s33 = scalar_select %p30, %s31, %s32
      %p36 = pneg %p30
      %p37 = scmp.eq.s32.totalorder %s7, 1
      %p38 = por %p36, %p37
      %p39 = scmp.ne.s32.totalorder %s31, %s34
      %p40 = scmp.eq.s32.totalorder %s7, 0
      %p41 = por %p39, %p40
      %p42 = scmp.ne.s32.totalorder %s31, %s34
      %p43 = scmp.eq.s32.totalorder %s12, 1
      %p44 = por %p42, %p43
      %p45 = scmp.ne.s32.totalorder %s34, %s35
      %p46 = scmp.eq.s32.totalorder %s12, 0
      %p47 = por %p45, %p46
      %p48 = scmp.ne.s32.totalorder %s34, %s35
      %p49 = scmp.eq.s32.totalorder %s13, 1
      %p50 = por %p48, %p49
      %p52 = scmp.ne.s32.totalorder %s35, %s51
      %p53 = scmp.eq.s32.totalorder %s13, 0
      %p54 = por %p52, %p53
      %s55 = ssub.s32 %s14, %s26
      %p56 = scmp.eq.s32.totalorder %s55, 0
      %s58 = sadd.s32 %s57, 1
      %s59 = scalar_select %p56, %s57, %s58
      %p62 = pneg %p56
      %p63 = scmp.eq.s32.totalorder %s7, 1
      %p64 = por %p62, %p63
      %p65 = scmp.ne.s32.totalorder %s57, %s60
      %p66 = scmp.eq.s32.totalorder %s7, 0
      %p67 = por %p65, %p66
      %p68 = scmp.ne.s32.totalorder %s57, %s60
      %p69 = scmp.eq.s32.totalorder %s12, 1
      %p70 = por %p68, %p69
      %p71 = scmp.ne.s32.totalorder %s60, %s61
      %p72 = scmp.eq.s32.totalorder %s12, 0
      %p73 = por %p71, %p72
      %p74 = scmp.ne.s32.totalorder %s60, %s61
      %p75 = scmp.eq.s32.totalorder %s13, 1
      %p76 = por %p74, %p75
      %p78 = scmp.ne.s32.totalorder %s61, %s77
      %p79 = scmp.eq.s32.totalorder %s13, 0
      %p80 = por %p78, %p79
      %p81 = scmp.le.s32.totalorder 1, %s7
      %p82 = scmp.lt.s32.totalorder %s7, 3
      %p83 = pnand %p81, %p82
      %p84 = pneg %p83
      // Predicated region
      $region9: #{faster_rcnn_embedder.6} parent=5 // pred_check
        _
      $region10: #{faster_rcnn_embedder.6} parent=5 // pred_check_branch
        %86 = sbr.rel (%p83) target = $region12
      $region11: #{faster_rcnn_embedder.6} parent=5 // pred_region
        %s87 = ssub.s32 %s7, 1
      $region12: #{faster_rcnn_embedder.6} parent=5 // pred_fallthru
        _
      %p88 = scmp.lt.s32.totalorder %s7, 2
      // Predicated region
      $region13: #{faster_rcnn_embedder.6} parent=5 // pred_check
        %p89 = pneg %p88
      $region14: #{faster_rcnn_embedder.6} parent=5 // pred_check_branch
        %91 = sbr.rel (%p89) target = $region16
      $region15: #{faster_rcnn_embedder.6} parent=5 // pred_region
        // Predicated region
        $region17: #{faster_rcnn_embedder.6} parent=15 // pred_check
          %p92 = pneg %p41
        $region18: #{faster_rcnn_embedder.6} parent=15 // pred_check_branch
          %94 = sbr.rel (%p92) target = $region20
        $region19: #{faster_rcnn_embedder.6} parent=15 // pred_region
          %s95 = sand.u32 %s31, 1
          %s96 = sand.u32 %s31, 1
          %s97 = smul.addr %s96, 256
          %s98 = scalar_lea.vmem [#allocation2], %s97
          %s99 = smul.u32 16, %s14
          %s100 = sadd.s32 %s15, %s99
          %s101 = smul.addr %s100, 8
          %s102 = scalar_lea.vmem %s0, %s101
          // Predicated region
          $region21: #{faster_rcnn_embedder.6} parent=19 // pred_check
            _
          $region22: #{faster_rcnn_embedder.6} parent=19 // pred_check_branch
            %104 = sbr.rel (0) target = $region24
          $region23: #{faster_rcnn_embedder.6} parent=19 // pred_region
            // Predicated region
            $region25: #{faster_rcnn_embedder.6} parent=23 // pred_check
              _
            $region26: #{faster_rcnn_embedder.6} parent=23 // pred_check_branch
              %106 = sbr.rel (0) target = $region28
            $region27: #{faster_rcnn_embedder.6} parent=23 // pred_region
              // Predicated region
              $region40: #{faster_rcnn_embedder.6} parent=27 // pred_check
                _
              $region41: #{faster_rcnn_embedder.6} parent=27 // pred_check_branch
                %183 = sbr.rel (0) target = $region43
              $region42: #{faster_rcnn_embedder.6} parent=27 // pred_region
                loop: start=0, step=1, limit=1
                $region44: #{faster_rcnn_embedder.6} parent=42 // loop_pre_header
                  _
                $region45: #{faster_rcnn_embedder.6} parent=42 // loop_header
                  %s185 = sphi 0, %s189
                  %p186 = scmp.ge.s32.totalorder %s185, 1
                  %s190 = sphi %s102, %s102
                  %s191 = sphi %s98, %s98
                $region46: #{faster_rcnn_embedder.6} parent=42 // loop_header_branch
                  %188 = sbr.rel (%p186) target = $region50
                $region47: #{faster_rcnn_embedder.6} parent=42 // loop_body
                  %v192 = vld [vmem:[%s190] sm:$0xff]
                  %193 = vst [vmem:[%s191] sm:$0xff] %v192
                  %v194 = vld [vmem:[%s190 + $0x8] sm:$0xff]
                  %195 = vst [vmem:[%s191 + $0x8] sm:$0xff] %v194
                  %v196 = vld [vmem:[%s190 + $0x10] sm:$0xff]
                  %197 = vst [vmem:[%s191 + $0x10] sm:$0xff] %v196
                  %v198 = vld [vmem:[%s190 + $0x18] sm:$0xff]
                  %199 = vst [vmem:[%s191 + $0x18] sm:$0xff] %v198
                  %v200 = vld [vmem:[%s190 + $0x20] sm:$0xff]
                  %201 = vst [vmem:[%s191 + $0x20] sm:$0xff] %v200
                  %v202 = vld [vmem:[%s190 + $0x28] sm:$0xff]
                  %203 = vst [vmem:[%s191 + $0x28] sm:$0xff] %v202
                  %v204 = vld [vmem:[%s190 + $0x30] sm:$0xff]
                  %205 = vst [vmem:[%s191 + $0x30] sm:$0xff] %v204
                  %v206 = vld [vmem:[%s190 + $0x38] sm:$0xff]
                  %207 = vst [vmem:[%s191 + $0x38] sm:$0xff] %v206
                  %v208 = vld [vmem:[%s190 + $0x40] sm:$0xff]
                  %209 = vst [vmem:[%s191 + $0x40] sm:$0xff] %v208
                  %v210 = vld [vmem:[%s190 + $0x48] sm:$0xff]
                  %211 = vst [vmem:[%s191 + $0x48] sm:$0xff] %v210
                  %v212 = vld [vmem:[%s190 + $0x50] sm:$0xff]
                  %213 = vst [vmem:[%s191 + $0x50] sm:$0xff] %v212
                  %v214 = vld [vmem:[%s190 + $0x58] sm:$0xff]
                  %215 = vst [vmem:[%s191 + $0x58] sm:$0xff] %v214
                  %v216 = vld [vmem:[%s190 + $0x60] sm:$0xff]
                  %217 = vst [vmem:[%s191 + $0x60] sm:$0xff] %v216
                  %v218 = vld [vmem:[%s190 + $0x68] sm:$0xff]
                  %219 = vst [vmem:[%s191 + $0x68] sm:$0xff] %v218
                  %v220 = vld [vmem:[%s190 + $0x70] sm:$0xff]
                  %221 = vst [vmem:[%s191 + $0x70] sm:$0xff] %v220
                  %v222 = vld [vmem:[%s190 + $0x78] sm:$0xff]
                  %223 = vst [vmem:[%s191 + $0x78] sm:$0xff] %v222
                  %v224 = vld [vmem:[%s190 + $0x100] sm:$0xff]
                  %225 = vst [vmem:[%s191 + $0x80] sm:$0xff] %v224
                  %v226 = vld [vmem:[%s190 + $0x108] sm:$0xff]
                  %227 = vst [vmem:[%s191 + $0x88] sm:$0xff] %v226
                  %v228 = vld [vmem:[%s190 + $0x110] sm:$0xff]
                  %229 = vst [vmem:[%s191 + $0x90] sm:$0xff] %v228
                  %v230 = vld [vmem:[%s190 + $0x118] sm:$0xff]
                  %231 = vst [vmem:[%s191 + $0x98] sm:$0xff] %v230
                  %v232 = vld [vmem:[%s190 + $0x120] sm:$0xff]
                  %233 = vst [vmem:[%s191 + $0xa0] sm:$0xff] %v232
                  %v234 = vld [vmem:[%s190 + $0x128] sm:$0xff]
                  %235 = vst [vmem:[%s191 + $0xa8] sm:$0xff] %v234
                  %v236 = vld [vmem:[%s190 + $0x130] sm:$0xff]
                  %237 = vst [vmem:[%s191 + $0xb0] sm:$0xff] %v236
                  %v238 = vld [vmem:[%s190 + $0x138] sm:$0xff]
                  %239 = vst [vmem:[%s191 + $0xb8] sm:$0xff] %v238
                  %v240 = vld [vmem:[%s190 + $0x140] sm:$0xff]
                  %241 = vst [vmem:[%s191 + $0xc0] sm:$0xff] %v240
                  %v242 = vld [vmem:[%s190 + $0x148] sm:$0xff]
                  %243 = vst [vmem:[%s191 + $0xc8] sm:$0xff] %v242
                  %v244 = vld [vmem:[%s190 + $0x150] sm:$0xff]
                  %245 = vst [vmem:[%s191 + $0xd0] sm:$0xff] %v244
                  %v246 = vld [vmem:[%s190 + $0x158] sm:$0xff]
                  %247 = vst [vmem:[%s191 + $0xd8] sm:$0xff] %v246
                  %v248 = vld [vmem:[%s190 + $0x160] sm:$0xff]
                  %249 = vst [vmem:[%s191 + $0xe0] sm:$0xff] %v248
                  %v250 = vld [vmem:[%s190 + $0x168] sm:$0xff]
                  %251 = vst [vmem:[%s191 + $0xe8] sm:$0xff] %v250
                  %v252 = vld [vmem:[%s190 + $0x170] sm:$0xff]
                  %253 = vst [vmem:[%s191 + $0xf0] sm:$0xff] %v252
                  %v254 = vld [vmem:[%s190 + $0x178] sm:$0xff]
                  %255 = vst [vmem:[%s191 + $0xf8] sm:$0xff] %v254
                $region48: #{faster_rcnn_embedder.6} parent=42 // loop_footer
                  %s189 = sadd.s32 1, %s185
                $region49: #{faster_rcnn_embedder.6} parent=42 // loop_footer_branch
                  %184 = sbr.rel target = $region45
                $region50: #{faster_rcnn_embedder.6} parent=42 // loop_exit
                  _
              $region43: #{faster_rcnn_embedder.6} parent=27 // pred_fallthru
                _
              // Predicated region
              $region51: #{faster_rcnn_embedder.6} parent=27 // pred_check
                _
              $region52: #{faster_rcnn_embedder.6} parent=27 // pred_check_branch
                %257 = sbr.rel target = $region54
              $region53: #{faster_rcnn_embedder.6} parent=27 // pred_region
                _
              $region54: #{faster_rcnn_embedder.6} parent=27 // pred_fallthru
                _
            $region28: #{faster_rcnn_embedder.6} parent=23 // pred_fallthru
              _
            // Predicated region
            $region29: #{faster_rcnn_embedder.6} parent=23 // pred_check
              _
            $region30: #{faster_rcnn_embedder.6} parent=23 // pred_check_branch
              %108 = sbr.rel target = $region32
            $region31: #{faster_rcnn_embedder.6} parent=23 // pred_region
              loop: start=0, step=1, limit=1
              $region33: #{faster_rcnn_embedder.6} parent=31 // loop_pre_header
                _
              $region34: #{faster_rcnn_embedder.6} parent=31 // loop_header
                %s111 = sphi 0, %s115
                %p112 = scmp.ge.s32.totalorder %s111, 1
                %s116 = sphi %s102, %s102
                %s117 = sphi %s98, %s98
              $region35: #{faster_rcnn_embedder.6} parent=31 // loop_header_branch
                %114 = sbr.rel (%p112) target = $region39
              $region36: #{faster_rcnn_embedder.6} parent=31 // loop_body
                %v118 = vld [vmem:[%s116] sm:$0xff]
                %119 = vst [vmem:[%s117] sm:$0xff] %v118
                %v120 = vld [vmem:[%s116 + $0x8] sm:$0xff]
                %121 = vst [vmem:[%s117 + $0x8] sm:$0xff] %v120
                %v122 = vld [vmem:[%s116 + $0x10] sm:$0xff]
                %123 = vst [vmem:[%s117 + $0x10] sm:$0xff] %v122
                %v124 = vld [vmem:[%s116 + $0x18] sm:$0xff]
                %125 = vst [vmem:[%s117 + $0x18] sm:$0xff] %v124
                %v126 = vld [vmem:[%s116 + $0x20] sm:$0xff]
                %127 = vst [vmem:[%s117 + $0x20] sm:$0xff] %v126
                %v128 = vld [vmem:[%s116 + $0x28] sm:$0xff]
                %129 = vst [vmem:[%s117 + $0x28] sm:$0xff] %v128
                %v130 = vld [vmem:[%s116 + $0x30] sm:$0xff]
                %131 = vst [vmem:[%s117 + $0x30] sm:$0xff] %v130
                %v132 = vld [vmem:[%s116 + $0x38] sm:$0xff]
                %133 = vst [vmem:[%s117 + $0x38] sm:$0xff] %v132
                %v134 = vld [vmem:[%s116 + $0x40] sm:$0xff]
                %135 = vst [vmem:[%s117 + $0x40] sm:$0xff] %v134
                %v136 = vld [vmem:[%s116 + $0x48] sm:$0xff]
                %137 = vst [vmem:[%s117 + $0x48] sm:$0xff] %v136
                %v138 = vld [vmem:[%s116 + $0x50] sm:$0xff]
                %139 = vst [vmem:[%s117 + $0x50] sm:$0xff] %v138
                %v140 = vld [vmem:[%s116 + $0x58] sm:$0xff]
                %141 = vst [vmem:[%s117 + $0x58] sm:$0xff] %v140
                %v142 = vld [vmem:[%s116 + $0x60] sm:$0xff]
                %143 = vst [vmem:[%s117 + $0x60] sm:$0xff] %v142
                %v144 = vld [vmem:[%s116 + $0x68] sm:$0xff]
                %145 = vst [vmem:[%s117 + $0x68] sm:$0xff] %v144
                %v146 = vld [vmem:[%s116 + $0x70] sm:$0xff]
                %147 = vst [vmem:[%s117 + $0x70] sm:$0xff] %v146
                %v148 = vld [vmem:[%s116 + $0x78] sm:$0xff]
                %149 = vst [vmem:[%s117 + $0x78] sm:$0xff] %v148
                %v150 = vld [vmem:[%s116 + $0x100] sm:$0xff]
                %151 = vst [vmem:[%s117 + $0x80] sm:$0xff] %v150
                %v152 = vld [vmem:[%s116 + $0x108] sm:$0xff]
                %153 = vst [vmem:[%s117 + $0x88] sm:$0xff] %v152
                %v154 = vld [vmem:[%s116 + $0x110] sm:$0xff]
                %155 = vst [vmem:[%s117 + $0x90] sm:$0xff] %v154
                %v156 = vld [vmem:[%s116 + $0x118] sm:$0xff]
                %157 = vst [vmem:[%s117 + $0x98] sm:$0xff] %v156
                %v158 = vld [vmem:[%s116 + $0x120] sm:$0xff]
                %159 = vst [vmem:[%s117 + $0xa0] sm:$0xff] %v158
                %v160 = vld [vmem:[%s116 + $0x128] sm:$0xff]
                %161 = vst [vmem:[%s117 + $0xa8] sm:$0xff] %v160
                %v162 = vld [vmem:[%s116 + $0x130] sm:$0xff]
                %163 = vst [vmem:[%s117 + $0xb0] sm:$0xff] %v162
                %v164 = vld [vmem:[%s116 + $0x138] sm:$0xff]
                %165 = vst [vmem:[%s117 + $0xb8] sm:$0xff] %v164
                %v166 = vld [vmem:[%s116 + $0x140] sm:$0xff]
                %167 = vst [vmem:[%s117 + $0xc0] sm:$0xff] %v166
                %v168 = vld [vmem:[%s116 + $0x148] sm:$0xff]
                %169 = vst [vmem:[%s117 + $0xc8] sm:$0xff] %v168
                %v170 = vld [vmem:[%s116 + $0x150] sm:$0xff]
                %171 = vst [vmem:[%s117 + $0xd0] sm:$0xff] %v170
                %v172 = vld [vmem:[%s116 + $0x158] sm:$0xff]
                %173 = vst [vmem:[%s117 + $0xd8] sm:$0xff] %v172
                %v174 = vld [vmem:[%s116 + $0x160] sm:$0xff]
                %175 = vst [vmem:[%s117 + $0xe0] sm:$0xff] %v174
                %v176 = vld [vmem:[%s116 + $0x168] sm:$0xff]
                %177 = vst [vmem:[%s117 + $0xe8] sm:$0xff] %v176
                %v178 = vld [vmem:[%s116 + $0x170] sm:$0xff]
                %179 = vst [vmem:[%s117 + $0xf0] sm:$0xff] %v178
                %v180 = vld [vmem:[%s116 + $0x178] sm:$0xff]
                %181 = vst [vmem:[%s117 + $0xf8] sm:$0xff] %v180
              $region37: #{faster_rcnn_embedder.6} parent=31 // loop_footer
                %s115 = sadd.s32 1, %s111
              $region38: #{faster_rcnn_embedder.6} parent=31 // loop_footer_branch
                %110 = sbr.rel target = $region34
              $region39: #{faster_rcnn_embedder.6} parent=31 // loop_exit
                _
            $region32: #{faster_rcnn_embedder.6} parent=23 // pred_fallthru
              _
          $region24: #{faster_rcnn_embedder.6} parent=19 // pred_fallthru
            _
          %258 = vnop
        $region20: #{faster_rcnn_embedder.6} parent=15 // pred_fallthru
          _
      $region16: #{faster_rcnn_embedder.6} parent=5 // pred_fallthru
        _
      %p259 = scmp.le.s32.totalorder 1, %s7
      %p260 = scmp.lt.s32.totalorder %s7, 3
      %p261 = pnand %p259, %p260
      %p262 = pneg %p261
      // Predicated region
      $region55: #{faster_rcnn_embedder.6} parent=5 // pred_check
        _
      $region56: #{faster_rcnn_embedder.6} parent=5 // pred_check_branch
        %264 = sbr.rel (%p261) target = $region58
      $region57: #{faster_rcnn_embedder.6} parent=5 // pred_region
        %s265 = ssub.s32 %s7, 1
        %s266 = sand.u32 %s34, 1
        %s267 = sand.u32 %s34, 1
        %s268 = smul.addr %s267, 256
        %s269 = scalar_lea.vmem [#allocation2], %s268
        // Predicated region
        $region59: #{faster_rcnn_embedder.6} parent=57 // pred_check
          %p270 = pneg %p47
        $region60: #{faster_rcnn_embedder.6} parent=57 // pred_check_branch
          %272 = sbr.rel (%p270) target = $region62
        $region61: #{faster_rcnn_embedder.6} parent=57 // pred_region
          _
        $region62: #{faster_rcnn_embedder.6} parent=57 // pred_fallthru
          _
        %s273 = sand.u32 %s34, 1
        %s274 = sand.u32 %s34, 1
        %s275 = smul.addr %s274, 256
        %s276 = scalar_lea.vmem [#allocation2], %s275
        %p277 = pneg %p47
        %p278 = pneg %p44
        %p279 = pneg %p73
        %p280 = pneg %p70
        %p281 = scmp.lt.s32.totalorder %s16, 1
        %s282 = scalar_select %p281, %s16, 1
        %s283 = smul.addr %s282, 2
        %s284 = scalar_lea.vmem %s1, %s283
        %s285 = smul.u32 16, %s16
        %p286 = scmp.lt.s32.totalorder %s16, 1
        %s287 = scalar_select %p286, %s16, 1
        %s288 = smul.addr %s287, 2
        %s289 = scalar_lea.vmem %s1, %s288
        %p290 = scmp.eq.s32.totalorder %s17, 0
        // Predicated region
        $region63: #{faster_rcnn_embedder.6} parent=57 // pred_check
          %p291 = pneg %p290
        $region64: #{faster_rcnn_embedder.6} parent=57 // pred_check_branch
          %293 = sbr.rel (%p291) target = $region66
        $region65: #{faster_rcnn_embedder.6} parent=57 // pred_region
          %294 = vst [vmem:[%s289] sm:$0x3] 0.0
        $region66: #{faster_rcnn_embedder.6} parent=57 // pred_fallthru
          _
        %v295 = vld [vmem:[%s269] sm:$0xff]
        %v296 = vld [vmem:[%s269 + $0x8] sm:$0xff]
        %v297 = vld [vmem:[%s269 + $0x10] sm:$0xff]
        %v298 = vld [vmem:[%s269 + $0x18] sm:$0xff]
        %v299 = vld [vmem:[%s269 + $0x20] sm:$0xff]
        %v300 = vld [vmem:[%s269 + $0x28] sm:$0xff]
        %v301 = vld [vmem:[%s269 + $0x30] sm:$0xff]
        %v302 = vld [vmem:[%s269 + $0x38] sm:$0xff]
        %v303 = vld [vmem:[%s269 + $0x40] sm:$0xff]
        %v304 = vld [vmem:[%s269 + $0x48] sm:$0xff]
        %v305 = vld [vmem:[%s269 + $0x50] sm:$0xff]
        %v306 = vld [vmem:[%s269 + $0x58] sm:$0xff]
        %v307 = vld [vmem:[%s269 + $0x60] sm:$0xff]
        %v308 = vld [vmem:[%s269 + $0x68] sm:$0xff]
        %v309 = vld [vmem:[%s269 + $0x70] sm:$0xff]
        %v310 = vld [vmem:[%s269 + $0x78] sm:$0xff]
        %v311 = vld [vmem:[%s269 + $0x80] sm:$0xff]
        %v312 = vld [vmem:[%s269 + $0x88] sm:$0xff]
        %v313 = vld [vmem:[%s269 + $0x90] sm:$0xff]
        %v314 = vld [vmem:[%s269 + $0x98] sm:$0xff]
        %v315 = vld [vmem:[%s269 + $0xa0] sm:$0xff]
        %v316 = vld [vmem:[%s269 + $0xa8] sm:$0xff]
        %v317 = vld [vmem:[%s269 + $0xb0] sm:$0xff]
        %v318 = vld [vmem:[%s269 + $0xb8] sm:$0xff]
        %v319 = vld [vmem:[%s269 + $0xc0] sm:$0xff]
        %v320 = vld [vmem:[%s269 + $0xc8] sm:$0xff]
        %v321 = vld [vmem:[%s269 + $0xd0] sm:$0xff]
        %v322 = vld [vmem:[%s269 + $0xd8] sm:$0xff]
        %v323 = vld [vmem:[%s269 + $0xe0] sm:$0xff]
        %v324 = vld [vmem:[%s269 + $0xe8] sm:$0xff]
        %v325 = vld [vmem:[%s269 + $0xf0] sm:$0xff]
        %v326 = vld [vmem:[%s269 + $0xf8] sm:$0xff]
        %v327 = vld [vmem:[%s289] sm:$0x3]
        %vm328 = vcmask 523264
        %v329 = vsel %vm328, %v295, 0.0
        %330 = vadd.xlane.f32.xlu0 %v329
        %v331 = vpop.xlane.xlu0 %330
        %v332 = vsel %vm328, %v296, 0.0
        %333 = vadd.xlane.f32.xlu0 %v332
        %v334 = vpop.xlane.xlu0 %333
        %v335 = vsel %vm328, %v297, 0.0
        %336 = vadd.xlane.f32.xlu0 %v335
        %v337 = vpop.xlane.xlu0 %336
        %v338 = vsel %vm328, %v298, 0.0
        %339 = vadd.xlane.f32.xlu0 %v338
        %v340 = vpop.xlane.xlu0 %339
        %v341 = vsel %vm328, %v299, 0.0
        %342 = vadd.xlane.f32.xlu0 %v341
        %v343 = vpop.xlane.xlu0 %342
        %v344 = vsel %vm328, %v300, 0.0
        %345 = vadd.xlane.f32.xlu0 %v344
        %v346 = vpop.xlane.xlu0 %345
        %v347 = vsel %vm328, %v301, 0.0
        %348 = vadd.xlane.f32.xlu0 %v347
        %v349 = vpop.xlane.xlu0 %348
        %v350 = vsel %vm328, %v302, 0.0
        %351 = vadd.xlane.f32.xlu0 %v350
        %v352 = vpop.xlane.xlu0 %351
        %v353 = vsel %vm328, %v303, 0.0
        %354 = vadd.xlane.f32.xlu0 %v353
        %v355 = vpop.xlane.xlu0 %354
        %v356 = vsel %vm328, %v304, 0.0
        %357 = vadd.xlane.f32.xlu0 %v356
        %v358 = vpop.xlane.xlu0 %357
        %v359 = vsel %vm328, %v305, 0.0
        %360 = vadd.xlane.f32.xlu0 %v359
        %v361 = vpop.xlane.xlu0 %360
        %v362 = vsel %vm328, %v306, 0.0
        %363 = vadd.xlane.f32.xlu0 %v362
        %v364 = vpop.xlane.xlu0 %363
        %v365 = vsel %vm328, %v307, 0.0
        %366 = vadd.xlane.f32.xlu0 %v365
        %v367 = vpop.xlane.xlu0 %366
        %v368 = vsel %vm328, %v308, 0.0
        %369 = vadd.xlane.f32.xlu0 %v368
        %v370 = vpop.xlane.xlu0 %369
        %v371 = vsel %vm328, %v309, 0.0
        %372 = vadd.xlane.f32.xlu0 %v371
        %v373 = vpop.xlane.xlu0 %372
        %v374 = vsel %vm328, %v310, 0.0
        %375 = vadd.xlane.f32.xlu0 %v374
        %v376 = vpop.xlane.xlu0 %375
        %v377 = vsel %vm328, %v311, 0.0
        %378 = vadd.xlane.f32.xlu0 %v377
        %v379 = vpop.xlane.xlu0 %378
        %v380 = vsel %vm328, %v312, 0.0
        %381 = vadd.xlane.f32.xlu0 %v380
        %v382 = vpop.xlane.xlu0 %381
        %v383 = vsel %vm328, %v313, 0.0
        %384 = vadd.xlane.f32.xlu0 %v383
        %v385 = vpop.xlane.xlu0 %384
        %v386 = vsel %vm328, %v314, 0.0
        %387 = vadd.xlane.f32.xlu0 %v386
        %v388 = vpop.xlane.xlu0 %387
        %v389 = vsel %vm328, %v315, 0.0
        %390 = vadd.xlane.f32.xlu0 %v389
        %v391 = vpop.xlane.xlu0 %390
        %v392 = vsel %vm328, %v316, 0.0
        %393 = vadd.xlane.f32.xlu0 %v392
        %v394 = vpop.xlane.xlu0 %393
        %v395 = vsel %vm328, %v317, 0.0
        %396 = vadd.xlane.f32.xlu0 %v395
        %v397 = vpop.xlane.xlu0 %396
        %v398 = vsel %vm328, %v318, 0.0
        %399 = vadd.xlane.f32.xlu0 %v398
        %v400 = vpop.xlane.xlu0 %399
        %v401 = vsel %vm328, %v319, 0.0
        %402 = vadd.xlane.f32.xlu0 %v401
        %v403 = vpop.xlane.xlu0 %402
        %v404 = vsel %vm328, %v320, 0.0
        %405 = vadd.xlane.f32.xlu0 %v404
        %v406 = vpop.xlane.xlu0 %405
        %v407 = vsel %vm328, %v321, 0.0
        %408 = vadd.xlane.f32.xlu0 %v407
        %v409 = vpop.xlane.xlu0 %408
        %v410 = vsel %vm328, %v322, 0.0
        %411 = vadd.xlane.f32.xlu0 %v410
        %v412 = vpop.xlane.xlu0 %411
        %v413 = vsel %vm328, %v323, 0.0
        %414 = vadd.xlane.f32.xlu0 %v413
        %v415 = vpop.xlane.xlu0 %414
        %v416 = vsel %vm328, %v324, 0.0
        %417 = vadd.xlane.f32.xlu0 %v416
        %v418 = vpop.xlane.xlu0 %417
        %v419 = vsel %vm328, %v325, 0.0
        %420 = vadd.xlane.f32.xlu0 %v419
        %v421 = vpop.xlane.xlu0 %420
        %v422 = vsel %vm328, %v326, 0.0
        %423 = vadd.xlane.f32.xlu0 %v422
        %v424 = vpop.xlane.xlu0 %423
        %v457 = vlaneseq
        %v458 = vand.u32 %v457, 127
        %v459 = vlaneseq
        %v460 = vshrl.u32 %v459, 7
        %v461 = vsub.s32 %v458, %v460
        %v462 = vrot.slane %v331, %v461
        %v463 = vadd.s32 %v458, 4294967288
        %v464 = vlaneseq
        %v465 = vshrl.u32 %v464, 7
        %v466 = vsub.s32 %v463, %v465
        %v467 = vrot.slane %v334, %v466
        %vm468 = vcmask 130112
        %v469 = vsel %vm468, %v467, %v462
        %v470 = vadd.s32 %v458, 4294967280
        %v471 = vlaneseq
        %v472 = vshrl.u32 %v471, 7
        %v473 = vsub.s32 %v470, %v472
        %v474 = vrot.slane %v337, %v473
        %vm475 = vcmask 195712
        %v476 = vsel %vm475, %v474, %v469
        %v477 = vadd.s32 %v458, 4294967272
        %v478 = vlaneseq
        %v479 = vshrl.u32 %v478, 7
        %v480 = vsub.s32 %v477, %v479
        %v481 = vrot.slane %v340, %v480
        %vm482 = vcmask 261312
        %v483 = vsel %vm482, %v481, %v476
        %v484 = vadd.s32 %v458, 4294967264
        %v485 = vlaneseq
        %v486 = vshrl.u32 %v485, 7
        %v487 = vsub.s32 %v484, %v486
        %v488 = vrot.slane %v343, %v487
        %vm489 = vcmask 326912
        %v490 = vsel %vm489, %v488, %v483
        %v491 = vadd.s32 %v458, 4294967256
        %v492 = vlaneseq
        %v493 = vshrl.u32 %v492, 7
        %v494 = vsub.s32 %v491, %v493
        %v495 = vrot.slane %v346, %v494
        %vm496 = vcmask 392512
        %v497 = vsel %vm496, %v495, %v490
        %v498 = vadd.s32 %v458, 4294967248
        %v499 = vlaneseq
        %v500 = vshrl.u32 %v499, 7
        %v501 = vsub.s32 %v498, %v500
        %v502 = vrot.slane %v349, %v501
        %vm503 = vcmask 458112
        %v504 = vsel %vm503, %v502, %v497
        %v505 = vadd.s32 %v458, 4294967240
        %v506 = vlaneseq
        %v507 = vshrl.u32 %v506, 7
        %v508 = vsub.s32 %v505, %v507
        %v509 = vrot.slane %v352, %v508
        %vm510 = vcmask 523712
        %v511 = vsel %vm510, %v509, %v504
        %v512 = vadd.s32 %v458, 4294967232
        %v513 = vlaneseq
        %v514 = vshrl.u32 %v513, 7
        %v515 = vsub.s32 %v512, %v514
        %v516 = vrot.slane %v355, %v515
        %vm517 = vcmask 589312
        %v518 = vsel %vm517, %v516, %v511
        %v519 = vadd.s32 %v458, 4294967224
        %v520 = vlaneseq
        %v521 = vshrl.u32 %v520, 7
        %v522 = vsub.s32 %v519, %v521
        %v523 = vrot.slane %v358, %v522
        %vm524 = vcmask 654912
        %v525 = vsel %vm524, %v523, %v518
        %v526 = vadd.s32 %v458, 4294967216
        %v527 = vlaneseq
        %v528 = vshrl.u32 %v527, 7
        %v529 = vsub.s32 %v526, %v528
        %v530 = vrot.slane %v361, %v529
        %vm531 = vcmask 720512
        %v532 = vsel %vm531, %v530, %v525
        %v533 = vadd.s32 %v458, 4294967208
        %v534 = vlaneseq
        %v535 = vshrl.u32 %v534, 7
        %v536 = vsub.s32 %v533, %v535
        %v537 = vrot.slane %v364, %v536
        %vm538 = vcmask 786112
        %v539 = vsel %vm538, %v537, %v532
        %v540 = vadd.s32 %v458, 4294967200
        %v541 = vlaneseq
        %v542 = vshrl.u32 %v541, 7
        %v543 = vsub.s32 %v540, %v542
        %v544 = vrot.slane %v367, %v543
        %vm545 = vcmask 851712
        %v546 = vsel %vm545, %v544, %v539
        %v547 = vadd.s32 %v458, 4294967192
        %v548 = vlaneseq
        %v549 = vshrl.u32 %v548, 7
        %v550 = vsub.s32 %v547, %v549
        %v551 = vrot.slane %v370, %v550
        %vm552 = vcmask 917312
        %v553 = vsel %vm552, %v551, %v546
        %v554 = vadd.s32 %v458, 4294967184
        %v555 = vlaneseq
        %v556 = vshrl.u32 %v555, 7
        %v557 = vsub.s32 %v554, %v556
        %v558 = vrot.slane %v373, %v557
        %vm559 = vcmask 982912
        %v560 = vsel %vm559, %v558, %v553
        %v561 = vadd.s32 %v458, 4294967176
        %v562 = vlaneseq
        %v563 = vshrl.u32 %v562, 7
        %v564 = vsub.s32 %v561, %v563
        %v565 = vrot.slane %v376, %v564
        %vm566 = vcmask 1048512
        %v567 = vsel %vm566, %v565, %v560
        %v568 = vlaneseq
        %v569 = vshrl.u32 %v568, 7
        %v570 = vsub.s32 %v458, %v569
        %v571 = vrot.slane %v379, %v570
        %v572 = vlaneseq
        %v573 = vshrl.u32 %v572, 7
        %v574 = vsub.s32 %v463, %v573
        %v575 = vrot.slane %v382, %v574
        %v576 = vsel %vm468, %v575, %v571
        %v577 = vlaneseq
        %v578 = vshrl.u32 %v577, 7
        %v579 = vsub.s32 %v470, %v578
        %v580 = vrot.slane %v385, %v579
        %v581 = vsel %vm475, %v580, %v576
        %v582 = vlaneseq
        %v583 = vshrl.u32 %v582, 7
        %v584 = vsub.s32 %v477, %v583
        %v585 = vrot.slane %v388, %v584
        %v586 = vsel %vm482, %v585, %v581
        %v587 = vlaneseq
        %v588 = vshrl.u32 %v587, 7
        %v589 = vsub.s32 %v484, %v588
        %v590 = vrot.slane %v391, %v589
        %v591 = vsel %vm489, %v590, %v586
        %v592 = vlaneseq
        %v593 = vshrl.u32 %v592, 7
        %v594 = vsub.s32 %v491, %v593
        %v595 = vrot.slane %v394, %v594
        %v596 = vsel %vm496, %v595, %v591
        %v597 = vlaneseq
        %v598 = vshrl.u32 %v597, 7
        %v599 = vsub.s32 %v498, %v598
        %v600 = vrot.slane %v397, %v599
        %v601 = vsel %vm503, %v600, %v596
        %v602 = vlaneseq
        %v603 = vshrl.u32 %v602, 7
        %v604 = vsub.s32 %v505, %v603
        %v605 = vrot.slane %v400, %v604
        %v606 = vsel %vm510, %v605, %v601
        %v607 = vlaneseq
        %v608 = vshrl.u32 %v607, 7
        %v609 = vsub.s32 %v512, %v608
        %v610 = vrot.slane %v403, %v609
        %v611 = vsel %vm517, %v610, %v606
        %v612 = vlaneseq
        %v613 = vshrl.u32 %v612, 7
        %v614 = vsub.s32 %v519, %v613
        %v615 = vrot.slane %v406, %v614
        %v616 = vsel %vm524, %v615, %v611
        %v617 = vlaneseq
        %v618 = vshrl.u32 %v617, 7
        %v619 = vsub.s32 %v526, %v618
        %v620 = vrot.slane %v409, %v619
        %v621 = vsel %vm531, %v620, %v616
        %v622 = vlaneseq
        %v623 = vshrl.u32 %v622, 7
        %v624 = vsub.s32 %v533, %v623
        %v625 = vrot.slane %v412, %v624
        %v626 = vsel %vm538, %v625, %v621
        %v627 = vlaneseq
        %v628 = vshrl.u32 %v627, 7
        %v629 = vsub.s32 %v540, %v628
        %v630 = vrot.slane %v415, %v629
        %v631 = vsel %vm545, %v630, %v626
        %v632 = vlaneseq
        %v633 = vshrl.u32 %v632, 7
        %v634 = vsub.s32 %v547, %v633
        %v635 = vrot.slane %v418, %v634
        %v636 = vsel %vm552, %v635, %v631
        %v637 = vlaneseq
        %v638 = vshrl.u32 %v637, 7
        %v639 = vsub.s32 %v554, %v638
        %v640 = vrot.slane %v421, %v639
        %v641 = vsel %vm559, %v640, %v636
        %v642 = vlaneseq
        %v643 = vshrl.u32 %v642, 7
        %v644 = vsub.s32 %v561, %v643
        %v645 = vrot.slane %v424, %v644
        %v646 = vsel %vm566, %v645, %v641
        %vm647 = vcmask 1041409
        %v648 = vsel %vm647, %v646, %v567
        %v650 = vadd.f32 %v327, %v648
        %651 = vst [vmem:[%s289] sm:$0x3] %v650
        // Predicated region
        $region67: #{faster_rcnn_embedder.6} parent=57 // pred_check
          %p652 = pneg %p290
        $region68: #{faster_rcnn_embedder.6} parent=57 // pred_check_branch
          %654 = sbr.rel (%p652) target = $region70
        $region69: #{faster_rcnn_embedder.6} parent=57 // pred_region
          %v655 = vld [vmem:[%s289] sm:$0x3]
          %v656 = vmul.f32 %v655, 0.015625
          %657 = vst [vmem:[%s289] sm:$0x3] %v656
        $region70: #{faster_rcnn_embedder.6} parent=57 // pred_fallthru
          _
        %p658 = scmp.lt.s32.totalorder %s16, 1
        %s659 = scalar_select %p658, %s16, 1
        %s660 = smul.addr %s659, 2
        %s661 = scalar_lea.vmem %s1, %s660
        // Predicated region
        $region71: #{faster_rcnn_embedder.6} parent=57 // pred_check
          %p662 = pneg %p70
        $region72: #{faster_rcnn_embedder.6} parent=57 // pred_check_branch
          %664 = sbr.rel (%p662) target = $region74
        $region73: #{faster_rcnn_embedder.6} parent=57 // pred_region
          _
        $region74: #{faster_rcnn_embedder.6} parent=57 // pred_fallthru
          _
      $region58: #{faster_rcnn_embedder.6} parent=5 // pred_fallthru
        _
      %p665 = scmp.le.s32.totalorder 2, %s7
      // Predicated region
      $region75: #{faster_rcnn_embedder.6} parent=5 // pred_check
        %p666 = pneg %p665
      $region76: #{faster_rcnn_embedder.6} parent=5 // pred_check_branch
        %668 = sbr.rel (%p666) target = $region78
      $region77: #{faster_rcnn_embedder.6} parent=5 // pred_region
        %s669 = ssub.s32 %s7, 2
        // Predicated region
        $region79: #{faster_rcnn_embedder.6} parent=77 // pred_check
          %p670 = pneg %p76
        $region80: #{faster_rcnn_embedder.6} parent=77 // pred_check_branch
          %672 = sbr.rel (%p670) target = $region82
        $region81: #{faster_rcnn_embedder.6} parent=77 // pred_region
          %p673 = scmp.lt.s32.totalorder %s18, 1
          %s674 = scalar_select %p673, %s18, 1
          %s675 = smul.addr %s674, 2
          %s676 = scalar_lea.vmem %s1, %s675
        $region82: #{faster_rcnn_embedder.6} parent=77 // pred_fallthru
          _
      $region78: #{faster_rcnn_embedder.6} parent=5 // pred_fallthru
        _
    $region6: #{faster_rcnn_embedder.6} parent=1 // loop_footer
      %s11 = sadd.s32 1, %s7
    $region7: #{faster_rcnn_embedder.6} parent=1 // loop_footer_branch
      %6 = sbr.rel target = $region3
    $region8: #{faster_rcnn_embedder.6} parent=1 // loop_exit
      _

// kernel: faster_rcnn_embedder.9
$region0: #{faster_rcnn_embedder.9}
  #allocation0 [shape = 'u32[]', space=smem, size = 0x4, offset = 0x4, fixed_abs, tag = 'smem constant byte address 0x4 - core index']
  #allocation1 [shape = 'u32[144,128]{1,0:T(1,128)}', space=vmem, size = 0x12000, scoped, tag = 'internal scratch']
  %s0 = inlined_call_operand.vmem [shape: f32[2,1024], index: 0, kind: input, shape index: {}]
  %s1 = inlined_call_operand.vmem [shape: bf16[1024,1024], index: 1, kind: input, shape index: {}]
  %s2 = inlined_call_operand.vmem [shape: f32[3,1024], index: 2, kind: input, shape index: {}]
  %s3 = inlined_call_operand.hbm [shape: f32[2,1024], index: 3, kind: output, shape index: {}]
  %s4 = sld [smem:[#allocation0]]
  $region22: #{faster_rcnn_embedder.9} parent=0
    _
  %s6 = ssub.s32 1, %s4
  %s7 = scalar_select 0, %s6, %s4
  $region1: #{faster_rcnn_embedder.9} parent=0
    #allocation2 [shape = 'u8[8192]{0}', space=vmem, size = 0x2000, scoped, tag = 'output window, operand 0, single buffered']
    #allocation3 [shape = 's32[1]{0}', space=sflag, size = 0x4, scoped, tag = 'scoped memory for faster_rcnn_embedder.9']
    %8 = vsyncpa [#allocation3], 0
    // Predicated region
    $region2: #{faster_rcnn_embedder.9} parent=1 // pred_check
      _
    $region3: #{faster_rcnn_embedder.9} parent=1 // pred_check_branch
      %10 = sbr.rel (0) target = $region5
    $region4: #{faster_rcnn_embedder.9} parent=1 // pred_region
      _
    $region5: #{faster_rcnn_embedder.9} parent=1 // pred_fallthru
      _
    // Predicated region
    $region6: #{faster_rcnn_embedder.9} parent=1 // pred_check
      _
    $region7: #{faster_rcnn_embedder.9} parent=1 // pred_check_branch
      %12 = sbr.rel (0) target = $region9
    $region8: #{faster_rcnn_embedder.9} parent=1 // pred_region
      _
    $region9: #{faster_rcnn_embedder.9} parent=1 // pred_fallthru
      _
    // Predicated region
    $region10: #{faster_rcnn_embedder.9} parent=1 // pred_check
      _
    $region11: #{faster_rcnn_embedder.9} parent=1 // pred_check_branch
      %14 = sbr.rel (0) target = $region13
    $region12: #{faster_rcnn_embedder.9} parent=1 // pred_region
      _
    $region13: #{faster_rcnn_embedder.9} parent=1 // pred_fallthru
      _
    %v15 = vld [vmem:[%s0] sm:$0xff]
    %v16 = vld [vmem:[%s0 + $0x8] sm:$0xff]
    %v19 = vcombine.high %v15, %v15
    %v21 = vunpack.c.l.s4 1983009808
    %v22 = vunpack.c.0.s8 %v21
    %v23 = vlaneseq
    %v24 = vshrl.u32 %v23, 7
    %v25 = vsub.s32 %v22, %v24
    %v26 = vrot.slane %v15, %v25
    %v28 = vunpack.c.l.s4 1983009808
    %v29 = vunpack.c.0.s8 %v28
    %v30 = vlaneseq
    %v31 = vshrl.u32 %v30, 7
    %v32 = vsub.s32 %v29, %v31
    %v33 = vrot.slane %v19, %v32
    %v34 = vcombine.high %v26, %v26
    %v35 = vcombine.high %v33, %v33
    %v36 = vcombine.high %v16, %v16
    %v38 = vunpack.c.l.s4 1983009808
    %v39 = vunpack.c.0.s8 %v38
    %v40 = vlaneseq
    %v41 = vshrl.u32 %v40, 7
    %v42 = vsub.s32 %v39, %v41
    %v43 = vrot.slane %v16, %v42
    %v45 = vunpack.c.l.s4 1983009808
    %v46 = vunpack.c.0.s8 %v45
    %v47 = vlaneseq
    %v48 = vshrl.u32 %v47, 7
    %v49 = vsub.s32 %v46, %v48
    %v50 = vrot.slane %v36, %v49
    %v51 = vcombine.high %v43, %v43
    %v52 = vcombine.high %v50, %v50
    %v61 = vpack.c.bf16 %v26, %v26
    %v62 = vpack.c.bf16 %v34, %v34
    %v63 = vpack.c.bf16 %v33, %v33
    %v64 = vpack.c.bf16 %v35, %v35
    %v65 = vpack.c.bf16 %v43, %v43
    %v66 = vpack.c.bf16 %v51, %v51
    %v67 = vpack.c.bf16 %v50, %v50
    %v68 = vpack.c.bf16 %v52, %v52
    %v69 = vld [vmem:[%s1] sm:$0xff]
    %v70 = vld [vmem:[%s1 + $0x8] sm:$0xff]
    %v71 = vld [vmem:[%s1 + $0x10] sm:$0xff]
    %v72 = vld [vmem:[%s1 + $0x18] sm:$0xff]
    %v73 = vld [vmem:[%s1 + $0x20] sm:$0xff]
    %v74 = vld [vmem:[%s1 + $0x28] sm:$0xff]
    %v75 = vld [vmem:[%s1 + $0x30] sm:$0xff]
    %v76 = vld [vmem:[%s1 + $0x38] sm:$0xff]
    %v77 = vld [vmem:[%s1 + $0x40] sm:$0xff]
    %v78 = vld [vmem:[%s1 + $0x48] sm:$0xff]
    %v79 = vld [vmem:[%s1 + $0x50] sm:$0xff]
    %v80 = vld [vmem:[%s1 + $0x58] sm:$0xff]
    %v81 = vld [vmem:[%s1 + $0x60] sm:$0xff]
    %v82 = vld [vmem:[%s1 + $0x68] sm:$0xff]
    %v83 = vld [vmem:[%s1 + $0x70] sm:$0xff]
    %v84 = vld [vmem:[%s1 + $0x78] sm:$0xff]
    %v85 = vld [vmem:[%s1 + $0x80] sm:$0xff]
    %v86 = vld [vmem:[%s1 + $0x88] sm:$0xff]
    %v87 = vld [vmem:[%s1 + $0x90] sm:$0xff]
    %v88 = vld [vmem:[%s1 + $0x98] sm:$0xff]
    %v89 = vld [vmem:[%s1 + $0xa0] sm:$0xff]
    %v90 = vld [vmem:[%s1 + $0xa8] sm:$0xff]
    %v91 = vld [vmem:[%s1 + $0xb0] sm:$0xff]
    %v92 = vld [vmem:[%s1 + $0xb8] sm:$0xff]
    %v93 = vld [vmem:[%s1 + $0xc0] sm:$0xff]
    %v94 = vld [vmem:[%s1 + $0xc8] sm:$0xff]
    %v95 = vld [vmem:[%s1 + $0xd0] sm:$0xff]
    %v96 = vld [vmem:[%s1 + $0xd8] sm:$0xff]
    %v97 = vld [vmem:[%s1 + $0xe0] sm:$0xff]
    %v98 = vld [vmem:[%s1 + $0xe8] sm:$0xff]
    %v99 = vld [vmem:[%s1 + $0xf0] sm:$0xff]
    %v100 = vld [vmem:[%s1 + $0xf8] sm:$0xff]
    %v101 = vld [vmem:[%s1 + $0x100] sm:$0xff]
    %v102 = vld [vmem:[%s1 + $0x108] sm:$0xff]
    %v103 = vld [vmem:[%s1 + $0x110] sm:$0xff]
    %v104 = vld [vmem:[%s1 + $0x118] sm:$0xff]
    %v105 = vld [vmem:[%s1 + $0x120] sm:$0xff]
    %v106 = vld [vmem:[%s1 + $0x128] sm:$0xff]
    %v107 = vld [vmem:[%s1 + $0x130] sm:$0xff]
    %v108 = vld [vmem:[%s1 + $0x138] sm:$0xff]
    %v109 = vld [vmem:[%s1 + $0x140] sm:$0xff]
    %v110 = vld [vmem:[%s1 + $0x148] sm:$0xff]
    %v111 = vld [vmem:[%s1 + $0x150] sm:$0xff]
    %v112 = vld [vmem:[%s1 + $0x158] sm:$0xff]
    %v113 = vld [vmem:[%s1 + $0x160] sm:$0xff]
    %v114 = vld [vmem:[%s1 + $0x168] sm:$0xff]
    %v115 = vld [vmem:[%s1 + $0x170] sm:$0xff]
    %v116 = vld [vmem:[%s1 + $0x178] sm:$0xff]
    %v117 = vld [vmem:[%s1 + $0x180] sm:$0xff]
    %v118 = vld [vmem:[%s1 + $0x188] sm:$0xff]
    %v119 = vld [vmem:[%s1 + $0x190] sm:$0xff]
    %v120 = vld [vmem:[%s1 + $0x198] sm:$0xff]
    %v121 = vld [vmem:[%s1 + $0x1a0] sm:$0xff]
    %v122 = vld [vmem:[%s1 + $0x1a8] sm:$0xff]
    %v123 = vld [vmem:[%s1 + $0x1b0] sm:$0xff]
    %v124 = vld [vmem:[%s1 + $0x1b8] sm:$0xff]
    %v125 = vld [vmem:[%s1 + $0x1c0] sm:$0xff]
    %v126 = vld [vmem:[%s1 + $0x1c8] sm:$0xff]
    %v127 = vld [vmem:[%s1 + $0x1d0] sm:$0xff]
    %v128 = vld [vmem:[%s1 + $0x1d8] sm:$0xff]
    %v129 = vld [vmem:[%s1 + $0x1e0] sm:$0xff]
    %v130 = vld [vmem:[%s1 + $0x1e8] sm:$0xff]
    %v131 = vld [vmem:[%s1 + $0x1f0] sm:$0xff]
    %v132 = vld [vmem:[%s1 + $0x1f8] sm:$0xff]
    %v133 = vld [vmem:[%s1 + $0x200] sm:$0xff]
    %v134 = vld [vmem:[%s1 + $0x208] sm:$0xff]
    %v135 = vld [vmem:[%s1 + $0x210] sm:$0xff]
    %v136 = vld [vmem:[%s1 + $0x218] sm:$0xff]
    %v137 = vld [vmem:[%s1 + $0x220] sm:$0xff]
    %v138 = vld [vmem:[%s1 + $0x228] sm:$0xff]
    %v139 = vld [vmem:[%s1 + $0x230] sm:$0xff]
    %v140 = vld [vmem:[%s1 + $0x238] sm:$0xff]
    %v141 = vld [vmem:[%s1 + $0x240] sm:$0xff]
    %v142 = vld [vmem:[%s1 + $0x248] sm:$0xff]
    %v143 = vld [vmem:[%s1 + $0x250] sm:$0xff]
    %v144 = vld [vmem:[%s1 + $0x258] sm:$0xff]
    %v145 = vld [vmem:[%s1 + $0x260] sm:$0xff]
    %v146 = vld [vmem:[%s1 + $0x268] sm:$0xff]
    %v147 = vld [vmem:[%s1 + $0x270] sm:$0xff]
    %v148 = vld [vmem:[%s1 + $0x278] sm:$0xff]
    %v149 = vld [vmem:[%s1 + $0x280] sm:$0xff]
    %v150 = vld [vmem:[%s1 + $0x288] sm:$0xff]
    %v151 = vld [vmem:[%s1 + $0x290] sm:$0xff]
    %v152 = vld [vmem:[%s1 + $0x298] sm:$0xff]
    %v153 = vld [vmem:[%s1 + $0x2a0] sm:$0xff]
    %v154 = vld [vmem:[%s1 + $0x2a8] sm:$0xff]
    %v155 = vld [vmem:[%s1 + $0x2b0] sm:$0xff]
    %v156 = vld [vmem:[%s1 + $0x2b8] sm:$0xff]
    %v157 = vld [vmem:[%s1 + $0x2c0] sm:$0xff]
    %v158 = vld [vmem:[%s1 + $0x2c8] sm:$0xff]
    %v159 = vld [vmem:[%s1 + $0x2d0] sm:$0xff]
    %v160 = vld [vmem:[%s1 + $0x2d8] sm:$0xff]
    %v161 = vld [vmem:[%s1 + $0x2e0] sm:$0xff]
    %v162 = vld [vmem:[%s1 + $0x2e8] sm:$0xff]
    %v163 = vld [vmem:[%s1 + $0x2f0] sm:$0xff]
    %v164 = vld [vmem:[%s1 + $0x2f8] sm:$0xff]
    %v165 = vld [vmem:[%s1 + $0x300] sm:$0xff]
    %v166 = vld [vmem:[%s1 + $0x308] sm:$0xff]
    %v167 = vld [vmem:[%s1 + $0x310] sm:$0xff]
    %v168 = vld [vmem:[%s1 + $0x318] sm:$0xff]
    %v169 = vld [vmem:[%s1 + $0x320] sm:$0xff]
    %v170 = vld [vmem:[%s1 + $0x328] sm:$0xff]
    %v171 = vld [vmem:[%s1 + $0x330] sm:$0xff]
    %v172 = vld [vmem:[%s1 + $0x338] sm:$0xff]
    %v173 = vld [vmem:[%s1 + $0x340] sm:$0xff]
    %v174 = vld [vmem:[%s1 + $0x348] sm:$0xff]
    %v175 = vld [vmem:[%s1 + $0x350] sm:$0xff]
    %v176 = vld [vmem:[%s1 + $0x358] sm:$0xff]
    %v177 = vld [vmem:[%s1 + $0x360] sm:$0xff]
    %v178 = vld [vmem:[%s1 + $0x368] sm:$0xff]
    %v179 = vld [vmem:[%s1 + $0x370] sm:$0xff]
    %v180 = vld [vmem:[%s1 + $0x378] sm:$0xff]
    %v181 = vld [vmem:[%s1 + $0x380] sm:$0xff]
    %v182 = vld [vmem:[%s1 + $0x388] sm:$0xff]
    %v183 = vld [vmem:[%s1 + $0x390] sm:$0xff]
    %v184 = vld [vmem:[%s1 + $0x398] sm:$0xff]
    %v185 = vld [vmem:[%s1 + $0x3a0] sm:$0xff]
    %v186 = vld [vmem:[%s1 + $0x3a8] sm:$0xff]
    %v187 = vld [vmem:[%s1 + $0x3b0] sm:$0xff]
    %v188 = vld [vmem:[%s1 + $0x3b8] sm:$0xff]
    %v189 = vld [vmem:[%s1 + $0x3c0] sm:$0xff]
    %v190 = vld [vmem:[%s1 + $0x3c8] sm:$0xff]
    %v191 = vld [vmem:[%s1 + $0x3d0] sm:$0xff]
    %v192 = vld [vmem:[%s1 + $0x3d8] sm:$0xff]
    %v193 = vld [vmem:[%s1 + $0x3e0] sm:$0xff]
    %v194 = vld [vmem:[%s1 + $0x3e8] sm:$0xff]
    %v195 = vld [vmem:[%s1 + $0x3f0] sm:$0xff]
    %v196 = vld [vmem:[%s1 + $0x3f8] sm:$0xff]
    %v197 = vld [vmem:[%s1 + $0x400] sm:$0xff]
    %v198 = vld [vmem:[%s1 + $0x408] sm:$0xff]
    %v199 = vld [vmem:[%s1 + $0x410] sm:$0xff]
    %v200 = vld [vmem:[%s1 + $0x418] sm:$0xff]
    %v201 = vld [vmem:[%s1 + $0x420] sm:$0xff]
    %v202 = vld [vmem:[%s1 + $0x428] sm:$0xff]
    %v203 = vld [vmem:[%s1 + $0x430] sm:$0xff]
    %v204 = vld [vmem:[%s1 + $0x438] sm:$0xff]
    %v205 = vld [vmem:[%s1 + $0x440] sm:$0xff]
    %v206 = vld [vmem:[%s1 + $0x448] sm:$0xff]
    %v207 = vld [vmem:[%s1 + $0x450] sm:$0xff]
    %v208 = vld [vmem:[%s1 + $0x458] sm:$0xff]
    %v209 = vld [vmem:[%s1 + $0x460] sm:$0xff]
    %v210 = vld [vmem:[%s1 + $0x468] sm:$0xff]
    %v211 = vld [vmem:[%s1 + $0x470] sm:$0xff]
    %v212 = vld [vmem:[%s1 + $0x478] sm:$0xff]
    %v213 = vld [vmem:[%s1 + $0x480] sm:$0xff]
    %v214 = vld [vmem:[%s1 + $0x488] sm:$0xff]
    %v215 = vld [vmem:[%s1 + $0x490] sm:$0xff]
    %v216 = vld [vmem:[%s1 + $0x498] sm:$0xff]
    %v217 = vld [vmem:[%s1 + $0x4a0] sm:$0xff]
    %v218 = vld [vmem:[%s1 + $0x4a8] sm:$0xff]
    %v219 = vld [vmem:[%s1 + $0x4b0] sm:$0xff]
    %v220 = vld [vmem:[%s1 + $0x4b8] sm:$0xff]
    %v221 = vld [vmem:[%s1 + $0x4c0] sm:$0xff]
    %v222 = vld [vmem:[%s1 + $0x4c8] sm:$0xff]
    %v223 = vld [vmem:[%s1 + $0x4d0] sm:$0xff]
    %v224 = vld [vmem:[%s1 + $0x4d8] sm:$0xff]
    %v225 = vld [vmem:[%s1 + $0x4e0] sm:$0xff]
    %v226 = vld [vmem:[%s1 + $0x4e8] sm:$0xff]
    %v227 = vld [vmem:[%s1 + $0x4f0] sm:$0xff]
    %v228 = vld [vmem:[%s1 + $0x4f8] sm:$0xff]
    %v229 = vld [vmem:[%s1 + $0x500] sm:$0xff]
    %v230 = vld [vmem:[%s1 + $0x508] sm:$0xff]
    %v231 = vld [vmem:[%s1 + $0x510] sm:$0xff]
    %v232 = vld [vmem:[%s1 + $0x518] sm:$0xff]
    %v233 = vld [vmem:[%s1 + $0x520] sm:$0xff]
    %v234 = vld [vmem:[%s1 + $0x528] sm:$0xff]
    %v235 = vld [vmem:[%s1 + $0x530] sm:$0xff]
    %v236 = vld [vmem:[%s1 + $0x538] sm:$0xff]
    %v237 = vld [vmem:[%s1 + $0x540] sm:$0xff]
    %v238 = vld [vmem:[%s1 + $0x548] sm:$0xff]
    %v239 = vld [vmem:[%s1 + $0x550] sm:$0xff]
    %v240 = vld [vmem:[%s1 + $0x558] sm:$0xff]
    %v241 = vld [vmem:[%s1 + $0x560] sm:$0xff]
    %v242 = vld [vmem:[%s1 + $0x568] sm:$0xff]
    %v243 = vld [vmem:[%s1 + $0x570] sm:$0xff]
    %v244 = vld [vmem:[%s1 + $0x578] sm:$0xff]
    %v245 = vld [vmem:[%s1 + $0x580] sm:$0xff]
    %v246 = vld [vmem:[%s1 + $0x588] sm:$0xff]
    %v247 = vld [vmem:[%s1 + $0x590] sm:$0xff]
    %v248 = vld [vmem:[%s1 + $0x598] sm:$0xff]
    %v249 = vld [vmem:[%s1 + $0x5a0] sm:$0xff]
    %v250 = vld [vmem:[%s1 + $0x5a8] sm:$0xff]
    %v251 = vld [vmem:[%s1 + $0x5b0] sm:$0xff]
    %v252 = vld [vmem:[%s1 + $0x5b8] sm:$0xff]
    %v253 = vld [vmem:[%s1 + $0x5c0] sm:$0xff]
    %v254 = vld [vmem:[%s1 + $0x5c8] sm:$0xff]
    %v255 = vld [vmem:[%s1 + $0x5d0] sm:$0xff]
    %v256 = vld [vmem:[%s1 + $0x5d8] sm:$0xff]
    %v257 = vld [vmem:[%s1 + $0x5e0] sm:$0xff]
    %v258 = vld [vmem:[%s1 + $0x5e8] sm:$0xff]
    %v259 = vld [vmem:[%s1 + $0x5f0] sm:$0xff]
    %v260 = vld [vmem:[%s1 + $0x5f8] sm:$0xff]
    %v261 = vld [vmem:[%s1 + $0x600] sm:$0xff]
    %v262 = vld [vmem:[%s1 + $0x608] sm:$0xff]
    %v263 = vld [vmem:[%s1 + $0x610] sm:$0xff]
    %v264 = vld [vmem:[%s1 + $0x618] sm:$0xff]
    %v265 = vld [vmem:[%s1 + $0x620] sm:$0xff]
    %v266 = vld [vmem:[%s1 + $0x628] sm:$0xff]
    %v267 = vld [vmem:[%s1 + $0x630] sm:$0xff]
    %v268 = vld [vmem:[%s1 + $0x638] sm:$0xff]
    %v269 = vld [vmem:[%s1 + $0x640] sm:$0xff]
    %v270 = vld [vmem:[%s1 + $0x648] sm:$0xff]
    %v271 = vld [vmem:[%s1 + $0x650] sm:$0xff]
    %v272 = vld [vmem:[%s1 + $0x658] sm:$0xff]
    %v273 = vld [vmem:[%s1 + $0x660] sm:$0xff]
    %v274 = vld [vmem:[%s1 + $0x668] sm:$0xff]
    %v275 = vld [vmem:[%s1 + $0x670] sm:$0xff]
    %v276 = vld [vmem:[%s1 + $0x678] sm:$0xff]
    %v277 = vld [vmem:[%s1 + $0x680] sm:$0xff]
    %v278 = vld [vmem:[%s1 + $0x688] sm:$0xff]
    %v279 = vld [vmem:[%s1 + $0x690] sm:$0xff]
    %v280 = vld [vmem:[%s1 + $0x698] sm:$0xff]
    %v281 = vld [vmem:[%s1 + $0x6a0] sm:$0xff]
    %v282 = vld [vmem:[%s1 + $0x6a8] sm:$0xff]
    %v283 = vld [vmem:[%s1 + $0x6b0] sm:$0xff]
    %v284 = vld [vmem:[%s1 + $0x6b8] sm:$0xff]
    %v285 = vld [vmem:[%s1 + $0x6c0] sm:$0xff]
    %v286 = vld [vmem:[%s1 + $0x6c8] sm:$0xff]
    %v287 = vld [vmem:[%s1 + $0x6d0] sm:$0xff]
    %v288 = vld [vmem:[%s1 + $0x6d8] sm:$0xff]
    %v289 = vld [vmem:[%s1 + $0x6e0] sm:$0xff]
    %v290 = vld [vmem:[%s1 + $0x6e8] sm:$0xff]
    %v291 = vld [vmem:[%s1 + $0x6f0] sm:$0xff]
    %v292 = vld [vmem:[%s1 + $0x6f8] sm:$0xff]
    %v293 = vld [vmem:[%s1 + $0x700] sm:$0xff]
    %v294 = vld [vmem:[%s1 + $0x708] sm:$0xff]
    %v295 = vld [vmem:[%s1 + $0x710] sm:$0xff]
    %v296 = vld [vmem:[%s1 + $0x718] sm:$0xff]
    %v297 = vld [vmem:[%s1 + $0x720] sm:$0xff]
    %v298 = vld [vmem:[%s1 + $0x728] sm:$0xff]
    %v299 = vld [vmem:[%s1 + $0x730] sm:$0xff]
    %v300 = vld [vmem:[%s1 + $0x738] sm:$0xff]
    %v301 = vld [vmem:[%s1 + $0x740] sm:$0xff]
    %v302 = vld [vmem:[%s1 + $0x748] sm:$0xff]
    %v303 = vld [vmem:[%s1 + $0x750] sm:$0xff]
    %v304 = vld [vmem:[%s1 + $0x758] sm:$0xff]
    %v305 = vld [vmem:[%s1 + $0x760] sm:$0xff]
    %v306 = vld [vmem:[%s1 + $0x768] sm:$0xff]
    %v307 = vld [vmem:[%s1 + $0x770] sm:$0xff]
    %v308 = vld [vmem:[%s1 + $0x778] sm:$0xff]
    %v309 = vld [vmem:[%s1 + $0x780] sm:$0xff]
    %v310 = vld [vmem:[%s1 + $0x788] sm:$0xff]
    %v311 = vld [vmem:[%s1 + $0x790] sm:$0xff]
    %v312 = vld [vmem:[%s1 + $0x798] sm:$0xff]
    %v313 = vld [vmem:[%s1 + $0x7a0] sm:$0xff]
    %v314 = vld [vmem:[%s1 + $0x7a8] sm:$0xff]
    %v315 = vld [vmem:[%s1 + $0x7b0] sm:$0xff]
    %v316 = vld [vmem:[%s1 + $0x7b8] sm:$0xff]
    %v317 = vld [vmem:[%s1 + $0x7c0] sm:$0xff]
    %v318 = vld [vmem:[%s1 + $0x7c8] sm:$0xff]
    %v319 = vld [vmem:[%s1 + $0x7d0] sm:$0xff]
    %v320 = vld [vmem:[%s1 + $0x7d8] sm:$0xff]
    %v321 = vld [vmem:[%s1 + $0x7e0] sm:$0xff]
    %v322 = vld [vmem:[%s1 + $0x7e8] sm:$0xff]
    %v323 = vld [vmem:[%s1 + $0x7f0] sm:$0xff]
    %v324 = vld [vmem:[%s1 + $0x7f8] sm:$0xff]
    %v325 = vld [vmem:[%s1 + $0x800] sm:$0xff]
    %v326 = vld [vmem:[%s1 + $0x808] sm:$0xff]
    %v327 = vld [vmem:[%s1 + $0x810] sm:$0xff]
    %v328 = vld [vmem:[%s1 + $0x818] sm:$0xff]
    %v329 = vld [vmem:[%s1 + $0x820] sm:$0xff]
    %v330 = vld [vmem:[%s1 + $0x828] sm:$0xff]
    %v331 = vld [vmem:[%s1 + $0x830] sm:$0xff]
    %v332 = vld [vmem:[%s1 + $0x838] sm:$0xff]
    %v333 = vld [vmem:[%s1 + $0x840] sm:$0xff]
    %v334 = vld [vmem:[%s1 + $0x848] sm:$0xff]
    %v335 = vld [vmem:[%s1 + $0x850] sm:$0xff]
    %v336 = vld [vmem:[%s1 + $0x858] sm:$0xff]
    %v337 = vld [vmem:[%s1 + $0x860] sm:$0xff]
    %v338 = vld [vmem:[%s1 + $0x868] sm:$0xff]
    %v339 = vld [vmem:[%s1 + $0x870] sm:$0xff]
    %v340 = vld [vmem:[%s1 + $0x878] sm:$0xff]
    %v341 = vld [vmem:[%s1 + $0x880] sm:$0xff]
    %v342 = vld [vmem:[%s1 + $0x888] sm:$0xff]
    %v343 = vld [vmem:[%s1 + $0x890] sm:$0xff]
    %v344 = vld [vmem:[%s1 + $0x898] sm:$0xff]
    %v345 = vld [vmem:[%s1 + $0x8a0] sm:$0xff]
    %v346 = vld [vmem:[%s1 + $0x8a8] sm:$0xff]
    %v347 = vld [vmem:[%s1 + $0x8b0] sm:$0xff]
    %v348 = vld [vmem:[%s1 + $0x8b8] sm:$0xff]
    %v349 = vld [vmem:[%s1 + $0x8c0] sm:$0xff]
    %v350 = vld [vmem:[%s1 + $0x8c8] sm:$0xff]
    %v351 = vld [vmem:[%s1 + $0x8d0] sm:$0xff]
    %v352 = vld [vmem:[%s1 + $0x8d8] sm:$0xff]
    %v353 = vld [vmem:[%s1 + $0x8e0] sm:$0xff]
    %v354 = vld [vmem:[%s1 + $0x8e8] sm:$0xff]
    %v355 = vld [vmem:[%s1 + $0x8f0] sm:$0xff]
    %v356 = vld [vmem:[%s1 + $0x8f8] sm:$0xff]
    %v357 = vld [vmem:[%s1 + $0x900] sm:$0xff]
    %v358 = vld [vmem:[%s1 + $0x908] sm:$0xff]
    %v359 = vld [vmem:[%s1 + $0x910] sm:$0xff]
    %v360 = vld [vmem:[%s1 + $0x918] sm:$0xff]
    %v361 = vld [vmem:[%s1 + $0x920] sm:$0xff]
    %v362 = vld [vmem:[%s1 + $0x928] sm:$0xff]
    %v363 = vld [vmem:[%s1 + $0x930] sm:$0xff]
    %v364 = vld [vmem:[%s1 + $0x938] sm:$0xff]
    %v365 = vld [vmem:[%s1 + $0x940] sm:$0xff]
    %v366 = vld [vmem:[%s1 + $0x948] sm:$0xff]
    %v367 = vld [vmem:[%s1 + $0x950] sm:$0xff]
    %v368 = vld [vmem:[%s1 + $0x958] sm:$0xff]
    %v369 = vld [vmem:[%s1 + $0x960] sm:$0xff]
    %v370 = vld [vmem:[%s1 + $0x968] sm:$0xff]
    %v371 = vld [vmem:[%s1 + $0x970] sm:$0xff]
    %v372 = vld [vmem:[%s1 + $0x978] sm:$0xff]
    %v373 = vld [vmem:[%s1 + $0x980] sm:$0xff]
    %v374 = vld [vmem:[%s1 + $0x988] sm:$0xff]
    %v375 = vld [vmem:[%s1 + $0x990] sm:$0xff]
    %v376 = vld [vmem:[%s1 + $0x998] sm:$0xff]
    %v377 = vld [vmem:[%s1 + $0x9a0] sm:$0xff]
    %v378 = vld [vmem:[%s1 + $0x9a8] sm:$0xff]
    %v379 = vld [vmem:[%s1 + $0x9b0] sm:$0xff]
    %v380 = vld [vmem:[%s1 + $0x9b8] sm:$0xff]
    %v381 = vld [vmem:[%s1 + $0x9c0] sm:$0xff]
    %v382 = vld [vmem:[%s1 + $0x9c8] sm:$0xff]
    %v383 = vld [vmem:[%s1 + $0x9d0] sm:$0xff]
    %v384 = vld [vmem:[%s1 + $0x9d8] sm:$0xff]
    %v385 = vld [vmem:[%s1 + $0x9e0] sm:$0xff]
    %v386 = vld [vmem:[%s1 + $0x9e8] sm:$0xff]
    %v387 = vld [vmem:[%s1 + $0x9f0] sm:$0xff]
    %v388 = vld [vmem:[%s1 + $0x9f8] sm:$0xff]
    %v389 = vld [vmem:[%s1 + $0xa00] sm:$0xff]
    %v390 = vld [vmem:[%s1 + $0xa08] sm:$0xff]
    %v391 = vld [vmem:[%s1 + $0xa10] sm:$0xff]
    %v392 = vld [vmem:[%s1 + $0xa18] sm:$0xff]
    %v393 = vld [vmem:[%s1 + $0xa20] sm:$0xff]
    %v394 = vld [vmem:[%s1 + $0xa28] sm:$0xff]
    %v395 = vld [vmem:[%s1 + $0xa30] sm:$0xff]
    %v396 = vld [vmem:[%s1 + $0xa38] sm:$0xff]
    %v397 = vld [vmem:[%s1 + $0xa40] sm:$0xff]
    %v398 = vld [vmem:[%s1 + $0xa48] sm:$0xff]
    %v399 = vld [vmem:[%s1 + $0xa50] sm:$0xff]
    %v400 = vld [vmem:[%s1 + $0xa58] sm:$0xff]
    %v401 = vld [vmem:[%s1 + $0xa60] sm:$0xff]
    %v402 = vld [vmem:[%s1 + $0xa68] sm:$0xff]
    %v403 = vld [vmem:[%s1 + $0xa70] sm:$0xff]
    %v404 = vld [vmem:[%s1 + $0xa78] sm:$0xff]
    %v405 = vld [vmem:[%s1 + $0xa80] sm:$0xff]
    %v406 = vld [vmem:[%s1 + $0xa88] sm:$0xff]
    %v407 = vld [vmem:[%s1 + $0xa90] sm:$0xff]
    %v408 = vld [vmem:[%s1 + $0xa98] sm:$0xff]
    %v409 = vld [vmem:[%s1 + $0xaa0] sm:$0xff]
    %v410 = vld [vmem:[%s1 + $0xaa8] sm:$0xff]
    %v411 = vld [vmem:[%s1 + $0xab0] sm:$0xff]
    %v412 = vld [vmem:[%s1 + $0xab8] sm:$0xff]
    %v413 = vld [vmem:[%s1 + $0xac0] sm:$0xff]
    %v414 = vld [vmem:[%s1 + $0xac8] sm:$0xff]
    %v415 = vld [vmem:[%s1 + $0xad0] sm:$0xff]
    %v416 = vld [vmem:[%s1 + $0xad8] sm:$0xff]
    %v417 = vld [vmem:[%s1 + $0xae0] sm:$0xff]
    %v418 = vld [vmem:[%s1 + $0xae8] sm:$0xff]
    %v419 = vld [vmem:[%s1 + $0xaf0] sm:$0xff]
    %v420 = vld [vmem:[%s1 + $0xaf8] sm:$0xff]
    %v421 = vld [vmem:[%s1 + $0xb00] sm:$0xff]
    %v422 = vld [vmem:[%s1 + $0xb08] sm:$0xff]
    %v423 = vld [vmem:[%s1 + $0xb10] sm:$0xff]
    %v424 = vld [vmem:[%s1 + $0xb18] sm:$0xff]
    %v425 = vld [vmem:[%s1 + $0xb20] sm:$0xff]
    %v426 = vld [vmem:[%s1 + $0xb28] sm:$0xff]
    %v427 = vld [vmem:[%s1 + $0xb30] sm:$0xff]
    %v428 = vld [vmem:[%s1 + $0xb38] sm:$0xff]
    %v429 = vld [vmem:[%s1 + $0xb40] sm:$0xff]
    %v430 = vld [vmem:[%s1 + $0xb48] sm:$0xff]
    %v431 = vld [vmem:[%s1 + $0xb50] sm:$0xff]
    %v432 = vld [vmem:[%s1 + $0xb58] sm:$0xff]
    %v433 = vld [vmem:[%s1 + $0xb60] sm:$0xff]
    %v434 = vld [vmem:[%s1 + $0xb68] sm:$0xff]
    %v435 = vld [vmem:[%s1 + $0xb70] sm:$0xff]
    %v436 = vld [vmem:[%s1 + $0xb78] sm:$0xff]
    %v437 = vld [vmem:[%s1 + $0xb80] sm:$0xff]
    %v438 = vld [vmem:[%s1 + $0xb88] sm:$0xff]
    %v439 = vld [vmem:[%s1 + $0xb90] sm:$0xff]
    %v440 = vld [vmem:[%s1 + $0xb98] sm:$0xff]
    %v441 = vld [vmem:[%s1 + $0xba0] sm:$0xff]
    %v442 = vld [vmem:[%s1 + $0xba8] sm:$0xff]
    %v443 = vld [vmem:[%s1 + $0xbb0] sm:$0xff]
    %v444 = vld [vmem:[%s1 + $0xbb8] sm:$0xff]
    %v445 = vld [vmem:[%s1 + $0xbc0] sm:$0xff]
    %v446 = vld [vmem:[%s1 + $0xbc8] sm:$0xff]
    %v447 = vld [vmem:[%s1 + $0xbd0] sm:$0xff]
    %v448 = vld [vmem:[%s1 + $0xbd8] sm:$0xff]
    %v449 = vld [vmem:[%s1 + $0xbe0] sm:$0xff]
    %v450 = vld [vmem:[%s1 + $0xbe8] sm:$0xff]
    %v451 = vld [vmem:[%s1 + $0xbf0] sm:$0xff]
    %v452 = vld [vmem:[%s1 + $0xbf8] sm:$0xff]
    %v453 = vld [vmem:[%s1 + $0xc00] sm:$0xff]
    %v454 = vld [vmem:[%s1 + $0xc08] sm:$0xff]
    %v455 = vld [vmem:[%s1 + $0xc10] sm:$0xff]
    %v456 = vld [vmem:[%s1 + $0xc18] sm:$0xff]
    %v457 = vld [vmem:[%s1 + $0xc20] sm:$0xff]
    %v458 = vld [vmem:[%s1 + $0xc28] sm:$0xff]
    %v459 = vld [vmem:[%s1 + $0xc30] sm:$0xff]
    %v460 = vld [vmem:[%s1 + $0xc38] sm:$0xff]
    %v461 = vld [vmem:[%s1 + $0xc40] sm:$0xff]
    %v462 = vld [vmem:[%s1 + $0xc48] sm:$0xff]
    %v463 = vld [vmem:[%s1 + $0xc50] sm:$0xff]
    %v464 = vld [vmem:[%s1 + $0xc58] sm:$0xff]
    %v465 = vld [vmem:[%s1 + $0xc60] sm:$0xff]
    %v466 = vld [vmem:[%s1 + $0xc68] sm:$0xff]
    %v467 = vld [vmem:[%s1 + $0xc70] sm:$0xff]
    %v468 = vld [vmem:[%s1 + $0xc78] sm:$0xff]
    %v469 = vld [vmem:[%s1 + $0xc80] sm:$0xff]
    %v470 = vld [vmem:[%s1 + $0xc88] sm:$0xff]
    %v471 = vld [vmem:[%s1 + $0xc90] sm:$0xff]
    %v472 = vld [vmem:[%s1 + $0xc98] sm:$0xff]
    %v473 = vld [vmem:[%s1 + $0xca0] sm:$0xff]
    %v474 = vld [vmem:[%s1 + $0xca8] sm:$0xff]
    %v475 = vld [vmem:[%s1 + $0xcb0] sm:$0xff]
    %v476 = vld [vmem:[%s1 + $0xcb8] sm:$0xff]
    %v477 = vld [vmem:[%s1 + $0xcc0] sm:$0xff]
    %v478 = vld [vmem:[%s1 + $0xcc8] sm:$0xff]
    %v479 = vld [vmem:[%s1 + $0xcd0] sm:$0xff]
    %v480 = vld [vmem:[%s1 + $0xcd8] sm:$0xff]
    %v481 = vld [vmem:[%s1 + $0xce0] sm:$0xff]
    %v482 = vld [vmem:[%s1 + $0xce8] sm:$0xff]
    %v483 = vld [vmem:[%s1 + $0xcf0] sm:$0xff]
    %v484 = vld [vmem:[%s1 + $0xcf8] sm:$0xff]
    %v485 = vld [vmem:[%s1 + $0xd00] sm:$0xff]
    %v486 = vld [vmem:[%s1 + $0xd08] sm:$0xff]
    %v487 = vld [vmem:[%s1 + $0xd10] sm:$0xff]
    %v488 = vld [vmem:[%s1 + $0xd18] sm:$0xff]
    %v489 = vld [vmem:[%s1 + $0xd20] sm:$0xff]
    %v490 = vld [vmem:[%s1 + $0xd28] sm:$0xff]
    %v491 = vld [vmem:[%s1 + $0xd30] sm:$0xff]
    %v492 = vld [vmem:[%s1 + $0xd38] sm:$0xff]
    %v493 = vld [vmem:[%s1 + $0xd40] sm:$0xff]
    %v494 = vld [vmem:[%s1 + $0xd48] sm:$0xff]
    %v495 = vld [vmem:[%s1 + $0xd50] sm:$0xff]
    %v496 = vld [vmem:[%s1 + $0xd58] sm:$0xff]
    %v497 = vld [vmem:[%s1 + $0xd60] sm:$0xff]
    %v498 = vld [vmem:[%s1 + $0xd68] sm:$0xff]
    %v499 = vld [vmem:[%s1 + $0xd70] sm:$0xff]
    %v500 = vld [vmem:[%s1 + $0xd78] sm:$0xff]
    %v501 = vld [vmem:[%s1 + $0xd80] sm:$0xff]
    %v502 = vld [vmem:[%s1 + $0xd88] sm:$0xff]
    %v503 = vld [vmem:[%s1 + $0xd90] sm:$0xff]
    %v504 = vld [vmem:[%s1 + $0xd98] sm:$0xff]
    %v505 = vld [vmem:[%s1 + $0xda0] sm:$0xff]
    %v506 = vld [vmem:[%s1 + $0xda8] sm:$0xff]
    %v507 = vld [vmem:[%s1 + $0xdb0] sm:$0xff]
    %v508 = vld [vmem:[%s1 + $0xdb8] sm:$0xff]
    %v509 = vld [vmem:[%s1 + $0xdc0] sm:$0xff]
    %v510 = vld [vmem:[%s1 + $0xdc8] sm:$0xff]
    %v511 = vld [vmem:[%s1 + $0xdd0] sm:$0xff]
    %v512 = vld [vmem:[%s1 + $0xdd8] sm:$0xff]
    %v513 = vld [vmem:[%s1 + $0xde0] sm:$0xff]
    %v514 = vld [vmem:[%s1 + $0xde8] sm:$0xff]
    %v515 = vld [vmem:[%s1 + $0xdf0] sm:$0xff]
    %v516 = vld [vmem:[%s1 + $0xdf8] sm:$0xff]
    %v517 = vld [vmem:[%s1 + $0xe00] sm:$0xff]
    %v518 = vld [vmem:[%s1 + $0xe08] sm:$0xff]
    %v519 = vld [vmem:[%s1 + $0xe10] sm:$0xff]
    %v520 = vld [vmem:[%s1 + $0xe18] sm:$0xff]
    %v521 = vld [vmem:[%s1 + $0xe20] sm:$0xff]
    %v522 = vld [vmem:[%s1 + $0xe28] sm:$0xff]
    %v523 = vld [vmem:[%s1 + $0xe30] sm:$0xff]
    %v524 = vld [vmem:[%s1 + $0xe38] sm:$0xff]
    %v525 = vld [vmem:[%s1 + $0xe40] sm:$0xff]
    %v526 = vld [vmem:[%s1 + $0xe48] sm:$0xff]
    %v527 = vld [vmem:[%s1 + $0xe50] sm:$0xff]
    %v528 = vld [vmem:[%s1 + $0xe58] sm:$0xff]
    %v529 = vld [vmem:[%s1 + $0xe60] sm:$0xff]
    %v530 = vld [vmem:[%s1 + $0xe68] sm:$0xff]
    %v531 = vld [vmem:[%s1 + $0xe70] sm:$0xff]
    %v532 = vld [vmem:[%s1 + $0xe78] sm:$0xff]
    %v533 = vld [vmem:[%s1 + $0xe80] sm:$0xff]
    %v534 = vld [vmem:[%s1 + $0xe88] sm:$0xff]
    %v535 = vld [vmem:[%s1 + $0xe90] sm:$0xff]
    %v536 = vld [vmem:[%s1 + $0xe98] sm:$0xff]
    %v537 = vld [vmem:[%s1 + $0xea0] sm:$0xff]
    %v538 = vld [vmem:[%s1 + $0xea8] sm:$0xff]
    %v539 = vld [vmem:[%s1 + $0xeb0] sm:$0xff]
    %v540 = vld [vmem:[%s1 + $0xeb8] sm:$0xff]
    %v541 = vld [vmem:[%s1 + $0xec0] sm:$0xff]
    %v542 = vld [vmem:[%s1 + $0xec8] sm:$0xff]
    %v543 = vld [vmem:[%s1 + $0xed0] sm:$0xff]
    %v544 = vld [vmem:[%s1 + $0xed8] sm:$0xff]
    %v545 = vld [vmem:[%s1 + $0xee0] sm:$0xff]
    %v546 = vld [vmem:[%s1 + $0xee8] sm:$0xff]
    %v547 = vld [vmem:[%s1 + $0xef0] sm:$0xff]
    %v548 = vld [vmem:[%s1 + $0xef8] sm:$0xff]
    %v549 = vld [vmem:[%s1 + $0xf00] sm:$0xff]
    %v550 = vld [vmem:[%s1 + $0xf08] sm:$0xff]
    %v551 = vld [vmem:[%s1 + $0xf10] sm:$0xff]
    %v552 = vld [vmem:[%s1 + $0xf18] sm:$0xff]
    %v553 = vld [vmem:[%s1 + $0xf20] sm:$0xff]
    %v554 = vld [vmem:[%s1 + $0xf28] sm:$0xff]
    %v555 = vld [vmem:[%s1 + $0xf30] sm:$0xff]
    %v556 = vld [vmem:[%s1 + $0xf38] sm:$0xff]
    %v557 = vld [vmem:[%s1 + $0xf40] sm:$0xff]
    %v558 = vld [vmem:[%s1 + $0xf48] sm:$0xff]
    %v559 = vld [vmem:[%s1 + $0xf50] sm:$0xff]
    %v560 = vld [vmem:[%s1 + $0xf58] sm:$0xff]
    %v561 = vld [vmem:[%s1 + $0xf60] sm:$0xff]
    %v562 = vld [vmem:[%s1 + $0xf68] sm:$0xff]
    %v563 = vld [vmem:[%s1 + $0xf70] sm:$0xff]
    %v564 = vld [vmem:[%s1 + $0xf78] sm:$0xff]
    %v565 = vld [vmem:[%s1 + $0xf80] sm:$0xff]
    %v566 = vld [vmem:[%s1 + $0xf88] sm:$0xff]
    %v567 = vld [vmem:[%s1 + $0xf90] sm:$0xff]
    %v568 = vld [vmem:[%s1 + $0xf98] sm:$0xff]
    %v569 = vld [vmem:[%s1 + $0xfa0] sm:$0xff]
    %v570 = vld [vmem:[%s1 + $0xfa8] sm:$0xff]
    %v571 = vld [vmem:[%s1 + $0xfb0] sm:$0xff]
    %v572 = vld [vmem:[%s1 + $0xfb8] sm:$0xff]
    %v573 = vld [vmem:[%s1 + $0xfc0] sm:$0xff]
    %v574 = vld [vmem:[%s1 + $0xfc8] sm:$0xff]
    %v575 = vld [vmem:[%s1 + $0xfd0] sm:$0xff]
    %v576 = vld [vmem:[%s1 + $0xfd8] sm:$0xff]
    %v577 = vld [vmem:[%s1 + $0xfe0] sm:$0xff]
    %v578 = vld [vmem:[%s1 + $0xfe8] sm:$0xff]
    %v579 = vld [vmem:[%s1 + $0xff0] sm:$0xff]
    %v580 = vld [vmem:[%s1 + $0xff8] sm:$0xff]
    %v581 = vld [vmem:[%s2] ss:$4 sm:$0xff]
    %v583 = vlaneseq
    %v584 = vshrl.u32 %v583, 7
    %v585 = vsub.s32 0, %v584
    %v586 = vrot.slane %v581, %v585
    %v587 = vlaneseq
    %v588 = vshrl.u32 %v587, 7
    %v589 = vsub.s32 1, %v588
    %v590 = vrot.slane %v581, %v589
    %v591 = vlaneseq
    %v592 = vshrl.u32 %v591, 7
    %v593 = vsub.s32 2, %v592
    %v594 = vrot.slane %v581, %v593
    %v595 = vlaneseq
    %v596 = vshrl.u32 %v595, 7
    %v597 = vsub.s32 3, %v596
    %v598 = vrot.slane %v581, %v597
    %v599 = vlaneseq
    %v600 = vshrl.u32 %v599, 7
    %v601 = vsub.s32 4, %v600
    %v602 = vrot.slane %v581, %v601
    %v603 = vlaneseq
    %v604 = vshrl.u32 %v603, 7
    %v605 = vsub.s32 5, %v604
    %v606 = vrot.slane %v581, %v605
    %v607 = vlaneseq
    %v608 = vshrl.u32 %v607, 7
    %v609 = vsub.s32 6, %v608
    %v610 = vrot.slane %v581, %v609
    %v611 = vlaneseq
    %v612 = vshrl.u32 %v611, 7
    %v613 = vsub.s32 7, %v612
    %v614 = vrot.slane %v581, %v613
    %v1135 = vunpack.c.l.b16 %v69
    %v1136 = vunpack.c.h.b16 %v69
    %v1137 = vunpack.c.l.b16 %v70
    %v1138 = vunpack.c.h.b16 %v70
    %v1139 = vunpack.c.l.b16 %v71
    %v1140 = vunpack.c.h.b16 %v71
    %v1141 = vunpack.c.l.b16 %v72
    %v1142 = vunpack.c.h.b16 %v72
    %v1143 = vunpack.c.l.b16 %v73
    %v1144 = vunpack.c.h.b16 %v73
    %v1145 = vunpack.c.l.b16 %v74
    %v1146 = vunpack.c.h.b16 %v74
    %v1147 = vunpack.c.l.b16 %v75
    %v1148 = vunpack.c.h.b16 %v75
    %v1149 = vunpack.c.l.b16 %v76
    %v1150 = vunpack.c.h.b16 %v76
    %v1151 = vunpack.c.l.b16 %v77
    %v1152 = vunpack.c.h.b16 %v77
    %v1153 = vunpack.c.l.b16 %v78
    %v1154 = vunpack.c.h.b16 %v78
    %v1155 = vunpack.c.l.b16 %v79
    %v1156 = vunpack.c.h.b16 %v79
    %v1157 = vunpack.c.l.b16 %v80
    %v1158 = vunpack.c.h.b16 %v80
    %v1159 = vunpack.c.l.b16 %v81
    %v1160 = vunpack.c.h.b16 %v81
    %v1161 = vunpack.c.l.b16 %v82
    %v1162 = vunpack.c.h.b16 %v82
    %v1163 = vunpack.c.l.b16 %v83
    %v1164 = vunpack.c.h.b16 %v83
    %v1165 = vunpack.c.l.b16 %v84
    %v1166 = vunpack.c.h.b16 %v84
    %v1167 = vunpack.c.l.b16 %v85
    %v1168 = vunpack.c.h.b16 %v85
    %v1169 = vunpack.c.l.b16 %v86
    %v1170 = vunpack.c.h.b16 %v86
    %v1171 = vunpack.c.l.b16 %v87
    %v1172 = vunpack.c.h.b16 %v87
    %v1173 = vunpack.c.l.b16 %v88
    %v1174 = vunpack.c.h.b16 %v88
    %v1175 = vunpack.c.l.b16 %v89
    %v1176 = vunpack.c.h.b16 %v89
    %v1177 = vunpack.c.l.b16 %v90
    %v1178 = vunpack.c.h.b16 %v90
    %v1179 = vunpack.c.l.b16 %v91
    %v1180 = vunpack.c.h.b16 %v91
    %v1181 = vunpack.c.l.b16 %v92
    %v1182 = vunpack.c.h.b16 %v92
    %v1183 = vunpack.c.l.b16 %v93
    %v1184 = vunpack.c.h.b16 %v93
    %v1185 = vunpack.c.l.b16 %v94
    %v1186 = vunpack.c.h.b16 %v94
    %v1187 = vunpack.c.l.b16 %v95
    %v1188 = vunpack.c.h.b16 %v95
    %v1189 = vunpack.c.l.b16 %v96
    %v1190 = vunpack.c.h.b16 %v96
    %v1191 = vunpack.c.l.b16 %v97
    %v1192 = vunpack.c.h.b16 %v97
    %v1193 = vunpack.c.l.b16 %v98
    %v1194 = vunpack.c.h.b16 %v98
    %v1195 = vunpack.c.l.b16 %v99
    %v1196 = vunpack.c.h.b16 %v99
    %v1197 = vunpack.c.l.b16 %v100
    %v1198 = vunpack.c.h.b16 %v100
    %v1199 = vunpack.c.l.b16 %v101
    %v1200 = vunpack.c.h.b16 %v101
    %v1201 = vunpack.c.l.b16 %v102
    %v1202 = vunpack.c.h.b16 %v102
    %v1203 = vunpack.c.l.b16 %v103
    %v1204 = vunpack.c.h.b16 %v103
    %v1205 = vunpack.c.l.b16 %v104
    %v1206 = vunpack.c.h.b16 %v104
    %v1207 = vunpack.c.l.b16 %v105
    %v1208 = vunpack.c.h.b16 %v105
    %v1209 = vunpack.c.l.b16 %v106
    %v1210 = vunpack.c.h.b16 %v106
    %v1211 = vunpack.c.l.b16 %v107
    %v1212 = vunpack.c.h.b16 %v107
    %v1213 = vunpack.c.l.b16 %v108
    %v1214 = vunpack.c.h.b16 %v108
    %v1215 = vunpack.c.l.b16 %v109
    %v1216 = vunpack.c.h.b16 %v109
    %v1217 = vunpack.c.l.b16 %v110
    %v1218 = vunpack.c.h.b16 %v110
    %v1219 = vunpack.c.l.b16 %v111
    %v1220 = vunpack.c.h.b16 %v111
    %v1221 = vunpack.c.l.b16 %v112
    %v1222 = vunpack.c.h.b16 %v112
    %v1223 = vunpack.c.l.b16 %v113
    %v1224 = vunpack.c.h.b16 %v113
    %v1225 = vunpack.c.l.b16 %v114
    %v1226 = vunpack.c.h.b16 %v114
    %v1227 = vunpack.c.l.b16 %v115
    %v1228 = vunpack.c.h.b16 %v115
    %v1229 = vunpack.c.l.b16 %v116
    %v1230 = vunpack.c.h.b16 %v116
    %v1231 = vunpack.c.l.b16 %v117
    %v1232 = vunpack.c.h.b16 %v117
    %v1233 = vunpack.c.l.b16 %v118
    %v1234 = vunpack.c.h.b16 %v118
    %v1235 = vunpack.c.l.b16 %v119
    %v1236 = vunpack.c.h.b16 %v119
    %v1237 = vunpack.c.l.b16 %v120
    %v1238 = vunpack.c.h.b16 %v120
    %v1239 = vunpack.c.l.b16 %v121
    %v1240 = vunpack.c.h.b16 %v121
    %v1241 = vunpack.c.l.b16 %v122
    %v1242 = vunpack.c.h.b16 %v122
    %v1243 = vunpack.c.l.b16 %v123
    %v1244 = vunpack.c.h.b16 %v123
    %v1245 = vunpack.c.l.b16 %v124
    %v1246 = vunpack.c.h.b16 %v124
    %v1247 = vunpack.c.l.b16 %v125
    %v1248 = vunpack.c.h.b16 %v125
    %v1249 = vunpack.c.l.b16 %v126
    %v1250 = vunpack.c.h.b16 %v126
    %v1251 = vunpack.c.l.b16 %v127
    %v1252 = vunpack.c.h.b16 %v127
    %v1253 = vunpack.c.l.b16 %v128
    %v1254 = vunpack.c.h.b16 %v128
    %v1255 = vunpack.c.l.b16 %v129
    %v1256 = vunpack.c.h.b16 %v129
    %v1257 = vunpack.c.l.b16 %v130
    %v1258 = vunpack.c.h.b16 %v130
    %v1259 = vunpack.c.l.b16 %v131
    %v1260 = vunpack.c.h.b16 %v131
    %v1261 = vunpack.c.l.b16 %v132
    %v1262 = vunpack.c.h.b16 %v132
    %v1263 = vunpack.c.l.b16 %v133
    %v1264 = vunpack.c.h.b16 %v133
    %v1265 = vunpack.c.l.b16 %v134
    %v1266 = vunpack.c.h.b16 %v134
    %v1267 = vunpack.c.l.b16 %v135
    %v1268 = vunpack.c.h.b16 %v135
    %v1269 = vunpack.c.l.b16 %v136
    %v1270 = vunpack.c.h.b16 %v136
    %v1271 = vunpack.c.l.b16 %v137
    %v1272 = vunpack.c.h.b16 %v137
    %v1273 = vunpack.c.l.b16 %v138
    %v1274 = vunpack.c.h.b16 %v138
    %v1275 = vunpack.c.l.b16 %v139
    %v1276 = vunpack.c.h.b16 %v139
    %v1277 = vunpack.c.l.b16 %v140
    %v1278 = vunpack.c.h.b16 %v140
    %v1279 = vunpack.c.l.b16 %v141
    %v1280 = vunpack.c.h.b16 %v141
    %v1281 = vunpack.c.l.b16 %v142
    %v1282 = vunpack.c.h.b16 %v142
    %v1283 = vunpack.c.l.b16 %v143
    %v1284 = vunpack.c.h.b16 %v143
    %v1285 = vunpack.c.l.b16 %v144
    %v1286 = vunpack.c.h.b16 %v144
    %v1287 = vunpack.c.l.b16 %v145
    %v1288 = vunpack.c.h.b16 %v145
    %v1289 = vunpack.c.l.b16 %v146
    %v1290 = vunpack.c.h.b16 %v146
    %v1291 = vunpack.c.l.b16 %v147
    %v1292 = vunpack.c.h.b16 %v147
    %v1293 = vunpack.c.l.b16 %v148
    %v1294 = vunpack.c.h.b16 %v148
    %v1295 = vunpack.c.l.b16 %v149
    %v1296 = vunpack.c.h.b16 %v149
    %v1297 = vunpack.c.l.b16 %v150
    %v1298 = vunpack.c.h.b16 %v150
    %v1299 = vunpack.c.l.b16 %v151
    %v1300 = vunpack.c.h.b16 %v151
    %v1301 = vunpack.c.l.b16 %v152
    %v1302 = vunpack.c.h.b16 %v152
    %v1303 = vunpack.c.l.b16 %v153
    %v1304 = vunpack.c.h.b16 %v153
    %v1305 = vunpack.c.l.b16 %v154
    %v1306 = vunpack.c.h.b16 %v154
    %v1307 = vunpack.c.l.b16 %v155
    %v1308 = vunpack.c.h.b16 %v155
    %v1309 = vunpack.c.l.b16 %v156
    %v1310 = vunpack.c.h.b16 %v156
    %v1311 = vunpack.c.l.b16 %v157
    %v1312 = vunpack.c.h.b16 %v157
    %v1313 = vunpack.c.l.b16 %v158
    %v1314 = vunpack.c.h.b16 %v158
    %v1315 = vunpack.c.l.b16 %v159
    %v1316 = vunpack.c.h.b16 %v159
    %v1317 = vunpack.c.l.b16 %v160
    %v1318 = vunpack.c.h.b16 %v160
    %v1319 = vunpack.c.l.b16 %v161
    %v1320 = vunpack.c.h.b16 %v161
    %v1321 = vunpack.c.l.b16 %v162
    %v1322 = vunpack.c.h.b16 %v162
    %v1323 = vunpack.c.l.b16 %v163
    %v1324 = vunpack.c.h.b16 %v163
    %v1325 = vunpack.c.l.b16 %v164
    %v1326 = vunpack.c.h.b16 %v164
    %v1327 = vunpack.c.l.b16 %v165
    %v1328 = vunpack.c.h.b16 %v165
    %v1329 = vunpack.c.l.b16 %v166
    %v1330 = vunpack.c.h.b16 %v166
    %v1331 = vunpack.c.l.b16 %v167
    %v1332 = vunpack.c.h.b16 %v167
    %v1333 = vunpack.c.l.b16 %v168
    %v1334 = vunpack.c.h.b16 %v168
    %v1335 = vunpack.c.l.b16 %v169
    %v1336 = vunpack.c.h.b16 %v169
    %v1337 = vunpack.c.l.b16 %v170
    %v1338 = vunpack.c.h.b16 %v170
    %v1339 = vunpack.c.l.b16 %v171
    %v1340 = vunpack.c.h.b16 %v171
    %v1341 = vunpack.c.l.b16 %v172
    %v1342 = vunpack.c.h.b16 %v172
    %v1343 = vunpack.c.l.b16 %v173
    %v1344 = vunpack.c.h.b16 %v173
    %v1345 = vunpack.c.l.b16 %v174
    %v1346 = vunpack.c.h.b16 %v174
    %v1347 = vunpack.c.l.b16 %v175
    %v1348 = vunpack.c.h.b16 %v175
    %v1349 = vunpack.c.l.b16 %v176
    %v1350 = vunpack.c.h.b16 %v176
    %v1351 = vunpack.c.l.b16 %v177
    %v1352 = vunpack.c.h.b16 %v177
    %v1353 = vunpack.c.l.b16 %v178
    %v1354 = vunpack.c.h.b16 %v178
    %v1355 = vunpack.c.l.b16 %v179
    %v1356 = vunpack.c.h.b16 %v179
    %v1357 = vunpack.c.l.b16 %v180
    %v1358 = vunpack.c.h.b16 %v180
    %v1359 = vunpack.c.l.b16 %v181
    %v1360 = vunpack.c.h.b16 %v181
    %v1361 = vunpack.c.l.b16 %v182
    %v1362 = vunpack.c.h.b16 %v182
    %v1363 = vunpack.c.l.b16 %v183
    %v1364 = vunpack.c.h.b16 %v183
    %v1365 = vunpack.c.l.b16 %v184
    %v1366 = vunpack.c.h.b16 %v184
    %v1367 = vunpack.c.l.b16 %v185
    %v1368 = vunpack.c.h.b16 %v185
    %v1369 = vunpack.c.l.b16 %v186
    %v1370 = vunpack.c.h.b16 %v186
    %v1371 = vunpack.c.l.b16 %v187
    %v1372 = vunpack.c.h.b16 %v187
    %v1373 = vunpack.c.l.b16 %v188
    %v1374 = vunpack.c.h.b16 %v188
    %v1375 = vunpack.c.l.b16 %v189
    %v1376 = vunpack.c.h.b16 %v189
    %v1377 = vunpack.c.l.b16 %v190
    %v1378 = vunpack.c.h.b16 %v190
    %v1379 = vunpack.c.l.b16 %v191
    %v1380 = vunpack.c.h.b16 %v191
    %v1381 = vunpack.c.l.b16 %v192
    %v1382 = vunpack.c.h.b16 %v192
    %v1383 = vunpack.c.l.b16 %v193
    %v1384 = vunpack.c.h.b16 %v193
    %v1385 = vunpack.c.l.b16 %v194
    %v1386 = vunpack.c.h.b16 %v194
    %v1387 = vunpack.c.l.b16 %v195
    %v1388 = vunpack.c.h.b16 %v195
    %v1389 = vunpack.c.l.b16 %v196
    %v1390 = vunpack.c.h.b16 %v196
    %v1391 = vunpack.c.l.b16 %v197
    %v1392 = vunpack.c.h.b16 %v197
    %v1393 = vunpack.c.l.b16 %v198
    %v1394 = vunpack.c.h.b16 %v198
    %v1395 = vunpack.c.l.b16 %v199
    %v1396 = vunpack.c.h.b16 %v199
    %v1397 = vunpack.c.l.b16 %v200
    %v1398 = vunpack.c.h.b16 %v200
    %v1399 = vunpack.c.l.b16 %v201
    %v1400 = vunpack.c.h.b16 %v201
    %v1401 = vunpack.c.l.b16 %v202
    %v1402 = vunpack.c.h.b16 %v202
    %v1403 = vunpack.c.l.b16 %v203
    %v1404 = vunpack.c.h.b16 %v203
    %v1405 = vunpack.c.l.b16 %v204
    %v1406 = vunpack.c.h.b16 %v204
    %v1407 = vunpack.c.l.b16 %v205
    %v1408 = vunpack.c.h.b16 %v205
    %v1409 = vunpack.c.l.b16 %v206
    %v1410 = vunpack.c.h.b16 %v206
    %v1411 = vunpack.c.l.b16 %v207
    %v1412 = vunpack.c.h.b16 %v207
    %v1413 = vunpack.c.l.b16 %v208
    %v1414 = vunpack.c.h.b16 %v208
    %v1415 = vunpack.c.l.b16 %v209
    %v1416 = vunpack.c.h.b16 %v209
    %v1417 = vunpack.c.l.b16 %v210
    %v1418 = vunpack.c.h.b16 %v210
    %v1419 = vunpack.c.l.b16 %v211
    %v1420 = vunpack.c.h.b16 %v211
    %v1421 = vunpack.c.l.b16 %v212
    %v1422 = vunpack.c.h.b16 %v212
    %v1423 = vunpack.c.l.b16 %v213
    %v1424 = vunpack.c.h.b16 %v213
    %v1425 = vunpack.c.l.b16 %v214
    %v1426 = vunpack.c.h.b16 %v214
    %v1427 = vunpack.c.l.b16 %v215
    %v1428 = vunpack.c.h.b16 %v215
    %v1429 = vunpack.c.l.b16 %v216
    %v1430 = vunpack.c.h.b16 %v216
    %v1431 = vunpack.c.l.b16 %v217
    %v1432 = vunpack.c.h.b16 %v217
    %v1433 = vunpack.c.l.b16 %v218
    %v1434 = vunpack.c.h.b16 %v218
    %v1435 = vunpack.c.l.b16 %v219
    %v1436 = vunpack.c.h.b16 %v219
    %v1437 = vunpack.c.l.b16 %v220
    %v1438 = vunpack.c.h.b16 %v220
    %v1439 = vunpack.c.l.b16 %v221
    %v1440 = vunpack.c.h.b16 %v221
    %v1441 = vunpack.c.l.b16 %v222
    %v1442 = vunpack.c.h.b16 %v222
    %v1443 = vunpack.c.l.b16 %v223
    %v1444 = vunpack.c.h.b16 %v223
    %v1445 = vunpack.c.l.b16 %v224
    %v1446 = vunpack.c.h.b16 %v224
    %v1447 = vunpack.c.l.b16 %v225
    %v1448 = vunpack.c.h.b16 %v225
    %v1449 = vunpack.c.l.b16 %v226
    %v1450 = vunpack.c.h.b16 %v226
    %v1451 = vunpack.c.l.b16 %v227
    %v1452 = vunpack.c.h.b16 %v227
    %v1453 = vunpack.c.l.b16 %v228
    %v1454 = vunpack.c.h.b16 %v228
    %v1455 = vunpack.c.l.b16 %v229
    %v1456 = vunpack.c.h.b16 %v229
    %v1457 = vunpack.c.l.b16 %v230
    %v1458 = vunpack.c.h.b16 %v230
    %v1459 = vunpack.c.l.b16 %v231
    %v1460 = vunpack.c.h.b16 %v231
    %v1461 = vunpack.c.l.b16 %v232
    %v1462 = vunpack.c.h.b16 %v232
    %v1463 = vunpack.c.l.b16 %v233
    %v1464 = vunpack.c.h.b16 %v233
    %v1465 = vunpack.c.l.b16 %v234
    %v1466 = vunpack.c.h.b16 %v234
    %v1467 = vunpack.c.l.b16 %v235
    %v1468 = vunpack.c.h.b16 %v235
    %v1469 = vunpack.c.l.b16 %v236
    %v1470 = vunpack.c.h.b16 %v236
    %v1471 = vunpack.c.l.b16 %v237
    %v1472 = vunpack.c.h.b16 %v237
    %v1473 = vunpack.c.l.b16 %v238
    %v1474 = vunpack.c.h.b16 %v238
    %v1475 = vunpack.c.l.b16 %v239
    %v1476 = vunpack.c.h.b16 %v239
    %v1477 = vunpack.c.l.b16 %v240
    %v1478 = vunpack.c.h.b16 %v240
    %v1479 = vunpack.c.l.b16 %v241
    %v1480 = vunpack.c.h.b16 %v241
    %v1481 = vunpack.c.l.b16 %v242
    %v1482 = vunpack.c.h.b16 %v242
    %v1483 = vunpack.c.l.b16 %v243
    %v1484 = vunpack.c.h.b16 %v243
    %v1485 = vunpack.c.l.b16 %v244
    %v1486 = vunpack.c.h.b16 %v244
    %v1487 = vunpack.c.l.b16 %v245
    %v1488 = vunpack.c.h.b16 %v245
    %v1489 = vunpack.c.l.b16 %v246
    %v1490 = vunpack.c.h.b16 %v246
    %v1491 = vunpack.c.l.b16 %v247
    %v1492 = vunpack.c.h.b16 %v247
    %v1493 = vunpack.c.l.b16 %v248
    %v1494 = vunpack.c.h.b16 %v248
    %v1495 = vunpack.c.l.b16 %v249
    %v1496 = vunpack.c.h.b16 %v249
    %v1497 = vunpack.c.l.b16 %v250
    %v1498 = vunpack.c.h.b16 %v250
    %v1499 = vunpack.c.l.b16 %v251
    %v1500 = vunpack.c.h.b16 %v251
    %v1501 = vunpack.c.l.b16 %v252
    %v1502 = vunpack.c.h.b16 %v252
    %v1503 = vunpack.c.l.b16 %v253
    %v1504 = vunpack.c.h.b16 %v253
    %v1505 = vunpack.c.l.b16 %v254
    %v1506 = vunpack.c.h.b16 %v254
    %v1507 = vunpack.c.l.b16 %v255
    %v1508 = vunpack.c.h.b16 %v255
    %v1509 = vunpack.c.l.b16 %v256
    %v1510 = vunpack.c.h.b16 %v256
    %v1511 = vunpack.c.l.b16 %v257
    %v1512 = vunpack.c.h.b16 %v257
    %v1513 = vunpack.c.l.b16 %v258
    %v1514 = vunpack.c.h.b16 %v258
    %v1515 = vunpack.c.l.b16 %v259
    %v1516 = vunpack.c.h.b16 %v259
    %v1517 = vunpack.c.l.b16 %v260
    %v1518 = vunpack.c.h.b16 %v260
    %v1519 = vunpack.c.l.b16 %v261
    %v1520 = vunpack.c.h.b16 %v261
    %v1521 = vunpack.c.l.b16 %v262
    %v1522 = vunpack.c.h.b16 %v262
    %v1523 = vunpack.c.l.b16 %v263
    %v1524 = vunpack.c.h.b16 %v263
    %v1525 = vunpack.c.l.b16 %v264
    %v1526 = vunpack.c.h.b16 %v264
    %v1527 = vunpack.c.l.b16 %v265
    %v1528 = vunpack.c.h.b16 %v265
    %v1529 = vunpack.c.l.b16 %v266
    %v1530 = vunpack.c.h.b16 %v266
    %v1531 = vunpack.c.l.b16 %v267
    %v1532 = vunpack.c.h.b16 %v267
    %v1533 = vunpack.c.l.b16 %v268
    %v1534 = vunpack.c.h.b16 %v268
    %v1535 = vunpack.c.l.b16 %v269
    %v1536 = vunpack.c.h.b16 %v269
    %v1537 = vunpack.c.l.b16 %v270
    %v1538 = vunpack.c.h.b16 %v270
    %v1539 = vunpack.c.l.b16 %v271
    %v1540 = vunpack.c.h.b16 %v271
    %v1541 = vunpack.c.l.b16 %v272
    %v1542 = vunpack.c.h.b16 %v272
    %v1543 = vunpack.c.l.b16 %v273
    %v1544 = vunpack.c.h.b16 %v273
    %v1545 = vunpack.c.l.b16 %v274
    %v1546 = vunpack.c.h.b16 %v274
    %v1547 = vunpack.c.l.b16 %v275
    %v1548 = vunpack.c.h.b16 %v275
    %v1549 = vunpack.c.l.b16 %v276
    %v1550 = vunpack.c.h.b16 %v276
    %v1551 = vunpack.c.l.b16 %v277
    %v1552 = vunpack.c.h.b16 %v277
    %v1553 = vunpack.c.l.b16 %v278
    %v1554 = vunpack.c.h.b16 %v278
    %v1555 = vunpack.c.l.b16 %v279
    %v1556 = vunpack.c.h.b16 %v279
    %v1557 = vunpack.c.l.b16 %v280
    %v1558 = vunpack.c.h.b16 %v280
    %v1559 = vunpack.c.l.b16 %v281
    %v1560 = vunpack.c.h.b16 %v281
    %v1561 = vunpack.c.l.b16 %v282
    %v1562 = vunpack.c.h.b16 %v282
    %v1563 = vunpack.c.l.b16 %v283
    %v1564 = vunpack.c.h.b16 %v283
    %v1565 = vunpack.c.l.b16 %v284
    %v1566 = vunpack.c.h.b16 %v284
    %v1567 = vunpack.c.l.b16 %v285
    %v1568 = vunpack.c.h.b16 %v285
    %v1569 = vunpack.c.l.b16 %v286
    %v1570 = vunpack.c.h.b16 %v286
    %v1571 = vunpack.c.l.b16 %v287
    %v1572 = vunpack.c.h.b16 %v287
    %v1573 = vunpack.c.l.b16 %v288
    %v1574 = vunpack.c.h.b16 %v288
    %v1575 = vunpack.c.l.b16 %v289
    %v1576 = vunpack.c.h.b16 %v289
    %v1577 = vunpack.c.l.b16 %v290
    %v1578 = vunpack.c.h.b16 %v290
    %v1579 = vunpack.c.l.b16 %v291
    %v1580 = vunpack.c.h.b16 %v291
    %v1581 = vunpack.c.l.b16 %v292
    %v1582 = vunpack.c.h.b16 %v292
    %v1583 = vunpack.c.l.b16 %v293
    %v1584 = vunpack.c.h.b16 %v293
    %v1585 = vunpack.c.l.b16 %v294
    %v1586 = vunpack.c.h.b16 %v294
    %v1587 = vunpack.c.l.b16 %v295
    %v1588 = vunpack.c.h.b16 %v295
    %v1589 = vunpack.c.l.b16 %v296
    %v1590 = vunpack.c.h.b16 %v296
    %v1591 = vunpack.c.l.b16 %v297
    %v1592 = vunpack.c.h.b16 %v297
    %v1593 = vunpack.c.l.b16 %v298
    %v1594 = vunpack.c.h.b16 %v298
    %v1595 = vunpack.c.l.b16 %v299
    %v1596 = vunpack.c.h.b16 %v299
    %v1597 = vunpack.c.l.b16 %v300
    %v1598 = vunpack.c.h.b16 %v300
    %v1599 = vunpack.c.l.b16 %v301
    %v1600 = vunpack.c.h.b16 %v301
    %v1601 = vunpack.c.l.b16 %v302
    %v1602 = vunpack.c.h.b16 %v302
    %v1603 = vunpack.c.l.b16 %v303
    %v1604 = vunpack.c.h.b16 %v303
    %v1605 = vunpack.c.l.b16 %v304
    %v1606 = vunpack.c.h.b16 %v304
    %v1607 = vunpack.c.l.b16 %v305
    %v1608 = vunpack.c.h.b16 %v305
    %v1609 = vunpack.c.l.b16 %v306
    %v1610 = vunpack.c.h.b16 %v306
    %v1611 = vunpack.c.l.b16 %v307
    %v1612 = vunpack.c.h.b16 %v307
    %v1613 = vunpack.c.l.b16 %v308
    %v1614 = vunpack.c.h.b16 %v308
    %v1615 = vunpack.c.l.b16 %v309
    %v1616 = vunpack.c.h.b16 %v309
    %v1617 = vunpack.c.l.b16 %v310
    %v1618 = vunpack.c.h.b16 %v310
    %v1619 = vunpack.c.l.b16 %v311
    %v1620 = vunpack.c.h.b16 %v311
    %v1621 = vunpack.c.l.b16 %v312
    %v1622 = vunpack.c.h.b16 %v312
    %v1623 = vunpack.c.l.b16 %v313
    %v1624 = vunpack.c.h.b16 %v313
    %v1625 = vunpack.c.l.b16 %v314
    %v1626 = vunpack.c.h.b16 %v314
    %v1627 = vunpack.c.l.b16 %v315
    %v1628 = vunpack.c.h.b16 %v315
    %v1629 = vunpack.c.l.b16 %v316
    %v1630 = vunpack.c.h.b16 %v316
    %v1631 = vunpack.c.l.b16 %v317
    %v1632 = vunpack.c.h.b16 %v317
    %v1633 = vunpack.c.l.b16 %v318
    %v1634 = vunpack.c.h.b16 %v318
    %v1635 = vunpack.c.l.b16 %v319
    %v1636 = vunpack.c.h.b16 %v319
    %v1637 = vunpack.c.l.b16 %v320
    %v1638 = vunpack.c.h.b16 %v320
    %v1639 = vunpack.c.l.b16 %v321
    %v1640 = vunpack.c.h.b16 %v321
    %v1641 = vunpack.c.l.b16 %v322
    %v1642 = vunpack.c.h.b16 %v322
    %v1643 = vunpack.c.l.b16 %v323
    %v1644 = vunpack.c.h.b16 %v323
    %v1645 = vunpack.c.l.b16 %v324
    %v1646 = vunpack.c.h.b16 %v324
    %v1647 = vunpack.c.l.b16 %v325
    %v1648 = vunpack.c.h.b16 %v325
    %v1649 = vunpack.c.l.b16 %v326
    %v1650 = vunpack.c.h.b16 %v326
    %v1651 = vunpack.c.l.b16 %v327
    %v1652 = vunpack.c.h.b16 %v327
    %v1653 = vunpack.c.l.b16 %v328
    %v1654 = vunpack.c.h.b16 %v328
    %v1655 = vunpack.c.l.b16 %v329
    %v1656 = vunpack.c.h.b16 %v329
    %v1657 = vunpack.c.l.b16 %v330
    %v1658 = vunpack.c.h.b16 %v330
    %v1659 = vunpack.c.l.b16 %v331
    %v1660 = vunpack.c.h.b16 %v331
    %v1661 = vunpack.c.l.b16 %v332
    %v1662 = vunpack.c.h.b16 %v332
    %v1663 = vunpack.c.l.b16 %v333
    %v1664 = vunpack.c.h.b16 %v333
    %v1665 = vunpack.c.l.b16 %v334
    %v1666 = vunpack.c.h.b16 %v334
    %v1667 = vunpack.c.l.b16 %v335
    %v1668 = vunpack.c.h.b16 %v335
    %v1669 = vunpack.c.l.b16 %v336
    %v1670 = vunpack.c.h.b16 %v336
    %v1671 = vunpack.c.l.b16 %v337
    %v1672 = vunpack.c.h.b16 %v337
    %v1673 = vunpack.c.l.b16 %v338
    %v1674 = vunpack.c.h.b16 %v338
    %v1675 = vunpack.c.l.b16 %v339
    %v1676 = vunpack.c.h.b16 %v339
    %v1677 = vunpack.c.l.b16 %v340
    %v1678 = vunpack.c.h.b16 %v340
    %v1679 = vunpack.c.l.b16 %v341
    %v1680 = vunpack.c.h.b16 %v341
    %v1681 = vunpack.c.l.b16 %v342
    %v1682 = vunpack.c.h.b16 %v342
    %v1683 = vunpack.c.l.b16 %v343
    %v1684 = vunpack.c.h.b16 %v343
    %v1685 = vunpack.c.l.b16 %v344
    %v1686 = vunpack.c.h.b16 %v344
    %v1687 = vunpack.c.l.b16 %v345
    %v1688 = vunpack.c.h.b16 %v345
    %v1689 = vunpack.c.l.b16 %v346
    %v1690 = vunpack.c.h.b16 %v346
    %v1691 = vunpack.c.l.b16 %v347
    %v1692 = vunpack.c.h.b16 %v347
    %v1693 = vunpack.c.l.b16 %v348
    %v1694 = vunpack.c.h.b16 %v348
    %v1695 = vunpack.c.l.b16 %v349
    %v1696 = vunpack.c.h.b16 %v349
    %v1697 = vunpack.c.l.b16 %v350
    %v1698 = vunpack.c.h.b16 %v350
    %v1699 = vunpack.c.l.b16 %v351
    %v1700 = vunpack.c.h.b16 %v351
    %v1701 = vunpack.c.l.b16 %v352
    %v1702 = vunpack.c.h.b16 %v352
    %v1703 = vunpack.c.l.b16 %v353
    %v1704 = vunpack.c.h.b16 %v353
    %v1705 = vunpack.c.l.b16 %v354
    %v1706 = vunpack.c.h.b16 %v354
    %v1707 = vunpack.c.l.b16 %v355
    %v1708 = vunpack.c.h.b16 %v355
    %v1709 = vunpack.c.l.b16 %v356
    %v1710 = vunpack.c.h.b16 %v356
    %v1711 = vunpack.c.l.b16 %v357
    %v1712 = vunpack.c.h.b16 %v357
    %v1713 = vunpack.c.l.b16 %v358
    %v1714 = vunpack.c.h.b16 %v358
    %v1715 = vunpack.c.l.b16 %v359
    %v1716 = vunpack.c.h.b16 %v359
    %v1717 = vunpack.c.l.b16 %v360
    %v1718 = vunpack.c.h.b16 %v360
    %v1719 = vunpack.c.l.b16 %v361
    %v1720 = vunpack.c.h.b16 %v361
    %v1721 = vunpack.c.l.b16 %v362
    %v1722 = vunpack.c.h.b16 %v362
    %v1723 = vunpack.c.l.b16 %v363
    %v1724 = vunpack.c.h.b16 %v363
    %v1725 = vunpack.c.l.b16 %v364
    %v1726 = vunpack.c.h.b16 %v364
    %v1727 = vunpack.c.l.b16 %v365
    %v1728 = vunpack.c.h.b16 %v365
    %v1729 = vunpack.c.l.b16 %v366
    %v1730 = vunpack.c.h.b16 %v366
    %v1731 = vunpack.c.l.b16 %v367
    %v1732 = vunpack.c.h.b16 %v367
    %v1733 = vunpack.c.l.b16 %v368
    %v1734 = vunpack.c.h.b16 %v368
    %v1735 = vunpack.c.l.b16 %v369
    %v1736 = vunpack.c.h.b16 %v369
    %v1737 = vunpack.c.l.b16 %v370
    %v1738 = vunpack.c.h.b16 %v370
    %v1739 = vunpack.c.l.b16 %v371
    %v1740 = vunpack.c.h.b16 %v371
    %v1741 = vunpack.c.l.b16 %v372
    %v1742 = vunpack.c.h.b16 %v372
    %v1743 = vunpack.c.l.b16 %v373
    %v1744 = vunpack.c.h.b16 %v373
    %v1745 = vunpack.c.l.b16 %v374
    %v1746 = vunpack.c.h.b16 %v374
    %v1747 = vunpack.c.l.b16 %v375
    %v1748 = vunpack.c.h.b16 %v375
    %v1749 = vunpack.c.l.b16 %v376
    %v1750 = vunpack.c.h.b16 %v376
    %v1751 = vunpack.c.l.b16 %v377
    %v1752 = vunpack.c.h.b16 %v377
    %v1753 = vunpack.c.l.b16 %v378
    %v1754 = vunpack.c.h.b16 %v378
    %v1755 = vunpack.c.l.b16 %v379
    %v1756 = vunpack.c.h.b16 %v379
    %v1757 = vunpack.c.l.b16 %v380
    %v1758 = vunpack.c.h.b16 %v380
    %v1759 = vunpack.c.l.b16 %v381
    %v1760 = vunpack.c.h.b16 %v381
    %v1761 = vunpack.c.l.b16 %v382
    %v1762 = vunpack.c.h.b16 %v382
    %v1763 = vunpack.c.l.b16 %v383
    %v1764 = vunpack.c.h.b16 %v383
    %v1765 = vunpack.c.l.b16 %v384
    %v1766 = vunpack.c.h.b16 %v384
    %v1767 = vunpack.c.l.b16 %v385
    %v1768 = vunpack.c.h.b16 %v385
    %v1769 = vunpack.c.l.b16 %v386
    %v1770 = vunpack.c.h.b16 %v386
    %v1771 = vunpack.c.l.b16 %v387
    %v1772 = vunpack.c.h.b16 %v387
    %v1773 = vunpack.c.l.b16 %v388
    %v1774 = vunpack.c.h.b16 %v388
    %v1775 = vunpack.c.l.b16 %v389
    %v1776 = vunpack.c.h.b16 %v389
    %v1777 = vunpack.c.l.b16 %v390
    %v1778 = vunpack.c.h.b16 %v390
    %v1779 = vunpack.c.l.b16 %v391
    %v1780 = vunpack.c.h.b16 %v391
    %v1781 = vunpack.c.l.b16 %v392
    %v1782 = vunpack.c.h.b16 %v392
    %v1783 = vunpack.c.l.b16 %v393
    %v1784 = vunpack.c.h.b16 %v393
    %v1785 = vunpack.c.l.b16 %v394
    %v1786 = vunpack.c.h.b16 %v394
    %v1787 = vunpack.c.l.b16 %v395
    %v1788 = vunpack.c.h.b16 %v395
    %v1789 = vunpack.c.l.b16 %v396
    %v1790 = vunpack.c.h.b16 %v396
    %v1791 = vunpack.c.l.b16 %v397
    %v1792 = vunpack.c.h.b16 %v397
    %v1793 = vunpack.c.l.b16 %v398
    %v1794 = vunpack.c.h.b16 %v398
    %v1795 = vunpack.c.l.b16 %v399
    %v1796 = vunpack.c.h.b16 %v399
    %v1797 = vunpack.c.l.b16 %v400
    %v1798 = vunpack.c.h.b16 %v400
    %v1799 = vunpack.c.l.b16 %v401
    %v1800 = vunpack.c.h.b16 %v401
    %v1801 = vunpack.c.l.b16 %v402
    %v1802 = vunpack.c.h.b16 %v402
    %v1803 = vunpack.c.l.b16 %v403
    %v1804 = vunpack.c.h.b16 %v403
    %v1805 = vunpack.c.l.b16 %v404
    %v1806 = vunpack.c.h.b16 %v404
    %v1807 = vunpack.c.l.b16 %v405
    %v1808 = vunpack.c.h.b16 %v405
    %v1809 = vunpack.c.l.b16 %v406
    %v1810 = vunpack.c.h.b16 %v406
    %v1811 = vunpack.c.l.b16 %v407
    %v1812 = vunpack.c.h.b16 %v407
    %v1813 = vunpack.c.l.b16 %v408
    %v1814 = vunpack.c.h.b16 %v408
    %v1815 = vunpack.c.l.b16 %v409
    %v1816 = vunpack.c.h.b16 %v409
    %v1817 = vunpack.c.l.b16 %v410
    %v1818 = vunpack.c.h.b16 %v410
    %v1819 = vunpack.c.l.b16 %v411
    %v1820 = vunpack.c.h.b16 %v411
    %v1821 = vunpack.c.l.b16 %v412
    %v1822 = vunpack.c.h.b16 %v412
    %v1823 = vunpack.c.l.b16 %v413
    %v1824 = vunpack.c.h.b16 %v413
    %v1825 = vunpack.c.l.b16 %v414
    %v1826 = vunpack.c.h.b16 %v414
    %v1827 = vunpack.c.l.b16 %v415
    %v1828 = vunpack.c.h.b16 %v415
    %v1829 = vunpack.c.l.b16 %v416
    %v1830 = vunpack.c.h.b16 %v416
    %v1831 = vunpack.c.l.b16 %v417
    %v1832 = vunpack.c.h.b16 %v417
    %v1833 = vunpack.c.l.b16 %v418
    %v1834 = vunpack.c.h.b16 %v418
    %v1835 = vunpack.c.l.b16 %v419
    %v1836 = vunpack.c.h.b16 %v419
    %v1837 = vunpack.c.l.b16 %v420
    %v1838 = vunpack.c.h.b16 %v420
    %v1839 = vunpack.c.l.b16 %v421
    %v1840 = vunpack.c.h.b16 %v421
    %v1841 = vunpack.c.l.b16 %v422
    %v1842 = vunpack.c.h.b16 %v422
    %v1843 = vunpack.c.l.b16 %v423
    %v1844 = vunpack.c.h.b16 %v423
    %v1845 = vunpack.c.l.b16 %v424
    %v1846 = vunpack.c.h.b16 %v424
    %v1847 = vunpack.c.l.b16 %v425
    %v1848 = vunpack.c.h.b16 %v425
    %v1849 = vunpack.c.l.b16 %v426
    %v1850 = vunpack.c.h.b16 %v426
    %v1851 = vunpack.c.l.b16 %v427
    %v1852 = vunpack.c.h.b16 %v427
    %v1853 = vunpack.c.l.b16 %v428
    %v1854 = vunpack.c.h.b16 %v428
    %v1855 = vunpack.c.l.b16 %v429
    %v1856 = vunpack.c.h.b16 %v429
    %v1857 = vunpack.c.l.b16 %v430
    %v1858 = vunpack.c.h.b16 %v430
    %v1859 = vunpack.c.l.b16 %v431
    %v1860 = vunpack.c.h.b16 %v431
    %v1861 = vunpack.c.l.b16 %v432
    %v1862 = vunpack.c.h.b16 %v432
    %v1863 = vunpack.c.l.b16 %v433
    %v1864 = vunpack.c.h.b16 %v433
    %v1865 = vunpack.c.l.b16 %v434
    %v1866 = vunpack.c.h.b16 %v434
    %v1867 = vunpack.c.l.b16 %v435
    %v1868 = vunpack.c.h.b16 %v435
    %v1869 = vunpack.c.l.b16 %v436
    %v1870 = vunpack.c.h.b16 %v436
    %v1871 = vunpack.c.l.b16 %v437
    %v1872 = vunpack.c.h.b16 %v437
    %v1873 = vunpack.c.l.b16 %v438
    %v1874 = vunpack.c.h.b16 %v438
    %v1875 = vunpack.c.l.b16 %v439
    %v1876 = vunpack.c.h.b16 %v439
    %v1877 = vunpack.c.l.b16 %v440
    %v1878 = vunpack.c.h.b16 %v440
    %v1879 = vunpack.c.l.b16 %v441
    %v1880 = vunpack.c.h.b16 %v441
    %v1881 = vunpack.c.l.b16 %v442
    %v1882 = vunpack.c.h.b16 %v442
    %v1883 = vunpack.c.l.b16 %v443
    %v1884 = vunpack.c.h.b16 %v443
    %v1885 = vunpack.c.l.b16 %v444
    %v1886 = vunpack.c.h.b16 %v444
    %v1887 = vunpack.c.l.b16 %v445
    %v1888 = vunpack.c.h.b16 %v445
    %v1889 = vunpack.c.l.b16 %v446
    %v1890 = vunpack.c.h.b16 %v446
    %v1891 = vunpack.c.l.b16 %v447
    %v1892 = vunpack.c.h.b16 %v447
    %v1893 = vunpack.c.l.b16 %v448
    %v1894 = vunpack.c.h.b16 %v448
    %v1895 = vunpack.c.l.b16 %v449
    %v1896 = vunpack.c.h.b16 %v449
    %v1897 = vunpack.c.l.b16 %v450
    %v1898 = vunpack.c.h.b16 %v450
    %v1899 = vunpack.c.l.b16 %v451
    %v1900 = vunpack.c.h.b16 %v451
    %v1901 = vunpack.c.l.b16 %v452
    %v1902 = vunpack.c.h.b16 %v452
    %v1903 = vunpack.c.l.b16 %v453
    %v1904 = vunpack.c.h.b16 %v453
    %v1905 = vunpack.c.l.b16 %v454
    %v1906 = vunpack.c.h.b16 %v454
    %v1907 = vunpack.c.l.b16 %v455
    %v1908 = vunpack.c.h.b16 %v455
    %v1909 = vunpack.c.l.b16 %v456
    %v1910 = vunpack.c.h.b16 %v456
    %v1911 = vunpack.c.l.b16 %v457
    %v1912 = vunpack.c.h.b16 %v457
    %v1913 = vunpack.c.l.b16 %v458
    %v1914 = vunpack.c.h.b16 %v458
    %v1915 = vunpack.c.l.b16 %v459
    %v1916 = vunpack.c.h.b16 %v459
    %v1917 = vunpack.c.l.b16 %v460
    %v1918 = vunpack.c.h.b16 %v460
    %v1919 = vunpack.c.l.b16 %v461
    %v1920 = vunpack.c.h.b16 %v461
    %v1921 = vunpack.c.l.b16 %v462
    %v1922 = vunpack.c.h.b16 %v462
    %v1923 = vunpack.c.l.b16 %v463
    %v1924 = vunpack.c.h.b16 %v463
    %v1925 = vunpack.c.l.b16 %v464
    %v1926 = vunpack.c.h.b16 %v464
    %v1927 = vunpack.c.l.b16 %v465
    %v1928 = vunpack.c.h.b16 %v465
    %v1929 = vunpack.c.l.b16 %v466
    %v1930 = vunpack.c.h.b16 %v466
    %v1931 = vunpack.c.l.b16 %v467
    %v1932 = vunpack.c.h.b16 %v467
    %v1933 = vunpack.c.l.b16 %v468
    %v1934 = vunpack.c.h.b16 %v468
    %v1935 = vunpack.c.l.b16 %v469
    %v1936 = vunpack.c.h.b16 %v469
    %v1937 = vunpack.c.l.b16 %v470
    %v1938 = vunpack.c.h.b16 %v470
    %v1939 = vunpack.c.l.b16 %v471
    %v1940 = vunpack.c.h.b16 %v471
    %v1941 = vunpack.c.l.b16 %v472
    %v1942 = vunpack.c.h.b16 %v472
    %v1943 = vunpack.c.l.b16 %v473
    %v1944 = vunpack.c.h.b16 %v473
    %v1945 = vunpack.c.l.b16 %v474
    %v1946 = vunpack.c.h.b16 %v474
    %v1947 = vunpack.c.l.b16 %v475
    %v1948 = vunpack.c.h.b16 %v475
    %v1949 = vunpack.c.l.b16 %v476
    %v1950 = vunpack.c.h.b16 %v476
    %v1951 = vunpack.c.l.b16 %v477
    %v1952 = vunpack.c.h.b16 %v477
    %v1953 = vunpack.c.l.b16 %v478
    %v1954 = vunpack.c.h.b16 %v478
    %v1955 = vunpack.c.l.b16 %v479
    %v1956 = vunpack.c.h.b16 %v479
    %v1957 = vunpack.c.l.b16 %v480
    %v1958 = vunpack.c.h.b16 %v480
    %v1959 = vunpack.c.l.b16 %v481
    %v1960 = vunpack.c.h.b16 %v481
    %v1961 = vunpack.c.l.b16 %v482
    %v1962 = vunpack.c.h.b16 %v482
    %v1963 = vunpack.c.l.b16 %v483
    %v1964 = vunpack.c.h.b16 %v483
    %v1965 = vunpack.c.l.b16 %v484
    %v1966 = vunpack.c.h.b16 %v484
    %v1967 = vunpack.c.l.b16 %v485
    %v1968 = vunpack.c.h.b16 %v485
    %v1969 = vunpack.c.l.b16 %v486
    %v1970 = vunpack.c.h.b16 %v486
    %v1971 = vunpack.c.l.b16 %v487
    %v1972 = vunpack.c.h.b16 %v487
    %v1973 = vunpack.c.l.b16 %v488
    %v1974 = vunpack.c.h.b16 %v488
    %v1975 = vunpack.c.l.b16 %v489
    %v1976 = vunpack.c.h.b16 %v489
    %v1977 = vunpack.c.l.b16 %v490
    %v1978 = vunpack.c.h.b16 %v490
    %v1979 = vunpack.c.l.b16 %v491
    %v1980 = vunpack.c.h.b16 %v491
    %v1981 = vunpack.c.l.b16 %v492
    %v1982 = vunpack.c.h.b16 %v492
    %v1983 = vunpack.c.l.b16 %v493
    %v1984 = vunpack.c.h.b16 %v493
    %v1985 = vunpack.c.l.b16 %v494
    %v1986 = vunpack.c.h.b16 %v494
    %v1987 = vunpack.c.l.b16 %v495
    %v1988 = vunpack.c.h.b16 %v495
    %v1989 = vunpack.c.l.b16 %v496
    %v1990 = vunpack.c.h.b16 %v496
    %v1991 = vunpack.c.l.b16 %v497
    %v1992 = vunpack.c.h.b16 %v497
    %v1993 = vunpack.c.l.b16 %v498
    %v1994 = vunpack.c.h.b16 %v498
    %v1995 = vunpack.c.l.b16 %v499
    %v1996 = vunpack.c.h.b16 %v499
    %v1997 = vunpack.c.l.b16 %v500
    %v1998 = vunpack.c.h.b16 %v500
    %v1999 = vunpack.c.l.b16 %v501
    %v2000 = vunpack.c.h.b16 %v501
    %v2001 = vunpack.c.l.b16 %v502
    %v2002 = vunpack.c.h.b16 %v502
    %v2003 = vunpack.c.l.b16 %v503
    %v2004 = vunpack.c.h.b16 %v503
    %v2005 = vunpack.c.l.b16 %v504
    %v2006 = vunpack.c.h.b16 %v504
    %v2007 = vunpack.c.l.b16 %v505
    %v2008 = vunpack.c.h.b16 %v505
    %v2009 = vunpack.c.l.b16 %v506
    %v2010 = vunpack.c.h.b16 %v506
    %v2011 = vunpack.c.l.b16 %v507
    %v2012 = vunpack.c.h.b16 %v507
    %v2013 = vunpack.c.l.b16 %v508
    %v2014 = vunpack.c.h.b16 %v508
    %v2015 = vunpack.c.l.b16 %v509
    %v2016 = vunpack.c.h.b16 %v509
    %v2017 = vunpack.c.l.b16 %v510
    %v2018 = vunpack.c.h.b16 %v510
    %v2019 = vunpack.c.l.b16 %v511
    %v2020 = vunpack.c.h.b16 %v511
    %v2021 = vunpack.c.l.b16 %v512
    %v2022 = vunpack.c.h.b16 %v512
    %v2023 = vunpack.c.l.b16 %v513
    %v2024 = vunpack.c.h.b16 %v513
    %v2025 = vunpack.c.l.b16 %v514
    %v2026 = vunpack.c.h.b16 %v514
    %v2027 = vunpack.c.l.b16 %v515
    %v2028 = vunpack.c.h.b16 %v515
    %v2029 = vunpack.c.l.b16 %v516
    %v2030 = vunpack.c.h.b16 %v516
    %v2031 = vunpack.c.l.b16 %v517
    %v2032 = vunpack.c.h.b16 %v517
    %v2033 = vunpack.c.l.b16 %v518
    %v2034 = vunpack.c.h.b16 %v518
    %v2035 = vunpack.c.l.b16 %v519
    %v2036 = vunpack.c.h.b16 %v519
    %v2037 = vunpack.c.l.b16 %v520
    %v2038 = vunpack.c.h.b16 %v520
    %v2039 = vunpack.c.l.b16 %v521
    %v2040 = vunpack.c.h.b16 %v521
    %v2041 = vunpack.c.l.b16 %v522
    %v2042 = vunpack.c.h.b16 %v522
    %v2043 = vunpack.c.l.b16 %v523
    %v2044 = vunpack.c.h.b16 %v523
    %v2045 = vunpack.c.l.b16 %v524
    %v2046 = vunpack.c.h.b16 %v524
    %v2047 = vunpack.c.l.b16 %v525
    %v2048 = vunpack.c.h.b16 %v525
    %v2049 = vunpack.c.l.b16 %v526
    %v2050 = vunpack.c.h.b16 %v526
    %v2051 = vunpack.c.l.b16 %v527
    %v2052 = vunpack.c.h.b16 %v527
    %v2053 = vunpack.c.l.b16 %v528
    %v2054 = vunpack.c.h.b16 %v528
    %v2055 = vunpack.c.l.b16 %v529
    %v2056 = vunpack.c.h.b16 %v529
    %v2057 = vunpack.c.l.b16 %v530
    %v2058 = vunpack.c.h.b16 %v530
    %v2059 = vunpack.c.l.b16 %v531
    %v2060 = vunpack.c.h.b16 %v531
    %v2061 = vunpack.c.l.b16 %v532
    %v2062 = vunpack.c.h.b16 %v532
    %v2063 = vunpack.c.l.b16 %v533
    %v2064 = vunpack.c.h.b16 %v533
    %v2065 = vunpack.c.l.b16 %v534
    %v2066 = vunpack.c.h.b16 %v534
    %v2067 = vunpack.c.l.b16 %v535
    %v2068 = vunpack.c.h.b16 %v535
    %v2069 = vunpack.c.l.b16 %v536
    %v2070 = vunpack.c.h.b16 %v536
    %v2071 = vunpack.c.l.b16 %v537
    %v2072 = vunpack.c.h.b16 %v537
    %v2073 = vunpack.c.l.b16 %v538
    %v2074 = vunpack.c.h.b16 %v538
    %v2075 = vunpack.c.l.b16 %v539
    %v2076 = vunpack.c.h.b16 %v539
    %v2077 = vunpack.c.l.b16 %v540
    %v2078 = vunpack.c.h.b16 %v540
    %v2079 = vunpack.c.l.b16 %v541
    %v2080 = vunpack.c.h.b16 %v541
    %v2081 = vunpack.c.l.b16 %v542
    %v2082 = vunpack.c.h.b16 %v542
    %v2083 = vunpack.c.l.b16 %v543
    %v2084 = vunpack.c.h.b16 %v543
    %v2085 = vunpack.c.l.b16 %v544
    %v2086 = vunpack.c.h.b16 %v544
    %v2087 = vunpack.c.l.b16 %v545
    %v2088 = vunpack.c.h.b16 %v545
    %v2089 = vunpack.c.l.b16 %v546
    %v2090 = vunpack.c.h.b16 %v546
    %v2091 = vunpack.c.l.b16 %v547
    %v2092 = vunpack.c.h.b16 %v547
    %v2093 = vunpack.c.l.b16 %v548
    %v2094 = vunpack.c.h.b16 %v548
    %v2095 = vunpack.c.l.b16 %v549
    %v2096 = vunpack.c.h.b16 %v549
    %v2097 = vunpack.c.l.b16 %v550
    %v2098 = vunpack.c.h.b16 %v550
    %v2099 = vunpack.c.l.b16 %v551
    %v2100 = vunpack.c.h.b16 %v551
    %v2101 = vunpack.c.l.b16 %v552
    %v2102 = vunpack.c.h.b16 %v552
    %v2103 = vunpack.c.l.b16 %v553
    %v2104 = vunpack.c.h.b16 %v553
    %v2105 = vunpack.c.l.b16 %v554
    %v2106 = vunpack.c.h.b16 %v554
    %v2107 = vunpack.c.l.b16 %v555
    %v2108 = vunpack.c.h.b16 %v555
    %v2109 = vunpack.c.l.b16 %v556
    %v2110 = vunpack.c.h.b16 %v556
    %v2111 = vunpack.c.l.b16 %v557
    %v2112 = vunpack.c.h.b16 %v557
    %v2113 = vunpack.c.l.b16 %v558
    %v2114 = vunpack.c.h.b16 %v558
    %v2115 = vunpack.c.l.b16 %v559
    %v2116 = vunpack.c.h.b16 %v559
    %v2117 = vunpack.c.l.b16 %v560
    %v2118 = vunpack.c.h.b16 %v560
    %v2119 = vunpack.c.l.b16 %v561
    %v2120 = vunpack.c.h.b16 %v561
    %v2121 = vunpack.c.l.b16 %v562
    %v2122 = vunpack.c.h.b16 %v562
    %v2123 = vunpack.c.l.b16 %v563
    %v2124 = vunpack.c.h.b16 %v563
    %v2125 = vunpack.c.l.b16 %v564
    %v2126 = vunpack.c.h.b16 %v564
    %v2127 = vunpack.c.l.b16 %v565
    %v2128 = vunpack.c.h.b16 %v565
    %v2129 = vunpack.c.l.b16 %v566
    %v2130 = vunpack.c.h.b16 %v566
    %v2131 = vunpack.c.l.b16 %v567
    %v2132 = vunpack.c.h.b16 %v567
    %v2133 = vunpack.c.l.b16 %v568
    %v2134 = vunpack.c.h.b16 %v568
    %v2135 = vunpack.c.l.b16 %v569
    %v2136 = vunpack.c.h.b16 %v569
    %v2137 = vunpack.c.l.b16 %v570
    %v2138 = vunpack.c.h.b16 %v570
    %v2139 = vunpack.c.l.b16 %v571
    %v2140 = vunpack.c.h.b16 %v571
    %v2141 = vunpack.c.l.b16 %v572
    %v2142 = vunpack.c.h.b16 %v572
    %v2143 = vunpack.c.l.b16 %v573
    %v2144 = vunpack.c.h.b16 %v573
    %v2145 = vunpack.c.l.b16 %v574
    %v2146 = vunpack.c.h.b16 %v574
    %v2147 = vunpack.c.l.b16 %v575
    %v2148 = vunpack.c.h.b16 %v575
    %v2149 = vunpack.c.l.b16 %v576
    %v2150 = vunpack.c.h.b16 %v576
    %v2151 = vunpack.c.l.b16 %v577
    %v2152 = vunpack.c.h.b16 %v577
    %v2153 = vunpack.c.l.b16 %v578
    %v2154 = vunpack.c.h.b16 %v578
    %v2155 = vunpack.c.l.b16 %v579
    %v2156 = vunpack.c.h.b16 %v579
    %v2157 = vunpack.c.l.b16 %v580
    %v2158 = vunpack.c.h.b16 %v580
    %v2159 = vpack.c.b16 %v1143, %v1135
    %v2160 = vpack.c.b16 %v1144, %v1136
    %v2161 = vpack.c.b16 %v1145, %v1137
    %v2162 = vpack.c.b16 %v1146, %v1138
    %v2163 = vpack.c.b16 %v1147, %v1139
    %v2164 = vpack.c.b16 %v1148, %v1140
    %v2165 = vpack.c.b16 %v1149, %v1141
    %v2166 = vpack.c.b16 %v1150, %v1142
    %v2167 = vpack.c.b16 %v1159, %v1151
    %v2168 = vpack.c.b16 %v1160, %v1152
    %v2169 = vpack.c.b16 %v1161, %v1153
    %v2170 = vpack.c.b16 %v1162, %v1154
    %v2171 = vpack.c.b16 %v1163, %v1155
    %v2172 = vpack.c.b16 %v1164, %v1156
    %v2173 = vpack.c.b16 %v1165, %v1157
    %v2174 = vpack.c.b16 %v1166, %v1158
    %v2175 = vpack.c.b16 %v1175, %v1167
    %v2176 = vpack.c.b16 %v1176, %v1168
    %v2177 = vpack.c.b16 %v1177, %v1169
    %v2178 = vpack.c.b16 %v1178, %v1170
    %v2179 = vpack.c.b16 %v1179, %v1171
    %v2180 = vpack.c.b16 %v1180, %v1172
    %v2181 = vpack.c.b16 %v1181, %v1173
    %v2182 = vpack.c.b16 %v1182, %v1174
    %v2183 = vpack.c.b16 %v1191, %v1183
    %v2184 = vpack.c.b16 %v1192, %v1184
    %v2185 = vpack.c.b16 %v1193, %v1185
    %v2186 = vpack.c.b16 %v1194, %v1186
    %v2187 = vpack.c.b16 %v1195, %v1187
    %v2188 = vpack.c.b16 %v1196, %v1188
    %v2189 = vpack.c.b16 %v1197, %v1189
    %v2190 = vpack.c.b16 %v1198, %v1190
    %v2191 = vpack.c.b16 %v1207, %v1199
    %v2192 = vpack.c.b16 %v1208, %v1200
    %v2193 = vpack.c.b16 %v1209, %v1201
    %v2194 = vpack.c.b16 %v1210, %v1202
    %v2195 = vpack.c.b16 %v1211, %v1203
    %v2196 = vpack.c.b16 %v1212, %v1204
    %v2197 = vpack.c.b16 %v1213, %v1205
    %v2198 = vpack.c.b16 %v1214, %v1206
    %v2199 = vpack.c.b16 %v1223, %v1215
    %v2200 = vpack.c.b16 %v1224, %v1216
    %v2201 = vpack.c.b16 %v1225, %v1217
    %v2202 = vpack.c.b16 %v1226, %v1218
    %v2203 = vpack.c.b16 %v1227, %v1219
    %v2204 = vpack.c.b16 %v1228, %v1220
    %v2205 = vpack.c.b16 %v1229, %v1221
    %v2206 = vpack.c.b16 %v1230, %v1222
    %v2207 = vpack.c.b16 %v1239, %v1231
    %v2208 = vpack.c.b16 %v1240, %v1232
    %v2209 = vpack.c.b16 %v1241, %v1233
    %v2210 = vpack.c.b16 %v1242, %v1234
    %v2211 = vpack.c.b16 %v1243, %v1235
    %v2212 = vpack.c.b16 %v1244, %v1236
    %v2213 = vpack.c.b16 %v1245, %v1237
    %v2214 = vpack.c.b16 %v1246, %v1238
    %v2215 = vpack.c.b16 %v1255, %v1247
    %v2216 = vpack.c.b16 %v1256, %v1248
    %v2217 = vpack.c.b16 %v1257, %v1249
    %v2218 = vpack.c.b16 %v1258, %v1250
    %v2219 = vpack.c.b16 %v1259, %v1251
    %v2220 = vpack.c.b16 %v1260, %v1252
    %v2221 = vpack.c.b16 %v1261, %v1253
    %v2222 = vpack.c.b16 %v1262, %v1254
    %v2223 = vpack.c.b16 %v1271, %v1263
    %v2224 = vpack.c.b16 %v1272, %v1264
    %v2225 = vpack.c.b16 %v1273, %v1265
    %v2226 = vpack.c.b16 %v1274, %v1266
    %v2227 = vpack.c.b16 %v1275, %v1267
    %v2228 = vpack.c.b16 %v1276, %v1268
    %v2229 = vpack.c.b16 %v1277, %v1269
    %v2230 = vpack.c.b16 %v1278, %v1270
    %v2231 = vpack.c.b16 %v1287, %v1279
    %v2232 = vpack.c.b16 %v1288, %v1280
    %v2233 = vpack.c.b16 %v1289, %v1281
    %v2234 = vpack.c.b16 %v1290, %v1282
    %v2235 = vpack.c.b16 %v1291, %v1283
    %v2236 = vpack.c.b16 %v1292, %v1284
    %v2237 = vpack.c.b16 %v1293, %v1285
    %v2238 = vpack.c.b16 %v1294, %v1286
    %v2239 = vpack.c.b16 %v1303, %v1295
    %v2240 = vpack.c.b16 %v1304, %v1296
    %v2241 = vpack.c.b16 %v1305, %v1297
    %v2242 = vpack.c.b16 %v1306, %v1298
    %v2243 = vpack.c.b16 %v1307, %v1299
    %v2244 = vpack.c.b16 %v1308, %v1300
    %v2245 = vpack.c.b16 %v1309, %v1301
    %v2246 = vpack.c.b16 %v1310, %v1302
    %v2247 = vpack.c.b16 %v1319, %v1311
    %v2248 = vpack.c.b16 %v1320, %v1312
    %v2249 = vpack.c.b16 %v1321, %v1313
    %v2250 = vpack.c.b16 %v1322, %v1314
    %v2251 = vpack.c.b16 %v1323, %v1315
    %v2252 = vpack.c.b16 %v1324, %v1316
    %v2253 = vpack.c.b16 %v1325, %v1317
    %v2254 = vpack.c.b16 %v1326, %v1318
    %v2255 = vpack.c.b16 %v1335, %v1327
    %v2256 = vpack.c.b16 %v1336, %v1328
    %v2257 = vpack.c.b16 %v1337, %v1329
    %v2258 = vpack.c.b16 %v1338, %v1330
    %v2259 = vpack.c.b16 %v1339, %v1331
    %v2260 = vpack.c.b16 %v1340, %v1332
    %v2261 = vpack.c.b16 %v1341, %v1333
    %v2262 = vpack.c.b16 %v1342, %v1334
    %v2263 = vpack.c.b16 %v1351, %v1343
    %v2264 = vpack.c.b16 %v1352, %v1344
    %v2265 = vpack.c.b16 %v1353, %v1345
    %v2266 = vpack.c.b16 %v1354, %v1346
    %v2267 = vpack.c.b16 %v1355, %v1347
    %v2268 = vpack.c.b16 %v1356, %v1348
    %v2269 = vpack.c.b16 %v1357, %v1349
    %v2270 = vpack.c.b16 %v1358, %v1350
    %v2271 = vpack.c.b16 %v1367, %v1359
    %v2272 = vpack.c.b16 %v1368, %v1360
    %v2273 = vpack.c.b16 %v1369, %v1361
    %v2274 = vpack.c.b16 %v1370, %v1362
    %v2275 = vpack.c.b16 %v1371, %v1363
    %v2276 = vpack.c.b16 %v1372, %v1364
    %v2277 = vpack.c.b16 %v1373, %v1365
    %v2278 = vpack.c.b16 %v1374, %v1366
    %v2279 = vpack.c.b16 %v1383, %v1375
    %v2280 = vpack.c.b16 %v1384, %v1376
    %v2281 = vpack.c.b16 %v1385, %v1377
    %v2282 = vpack.c.b16 %v1386, %v1378
    %v2283 = vpack.c.b16 %v1387, %v1379
    %v2284 = vpack.c.b16 %v1388, %v1380
    %v2285 = vpack.c.b16 %v1389, %v1381
    %v2286 = vpack.c.b16 %v1390, %v1382
    %v2287 = vpack.c.b16 %v1399, %v1391
    %v2288 = vpack.c.b16 %v1400, %v1392
    %v2289 = vpack.c.b16 %v1401, %v1393
    %v2290 = vpack.c.b16 %v1402, %v1394
    %v2291 = vpack.c.b16 %v1403, %v1395
    %v2292 = vpack.c.b16 %v1404, %v1396
    %v2293 = vpack.c.b16 %v1405, %v1397
    %v2294 = vpack.c.b16 %v1406, %v1398
    %v2295 = vpack.c.b16 %v1415, %v1407
    %v2296 = vpack.c.b16 %v1416, %v1408
    %v2297 = vpack.c.b16 %v1417, %v1409
    %v2298 = vpack.c.b16 %v1418, %v1410
    %v2299 = vpack.c.b16 %v1419, %v1411
    %v2300 = vpack.c.b16 %v1420, %v1412
    %v2301 = vpack.c.b16 %v1421, %v1413
    %v2302 = vpack.c.b16 %v1422, %v1414
    %v2303 = vpack.c.b16 %v1431, %v1423
    %v2304 = vpack.c.b16 %v1432, %v1424
    %v2305 = vpack.c.b16 %v1433, %v1425
    %v2306 = vpack.c.b16 %v1434, %v1426
    %v2307 = vpack.c.b16 %v1435, %v1427
    %v2308 = vpack.c.b16 %v1436, %v1428
    %v2309 = vpack.c.b16 %v1437, %v1429
    %v2310 = vpack.c.b16 %v1438, %v1430
    %v2311 = vpack.c.b16 %v1447, %v1439
    %v2312 = vpack.c.b16 %v1448, %v1440
    %v2313 = vpack.c.b16 %v1449, %v1441
    %v2314 = vpack.c.b16 %v1450, %v1442
    %v2315 = vpack.c.b16 %v1451, %v1443
    %v2316 = vpack.c.b16 %v1452, %v1444
    %v2317 = vpack.c.b16 %v1453, %v1445
    %v2318 = vpack.c.b16 %v1454, %v1446
    %v2319 = vpack.c.b16 %v1463, %v1455
    %v2320 = vpack.c.b16 %v1464, %v1456
    %v2321 = vpack.c.b16 %v1465, %v1457
    %v2322 = vpack.c.b16 %v1466, %v1458
    %v2323 = vpack.c.b16 %v1467, %v1459
    %v2324 = vpack.c.b16 %v1468, %v1460
    %v2325 = vpack.c.b16 %v1469, %v1461
    %v2326 = vpack.c.b16 %v1470, %v1462
    %v2327 = vpack.c.b16 %v1479, %v1471
    %v2328 = vpack.c.b16 %v1480, %v1472
    %v2329 = vpack.c.b16 %v1481, %v1473
    %v2330 = vpack.c.b16 %v1482, %v1474
    %v2331 = vpack.c.b16 %v1483, %v1475
    %v2332 = vpack.c.b16 %v1484, %v1476
    %v2333 = vpack.c.b16 %v1485, %v1477
    %v2334 = vpack.c.b16 %v1486, %v1478
    %v2335 = vpack.c.b16 %v1495, %v1487
    %v2336 = vpack.c.b16 %v1496, %v1488
    %v2337 = vpack.c.b16 %v1497, %v1489
    %v2338 = vpack.c.b16 %v1498, %v1490
    %v2339 = vpack.c.b16 %v1499, %v1491
    %v2340 = vpack.c.b16 %v1500, %v1492
    %v2341 = vpack.c.b16 %v1501, %v1493
    %v2342 = vpack.c.b16 %v1502, %v1494
    %v2343 = vpack.c.b16 %v1511, %v1503
    %v2344 = vpack.c.b16 %v1512, %v1504
    %v2345 = vpack.c.b16 %v1513, %v1505
    %v2346 = vpack.c.b16 %v1514, %v1506
    %v2347 = vpack.c.b16 %v1515, %v1507
    %v2348 = vpack.c.b16 %v1516, %v1508
    %v2349 = vpack.c.b16 %v1517, %v1509
    %v2350 = vpack.c.b16 %v1518, %v1510
    %v2351 = vpack.c.b16 %v1527, %v1519
    %v2352 = vpack.c.b16 %v1528, %v1520
    %v2353 = vpack.c.b16 %v1529, %v1521
    %v2354 = vpack.c.b16 %v1530, %v1522
    %v2355 = vpack.c.b16 %v1531, %v1523
    %v2356 = vpack.c.b16 %v1532, %v1524
    %v2357 = vpack.c.b16 %v1533, %v1525
    %v2358 = vpack.c.b16 %v1534, %v1526
    %v2359 = vpack.c.b16 %v1543, %v1535
    %v2360 = vpack.c.b16 %v1544, %v1536
    %v2361 = vpack.c.b16 %v1545, %v1537
    %v2362 = vpack.c.b16 %v1546, %v1538
    %v2363 = vpack.c.b16 %v1547, %v1539
    %v2364 = vpack.c.b16 %v1548, %v1540
    %v2365 = vpack.c.b16 %v1549, %v1541
    %v2366 = vpack.c.b16 %v1550, %v1542
    %v2367 = vpack.c.b16 %v1559, %v1551
    %v2368 = vpack.c.b16 %v1560, %v1552
    %v2369 = vpack.c.b16 %v1561, %v1553
    %v2370 = vpack.c.b16 %v1562, %v1554
    %v2371 = vpack.c.b16 %v1563, %v1555
    %v2372 = vpack.c.b16 %v1564, %v1556
    %v2373 = vpack.c.b16 %v1565, %v1557
    %v2374 = vpack.c.b16 %v1566, %v1558
    %v2375 = vpack.c.b16 %v1575, %v1567
    %v2376 = vpack.c.b16 %v1576, %v1568
    %v2377 = vpack.c.b16 %v1577, %v1569
    %v2378 = vpack.c.b16 %v1578, %v1570
    %v2379 = vpack.c.b16 %v1579, %v1571
    %v2380 = vpack.c.b16 %v1580, %v1572
    %v2381 = vpack.c.b16 %v1581, %v1573
    %v2382 = vpack.c.b16 %v1582, %v1574
    %v2383 = vpack.c.b16 %v1591, %v1583
    %v2384 = vpack.c.b16 %v1592, %v1584
    %v2385 = vpack.c.b16 %v1593, %v1585
    %v2386 = vpack.c.b16 %v1594, %v1586
    %v2387 = vpack.c.b16 %v1595, %v1587
    %v2388 = vpack.c.b16 %v1596, %v1588
    %v2389 = vpack.c.b16 %v1597, %v1589
    %v2390 = vpack.c.b16 %v1598, %v1590
    %v2391 = vpack.c.b16 %v1607, %v1599
    %v2392 = vpack.c.b16 %v1608, %v1600
    %v2393 = vpack.c.b16 %v1609, %v1601
    %v2394 = vpack.c.b16 %v1610, %v1602
    %v2395 = vpack.c.b16 %v1611, %v1603
    %v2396 = vpack.c.b16 %v1612, %v1604
    %v2397 = vpack.c.b16 %v1613, %v1605
    %v2398 = vpack.c.b16 %v1614, %v1606
    %v2399 = vpack.c.b16 %v1623, %v1615
    %v2400 = vpack.c.b16 %v1624, %v1616
    %v2401 = vpack.c.b16 %v1625, %v1617
    %v2402 = vpack.c.b16 %v1626, %v1618
    %v2403 = vpack.c.b16 %v1627, %v1619
    %v2404 = vpack.c.b16 %v1628, %v1620
    %v2405 = vpack.c.b16 %v1629, %v1621
    %v2406 = vpack.c.b16 %v1630, %v1622
    %v2407 = vpack.c.b16 %v1639, %v1631
    %v2408 = vpack.c.b16 %v1640, %v1632
    %v2409 = vpack.c.b16 %v1641, %v1633
    %v2410 = vpack.c.b16 %v1642, %v1634
    %v2411 = vpack.c.b16 %v1643, %v1635
    %v2412 = vpack.c.b16 %v1644, %v1636
    %v2413 = vpack.c.b16 %v1645, %v1637
    %v2414 = vpack.c.b16 %v1646, %v1638
    %v2415 = vpack.c.b16 %v1655, %v1647
    %v2416 = vpack.c.b16 %v1656, %v1648
    %v2417 = vpack.c.b16 %v1657, %v1649
    %v2418 = vpack.c.b16 %v1658, %v1650
    %v2419 = vpack.c.b16 %v1659, %v1651
    %v2420 = vpack.c.b16 %v1660, %v1652
    %v2421 = vpack.c.b16 %v1661, %v1653
    %v2422 = vpack.c.b16 %v1662, %v1654
    %v2423 = vpack.c.b16 %v1671, %v1663
    %v2424 = vpack.c.b16 %v1672, %v1664
    %v2425 = vpack.c.b16 %v1673, %v1665
    %v2426 = vpack.c.b16 %v1674, %v1666
    %v2427 = vpack.c.b16 %v1675, %v1667
    %v2428 = vpack.c.b16 %v1676, %v1668
    %v2429 = vpack.c.b16 %v1677, %v1669
    %v2430 = vpack.c.b16 %v1678, %v1670
    %v2431 = vpack.c.b16 %v1687, %v1679
    %v2432 = vpack.c.b16 %v1688, %v1680
    %v2433 = vpack.c.b16 %v1689, %v1681
    %v2434 = vpack.c.b16 %v1690, %v1682
    %v2435 = vpack.c.b16 %v1691, %v1683
    %v2436 = vpack.c.b16 %v1692, %v1684
    %v2437 = vpack.c.b16 %v1693, %v1685
    %v2438 = vpack.c.b16 %v1694, %v1686
    %v2439 = vpack.c.b16 %v1703, %v1695
    %v2440 = vpack.c.b16 %v1704, %v1696
    %v2441 = vpack.c.b16 %v1705, %v1697
    %v2442 = vpack.c.b16 %v1706, %v1698
    %v2443 = vpack.c.b16 %v1707, %v1699
    %v2444 = vpack.c.b16 %v1708, %v1700
    %v2445 = vpack.c.b16 %v1709, %v1701
    %v2446 = vpack.c.b16 %v1710, %v1702
    %v2447 = vpack.c.b16 %v1719, %v1711
    %v2448 = vpack.c.b16 %v1720, %v1712
    %v2449 = vpack.c.b16 %v1721, %v1713
    %v2450 = vpack.c.b16 %v1722, %v1714
    %v2451 = vpack.c.b16 %v1723, %v1715
    %v2452 = vpack.c.b16 %v1724, %v1716
    %v2453 = vpack.c.b16 %v1725, %v1717
    %v2454 = vpack.c.b16 %v1726, %v1718
    %v2455 = vpack.c.b16 %v1735, %v1727
    %v2456 = vpack.c.b16 %v1736, %v1728
    %v2457 = vpack.c.b16 %v1737, %v1729
    %v2458 = vpack.c.b16 %v1738, %v1730
    %v2459 = vpack.c.b16 %v1739, %v1731
    %v2460 = vpack.c.b16 %v1740, %v1732
    %v2461 = vpack.c.b16 %v1741, %v1733
    %v2462 = vpack.c.b16 %v1742, %v1734
    %v2463 = vpack.c.b16 %v1751, %v1743
    %v2464 = vpack.c.b16 %v1752, %v1744
    %v2465 = vpack.c.b16 %v1753, %v1745
    %v2466 = vpack.c.b16 %v1754, %v1746
    %v2467 = vpack.c.b16 %v1755, %v1747
    %v2468 = vpack.c.b16 %v1756, %v1748
    %v2469 = vpack.c.b16 %v1757, %v1749
    %v2470 = vpack.c.b16 %v1758, %v1750
    %v2471 = vpack.c.b16 %v1767, %v1759
    %v2472 = vpack.c.b16 %v1768, %v1760
    %v2473 = vpack.c.b16 %v1769, %v1761
    %v2474 = vpack.c.b16 %v1770, %v1762
    %v2475 = vpack.c.b16 %v1771, %v1763
    %v2476 = vpack.c.b16 %v1772, %v1764
    %v2477 = vpack.c.b16 %v1773, %v1765
    %v2478 = vpack.c.b16 %v1774, %v1766
    %v2479 = vpack.c.b16 %v1783, %v1775
    %v2480 = vpack.c.b16 %v1784, %v1776
    %v2481 = vpack.c.b16 %v1785, %v1777
    %v2482 = vpack.c.b16 %v1786, %v1778
    %v2483 = vpack.c.b16 %v1787, %v1779
    %v2484 = vpack.c.b16 %v1788, %v1780
    %v2485 = vpack.c.b16 %v1789, %v1781
    %v2486 = vpack.c.b16 %v1790, %v1782
    %v2487 = vpack.c.b16 %v1799, %v1791
    %v2488 = vpack.c.b16 %v1800, %v1792
    %v2489 = vpack.c.b16 %v1801, %v1793
    %v2490 = vpack.c.b16 %v1802, %v1794
    %v2491 = vpack.c.b16 %v1803, %v1795
    %v2492 = vpack.c.b16 %v1804, %v1796
    %v2493 = vpack.c.b16 %v1805, %v1797
    %v2494 = vpack.c.b16 %v1806, %v1798
    %v2495 = vpack.c.b16 %v1815, %v1807
    %v2496 = vpack.c.b16 %v1816, %v1808
    %v2497 = vpack.c.b16 %v1817, %v1809
    %v2498 = vpack.c.b16 %v1818, %v1810
    %v2499 = vpack.c.b16 %v1819, %v1811
    %v2500 = vpack.c.b16 %v1820, %v1812
    %v2501 = vpack.c.b16 %v1821, %v1813
    %v2502 = vpack.c.b16 %v1822, %v1814
    %v2503 = vpack.c.b16 %v1831, %v1823
    %v2504 = vpack.c.b16 %v1832, %v1824
    %v2505 = vpack.c.b16 %v1833, %v1825
    %v2506 = vpack.c.b16 %v1834, %v1826
    %v2507 = vpack.c.b16 %v1835, %v1827
    %v2508 = vpack.c.b16 %v1836, %v1828
    %v2509 = vpack.c.b16 %v1837, %v1829
    %v2510 = vpack.c.b16 %v1838, %v1830
    %v2511 = vpack.c.b16 %v1847, %v1839
    %v2512 = vpack.c.b16 %v1848, %v1840
    %v2513 = vpack.c.b16 %v1849, %v1841
    %v2514 = vpack.c.b16 %v1850, %v1842
    %v2515 = vpack.c.b16 %v1851, %v1843
    %v2516 = vpack.c.b16 %v1852, %v1844
    %v2517 = vpack.c.b16 %v1853, %v1845
    %v2518 = vpack.c.b16 %v1854, %v1846
    %v2519 = vpack.c.b16 %v1863, %v1855
    %v2520 = vpack.c.b16 %v1864, %v1856
    %v2521 = vpack.c.b16 %v1865, %v1857
    %v2522 = vpack.c.b16 %v1866, %v1858
    %v2523 = vpack.c.b16 %v1867, %v1859
    %v2524 = vpack.c.b16 %v1868, %v1860
    %v2525 = vpack.c.b16 %v1869, %v1861
    %v2526 = vpack.c.b16 %v1870, %v1862
    %v2527 = vpack.c.b16 %v1879, %v1871
    %v2528 = vpack.c.b16 %v1880, %v1872
    %v2529 = vpack.c.b16 %v1881, %v1873
    %v2530 = vpack.c.b16 %v1882, %v1874
    %v2531 = vpack.c.b16 %v1883, %v1875
    %v2532 = vpack.c.b16 %v1884, %v1876
    %v2533 = vpack.c.b16 %v1885, %v1877
    %v2534 = vpack.c.b16 %v1886, %v1878
    %v2535 = vpack.c.b16 %v1895, %v1887
    %v2536 = vpack.c.b16 %v1896, %v1888
    %v2537 = vpack.c.b16 %v1897, %v1889
    %v2538 = vpack.c.b16 %v1898, %v1890
    %v2539 = vpack.c.b16 %v1899, %v1891
    %v2540 = vpack.c.b16 %v1900, %v1892
    %v2541 = vpack.c.b16 %v1901, %v1893
    %v2542 = vpack.c.b16 %v1902, %v1894
    %v2543 = vpack.c.b16 %v1911, %v1903
    %v2544 = vpack.c.b16 %v1912, %v1904
    %v2545 = vpack.c.b16 %v1913, %v1905
    %v2546 = vpack.c.b16 %v1914, %v1906
    %v2547 = vpack.c.b16 %v1915, %v1907
    %v2548 = vpack.c.b16 %v1916, %v1908
    %v2549 = vpack.c.b16 %v1917, %v1909
    %v2550 = vpack.c.b16 %v1918, %v1910
    %v2551 = vpack.c.b16 %v1927, %v1919
    %v2552 = vpack.c.b16 %v1928, %v1920
    %v2553 = vpack.c.b16 %v1929, %v1921
    %v2554 = vpack.c.b16 %v1930, %v1922
    %v2555 = vpack.c.b16 %v1931, %v1923
    %v2556 = vpack.c.b16 %v1932, %v1924
    %v2557 = vpack.c.b16 %v1933, %v1925
    %v2558 = vpack.c.b16 %v1934, %v1926
    %v2559 = vpack.c.b16 %v1943, %v1935
    %v2560 = vpack.c.b16 %v1944, %v1936
    %v2561 = vpack.c.b16 %v1945, %v1937
    %v2562 = vpack.c.b16 %v1946, %v1938
    %v2563 = vpack.c.b16 %v1947, %v1939
    %v2564 = vpack.c.b16 %v1948, %v1940
    %v2565 = vpack.c.b16 %v1949, %v1941
    %v2566 = vpack.c.b16 %v1950, %v1942
    %v2567 = vpack.c.b16 %v1959, %v1951
    %v2568 = vpack.c.b16 %v1960, %v1952
    %v2569 = vpack.c.b16 %v1961, %v1953
    %v2570 = vpack.c.b16 %v1962, %v1954
    %v2571 = vpack.c.b16 %v1963, %v1955
    %v2572 = vpack.c.b16 %v1964, %v1956
    %v2573 = vpack.c.b16 %v1965, %v1957
    %v2574 = vpack.c.b16 %v1966, %v1958
    %v2575 = vpack.c.b16 %v1975, %v1967
    %v2576 = vpack.c.b16 %v1976, %v1968
    %v2577 = vpack.c.b16 %v1977, %v1969
    %v2578 = vpack.c.b16 %v1978, %v1970
    %v2579 = vpack.c.b16 %v1979, %v1971
    %v2580 = vpack.c.b16 %v1980, %v1972
    %v2581 = vpack.c.b16 %v1981, %v1973
    %v2582 = vpack.c.b16 %v1982, %v1974
    %v2583 = vpack.c.b16 %v1991, %v1983
    %v2584 = vpack.c.b16 %v1992, %v1984
    %v2585 = vpack.c.b16 %v1993, %v1985
    %v2586 = vpack.c.b16 %v1994, %v1986
    %v2587 = vpack.c.b16 %v1995, %v1987
    %v2588 = vpack.c.b16 %v1996, %v1988
    %v2589 = vpack.c.b16 %v1997, %v1989
    %v2590 = vpack.c.b16 %v1998, %v1990
    %v2591 = vpack.c.b16 %v2007, %v1999
    %v2592 = vpack.c.b16 %v2008, %v2000
    %v2593 = vpack.c.b16 %v2009, %v2001
    %v2594 = vpack.c.b16 %v2010, %v2002
    %v2595 = vpack.c.b16 %v2011, %v2003
    %v2596 = vpack.c.b16 %v2012, %v2004
    %v2597 = vpack.c.b16 %v2013, %v2005
    %v2598 = vpack.c.b16 %v2014, %v2006
    %v2599 = vpack.c.b16 %v2023, %v2015
    %v2600 = vpack.c.b16 %v2024, %v2016
    %v2601 = vpack.c.b16 %v2025, %v2017
    %v2602 = vpack.c.b16 %v2026, %v2018
    %v2603 = vpack.c.b16 %v2027, %v2019
    %v2604 = vpack.c.b16 %v2028, %v2020
    %v2605 = vpack.c.b16 %v2029, %v2021
    %v2606 = vpack.c.b16 %v2030, %v2022
    %v2607 = vpack.c.b16 %v2039, %v2031
    %v2608 = vpack.c.b16 %v2040, %v2032
    %v2609 = vpack.c.b16 %v2041, %v2033
    %v2610 = vpack.c.b16 %v2042, %v2034
    %v2611 = vpack.c.b16 %v2043, %v2035
    %v2612 = vpack.c.b16 %v2044, %v2036
    %v2613 = vpack.c.b16 %v2045, %v2037
    %v2614 = vpack.c.b16 %v2046, %v2038
    %v2615 = vpack.c.b16 %v2055, %v2047
    %v2616 = vpack.c.b16 %v2056, %v2048
    %v2617 = vpack.c.b16 %v2057, %v2049
    %v2618 = vpack.c.b16 %v2058, %v2050
    %v2619 = vpack.c.b16 %v2059, %v2051
    %v2620 = vpack.c.b16 %v2060, %v2052
    %v2621 = vpack.c.b16 %v2061, %v2053
    %v2622 = vpack.c.b16 %v2062, %v2054
    %v2623 = vpack.c.b16 %v2071, %v2063
    %v2624 = vpack.c.b16 %v2072, %v2064
    %v2625 = vpack.c.b16 %v2073, %v2065
    %v2626 = vpack.c.b16 %v2074, %v2066
    %v2627 = vpack.c.b16 %v2075, %v2067
    %v2628 = vpack.c.b16 %v2076, %v2068
    %v2629 = vpack.c.b16 %v2077, %v2069
    %v2630 = vpack.c.b16 %v2078, %v2070
    %v2631 = vpack.c.b16 %v2087, %v2079
    %v2632 = vpack.c.b16 %v2088, %v2080
    %v2633 = vpack.c.b16 %v2089, %v2081
    %v2634 = vpack.c.b16 %v2090, %v2082
    %v2635 = vpack.c.b16 %v2091, %v2083
    %v2636 = vpack.c.b16 %v2092, %v2084
    %v2637 = vpack.c.b16 %v2093, %v2085
    %v2638 = vpack.c.b16 %v2094, %v2086
    %v2639 = vpack.c.b16 %v2103, %v2095
    %v2640 = vpack.c.b16 %v2104, %v2096
    %v2641 = vpack.c.b16 %v2105, %v2097
    %v2642 = vpack.c.b16 %v2106, %v2098
    %v2643 = vpack.c.b16 %v2107, %v2099
    %v2644 = vpack.c.b16 %v2108, %v2100
    %v2645 = vpack.c.b16 %v2109, %v2101
    %v2646 = vpack.c.b16 %v2110, %v2102
    %v2647 = vpack.c.b16 %v2119, %v2111
    %v2648 = vpack.c.b16 %v2120, %v2112
    %v2649 = vpack.c.b16 %v2121, %v2113
    %v2650 = vpack.c.b16 %v2122, %v2114
    %v2651 = vpack.c.b16 %v2123, %v2115
    %v2652 = vpack.c.b16 %v2124, %v2116
    %v2653 = vpack.c.b16 %v2125, %v2117
    %v2654 = vpack.c.b16 %v2126, %v2118
    %v2655 = vpack.c.b16 %v2135, %v2127
    %v2656 = vpack.c.b16 %v2136, %v2128
    %v2657 = vpack.c.b16 %v2137, %v2129
    %v2658 = vpack.c.b16 %v2138, %v2130
    %v2659 = vpack.c.b16 %v2139, %v2131
    %v2660 = vpack.c.b16 %v2140, %v2132
    %v2661 = vpack.c.b16 %v2141, %v2133
    %v2662 = vpack.c.b16 %v2142, %v2134
    %v2663 = vpack.c.b16 %v2151, %v2143
    %v2664 = vpack.c.b16 %v2152, %v2144
    %v2665 = vpack.c.b16 %v2153, %v2145
    %v2666 = vpack.c.b16 %v2154, %v2146
    %v2667 = vpack.c.b16 %v2155, %v2147
    %v2668 = vpack.c.b16 %v2156, %v2148
    %v2669 = vpack.c.b16 %v2157, %v2149
    %v2670 = vpack.c.b16 %v2158, %v2150
    %3183 = vmatprep.subr.bf16.mxu0 %v2160
    %3184 = vmatpush1.bf16.msra.mxu0 %v2159
    %3185 = vmatprep.subr.bf16.mxu0 %v2168
    %3186 = vmatpush1.bf16.msra.mxu0 %v2167
    %3187 = vmatprep.subr.bf16.mxu0 %v2176
    %3188 = vmatpush1.bf16.msra.mxu0 %v2175
    %3189 = vmatprep.subr.bf16.mxu0 %v2184
    %3190 = vmatpush1.bf16.msra.mxu0 %v2183
    %3191 = vmatprep.subr.bf16.mxu0 %v2192
    %3192 = vmatpush1.bf16.msra.mxu0 %v2191
    %3193 = vmatprep.subr.bf16.mxu0 %v2200
    %3194 = vmatpush1.bf16.msra.mxu0 %v2199
    %3195 = vmatprep.subr.bf16.mxu0 %v2208
    %3196 = vmatpush1.bf16.msra.mxu0 %v2207
    %3197 = vmatprep.subr.bf16.mxu0 %v2216
    %3198 = vmatpush1.bf16.msra.mxu0 %v2215
    %3199 = vmatprep.subr.bf16.mxu0 %v2224
    %3200 = vmatpush1.bf16.msra.mxu0 %v2223
    %3201 = vmatprep.subr.bf16.mxu0 %v2232
    %3202 = vmatpush1.bf16.msra.mxu0 %v2231
    %3203 = vmatprep.subr.bf16.mxu0 %v2240
    %3204 = vmatpush1.bf16.msra.mxu0 %v2239
    %3205 = vmatprep.subr.bf16.mxu0 %v2248
    %3206 = vmatpush1.bf16.msra.mxu0 %v2247
    %3207 = vmatprep.subr.bf16.mxu0 %v2256
    %3208 = vmatpush1.bf16.msra.mxu0 %v2255
    %3209 = vmatprep.subr.bf16.mxu0 %v2264
    %3210 = vmatpush1.bf16.msra.mxu0 %v2263
    %3211 = vmatprep.subr.bf16.mxu0 %v2272
    %3212 = vmatpush1.bf16.msra.mxu0 %v2271
    %3213 = vmatprep.subr.bf16.mxu0 %v2280
    %3214 = vmatpush1.bf16.msra.mxu0 %v2279
    %3215 = vmatprep.mubr.bf16.mxu0 %v62
    %3216 = vmatmul.mubr.bf16.gmra.mrb[0].mxu0 %v61
    %v3217 = vpop.f32.mrb[0].mxu0
    %v3218 = vadd.f32 %v586, %v3217
    %v3219 = vpop.f32.mrb[0].mxu0
    %v3220 = vadd.f32 %v590, %v3219
    %v3221 = vpop.f32.mrb[0].mxu0
    %v3222 = vpop.f32.mrb[0].mxu0
    %3223 = vdwg.mxu0
    %3224 = vmatprep.subr.bf16.mxu0 %v2288
    %3225 = vmatpush1.bf16.msra.mxu0 %v2287
    %3226 = vmatprep.subr.bf16.mxu0 %v2296
    %3227 = vmatpush1.bf16.msra.mxu0 %v2295
    %3228 = vmatprep.subr.bf16.mxu0 %v2304
    %3229 = vmatpush1.bf16.msra.mxu0 %v2303
    %3230 = vmatprep.subr.bf16.mxu0 %v2312
    %3231 = vmatpush1.bf16.msra.mxu0 %v2311
    %3232 = vmatprep.subr.bf16.mxu0 %v2320
    %3233 = vmatpush1.bf16.msra.mxu0 %v2319
    %3234 = vmatprep.subr.bf16.mxu0 %v2328
    %3235 = vmatpush1.bf16.msra.mxu0 %v2327
    %3236 = vmatprep.subr.bf16.mxu0 %v2336
    %3237 = vmatpush1.bf16.msra.mxu0 %v2335
    %3238 = vmatprep.subr.bf16.mxu0 %v2344
    %3239 = vmatpush1.bf16.msra.mxu0 %v2343
    %3240 = vmatprep.subr.bf16.mxu0 %v2352
    %3241 = vmatpush1.bf16.msra.mxu0 %v2351
    %3242 = vmatprep.subr.bf16.mxu0 %v2360
    %3243 = vmatpush1.bf16.msra.mxu0 %v2359
    %3244 = vmatprep.subr.bf16.mxu0 %v2368
    %3245 = vmatpush1.bf16.msra.mxu0 %v2367
    %3246 = vmatprep.subr.bf16.mxu0 %v2376
    %3247 = vmatpush1.bf16.msra.mxu0 %v2375
    %3248 = vmatprep.subr.bf16.mxu0 %v2384
    %3249 = vmatpush1.bf16.msra.mxu0 %v2383
    %3250 = vmatprep.subr.bf16.mxu0 %v2392
    %3251 = vmatpush1.bf16.msra.mxu0 %v2391
    %3252 = vmatprep.subr.bf16.mxu0 %v2400
    %3253 = vmatpush1.bf16.msra.mxu0 %v2399
    %3254 = vmatprep.subr.bf16.mxu0 %v2408
    %3255 = vmatpush1.bf16.msra.mxu0 %v2407
    %3256 = vmatprep.mubr.bf16.mxu0 %v64
    %3257 = vmatmul.mubr.bf16.gmra.mrb[0].mxu0 %v63
    %v3258 = vpop.f32.mrb[0].mxu0
    %v3259 = vadd.f32 %v3218, %v3258
    %v3260 = vpop.f32.mrb[0].mxu0
    %v3261 = vadd.f32 %v3220, %v3260
    %v3262 = vpop.f32.mrb[0].mxu0
    %v3263 = vpop.f32.mrb[0].mxu0
    %3264 = vdwg.mxu0
    %3265 = vmatprep.subr.bf16.mxu0 %v2416
    %3266 = vmatpush1.bf16.msra.mxu0 %v2415
    %3267 = vmatprep.subr.bf16.mxu0 %v2424
    %3268 = vmatpush1.bf16.msra.mxu0 %v2423
    %3269 = vmatprep.subr.bf16.mxu0 %v2432
    %3270 = vmatpush1.bf16.msra.mxu0 %v2431
    %3271 = vmatprep.subr.bf16.mxu0 %v2440
    %3272 = vmatpush1.bf16.msra.mxu0 %v2439
    %3273 = vmatprep.subr.bf16.mxu0 %v2448
    %3274 = vmatpush1.bf16.msra.mxu0 %v2447
    %3275 = vmatprep.subr.bf16.mxu0 %v2456
    %3276 = vmatpush1.bf16.msra.mxu0 %v2455
    %3277 = vmatprep.subr.bf16.mxu0 %v2464
    %3278 = vmatpush1.bf16.msra.mxu0 %v2463
    %3279 = vmatprep.subr.bf16.mxu0 %v2472
    %3280 = vmatpush1.bf16.msra.mxu0 %v2471
    %3281 = vmatprep.subr.bf16.mxu0 %v2480
    %3282 = vmatpush1.bf16.msra.mxu0 %v2479
    %3283 = vmatprep.subr.bf16.mxu0 %v2488
    %3284 = vmatpush1.bf16.msra.mxu0 %v2487
    %3285 = vmatprep.subr.bf16.mxu0 %v2496
    %3286 = vmatpush1.bf16.msra.mxu0 %v2495
    %3287 = vmatprep.subr.bf16.mxu0 %v2504
    %3288 = vmatpush1.bf16.msra.mxu0 %v2503
    %3289 = vmatprep.subr.bf16.mxu0 %v2512
    %3290 = vmatpush1.bf16.msra.mxu0 %v2511
    %3291 = vmatprep.subr.bf16.mxu0 %v2520
    %3292 = vmatpush1.bf16.msra.mxu0 %v2519
    %3293 = vmatprep.subr.bf16.mxu0 %v2528
    %3294 = vmatpush1.bf16.msra.mxu0 %v2527
    %3295 = vmatprep.subr.bf16.mxu0 %v2536
    %3296 = vmatpush1.bf16.msra.mxu0 %v2535
    %3297 = vmatprep.mubr.bf16.mxu0 %v66
    %3298 = vmatmul.mubr.bf16.gmra.mrb[0].mxu0 %v65
    %v3299 = vpop.f32.mrb[0].mxu0
    %v3300 = vadd.f32 %v3259, %v3299
    %v3301 = vpop.f32.mrb[0].mxu0
    %v3302 = vadd.f32 %v3261, %v3301
    %v3303 = vpop.f32.mrb[0].mxu0
    %v3304 = vpop.f32.mrb[0].mxu0
    %3305 = vdwg.mxu0
    %3306 = vmatprep.subr.bf16.mxu0 %v2544
    %3307 = vmatpush1.bf16.msra.mxu0 %v2543
    %3308 = vmatprep.subr.bf16.mxu0 %v2552
    %3309 = vmatpush1.bf16.msra.mxu0 %v2551
    %3310 = vmatprep.subr.bf16.mxu0 %v2560
    %3311 = vmatpush1.bf16.msra.mxu0 %v2559
    %3312 = vmatprep.subr.bf16.mxu0 %v2568
    %3313 = vmatpush1.bf16.msra.mxu0 %v2567
    %3314 = vmatprep.subr.bf16.mxu0 %v2576
    %3315 = vmatpush1.bf16.msra.mxu0 %v2575
    %3316 = vmatprep.subr.bf16.mxu0 %v2584
    %3317 = vmatpush1.bf16.msra.mxu0 %v2583
    %3318 = vmatprep.subr.bf16.mxu0 %v2592
    %3319 = vmatpush1.bf16.msra.mxu0 %v2591
    %3320 = vmatprep.subr.bf16.mxu0 %v2600
    %3321 = vmatpush1.bf16.msra.mxu0 %v2599
    %3322 = vmatprep.subr.bf16.mxu0 %v2608
    %3323 = vmatpush1.bf16.msra.mxu0 %v2607
    %3324 = vmatprep.subr.bf16.mxu0 %v2616
    %3325 = vmatpush1.bf16.msra.mxu0 %v2615
    %3326 = vmatprep.subr.bf16.mxu0 %v2624
    %3327 = vmatpush1.bf16.msra.mxu0 %v2623
    %3328 = vmatprep.subr.bf16.mxu0 %v2632
    %3329 = vmatpush1.bf16.msra.mxu0 %v2631
    %3330 = vmatprep.subr.bf16.mxu0 %v2640
    %3331 = vmatpush1.bf16.msra.mxu0 %v2639
    %3332 = vmatprep.subr.bf16.mxu0 %v2648
    %3333 = vmatpush1.bf16.msra.mxu0 %v2647
    %3334 = vmatprep.subr.bf16.mxu0 %v2656
    %3335 = vmatpush1.bf16.msra.mxu0 %v2655
    %3336 = vmatprep.subr.bf16.mxu0 %v2664
    %3337 = vmatpush1.bf16.msra.mxu0 %v2663
    %3338 = vmatprep.mubr.bf16.mxu0 %v68
    %3339 = vmatmul.mubr.bf16.gmra.mrb[0].mxu0 %v67
    %v3340 = vpop.f32.mrb[0].mxu0
    %v3341 = vadd.f32 %v3300, %v3340
    %v3342 = vpop.f32.mrb[0].mxu0
    %v3343 = vadd.f32 %v3302, %v3342
    %v3344 = vpop.f32.mrb[0].mxu0
    %v3345 = vpop.f32.mrb[0].mxu0
    %3346 = vdwg.mxu0
    %3347 = vmatprep.subr.bf16.mxu0 %v2162
    %3348 = vmatpush1.bf16.msra.mxu0 %v2161
    %3349 = vmatprep.subr.bf16.mxu0 %v2170
    %3350 = vmatpush1.bf16.msra.mxu0 %v2169
    %3351 = vmatprep.subr.bf16.mxu0 %v2178
    %3352 = vmatpush1.bf16.msra.mxu0 %v2177
    %3353 = vmatprep.subr.bf16.mxu0 %v2186
    %3354 = vmatpush1.bf16.msra.mxu0 %v2185
    %3355 = vmatprep.subr.bf16.mxu0 %v2194
    %3356 = vmatpush1.bf16.msra.mxu0 %v2193
    %3357 = vmatprep.subr.bf16.mxu0 %v2202
    %3358 = vmatpush1.bf16.msra.mxu0 %v2201
    %3359 = vmatprep.subr.bf16.mxu0 %v2210
    %3360 = vmatpush1.bf16.msra.mxu0 %v2209
    %3361 = vmatprep.subr.bf16.mxu0 %v2218
    %3362 = vmatpush1.bf16.msra.mxu0 %v2217
    %3363 = vmatprep.subr.bf16.mxu0 %v2226
    %3364 = vmatpush1.bf16.msra.mxu0 %v2225
    %3365 = vmatprep.subr.bf16.mxu0 %v2234
    %3366 = vmatpush1.bf16.msra.mxu0 %v2233
    %3367 = vmatprep.subr.bf16.mxu0 %v2242
    %3368 = vmatpush1.bf16.msra.mxu0 %v2241
    %3369 = vmatprep.subr.bf16.mxu0 %v2250
    %3370 = vmatpush1.bf16.msra.mxu0 %v2249
    %3371 = vmatprep.subr.bf16.mxu0 %v2258
    %3372 = vmatpush1.bf16.msra.mxu0 %v2257
    %3373 = vmatprep.subr.bf16.mxu0 %v2266
    %3374 = vmatpush1.bf16.msra.mxu0 %v2265
    %3375 = vmatprep.subr.bf16.mxu0 %v2274
    %3376 = vmatpush1.bf16.msra.mxu0 %v2273
    %3377 = vmatprep.subr.bf16.mxu0 %v2282
    %3378 = vmatpush1.bf16.msra.mxu0 %v2281
    %3379 = vmatprep.mubr.bf16.mxu0 %v62
    %3380 = vmatmul.mubr.bf16.gmra.mrb[0].mxu0 %v61
    %v3381 = vpop.f32.mrb[0].mxu0
    %v3382 = vadd.f32 %v594, %v3381
    %v3383 = vpop.f32.mrb[0].mxu0
    %v3384 = vadd.f32 %v598, %v3383
    %v3385 = vpop.f32.mrb[0].mxu0
    %v3386 = vpop.f32.mrb[0].mxu0
    %3387 = vdwg.mxu0
    %3388 = vmatprep.subr.bf16.mxu0 %v2290
    %3389 = vmatpush1.bf16.msra.mxu0 %v2289
    %3390 = vmatprep.subr.bf16.mxu0 %v2298
    %3391 = vmatpush1.bf16.msra.mxu0 %v2297
    %3392 = vmatprep.subr.bf16.mxu0 %v2306
    %3393 = vmatpush1.bf16.msra.mxu0 %v2305
    %3394 = vmatprep.subr.bf16.mxu0 %v2314
    %3395 = vmatpush1.bf16.msra.mxu0 %v2313
    %3396 = vmatprep.subr.bf16.mxu0 %v2322
    %3397 = vmatpush1.bf16.msra.mxu0 %v2321
    %3398 = vmatprep.subr.bf16.mxu0 %v2330
    %3399 = vmatpush1.bf16.msra.mxu0 %v2329
    %3400 = vmatprep.subr.bf16.mxu0 %v2338
    %3401 = vmatpush1.bf16.msra.mxu0 %v2337
    %3402 = vmatprep.subr.bf16.mxu0 %v2346
    %3403 = vmatpush1.bf16.msra.mxu0 %v2345
    %3404 = vmatprep.subr.bf16.mxu0 %v2354
    %3405 = vmatpush1.bf16.msra.mxu0 %v2353
    %3406 = vmatprep.subr.bf16.mxu0 %v2362
    %3407 = vmatpush1.bf16.msra.mxu0 %v2361
    %3408 = vmatprep.subr.bf16.mxu0 %v2370
    %3409 = vmatpush1.bf16.msra.mxu0 %v2369
    %3410 = vmatprep.subr.bf16.mxu0 %v2378
    %3411 = vmatpush1.bf16.msra.mxu0 %v2377
    %3412 = vmatprep.subr.bf16.mxu0 %v2386
    %3413 = vmatpush1.bf16.msra.mxu0 %v2385
    %3414 = vmatprep.subr.bf16.mxu0 %v2394
    %3415 = vmatpush1.bf16.msra.mxu0 %v2393
    %3416 = vmatprep.subr.bf16.mxu0 %v2402
    %3417 = vmatpush1.bf16.msra.mxu0 %v2401
    %3418 = vmatprep.subr.bf16.mxu0 %v2410
    %3419 = vmatpush1.bf16.msra.mxu0 %v2409
    %3420 = vmatprep.mubr.bf16.mxu0 %v64
    %3421 = vmatmul.mubr.bf16.gmra.mrb[0].mxu0 %v63
    %v3422 = vpop.f32.mrb[0].mxu0
    %v3423 = vadd.f32 %v3382, %v3422
    %v3424 = vpop.f32.mrb[0].mxu0
    %v3425 = vadd.f32 %v3384, %v3424
    %v3426 = vpop.f32.mrb[0].mxu0
    %v3427 = vpop.f32.mrb[0].mxu0
    %3428 = vdwg.mxu0
    %3429 = vmatprep.subr.bf16.mxu0 %v2418
    %3430 = vmatpush1.bf16.msra.mxu0 %v2417
    %3431 = vmatprep.subr.bf16.mxu0 %v2426
    %3432 = vmatpush1.bf16.msra.mxu0 %v2425
    %3433 = vmatprep.subr.bf16.mxu0 %v2434
    %3434 = vmatpush1.bf16.msra.mxu0 %v2433
    %3435 = vmatprep.subr.bf16.mxu0 %v2442
    %3436 = vmatpush1.bf16.msra.mxu0 %v2441
    %3437 = vmatprep.subr.bf16.mxu0 %v2450
    %3438 = vmatpush1.bf16.msra.mxu0 %v2449
    %3439 = vmatprep.subr.bf16.mxu0 %v2458
    %3440 = vmatpush1.bf16.msra.mxu0 %v2457
    %3441 = vmatprep.subr.bf16.mxu0 %v2466
    %3442 = vmatpush1.bf16.msra.mxu0 %v2465
    %3443 = vmatprep.subr.bf16.mxu0 %v2474
    %3444 = vmatpush1.bf16.msra.mxu0 %v2473
    %3445 = vmatprep.subr.bf16.mxu0 %v2482
    %3446 = vmatpush1.bf16.msra.mxu0 %v2481
    %3447 = vmatprep.subr.bf16.mxu0 %v2490
    %3448 = vmatpush1.bf16.msra.mxu0 %v2489
    %3449 = vmatprep.subr.bf16.mxu0 %v2498
    %3450 = vmatpush1.bf16.msra.mxu0 %v2497
    %3451 = vmatprep.subr.bf16.mxu0 %v2506
    %3452 = vmatpush1.bf16.msra.mxu0 %v2505
    %3453 = vmatprep.subr.bf16.mxu0 %v2514
    %3454 = vmatpush1.bf16.msra.mxu0 %v2513
    %3455 = vmatprep.subr.bf16.mxu0 %v2522
    %3456 = vmatpush1.bf16.msra.mxu0 %v2521
    %3457 = vmatprep.subr.bf16.mxu0 %v2530
    %3458 = vmatpush1.bf16.msra.mxu0 %v2529
    %3459 = vmatprep.subr.bf16.mxu0 %v2538
    %3460 = vmatpush1.bf16.msra.mxu0 %v2537
    %3461 = vmatprep.mubr.bf16.mxu0 %v66
    %3462 = vmatmul.mubr.bf16.gmra.mrb[0].mxu0 %v65
    %v3463 = vpop.f32.mrb[0].mxu0
    %v3464 = vadd.f32 %v3423, %v3463
    %v3465 = vpop.f32.mrb[0].mxu0
    %v3466 = vadd.f32 %v3425, %v3465
    %v3467 = vpop.f32.mrb[0].mxu0
    %v3468 = vpop.f32.mrb[0].mxu0
    %3469 = vdwg.mxu0
    %3470 = vmatprep.subr.bf16.mxu0 %v2546
    %3471 = vmatpush1.bf16.msra.mxu0 %v2545
    %3472 = vmatprep.subr.bf16.mxu0 %v2554
    %3473 = vmatpush1.bf16.msra.mxu0 %v2553
    %3474 = vmatprep.subr.bf16.mxu0 %v2562
    %3475 = vmatpush1.bf16.msra.mxu0 %v2561
    %3476 = vmatprep.subr.bf16.mxu0 %v2570
    %3477 = vmatpush1.bf16.msra.mxu0 %v2569
    %3478 = vmatprep.subr.bf16.mxu0 %v2578
    %3479 = vmatpush1.bf16.msra.mxu0 %v2577
    %3480 = vmatprep.subr.bf16.mxu0 %v2586
    %3481 = vmatpush1.bf16.msra.mxu0 %v2585
    %3482 = vmatprep.subr.bf16.mxu0 %v2594
    %3483 = vmatpush1.bf16.msra.mxu0 %v2593
    %3484 = vmatprep.subr.bf16.mxu0 %v2602
    %3485 = vmatpush1.bf16.msra.mxu0 %v2601
    %3486 = vmatprep.subr.bf16.mxu0 %v2610
    %3487 = vmatpush1.bf16.msra.mxu0 %v2609
    %3488 = vmatprep.subr.bf16.mxu0 %v2618
    %3489 = vmatpush1.bf16.msra.mxu0 %v2617
    %3490 = vmatprep.subr.bf16.mxu0 %v2626
    %3491 = vmatpush1.bf16.msra.mxu0 %v2625
    %3492 = vmatprep.subr.bf16.mxu0 %v2634
    %3493 = vmatpush1.bf16.msra.mxu0 %v2633
    %3494 = vmatprep.subr.bf16.mxu0 %v2642
    %3495 = vmatpush1.bf16.msra.mxu0 %v2641
    %3496 = vmatprep.subr.bf16.mxu0 %v2650
    %3497 = vmatpush1.bf16.msra.mxu0 %v2649
    %3498 = vmatprep.subr.bf16.mxu0 %v2658
    %3499 = vmatpush1.bf16.msra.mxu0 %v2657
    %3500 = vmatprep.subr.bf16.mxu0 %v2666
    %3501 = vmatpush1.bf16.msra.mxu0 %v2665
    %3502 = vmatprep.mubr.bf16.mxu0 %v68
    %3503 = vmatmul.mubr.bf16.gmra.mrb[0].mxu0 %v67
    %v3504 = vpop.f32.mrb[0].mxu0
    %v3505 = vadd.f32 %v3464, %v3504
    %v3506 = vpop.f32.mrb[0].mxu0
    %v3507 = vadd.f32 %v3466, %v3506
    %v3508 = vpop.f32.mrb[0].mxu0
    %v3509 = vpop.f32.mrb[0].mxu0
    %3510 = vdwg.mxu0
    %3511 = vmatprep.subr.bf16.mxu0 %v2164
    %3512 = vmatpush1.bf16.msra.mxu0 %v2163
    %3513 = vmatprep.subr.bf16.mxu0 %v2172
    %3514 = vmatpush1.bf16.msra.mxu0 %v2171
    %3515 = vmatprep.subr.bf16.mxu0 %v2180
    %3516 = vmatpush1.bf16.msra.mxu0 %v2179
    %3517 = vmatprep.subr.bf16.mxu0 %v2188
    %3518 = vmatpush1.bf16.msra.mxu0 %v2187
    %3519 = vmatprep.subr.bf16.mxu0 %v2196
    %3520 = vmatpush1.bf16.msra.mxu0 %v2195
    %3521 = vmatprep.subr.bf16.mxu0 %v2204
    %3522 = vmatpush1.bf16.msra.mxu0 %v2203
    %3523 = vmatprep.subr.bf16.mxu0 %v2212
    %3524 = vmatpush1.bf16.msra.mxu0 %v2211
    %3525 = vmatprep.subr.bf16.mxu0 %v2220
    %3526 = vmatpush1.bf16.msra.mxu0 %v2219
    %3527 = vmatprep.subr.bf16.mxu0 %v2228
    %3528 = vmatpush1.bf16.msra.mxu0 %v2227
    %3529 = vmatprep.subr.bf16.mxu0 %v2236
    %3530 = vmatpush1.bf16.msra.mxu0 %v2235
    %3531 = vmatprep.subr.bf16.mxu0 %v2244
    %3532 = vmatpush1.bf16.msra.mxu0 %v2243
    %3533 = vmatprep.subr.bf16.mxu0 %v2252
    %3534 = vmatpush1.bf16.msra.mxu0 %v2251
    %3535 = vmatprep.subr.bf16.mxu0 %v2260
    %3536 = vmatpush1.bf16.msra.mxu0 %v2259
    %3537 = vmatprep.subr.bf16.mxu0 %v2268
    %3538 = vmatpush1.bf16.msra.mxu0 %v2267
    %3539 = vmatprep.subr.bf16.mxu0 %v2276
    %3540 = vmatpush1.bf16.msra.mxu0 %v2275
    %3541 = vmatprep.subr.bf16.mxu0 %v2284
    %3542 = vmatpush1.bf16.msra.mxu0 %v2283
    %3543 = vmatprep.mubr.bf16.mxu0 %v62
    %3544 = vmatmul.mubr.bf16.gmra.mrb[0].mxu0 %v61
    %v3545 = vpop.f32.mrb[0].mxu0
    %v3546 = vadd.f32 %v602, %v3545
    %v3547 = vpop.f32.mrb[0].mxu0
    %v3548 = vadd.f32 %v606, %v3547
    %v3549 = vpop.f32.mrb[0].mxu0
    %v3550 = vpop.f32.mrb[0].mxu0
    %3551 = vdwg.mxu0
    %3552 = vmatprep.subr.bf16.mxu0 %v2292
    %3553 = vmatpush1.bf16.msra.mxu0 %v2291
    %3554 = vmatprep.subr.bf16.mxu0 %v2300
    %3555 = vmatpush1.bf16.msra.mxu0 %v2299
    %3556 = vmatprep.subr.bf16.mxu0 %v2308
    %3557 = vmatpush1.bf16.msra.mxu0 %v2307
    %3558 = vmatprep.subr.bf16.mxu0 %v2316
    %3559 = vmatpush1.bf16.msra.mxu0 %v2315
    %3560 = vmatprep.subr.bf16.mxu0 %v2324
    %3561 = vmatpush1.bf16.msra.mxu0 %v2323
    %3562 = vmatprep.subr.bf16.mxu0 %v2332
    %3563 = vmatpush1.bf16.msra.mxu0 %v2331
    %3564 = vmatprep.subr.bf16.mxu0 %v2340
    %3565 = vmatpush1.bf16.msra.mxu0 %v2339
    %3566 = vmatprep.subr.bf16.mxu0 %v2348
    %3567 = vmatpush1.bf16.msra.mxu0 %v2347
    %3568 = vmatprep.subr.bf16.mxu0 %v2356
    %3569 = vmatpush1.bf16.msra.mxu0 %v2355
    %3570 = vmatprep.subr.bf16.mxu0 %v2364
    %3571 = vmatpush1.bf16.msra.mxu0 %v2363
    %3572 = vmatprep.subr.bf16.mxu0 %v2372
    %3573 = vmatpush1.bf16.msra.mxu0 %v2371
    %3574 = vmatprep.subr.bf16.mxu0 %v2380
    %3575 = vmatpush1.bf16.msra.mxu0 %v2379
    %3576 = vmatprep.subr.bf16.mxu0 %v2388
    %3577 = vmatpush1.bf16.msra.mxu0 %v2387
    %3578 = vmatprep.subr.bf16.mxu0 %v2396
    %3579 = vmatpush1.bf16.msra.mxu0 %v2395
    %3580 = vmatprep.subr.bf16.mxu0 %v2404
    %3581 = vmatpush1.bf16.msra.mxu0 %v2403
    %3582 = vmatprep.subr.bf16.mxu0 %v2412
    %3583 = vmatpush1.bf16.msra.mxu0 %v2411
    %3584 = vmatprep.mubr.bf16.mxu0 %v64
    %3585 = vmatmul.mubr.bf16.gmra.mrb[0].mxu0 %v63
    %v3586 = vpop.f32.mrb[0].mxu0
    %v3587 = vadd.f32 %v3546, %v3586
    %v3588 = vpop.f32.mrb[0].mxu0
    %v3589 = vadd.f32 %v3548, %v3588
    %v3590 = vpop.f32.mrb[0].mxu0
    %v3591 = vpop.f32.mrb[0].mxu0
    %3592 = vdwg.mxu0
    %3593 = vmatprep.subr.bf16.mxu0 %v2420
    %3594 = vmatpush1.bf16.msra.mxu0 %v2419
    %3595 = vmatprep.subr.bf16.mxu0 %v2428
    %3596 = vmatpush1.bf16.msra.mxu0 %v2427
    %3597 = vmatprep.subr.bf16.mxu0 %v2436
    %3598 = vmatpush1.bf16.msra.mxu0 %v2435
    %3599 = vmatprep.subr.bf16.mxu0 %v2444
    %3600 = vmatpush1.bf16.msra.mxu0 %v2443
    %3601 = vmatprep.subr.bf16.mxu0 %v2452
    %3602 = vmatpush1.bf16.msra.mxu0 %v2451
    %3603 = vmatprep.subr.bf16.mxu0 %v2460
    %3604 = vmatpush1.bf16.msra.mxu0 %v2459
    %3605 = vmatprep.subr.bf16.mxu0 %v2468
    %3606 = vmatpush1.bf16.msra.mxu0 %v2467
    %3607 = vmatprep.subr.bf16.mxu0 %v2476
    %3608 = vmatpush1.bf16.msra.mxu0 %v2475
    %3609 = vmatprep.subr.bf16.mxu0 %v2484
    %3610 = vmatpush1.bf16.msra.mxu0 %v2483
    %3611 = vmatprep.subr.bf16.mxu0 %v2492
    %3612 = vmatpush1.bf16.msra.mxu0 %v2491
    %3613 = vmatprep.subr.bf16.mxu0 %v2500
    %3614 = vmatpush1.bf16.msra.mxu0 %v2499
    %3615 = vmatprep.subr.bf16.mxu0 %v2508
    %3616 = vmatpush1.bf16.msra.mxu0 %v2507
    %3617 = vmatprep.subr.bf16.mxu0 %v2516
    %3618 = vmatpush1.bf16.msra.mxu0 %v2515
    %3619 = vmatprep.subr.bf16.mxu0 %v2524
    %3620 = vmatpush1.bf16.msra.mxu0 %v2523
    %3621 = vmatprep.subr.bf16.mxu0 %v2532
    %3622 = vmatpush1.bf16.msra.mxu0 %v2531
    %3623 = vmatprep.subr.bf16.mxu0 %v2540
    %3624 = vmatpush1.bf16.msra.mxu0 %v2539
    %3625 = vmatprep.mubr.bf16.mxu0 %v66
    %3626 = vmatmul.mubr.bf16.gmra.mrb[0].mxu0 %v65
    %v3627 = vpop.f32.mrb[0].mxu0
    %v3628 = vadd.f32 %v3587, %v3627
    %v3629 = vpop.f32.mrb[0].mxu0
    %v3630 = vadd.f32 %v3589, %v3629
    %v3631 = vpop.f32.mrb[0].mxu0
    %v3632 = vpop.f32.mrb[0].mxu0
    %3633 = vdwg.mxu0
    %3634 = vmatprep.subr.bf16.mxu0 %v2548
    %3635 = vmatpush1.bf16.msra.mxu0 %v2547
    %3636 = vmatprep.subr.bf16.mxu0 %v2556
    %3637 = vmatpush1.bf16.msra.mxu0 %v2555
    %3638 = vmatprep.subr.bf16.mxu0 %v2564
    %3639 = vmatpush1.bf16.msra.mxu0 %v2563
    %3640 = vmatprep.subr.bf16.mxu0 %v2572
    %3641 = vmatpush1.bf16.msra.mxu0 %v2571
    %3642 = vmatprep.subr.bf16.mxu0 %v2580
    %3643 = vmatpush1.bf16.msra.mxu0 %v2579
    %3644 = vmatprep.subr.bf16.mxu0 %v2588
    %3645 = vmatpush1.bf16.msra.mxu0 %v2587
    %3646 = vmatprep.subr.bf16.mxu0 %v2596
    %3647 = vmatpush1.bf16.msra.mxu0 %v2595
    %3648 = vmatprep.subr.bf16.mxu0 %v2604
    %3649 = vmatpush1.bf16.msra.mxu0 %v2603
    %3650 = vmatprep.subr.bf16.mxu0 %v2612
    %3651 = vmatpush1.bf16.msra.mxu0 %v2611
    %3652 = vmatprep.subr.bf16.mxu0 %v2620
    %3653 = vmatpush1.bf16.msra.mxu0 %v2619
    %3654 = vmatprep.subr.bf16.mxu0 %v2628
    %3655 = vmatpush1.bf16.msra.mxu0 %v2627
    %3656 = vmatprep.subr.bf16.mxu0 %v2636
    %3657 = vmatpush1.bf16.msra.mxu0 %v2635
    %3658 = vmatprep.subr.bf16.mxu0 %v2644
    %3659 = vmatpush1.bf16.msra.mxu0 %v2643
    %3660 = vmatprep.subr.bf16.mxu0 %v2652
    %3661 = vmatpush1.bf16.msra.mxu0 %v2651
    %3662 = vmatprep.subr.bf16.mxu0 %v2660
    %3663 = vmatpush1.bf16.msra.mxu0 %v2659
    %3664 = vmatprep.subr.bf16.mxu0 %v2668
    %3665 = vmatpush1.bf16.msra.mxu0 %v2667
    %3666 = vmatprep.mubr.bf16.mxu0 %v68
    %3667 = vmatmul.mubr.bf16.gmra.mrb[0].mxu0 %v67
    %v3668 = vpop.f32.mrb[0].mxu0
    %v3669 = vadd.f32 %v3628, %v3668
    %v3670 = vpop.f32.mrb[0].mxu0
    %v3671 = vadd.f32 %v3630, %v3670
    %v3672 = vpop.f32.mrb[0].mxu0
    %v3673 = vpop.f32.mrb[0].mxu0
    %3674 = vdwg.mxu0
    %3675 = vmatprep.subr.bf16.mxu0 %v2166
    %3676 = vmatpush1.bf16.msra.mxu0 %v2165
    %3677 = vmatprep.subr.bf16.mxu0 %v2174
    %3678 = vmatpush1.bf16.msra.mxu0 %v2173
    %3679 = vmatprep.subr.bf16.mxu0 %v2182
    %3680 = vmatpush1.bf16.msra.mxu0 %v2181
    %3681 = vmatprep.subr.bf16.mxu0 %v2190
    %3682 = vmatpush1.bf16.msra.mxu0 %v2189
    %3683 = vmatprep.subr.bf16.mxu0 %v2198
    %3684 = vmatpush1.bf16.msra.mxu0 %v2197
    %3685 = vmatprep.subr.bf16.mxu0 %v2206
    %3686 = vmatpush1.bf16.msra.mxu0 %v2205
    %3687 = vmatprep.subr.bf16.mxu0 %v2214
    %3688 = vmatpush1.bf16.msra.mxu0 %v2213
    %3689 = vmatprep.subr.bf16.mxu0 %v2222
    %3690 = vmatpush1.bf16.msra.mxu0 %v2221
    %3691 = vmatprep.subr.bf16.mxu0 %v2230
    %3692 = vmatpush1.bf16.msra.mxu0 %v2229
    %3693 = vmatprep.subr.bf16.mxu0 %v2238
    %3694 = vmatpush1.bf16.msra.mxu0 %v2237
    %3695 = vmatprep.subr.bf16.mxu0 %v2246
    %3696 = vmatpush1.bf16.msra.mxu0 %v2245
    %3697 = vmatprep.subr.bf16.mxu0 %v2254
    %3698 = vmatpush1.bf16.msra.mxu0 %v2253
    %3699 = vmatprep.subr.bf16.mxu0 %v2262
    %3700 = vmatpush1.bf16.msra.mxu0 %v2261
    %3701 = vmatprep.subr.bf16.mxu0 %v2270
    %3702 = vmatpush1.bf16.msra.mxu0 %v2269
    %3703 = vmatprep.subr.bf16.mxu0 %v2278
    %3704 = vmatpush1.bf16.msra.mxu0 %v2277
    %3705 = vmatprep.subr.bf16.mxu0 %v2286
    %3706 = vmatpush1.bf16.msra.mxu0 %v2285
    %3707 = vmatprep.mubr.bf16.mxu0 %v62
    %3708 = vmatmul.mubr.bf16.gmra.mrb[0].mxu0 %v61
    %v3709 = vpop.f32.mrb[0].mxu0
    %v3710 = vadd.f32 %v610, %v3709
    %v3711 = vpop.f32.mrb[0].mxu0
    %v3712 = vadd.f32 %v614, %v3711
    %v3713 = vpop.f32.mrb[0].mxu0
    %v3714 = vpop.f32.mrb[0].mxu0
    %3715 = vdwg.mxu0
    %3716 = vmatprep.subr.bf16.mxu0 %v2294
    %3717 = vmatpush1.bf16.msra.mxu0 %v2293
    %3718 = vmatprep.subr.bf16.mxu0 %v2302
    %3719 = vmatpush1.bf16.msra.mxu0 %v2301
    %3720 = vmatprep.subr.bf16.mxu0 %v2310
    %3721 = vmatpush1.bf16.msra.mxu0 %v2309
    %3722 = vmatprep.subr.bf16.mxu0 %v2318
    %3723 = vmatpush1.bf16.msra.mxu0 %v2317
    %3724 = vmatprep.subr.bf16.mxu0 %v2326
    %3725 = vmatpush1.bf16.msra.mxu0 %v2325
    %3726 = vmatprep.subr.bf16.mxu0 %v2334
    %3727 = vmatpush1.bf16.msra.mxu0 %v2333
    %3728 = vmatprep.subr.bf16.mxu0 %v2342
    %3729 = vmatpush1.bf16.msra.mxu0 %v2341
    %3730 = vmatprep.subr.bf16.mxu0 %v2350
    %3731 = vmatpush1.bf16.msra.mxu0 %v2349
    %3732 = vmatprep.subr.bf16.mxu0 %v2358
    %3733 = vmatpush1.bf16.msra.mxu0 %v2357
    %3734 = vmatprep.subr.bf16.mxu0 %v2366
    %3735 = vmatpush1.bf16.msra.mxu0 %v2365
    %3736 = vmatprep.subr.bf16.mxu0 %v2374
    %3737 = vmatpush1.bf16.msra.mxu0 %v2373
    %3738 = vmatprep.subr.bf16.mxu0 %v2382
    %3739 = vmatpush1.bf16.msra.mxu0 %v2381
    %3740 = vmatprep.subr.bf16.mxu0 %v2390
    %3741 = vmatpush1.bf16.msra.mxu0 %v2389
    %3742 = vmatprep.subr.bf16.mxu0 %v2398
    %3743 = vmatpush1.bf16.msra.mxu0 %v2397
    %3744 = vmatprep.subr.bf16.mxu0 %v2406
    %3745 = vmatpush1.bf16.msra.mxu0 %v2405
    %3746 = vmatprep.subr.bf16.mxu0 %v2414
    %3747 = vmatpush1.bf16.msra.mxu0 %v2413
    %3748 = vmatprep.mubr.bf16.mxu0 %v64
    %3749 = vmatmul.mubr.bf16.gmra.mrb[0].mxu0 %v63
    %v3750 = vpop.f32.mrb[0].mxu0
    %v3751 = vadd.f32 %v3710, %v3750
    %v3752 = vpop.f32.mrb[0].mxu0
    %v3753 = vadd.f32 %v3712, %v3752
    %v3754 = vpop.f32.mrb[0].mxu0
    %v3755 = vpop.f32.mrb[0].mxu0
    %3756 = vdwg.mxu0
    %3757 = vmatprep.subr.bf16.mxu0 %v2422
    %3758 = vmatpush1.bf16.msra.mxu0 %v2421
    %3759 = vmatprep.subr.bf16.mxu0 %v2430
    %3760 = vmatpush1.bf16.msra.mxu0 %v2429
    %3761 = vmatprep.subr.bf16.mxu0 %v2438
    %3762 = vmatpush1.bf16.msra.mxu0 %v2437
    %3763 = vmatprep.subr.bf16.mxu0 %v2446
    %3764 = vmatpush1.bf16.msra.mxu0 %v2445
    %3765 = vmatprep.subr.bf16.mxu0 %v2454
    %3766 = vmatpush1.bf16.msra.mxu0 %v2453
    %3767 = vmatprep.subr.bf16.mxu0 %v2462
    %3768 = vmatpush1.bf16.msra.mxu0 %v2461
    %3769 = vmatprep.subr.bf16.mxu0 %v2470
    %3770 = vmatpush1.bf16.msra.mxu0 %v2469
    %3771 = vmatprep.subr.bf16.mxu0 %v2478
    %3772 = vmatpush1.bf16.msra.mxu0 %v2477
    %3773 = vmatprep.subr.bf16.mxu0 %v2486
    %3774 = vmatpush1.bf16.msra.mxu0 %v2485
    %3775 = vmatprep.subr.bf16.mxu0 %v2494
    %3776 = vmatpush1.bf16.msra.mxu0 %v2493
    %3777 = vmatprep.subr.bf16.mxu0 %v2502
    %3778 = vmatpush1.bf16.msra.mxu0 %v2501
    %3779 = vmatprep.subr.bf16.mxu0 %v2510
    %3780 = vmatpush1.bf16.msra.mxu0 %v2509
    %3781 = vmatprep.subr.bf16.mxu0 %v2518
    %3782 = vmatpush1.bf16.msra.mxu0 %v2517
    %3783 = vmatprep.subr.bf16.mxu0 %v2526
    %3784 = vmatpush1.bf16.msra.mxu0 %v2525
    %3785 = vmatprep.subr.bf16.mxu0 %v2534
    %3786 = vmatpush1.bf16.msra.mxu0 %v2533
    %3787 = vmatprep.subr.bf16.mxu0 %v2542
    %3788 = vmatpush1.bf16.msra.mxu0 %v2541
    %3789 = vmatprep.mubr.bf16.mxu0 %v66
    %3790 = vmatmul.mubr.bf16.gmra.mrb[0].mxu0 %v65
    %v3791 = vpop.f32.mrb[0].mxu0
    %v3792 = vadd.f32 %v3751, %v3791
    %v3793 = vpop.f32.mrb[0].mxu0
    %v3794 = vadd.f32 %v3753, %v3793
    %v3795 = vpop.f32.mrb[0].mxu0
    %v3796 = vpop.f32.mrb[0].mxu0
    %3797 = vdwg.mxu0
    %3798 = vmatprep.subr.bf16.mxu0 %v2550
    %3799 = vmatpush1.bf16.msra.mxu0 %v2549
    %3800 = vmatprep.subr.bf16.mxu0 %v2558
    %3801 = vmatpush1.bf16.msra.mxu0 %v2557
    %3802 = vmatprep.subr.bf16.mxu0 %v2566
    %3803 = vmatpush1.bf16.msra.mxu0 %v2565
    %3804 = vmatprep.subr.bf16.mxu0 %v2574
    %3805 = vmatpush1.bf16.msra.mxu0 %v2573
    %3806 = vmatprep.subr.bf16.mxu0 %v2582
    %3807 = vmatpush1.bf16.msra.mxu0 %v2581
    %3808 = vmatprep.subr.bf16.mxu0 %v2590
    %3809 = vmatpush1.bf16.msra.mxu0 %v2589
    %3810 = vmatprep.subr.bf16.mxu0 %v2598
    %3811 = vmatpush1.bf16.msra.mxu0 %v2597
    %3812 = vmatprep.subr.bf16.mxu0 %v2606
    %3813 = vmatpush1.bf16.msra.mxu0 %v2605
    %3814 = vmatprep.subr.bf16.mxu0 %v2614
    %3815 = vmatpush1.bf16.msra.mxu0 %v2613
    %3816 = vmatprep.subr.bf16.mxu0 %v2622
    %3817 = vmatpush1.bf16.msra.mxu0 %v2621
    %3818 = vmatprep.subr.bf16.mxu0 %v2630
    %3819 = vmatpush1.bf16.msra.mxu0 %v2629
    %3820 = vmatprep.subr.bf16.mxu0 %v2638
    %3821 = vmatpush1.bf16.msra.mxu0 %v2637
    %3822 = vmatprep.subr.bf16.mxu0 %v2646
    %3823 = vmatpush1.bf16.msra.mxu0 %v2645
    %3824 = vmatprep.subr.bf16.mxu0 %v2654
    %3825 = vmatpush1.bf16.msra.mxu0 %v2653
    %3826 = vmatprep.subr.bf16.mxu0 %v2662
    %3827 = vmatpush1.bf16.msra.mxu0 %v2661
    %3828 = vmatprep.subr.bf16.mxu0 %v2670
    %3829 = vmatpush1.bf16.msra.mxu0 %v2669
    %3830 = vmatprep.mubr.bf16.mxu0 %v68
    %3831 = vmatmul.mubr.bf16.gmra.mrb[0].mxu0 %v67
    %v3832 = vpop.f32.mrb[0].mxu0
    %v3833 = vadd.f32 %v3792, %v3832
    %v3834 = vpop.f32.mrb[0].mxu0
    %v3835 = vadd.f32 %v3794, %v3834
    %v3836 = vpop.f32.mrb[0].mxu0
    %v3837 = vpop.f32.mrb[0].mxu0
    %3838 = vdwg.mxu0
    %v3839 = vmax.f32 %v3341, 0.0
    %v3840 = vmax.f32 %v3343, 0.0
    %v3841 = vmax.f32 %v3505, 0.0
    %v3842 = vmax.f32 %v3507, 0.0
    %v3843 = vmax.f32 %v3669, 0.0
    %v3844 = vmax.f32 %v3671, 0.0
    %v3845 = vmax.f32 %v3833, 0.0
    %v3846 = vmax.f32 %v3835, 0.0
    %vm3847 = vcmask 1041408
    %v3848 = vsel %vm3847, %v3839, 0.0
    %v3849 = vrot.slane %v3848, 4
    %v3850 = vadd.f32 %v3848, %v3849
    %v3851 = vrot.slane %v3850, 2
    %v3852 = vadd.f32 %v3850, %v3851
    %v3853 = vrot.slane %v3852, 1
    %v3854 = vadd.f32 %v3852, %v3853
    %v3855 = vsel %vm3847, %v3840, 0.0
    %v3856 = vrot.slane %v3855, 4
    %v3857 = vadd.f32 %v3855, %v3856
    %v3858 = vrot.slane %v3857, 2
    %v3859 = vadd.f32 %v3857, %v3858
    %v3860 = vrot.slane %v3859, 1
    %v3861 = vadd.f32 %v3859, %v3860
    %v3862 = vsel %vm3847, %v3841, 0.0
    %v3863 = vrot.slane %v3862, 4
    %v3864 = vadd.f32 %v3862, %v3863
    %v3865 = vrot.slane %v3864, 2
    %v3866 = vadd.f32 %v3864, %v3865
    %v3867 = vrot.slane %v3866, 1
    %v3868 = vadd.f32 %v3866, %v3867
    %v3869 = vsel %vm3847, %v3842, 0.0
    %v3870 = vrot.slane %v3869, 4
    %v3871 = vadd.f32 %v3869, %v3870
    %v3872 = vrot.slane %v3871, 2
    %v3873 = vadd.f32 %v3871, %v3872
    %v3874 = vrot.slane %v3873, 1
    %v3875 = vadd.f32 %v3873, %v3874
    %v3876 = vsel %vm3847, %v3843, 0.0
    %v3877 = vrot.slane %v3876, 4
    %v3878 = vadd.f32 %v3876, %v3877
    %v3879 = vrot.slane %v3878, 2
    %v3880 = vadd.f32 %v3878, %v3879
    %v3881 = vrot.slane %v3880, 1
    %v3882 = vadd.f32 %v3880, %v3881
    %v3883 = vsel %vm3847, %v3844, 0.0
    %v3884 = vrot.slane %v3883, 4
    %v3885 = vadd.f32 %v3883, %v3884
    %v3886 = vrot.slane %v3885, 2
    %v3887 = vadd.f32 %v3885, %v3886
    %v3888 = vrot.slane %v3887, 1
    %v3889 = vadd.f32 %v3887, %v3888
    %v3890 = vsel %vm3847, %v3845, 0.0
    %v3891 = vrot.slane %v3890, 4
    %v3892 = vadd.f32 %v3890, %v3891
    %v3893 = vrot.slane %v3892, 2
    %v3894 = vadd.f32 %v3892, %v3893
    %v3895 = vrot.slane %v3894, 1
    %v3896 = vadd.f32 %v3894, %v3895
    %v3897 = vsel %vm3847, %v3846, 0.0
    %v3898 = vrot.slane %v3897, 4
    %v3899 = vadd.f32 %v3897, %v3898
    %v3900 = vrot.slane %v3899, 2
    %v3901 = vadd.f32 %v3899, %v3900
    %v3902 = vrot.slane %v3901, 1
    %v3903 = vadd.f32 %v3901, %v3902
    %v3904 = vrcp.pop 2.0
    %v3905 = vmul.f32 %v3854, %v3904
    %v3906 = vmul.f32 %v3861, %v3904
    %v3907 = vmul.f32 %v3868, %v3904
    %v3908 = vmul.f32 %v3875, %v3904
    %v3909 = vmul.f32 %v3882, %v3904
    %v3910 = vmul.f32 %v3889, %v3904
    %v3911 = vmul.f32 %v3896, %v3904
    %v3912 = vmul.f32 %v3903, %v3904
    %v3913 = vsub.f32 %v3839, %v3905
    %v3914 = vsub.f32 %v3840, %v3906
    %v3915 = vsub.f32 %v3841, %v3907
    %v3916 = vsub.f32 %v3842, %v3908
    %v3917 = vsub.f32 %v3843, %v3909
    %v3918 = vsub.f32 %v3844, %v3910
    %v3919 = vsub.f32 %v3845, %v3911
    %v3920 = vsub.f32 %v3846, %v3912
    %v3921 = vmul.f32 %v3913, %v3913
    %v3922 = vmul.f32 %v3914, %v3914
    %v3923 = vmul.f32 %v3915, %v3915
    %v3924 = vmul.f32 %v3916, %v3916
    %v3925 = vmul.f32 %v3917, %v3917
    %v3926 = vmul.f32 %v3918, %v3918
    %v3927 = vmul.f32 %v3919, %v3919
    %v3928 = vmul.f32 %v3920, %v3920
    %v3929 = vsel %vm3847, %v3921, 0.0
    %v3930 = vrot.slane %v3929, 4
    %v3931 = vadd.f32 %v3929, %v3930
    %v3932 = vrot.slane %v3931, 2
    %v3933 = vadd.f32 %v3931, %v3932
    %v3934 = vrot.slane %v3933, 1
    %v3935 = vadd.f32 %v3933, %v3934
    %v3936 = vsel %vm3847, %v3922, 0.0
    %v3937 = vrot.slane %v3936, 4
    %v3938 = vadd.f32 %v3936, %v3937
    %v3939 = vrot.slane %v3938, 2
    %v3940 = vadd.f32 %v3938, %v3939
    %v3941 = vrot.slane %v3940, 1
    %v3942 = vadd.f32 %v3940, %v3941
    %v3943 = vsel %vm3847, %v3923, 0.0
    %v3944 = vrot.slane %v3943, 4
    %v3945 = vadd.f32 %v3943, %v3944
    %v3946 = vrot.slane %v3945, 2
    %v3947 = vadd.f32 %v3945, %v3946
    %v3948 = vrot.slane %v3947, 1
    %v3949 = vadd.f32 %v3947, %v3948
    %v3950 = vsel %vm3847, %v3924, 0.0
    %v3951 = vrot.slane %v3950, 4
    %v3952 = vadd.f32 %v3950, %v3951
    %v3953 = vrot.slane %v3952, 2
    %v3954 = vadd.f32 %v3952, %v3953
    %v3955 = vrot.slane %v3954, 1
    %v3956 = vadd.f32 %v3954, %v3955
    %v3957 = vsel %vm3847, %v3925, 0.0
    %v3958 = vrot.slane %v3957, 4
    %v3959 = vadd.f32 %v3957, %v3958
    %v3960 = vrot.slane %v3959, 2
    %v3961 = vadd.f32 %v3959, %v3960
    %v3962 = vrot.slane %v3961, 1
    %v3963 = vadd.f32 %v3961, %v3962
    %v3964 = vsel %vm3847, %v3926, 0.0
    %v3965 = vrot.slane %v3964, 4
    %v3966 = vadd.f32 %v3964, %v3965
    %v3967 = vrot.slane %v3966, 2
    %v3968 = vadd.f32 %v3966, %v3967
    %v3969 = vrot.slane %v3968, 1
    %v3970 = vadd.f32 %v3968, %v3969
    %v3971 = vsel %vm3847, %v3927, 0.0
    %v3972 = vrot.slane %v3971, 4
    %v3973 = vadd.f32 %v3971, %v3972
    %v3974 = vrot.slane %v3973, 2
    %v3975 = vadd.f32 %v3973, %v3974
    %v3976 = vrot.slane %v3975, 1
    %v3977 = vadd.f32 %v3975, %v3976
    %v3978 = vsel %vm3847, %v3928, 0.0
    %v3979 = vrot.slane %v3978, 4
    %v3980 = vadd.f32 %v3978, %v3979
    %v3981 = vrot.slane %v3980, 2
    %v3982 = vadd.f32 %v3980, %v3981
    %v3983 = vrot.slane %v3982, 1
    %v3984 = vadd.f32 %v3982, %v3983
    %v3985 = vmul.f32 %v3935, %v3904
    %v3986 = vmul.f32 %v3942, %v3904
    %v3987 = vmul.f32 %v3949, %v3904
    %v3988 = vmul.f32 %v3956, %v3904
    %v3989 = vmul.f32 %v3963, %v3904
    %v3990 = vmul.f32 %v3970, %v3904
    %v3991 = vmul.f32 %v3977, %v3904
    %v3992 = vmul.f32 %v3984, %v3904
    %v3993 = vadd.f32 %v3985, 1e-05
    %v3994 = vadd.f32 %v3986, 1e-05
    %v3995 = vadd.f32 %v3987, 1e-05
    %v3996 = vadd.f32 %v3988, 1e-05
    %v3997 = vadd.f32 %v3989, 1e-05
    %v3998 = vadd.f32 %v3990, 1e-05
    %v3999 = vadd.f32 %v3991, 1e-05
    %v4000 = vadd.f32 %v3992, 1e-05
    %v4001 = vrsqrt.pop %v3993
    %v4002 = vrsqrt.pop %v3994
    %v4003 = vrsqrt.pop %v3995
    %v4004 = vrsqrt.pop %v3996
    %v4005 = vrsqrt.pop %v3997
    %v4006 = vrsqrt.pop %v3998
    %v4007 = vrsqrt.pop %v3999
    %v4008 = vrsqrt.pop %v4000
    %v4009 = vmul.f32 %v3913, %v4001
    %v4010 = vmul.f32 %v3914, %v4002
    %v4011 = vmul.f32 %v3915, %v4003
    %v4012 = vmul.f32 %v3916, %v4004
    %v4013 = vmul.f32 %v3917, %v4005
    %v4014 = vmul.f32 %v3918, %v4006
    %v4015 = vmul.f32 %v3919, %v4007
    %v4016 = vmul.f32 %v3920, %v4008
    %s4017 = scalar_lea.vmem %s2, 1
    %v4018 = vld [vmem:[%s4017] ss:$4 sm:$0xff]
    %v4020 = vlaneseq
    %v4021 = vshrl.u32 %v4020, 7
    %v4022 = vsub.s32 0, %v4021
    %v4023 = vrot.slane %v4018, %v4022
    %v4024 = vlaneseq
    %v4025 = vshrl.u32 %v4024, 7
    %v4026 = vsub.s32 1, %v4025
    %v4027 = vrot.slane %v4018, %v4026
    %v4028 = vlaneseq
    %v4029 = vshrl.u32 %v4028, 7
    %v4030 = vsub.s32 2, %v4029
    %v4031 = vrot.slane %v4018, %v4030
    %v4032 = vlaneseq
    %v4033 = vshrl.u32 %v4032, 7
    %v4034 = vsub.s32 3, %v4033
    %v4035 = vrot.slane %v4018, %v4034
    %v4036 = vlaneseq
    %v4037 = vshrl.u32 %v4036, 7
    %v4038 = vsub.s32 4, %v4037
    %v4039 = vrot.slane %v4018, %v4038
    %v4040 = vlaneseq
    %v4041 = vshrl.u32 %v4040, 7
    %v4042 = vsub.s32 5, %v4041
    %v4043 = vrot.slane %v4018, %v4042
    %v4044 = vlaneseq
    %v4045 = vshrl.u32 %v4044, 7
    %v4046 = vsub.s32 6, %v4045
    %v4047 = vrot.slane %v4018, %v4046
    %v4048 = vlaneseq
    %v4049 = vshrl.u32 %v4048, 7
    %v4050 = vsub.s32 7, %v4049
    %v4051 = vrot.slane %v4018, %v4050
    %v4060 = vmul.f32 %v4009, %v4023
    %v4061 = vmul.f32 %v4010, %v4027
    %v4062 = vmul.f32 %v4011, %v4031
    %v4063 = vmul.f32 %v4012, %v4035
    %v4064 = vmul.f32 %v4013, %v4039
    %v4065 = vmul.f32 %v4014, %v4043
    %v4066 = vmul.f32 %v4015, %v4047
    %v4067 = vmul.f32 %v4016, %v4051
    %s4068 = scalar_lea.vmem %s2, 2
    %v4069 = vld [vmem:[%s4068] ss:$4 sm:$0xff]
    %v4071 = vlaneseq
    %v4072 = vshrl.u32 %v4071, 7
    %v4073 = vsub.s32 0, %v4072
    %v4074 = vrot.slane %v4069, %v4073
    %v4075 = vlaneseq
    %v4076 = vshrl.u32 %v4075, 7
    %v4077 = vsub.s32 1, %v4076
    %v4078 = vrot.slane %v4069, %v4077
    %v4079 = vlaneseq
    %v4080 = vshrl.u32 %v4079, 7
    %v4081 = vsub.s32 2, %v4080
    %v4082 = vrot.slane %v4069, %v4081
    %v4083 = vlaneseq
    %v4084 = vshrl.u32 %v4083, 7
    %v4085 = vsub.s32 3, %v4084
    %v4086 = vrot.slane %v4069, %v4085
    %v4087 = vlaneseq
    %v4088 = vshrl.u32 %v4087, 7
    %v4089 = vsub.s32 4, %v4088
    %v4090 = vrot.slane %v4069, %v4089
    %v4091 = vlaneseq
    %v4092 = vshrl.u32 %v4091, 7
    %v4093 = vsub.s32 5, %v4092
    %v4094 = vrot.slane %v4069, %v4093
    %v4095 = vlaneseq
    %v4096 = vshrl.u32 %v4095, 7
    %v4097 = vsub.s32 6, %v4096
    %v4098 = vrot.slane %v4069, %v4097
    %v4099 = vlaneseq
    %v4100 = vshrl.u32 %v4099, 7
    %v4101 = vsub.s32 7, %v4100
    %v4102 = vrot.slane %v4069, %v4101
    %v4111 = vadd.f32 %v4060, %v4074
    %v4112 = vadd.f32 %v4061, %v4078
    %v4113 = vadd.f32 %v4062, %v4082
    %v4114 = vadd.f32 %v4063, %v4086
    %v4115 = vadd.f32 %v4064, %v4090
    %v4116 = vadd.f32 %v4065, %v4094
    %v4117 = vadd.f32 %v4066, %v4098
    %v4118 = vadd.f32 %v4067, %v4102
    %v4127 = vcombine.low %v4111, %v4112
    %v4128 = vcombine.low %v4113, %v4114
    %v4130 = vunpack.c.l.s4 1983009808
    %v4131 = vunpack.c.0.s8 %v4130
    %v4132 = vlaneseq
    %v4133 = vshrl.u32 %v4132, 7
    %v4134 = vsub.s32 %v4131, %v4133
    %v4135 = vrot.slane %v4127, %v4134
    %v4137 = vunpack.c.l.s4 1983009808
    %v4138 = vunpack.c.0.s8 %v4137
    %v4139 = vlaneseq
    %v4140 = vshrl.u32 %v4139, 7
    %v4141 = vsub.s32 %v4138, %v4140
    %v4142 = vrot.slane %v4128, %v4141
    %v4143 = vcombine.low %v4135, %v4142
    %v4144 = vcombine.low %v4115, %v4116
    %v4145 = vcombine.low %v4117, %v4118
    %v4147 = vunpack.c.l.s4 1983009808
    %v4148 = vunpack.c.0.s8 %v4147
    %v4149 = vlaneseq
    %v4150 = vshrl.u32 %v4149, 7
    %v4151 = vsub.s32 %v4148, %v4150
    %v4152 = vrot.slane %v4144, %v4151
    %v4154 = vunpack.c.l.s4 1983009808
    %v4155 = vunpack.c.0.s8 %v4154
    %v4156 = vlaneseq
    %v4157 = vshrl.u32 %v4156, 7
    %v4158 = vsub.s32 %v4155, %v4157
    %v4159 = vrot.slane %v4145, %v4158
    %v4160 = vcombine.low %v4152, %v4159
    %4163 = vst [vmem:[#allocation2] sm:$0xff] %v4143
    %4164 = vst [vmem:[#allocation2 + $0x8] sm:$0xff] %v4160
    // Predicated region
    $region14: #{faster_rcnn_embedder.9} parent=1 // pred_check
      _
    $region15: #{faster_rcnn_embedder.9} parent=1 // pred_check_branch
      %4166 = sbr.rel (0) target = $region17
    $region16: #{faster_rcnn_embedder.9} parent=1 // pred_region
      %s4168 = ssub.s32 256, 256
      %4169 = vsyncadd [#allocation3], %s4168
      %s4171 = sshll.u32 [#allocation2], 4
      %s4172 = int_to_ptr.vmem [resolvable:$true] %s4171
      %4174 = dma.vmem_to_hbm [thread:$0]  %s4172, 256, %s3, [#allocation3]
    $region17: #{faster_rcnn_embedder.9} parent=1 // pred_fallthru
      _
    // Predicated region
    $region18: #{faster_rcnn_embedder.9} parent=1 // pred_check
      _
    $region19: #{faster_rcnn_embedder.9} parent=1 // pred_check_branch
      %4176 = sbr.rel (0) target = $region21
    $region20: #{faster_rcnn_embedder.9} parent=1 // pred_region
      %4177 = dma.done [#allocation3], 256
    $region21: #{faster_rcnn_embedder.9} parent=1 // pred_fallthru
      _
    %4178 = vsyncpa [#allocation3], 1

</llo_original>
